<compile_context>
chip_gen: v7x
topology: tpu7x:2x2x1
jax: 0.10.0
libtpu: 0.0.40
codegen_flags: <defaults>
</compile_context>

<pallas_src>
import functools

import jax
import jax.numpy as jnp
from jax import lax
from jax.experimental import pallas as pl
from jax.experimental.pallas import tpu as pltpu

EXPANSION = 4
BN_EPS = 1e-5


# ----------------------------- fused Pallas kernel -----------------------------

def _fused_att_conv_pool_kernel(y_ref, w1_ref, b1_ref, w2_ref, b2_ref,
                                wc_ref, bc_ref, sel_ref, o_ref,
                                *, wp, p_win, mo):
    """Fused attention gate -> 3x3 conv (+bias, ReLU) -> 2x2/2 max pool, one image.

    y_ref:   (1, P_in, C)    zero-padded image, spatially flattened (row = r*wp + c)
    w1/b1, w2/b2:            1x1 conv weights/biases with BN folded, (C, C) / (1, C)
    wc_ref:  (9, C, Co)      3x3 conv taps (BN folded), tap t = dy*3 + dx
    bc_ref:  (1, Co)         3x3 conv bias (BN folded)
    sel_ref: (4*mo, p_win)   one-hot gather: row k*mo + i*Wo + j selects padded flat
                             position (2i+p)*wp + (2j+q), with corner k = 2p + q
    o_ref:   (1, mo, Co)     pooled output, row = i*Wo + j
    """
    y = y_ref[0]                                                      # (P_in, C)

    # --- attention mask: sigmoid(BN(conv1x1(relu(BN(conv1x1(y)))))), BN pre-folded ---
    h = jnp.dot(y, w1_ref[...], preferred_element_type=jnp.float32) + b1_ref[...]
    h = jnp.maximum(h, 0.0)
    g = jnp.dot(h, w2_ref[...], preferred_element_type=jnp.float32) + b2_ref[...]
    mask = pl.reciprocal(1.0 + jnp.exp(-g), approx=True)              # sigmoid via EUP
    ya = mask * y                                  # zero-padded pixels stay exactly 0

    # --- 3x3 conv, evaluated only at the 4 pool-corner positions of every window ---
    co = wc_ref.shape[-1]
    nsel = 4 * mo
    acc = jnp.zeros((nsel, co), jnp.float32)
    for t in range(9):
        dy, dx = divmod(t, 3)
        off = dy * wp + dx
        # gather this tap's activation rows for all corner positions (one-hot matmul)
        gathered = jnp.dot(sel_ref[...], ya[off:off + p_win, :],
                           preferred_element_type=jnp.float32)        # (4*mo, C)
        acc = acc + jnp.dot(gathered, wc_ref[t],
                            preferred_element_type=jnp.float32)       # (4*mo, Co)
    conv = jnp.maximum(acc + bc_ref[...], 0.0)                        # bias+ReLU

    # --- 2x2 stride-2 max pool = elementwise max over the 4 corner blocks ---
    o_ref[0] = jnp.maximum(
        jnp.maximum(conv[0 * mo:1 * mo], conv[1 * mo:2 * mo]),
        jnp.maximum(conv[2 * mo:3 * mo], conv[3 * mo:4 * mo]))


def fused_att_conv_pool_pallas(y_flat, w1, b1, w2, b2, wc, bc, sel, *, wp, p_win, mo):
    n, p_in, c = y_flat.shape
    co = wc.shape[-1]
    kernel = functools.partial(_fused_att_conv_pool_kernel,
                               wp=wp, p_win=p_win, mo=mo)
    return pl.pallas_call(
        kernel,
        out_shape=jax.ShapeDtypeStruct((n, mo, co), jnp.float32),
        grid=(n,),
        in_specs=[
            pl.BlockSpec((1, p_in, c), lambda i: (i, 0, 0)),
            pl.BlockSpec(w1.shape, lambda i: (0, 0)),
            pl.BlockSpec(b1.shape, lambda i: (0, 0)),
            pl.BlockSpec(w2.shape, lambda i: (0, 0)),
            pl.BlockSpec(b2.shape, lambda i: (0, 0)),
            pl.BlockSpec(wc.shape, lambda i: (0, 0, 0)),
            pl.BlockSpec(bc.shape, lambda i: (0, 0)),
            pl.BlockSpec(sel.shape, lambda i: (0, 0)),
        ],
        out_specs=pl.BlockSpec((1, mo, co), lambda i: (i, 0, 0)),
        compiler_params=pltpu.CompilerParams(dimension_semantics=("parallel",)),
    )(y_flat, w1, b1, w2, b2, wc, bc, sel)


# ----------------------------- parameter setup / folding -----------------------------

def _bn_fold(gamma, beta, mean, var):
    scale = gamma / jnp.sqrt(var + BN_EPS)
    return scale, beta - mean * scale


def _fold_1x1(w, b, bn):
    """PyTorch (Cout, Cin, 1, 1) conv + eval BN -> (Cin, Cout) weight and (1, Cout) bias."""
    scale, shift = _bn_fold(**bn)
    w_mat = jnp.transpose(w[:, :, 0, 0]) * scale[None, :]
    b_vec = b * scale + shift
    return w_mat, b_vec[None, :]


def _fold_3x3(w, b, bn):
    """PyTorch (Cout, Cin, 3, 3) conv + eval BN -> (9, Cin, Cout) taps and (1, Cout) bias."""
    scale, shift = _bn_fold(**bn)
    w_f = w * scale[:, None, None, None]
    b_f = b * scale + shift
    taps = jnp.transpose(w_f, (2, 3, 1, 0)).reshape(9, w.shape[1], w.shape[0])
    return taps, b_f[None, :]


def init_params(key, in1_ch, in2_ch, out_ch):
    c1 = in1_ch * EXPANSION
    c2 = in2_ch * EXPANSION
    C = c1 + c2
    Co = out_ch * EXPANSION
    keys = jax.random.split(key, 18)

    def conv_w(k, o, i, kh, kw):
        bound = 1.0 / jnp.sqrt(i * kh * kw)
        return jax.random.uniform(k, (o, i, kh, kw), jnp.float32, -bound, bound)

    def conv_b(k, o, fan_in):
        bound = 1.0 / jnp.sqrt(fan_in)
        return jax.random.uniform(k, (o,), jnp.float32, -bound, bound)

    def bn_params(ks, n):
        return dict(
            gamma=1.0 + 0.1 * jax.random.normal(ks[0], (n,), jnp.float32),
            beta=0.1 * jax.random.normal(ks[1], (n,), jnp.float32),
            mean=0.1 * jax.random.normal(ks[2], (n,), jnp.float32),
            var=1.0 + 0.1 * jax.random.uniform(ks[3], (n,), jnp.float32),
        )

    return dict(
        att_w1=conv_w(keys[0], C, C, 1, 1), att_b1=conv_b(keys[1], C, C),
        att_bn1=bn_params(keys[2:6], C),
        att_w2=conv_w(keys[6], C, C, 1, 1), att_b2=conv_b(keys[7], C, C),
        att_bn2=bn_params(keys[8:12], C),
        conv_w=conv_w(keys[12], Co, C, 3, 3), conv_b=conv_b(keys[13], Co, C * 9),
        conv_bn=bn_params(keys[14:18], Co),
    )


# ----------------------------- forward (glue + kernel) -----------------------------

def _pad_and_concat_nhwc(x1, x2):
    # x1, x2: NCHW -> NHWC, pad x1 spatially to x2 (F.pad semantics, diffs >= 0).
    x1 = jnp.transpose(x1, (0, 2, 3, 1))
    x2 = jnp.transpose(x2, (0, 2, 3, 1))
    diffY = x2.shape[1] - x1.shape[1]
    diffX = x2.shape[2] - x1.shape[2]
    x1 = jnp.pad(x1, ((0, 0),
                      (diffY // 2, diffY - diffY // 2),
                      (diffX // 2, diffX - diffX // 2),
                      (0, 0)))
    return jnp.concatenate([x1, x2], axis=-1)


def _pool_select_matrix(ho, wo, wp, p_win):
    """One-hot (4*ho*wo, p_win): row k*ho*wo + i*wo + j -> padded flat (2i+p)*wp + 2j+q."""
    ii, jj = jnp.meshgrid(jnp.arange(ho), jnp.arange(wo), indexing="ij")
    cols = []
    for p in range(2):
        for q in range(2):
            cols.append(((2 * ii + p) * wp + (2 * jj + q)).reshape(-1))
    col_idx = jnp.concatenate(cols)
    return jax.nn.one_hot(col_idx, p_win, dtype=jnp.float32)


def att_module_forward(x1, x2, params, maxpool=True):
    """x1: (N, in1_ch*4, H1, W1), x2: (N, in2_ch*4, H, W) NCHW. Returns NCHW output."""
    if not maxpool:
        # TODO(synk): maxpool=False branch (strided 3x3 conv resample) not implemented.
        raise NotImplementedError("only maxpool=True resample is implemented")

    y = _pad_and_concat_nhwc(x1, x2)                     # (N, H, W, C)
    N, H, W, C = y.shape
    Ho, Wo = H // 2, W // 2
    Mo = Ho * Wo
    Wp = W + 2
    p_win = H * Wp                                       # gather width (covers all conv rows)

    # zero pad: 1 top/left/right (3x3 halo) + 2 bottom rows so every shifted flat
    # window of length p_win stays in range.  Flatten spatial dims (row = r*Wp + c).
    y_pad = jnp.pad(y, ((0, 0), (1, 2), (1, 1), (0, 0)))
    p_in = (H + 3) * Wp
    y_flat = y_pad.reshape(N, p_in, C)

    # fold eval-mode BN into the conv weights / biases (done once, outside the kernel)
    w1, b1 = _fold_1x1(params["att_w1"], params["att_b1"], params["att_bn1"])
    w2, b2 = _fold_1x1(params["att_w2"], params["att_b2"], params["att_bn2"])
    wc, bc = _fold_3x3(params["conv_w"], params["conv_b"], params["conv_bn"])
    Co = wc.shape[-1]

    sel = _pool_select_matrix(Ho, Wo, Wp, p_win)

    out = fused_att_conv_pool_pallas(y_flat, w1, b1, w2, b2, wc, bc, sel,
                                     wp=Wp, p_win=p_win, mo=Mo)       # (N, Mo, Co)
    out = out.reshape(N, Ho, Wo, Co)
    return jnp.transpose(out, (0, 3, 1, 2))              # back to NCHW


# ----------------------------- pure-JAX reference -----------------------------

def reference_forward(x1, x2, params, maxpool=True):
    assert maxpool
    y = _pad_and_concat_nhwc(x1, x2)

    def conv(x, w, padding):
        return lax.conv_general_dilated(
            x, jnp.transpose(w, (2, 3, 1, 0)), window_strides=(1, 1),
            padding=padding, dimension_numbers=("NHWC", "HWIO", "NHWC"),
            precision=lax.Precision.HIGHEST)

    def bn(x, p):
        return (x - p["mean"]) * (p["gamma"] / jnp.sqrt(p["var"] + BN_EPS)) + p["beta"]

    h = jax.nn.relu(bn(conv(y, params["att_w1"], "VALID") + params["att_b1"],
                       params["att_bn1"]))
    mask = jax.nn.sigmoid(bn(conv(h, params["att_w2"], "VALID") + params["att_b2"],
                             params["att_bn2"]))
    y = mask * y
    y = jax.nn.relu(bn(conv(y, params["conv_w"], [(1, 1), (1, 1)]) + params["conv_b"],
                       params["conv_bn"]))
    N, H, W, Co = y.shape
    y = y.reshape(N, H // 2, 2, W // 2, 2, Co).max(axis=(2, 4))
    return jnp.transpose(y, (0, 3, 1, 2))


# ----------------------------- main -----------------------------

if __name__ == "__main__":
    key = jax.random.PRNGKey(0)
    k_x1, k_x2, k_p = jax.random.split(key, 3)

    in1_ch, in2_ch, out_ch = 1, 1, 1        # expansion=4 -> C1=C2=4, C=8, Cout=4
    N, H, W = 2, 16, 16
    c1 = in1_ch * EXPANSION
    c2 = in2_ch * EXPANSION

    x1 = jax.random.normal(k_x1, (N, c1, H, W), jnp.float32)   # NCHW, like PyTorch
    x2 = jax.random.normal(k_x2, (N, c2, H, W), jnp.float32)
    params = init_params(k_p, in1_ch, in2_ch, out_ch)

    out = att_module_forward(x1, x2, params, maxpool=True)
    out = jax.block_until_ready(out)

    ref = reference_forward(x1, x2, params, maxpool=True)
    assert out.shape == (N, out_ch * EXPANSION, H // 2, W // 2), out.shape
    max_err = float(jnp.max(jnp.abs(out - ref)))
    if max_err > 1e-2:
        raise SystemExit(f"mismatch vs reference: max abs err = {max_err}")

    print("KERNEL_OK")
</pallas_src>

<mosaic_0001>
module attributes {stable_mosaic.version = 11 : i64} {
  func.func @_fused_att_conv_pool_kernel(%arg0: i32, %arg1: memref<1x342x8xf32, #tpu.memory_space<vmem>>, %arg2: memref<8x8xf32, #tpu.memory_space<vmem>>, %arg3: memref<1x8xf32, #tpu.memory_space<vmem>>, %arg4: memref<8x8xf32, #tpu.memory_space<vmem>>, %arg5: memref<1x8xf32, #tpu.memory_space<vmem>>, %arg6: memref<9x8x4xf32, #tpu.memory_space<vmem>>, %arg7: memref<1x4xf32, #tpu.memory_space<vmem>>, %arg8: memref<256x288xf32, #tpu.memory_space<vmem>>, %arg9: memref<1x64x4xf32, #tpu.memory_space<vmem>>) attributes {dimension_semantics = [#tpu.dimension_semantics<parallel>], iteration_bounds = array<i64: 2>, scalar_prefetch = 0 : i64, scratch_operands = 0 : i64, tpu.core_type = #tpu.core_type<tc>, window_params = [{transform_indices = @transform_0, window_bounds = array<i64: 1, 342, 8>}, {pipeline_mode = #tpu.pipeline_mode<synchronous>, transform_indices = @transform_1, window_bounds = array<i64: 8, 8>}, {pipeline_mode = #tpu.pipeline_mode<synchronous>, transform_indices = @transform_2, window_bounds = array<i64: 1, 8>}, {pipeline_mode = #tpu.pipeline_mode<synchronous>, transform_indices = @transform_3, window_bounds = array<i64: 8, 8>}, {pipeline_mode = #tpu.pipeline_mode<synchronous>, transform_indices = @transform_4, window_bounds = array<i64: 1, 8>}, {pipeline_mode = #tpu.pipeline_mode<synchronous>, transform_indices = @transform_5, window_bounds = array<i64: 9, 8, 4>}, {pipeline_mode = #tpu.pipeline_mode<synchronous>, transform_indices = @transform_6, window_bounds = array<i64: 1, 4>}, {pipeline_mode = #tpu.pipeline_mode<synchronous>, transform_indices = @transform_7, window_bounds = array<i64: 256, 288>}, {transform_indices = @transform_8, window_bounds = array<i64: 1, 64, 4>}]} {
    %c0 = arith.constant 0 : index
    %c0_0 = arith.constant 0 : index
    %c0_1 = arith.constant 0 : index
    %0 = vector.load %arg1[%c0, %c0_0, %c0_1] : memref<1x342x8xf32, #tpu.memory_space<vmem>>, vector<1x342x8xf32>
    %1 = vector.shape_cast %0 : vector<1x342x8xf32> to vector<342x8xf32>
    %c0_2 = arith.constant 0 : index
    %c0_3 = arith.constant 0 : index
    %2 = vector.load %arg2[%c0_2, %c0_3] : memref<8x8xf32, #tpu.memory_space<vmem>>, vector<8x8xf32>
    %cst = arith.constant dense<0.000000e+00> : vector<342x8xf32>
    %3 = tpu.matmul %1, %2, %cst {dimension_numbers = #tpu.dot_dimension_numbers<[1], [0], [0], [1], [0, 0, 1, 1], [], []>} : vector<342x8xf32>, vector<8x8xf32>, vector<342x8xf32> -> vector<342x8xf32>
    %c0_4 = arith.constant 0 : index
    %c0_5 = arith.constant 0 : index
    %4 = vector.load %arg3[%c0_4, %c0_5] : memref<1x8xf32, #tpu.memory_space<vmem>>, vector<1x8xf32>
    %5 = vector.broadcast %4 : vector<1x8xf32> to vector<342x8xf32>
    %6 = arith.addf %3, %5 : vector<342x8xf32>
    %cst_6 = arith.constant 0.000000e+00 : f32
    %7 = vector.broadcast %cst_6 : f32 to vector<342x8xf32>
    %8 = arith.maximumf %6, %7 : vector<342x8xf32>
    %c0_7 = arith.constant 0 : index
    %c0_8 = arith.constant 0 : index
    %9 = vector.load %arg4[%c0_7, %c0_8] : memref<8x8xf32, #tpu.memory_space<vmem>>, vector<8x8xf32>
    %cst_9 = arith.constant dense<0.000000e+00> : vector<342x8xf32>
    %10 = tpu.matmul %8, %9, %cst_9 {dimension_numbers = #tpu.dot_dimension_numbers<[1], [0], [0], [1], [0, 0, 1, 1], [], []>} : vector<342x8xf32>, vector<8x8xf32>, vector<342x8xf32> -> vector<342x8xf32>
    %c0_10 = arith.constant 0 : index
    %c0_11 = arith.constant 0 : index
    %11 = vector.load %arg5[%c0_10, %c0_11] : memref<1x8xf32, #tpu.memory_space<vmem>>, vector<1x8xf32>
    %12 = vector.broadcast %11 : vector<1x8xf32> to vector<342x8xf32>
    %13 = arith.addf %10, %12 : vector<342x8xf32>
    %cst_12 = arith.constant 0.000000e+00 : f32
    %14 = vector.broadcast %cst_12 : f32 to vector<342x8xf32>
    %15 = arith.subf %14, %13 : vector<342x8xf32>
    %16 = math.exp %15 : vector<342x8xf32>
    %cst_13 = arith.constant 1.000000e+00 : f32
    %17 = vector.broadcast %cst_13 : f32 to vector<342x8xf32>
    %18 = arith.addf %17, %16 : vector<342x8xf32>
    %19 = tpu.reciprocal %18 {approx = true} : vector<342x8xf32> -> vector<342x8xf32>
    %20 = arith.mulf %19, %1 : vector<342x8xf32>
    %cst_14 = arith.constant 0.000000e+00 : f32
    %21 = vector.broadcast %cst_14 : f32 to vector<256x4xf32>
    %c0_15 = arith.constant 0 : index
    %c0_16 = arith.constant 0 : index
    %22 = vector.load %arg8[%c0_15, %c0_16] : memref<256x288xf32, #tpu.memory_space<vmem>>, vector<256x288xf32>
    %23 = vector.extract_strided_slice %20 {offsets = [0, 0], sizes = [288, 8], strides = [1, 1]} : vector<342x8xf32> to vector<288x8xf32>
    %cst_17 = arith.constant dense<0.000000e+00> : vector<256x8xf32>
    %24 = tpu.matmul %22, %23, %cst_17 {dimension_numbers = #tpu.dot_dimension_numbers<[1], [0], [0], [1], [0, 0, 1, 1], [], []>} : vector<256x288xf32>, vector<288x8xf32>, vector<256x8xf32> -> vector<256x8xf32>
    %c0_18 = arith.constant 0 : index
    %c0_19 = arith.constant 0 : index
    %c0_20 = arith.constant 0 : index
    %25 = vector.load %arg6[%c0_18, %c0_19, %c0_20] : memref<9x8x4xf32, #tpu.memory_space<vmem>>, vector<1x8x4xf32>
    %26 = vector.shape_cast %25 : vector<1x8x4xf32> to vector<8x4xf32>
    %cst_21 = arith.constant dense<0.000000e+00> : vector<256x4xf32>
    %27 = tpu.matmul %24, %26, %cst_21 {dimension_numbers = #tpu.dot_dimension_numbers<[1], [0], [0], [1], [0, 0, 1, 1], [], []>} : vector<256x8xf32>, vector<8x4xf32>, vector<256x4xf32> -> vector<256x4xf32>
    %28 = arith.addf %21, %27 : vector<256x4xf32>
    %c0_22 = arith.constant 0 : index
    %c0_23 = arith.constant 0 : index
    %29 = vector.load %arg8[%c0_22, %c0_23] : memref<256x288xf32, #tpu.memory_space<vmem>>, vector<256x288xf32>
    %30 = vector.extract_strided_slice %20 {offsets = [1, 0], sizes = [288, 8], strides = [1, 1]} : vector<342x8xf32> to vector<288x8xf32>
    %cst_24 = arith.constant dense<0.000000e+00> : vector<256x8xf32>
    %31 = tpu.matmul %29, %30, %cst_24 {dimension_numbers = #tpu.dot_dimension_numbers<[1], [0], [0], [1], [0, 0, 1, 1], [], []>} : vector<256x288xf32>, vector<288x8xf32>, vector<256x8xf32> -> vector<256x8xf32>
    %c1 = arith.constant 1 : index
    %c0_25 = arith.constant 0 : index
    %c0_26 = arith.constant 0 : index
    %32 = vector.load %arg6[%c1, %c0_25, %c0_26] : memref<9x8x4xf32, #tpu.memory_space<vmem>>, vector<1x8x4xf32>
    %33 = vector.shape_cast %32 : vector<1x8x4xf32> to vector<8x4xf32>
    %cst_27 = arith.constant dense<0.000000e+00> : vector<256x4xf32>
    %34 = tpu.matmul %31, %33, %cst_27 {dimension_numbers = #tpu.dot_dimension_numbers<[1], [0], [0], [1], [0, 0, 1, 1], [], []>} : vector<256x8xf32>, vector<8x4xf32>, vector<256x4xf32> -> vector<256x4xf32>
    %35 = arith.addf %28, %34 : vector<256x4xf32>
    %c0_28 = arith.constant 0 : index
    %c0_29 = arith.constant 0 : index
    %36 = vector.load %arg8[%c0_28, %c0_29] : memref<256x288xf32, #tpu.memory_space<vmem>>, vector<256x288xf32>
    %37 = vector.extract_strided_slice %20 {offsets = [2, 0], sizes = [288, 8], strides = [1, 1]} : vector<342x8xf32> to vector<288x8xf32>
    %cst_30 = arith.constant dense<0.000000e+00> : vector<256x8xf32>
    %38 = tpu.matmul %36, %37, %cst_30 {dimension_numbers = #tpu.dot_dimension_numbers<[1], [0], [0], [1], [0, 0, 1, 1], [], []>} : vector<256x288xf32>, vector<288x8xf32>, vector<256x8xf32> -> vector<256x8xf32>
    %c2 = arith.constant 2 : index
    %c0_31 = arith.constant 0 : index
    %c0_32 = arith.constant 0 : index
    %39 = vector.load %arg6[%c2, %c0_31, %c0_32] : memref<9x8x4xf32, #tpu.memory_space<vmem>>, vector<1x8x4xf32>
    %40 = vector.shape_cast %39 : vector<1x8x4xf32> to vector<8x4xf32>
    %cst_33 = arith.constant dense<0.000000e+00> : vector<256x4xf32>
    %41 = tpu.matmul %38, %40, %cst_33 {dimension_numbers = #tpu.dot_dimension_numbers<[1], [0], [0], [1], [0, 0, 1, 1], [], []>} : vector<256x8xf32>, vector<8x4xf32>, vector<256x4xf32> -> vector<256x4xf32>
    %42 = arith.addf %35, %41 : vector<256x4xf32>
    %c0_34 = arith.constant 0 : index
    %c0_35 = arith.constant 0 : index
    %43 = vector.load %arg8[%c0_34, %c0_35] : memref<256x288xf32, #tpu.memory_space<vmem>>, vector<256x288xf32>
    %44 = vector.extract_strided_slice %20 {offsets = [18, 0], sizes = [288, 8], strides = [1, 1]} : vector<342x8xf32> to vector<288x8xf32>
    %cst_36 = arith.constant dense<0.000000e+00> : vector<256x8xf32>
    %45 = tpu.matmul %43, %44, %cst_36 {dimension_numbers = #tpu.dot_dimension_numbers<[1], [0], [0], [1], [0, 0, 1, 1], [], []>} : vector<256x288xf32>, vector<288x8xf32>, vector<256x8xf32> -> vector<256x8xf32>
    %c3 = arith.constant 3 : index
    %c0_37 = arith.constant 0 : index
    %c0_38 = arith.constant 0 : index
    %46 = vector.load %arg6[%c3, %c0_37, %c0_38] : memref<9x8x4xf32, #tpu.memory_space<vmem>>, vector<1x8x4xf32>
    %47 = vector.shape_cast %46 : vector<1x8x4xf32> to vector<8x4xf32>
    %cst_39 = arith.constant dense<0.000000e+00> : vector<256x4xf32>
    %48 = tpu.matmul %45, %47, %cst_39 {dimension_numbers = #tpu.dot_dimension_numbers<[1], [0], [0], [1], [0, 0, 1, 1], [], []>} : vector<256x8xf32>, vector<8x4xf32>, vector<256x4xf32> -> vector<256x4xf32>
    %49 = arith.addf %42, %48 : vector<256x4xf32>
    %c0_40 = arith.constant 0 : index
    %c0_41 = arith.constant 0 : index
    %50 = vector.load %arg8[%c0_40, %c0_41] : memref<256x288xf32, #tpu.memory_space<vmem>>, vector<256x288xf32>
    %51 = vector.extract_strided_slice %20 {offsets = [19, 0], sizes = [288, 8], strides = [1, 1]} : vector<342x8xf32> to vector<288x8xf32>
    %cst_42 = arith.constant dense<0.000000e+00> : vector<256x8xf32>
    %52 = tpu.matmul %50, %51, %cst_42 {dimension_numbers = #tpu.dot_dimension_numbers<[1], [0], [0], [1], [0, 0, 1, 1], [], []>} : vector<256x288xf32>, vector<288x8xf32>, vector<256x8xf32> -> vector<256x8xf32>
    %c4 = arith.constant 4 : index
    %c0_43 = arith.constant 0 : index
    %c0_44 = arith.constant 0 : index
    %53 = vector.load %arg6[%c4, %c0_43, %c0_44] : memref<9x8x4xf32, #tpu.memory_space<vmem>>, vector<1x8x4xf32>
    %54 = vector.shape_cast %53 : vector<1x8x4xf32> to vector<8x4xf32>
    %cst_45 = arith.constant dense<0.000000e+00> : vector<256x4xf32>
    %55 = tpu.matmul %52, %54, %cst_45 {dimension_numbers = #tpu.dot_dimension_numbers<[1], [0], [0], [1], [0, 0, 1, 1], [], []>} : vector<256x8xf32>, vector<8x4xf32>, vector<256x4xf32> -> vector<256x4xf32>
    %56 = arith.addf %49, %55 : vector<256x4xf32>
    %c0_46 = arith.constant 0 : index
    %c0_47 = arith.constant 0 : index
    %57 = vector.load %arg8[%c0_46, %c0_47] : memref<256x288xf32, #tpu.memory_space<vmem>>, vector<256x288xf32>
    %58 = vector.extract_strided_slice %20 {offsets = [20, 0], sizes = [288, 8], strides = [1, 1]} : vector<342x8xf32> to vector<288x8xf32>
    %cst_48 = arith.constant dense<0.000000e+00> : vector<256x8xf32>
    %59 = tpu.matmul %57, %58, %cst_48 {dimension_numbers = #tpu.dot_dimension_numbers<[1], [0], [0], [1], [0, 0, 1, 1], [], []>} : vector<256x288xf32>, vector<288x8xf32>, vector<256x8xf32> -> vector<256x8xf32>
    %c5 = arith.constant 5 : index
    %c0_49 = arith.constant 0 : index
    %c0_50 = arith.constant 0 : index
    %60 = vector.load %arg6[%c5, %c0_49, %c0_50] : memref<9x8x4xf32, #tpu.memory_space<vmem>>, vector<1x8x4xf32>
    %61 = vector.shape_cast %60 : vector<1x8x4xf32> to vector<8x4xf32>
    %cst_51 = arith.constant dense<0.000000e+00> : vector<256x4xf32>
    %62 = tpu.matmul %59, %61, %cst_51 {dimension_numbers = #tpu.dot_dimension_numbers<[1], [0], [0], [1], [0, 0, 1, 1], [], []>} : vector<256x8xf32>, vector<8x4xf32>, vector<256x4xf32> -> vector<256x4xf32>
    %63 = arith.addf %56, %62 : vector<256x4xf32>
    %c0_52 = arith.constant 0 : index
    %c0_53 = arith.constant 0 : index
    %64 = vector.load %arg8[%c0_52, %c0_53] : memref<256x288xf32, #tpu.memory_space<vmem>>, vector<256x288xf32>
    %65 = vector.extract_strided_slice %20 {offsets = [36, 0], sizes = [288, 8], strides = [1, 1]} : vector<342x8xf32> to vector<288x8xf32>
    %cst_54 = arith.constant dense<0.000000e+00> : vector<256x8xf32>
    %66 = tpu.matmul %64, %65, %cst_54 {dimension_numbers = #tpu.dot_dimension_numbers<[1], [0], [0], [1], [0, 0, 1, 1], [], []>} : vector<256x288xf32>, vector<288x8xf32>, vector<256x8xf32> -> vector<256x8xf32>
    %c6 = arith.constant 6 : index
    %c0_55 = arith.constant 0 : index
    %c0_56 = arith.constant 0 : index
    %67 = vector.load %arg6[%c6, %c0_55, %c0_56] : memref<9x8x4xf32, #tpu.memory_space<vmem>>, vector<1x8x4xf32>
    %68 = vector.shape_cast %67 : vector<1x8x4xf32> to vector<8x4xf32>
    %cst_57 = arith.constant dense<0.000000e+00> : vector<256x4xf32>
    %69 = tpu.matmul %66, %68, %cst_57 {dimension_numbers = #tpu.dot_dimension_numbers<[1], [0], [0], [1], [0, 0, 1, 1], [], []>} : vector<256x8xf32>, vector<8x4xf32>, vector<256x4xf32> -> vector<256x4xf32>
    %70 = arith.addf %63, %69 : vector<256x4xf32>
    %c0_58 = arith.constant 0 : index
    %c0_59 = arith.constant 0 : index
    %71 = vector.load %arg8[%c0_58, %c0_59] : memref<256x288xf32, #tpu.memory_space<vmem>>, vector<256x288xf32>
    %72 = vector.extract_strided_slice %20 {offsets = [37, 0], sizes = [288, 8], strides = [1, 1]} : vector<342x8xf32> to vector<288x8xf32>
    %cst_60 = arith.constant dense<0.000000e+00> : vector<256x8xf32>
    %73 = tpu.matmul %71, %72, %cst_60 {dimension_numbers = #tpu.dot_dimension_numbers<[1], [0], [0], [1], [0, 0, 1, 1], [], []>} : vector<256x288xf32>, vector<288x8xf32>, vector<256x8xf32> -> vector<256x8xf32>
    %c7 = arith.constant 7 : index
    %c0_61 = arith.constant 0 : index
    %c0_62 = arith.constant 0 : index
    %74 = vector.load %arg6[%c7, %c0_61, %c0_62] : memref<9x8x4xf32, #tpu.memory_space<vmem>>, vector<1x8x4xf32>
    %75 = vector.shape_cast %74 : vector<1x8x4xf32> to vector<8x4xf32>
    %cst_63 = arith.constant dense<0.000000e+00> : vector<256x4xf32>
    %76 = tpu.matmul %73, %75, %cst_63 {dimension_numbers = #tpu.dot_dimension_numbers<[1], [0], [0], [1], [0, 0, 1, 1], [], []>} : vector<256x8xf32>, vector<8x4xf32>, vector<256x4xf32> -> vector<256x4xf32>
    %77 = arith.addf %70, %76 : vector<256x4xf32>
    %c0_64 = arith.constant 0 : index
    %c0_65 = arith.constant 0 : index
    %78 = vector.load %arg8[%c0_64, %c0_65] : memref<256x288xf32, #tpu.memory_space<vmem>>, vector<256x288xf32>
    %79 = vector.extract_strided_slice %20 {offsets = [38, 0], sizes = [288, 8], strides = [1, 1]} : vector<342x8xf32> to vector<288x8xf32>
    %cst_66 = arith.constant dense<0.000000e+00> : vector<256x8xf32>
    %80 = tpu.matmul %78, %79, %cst_66 {dimension_numbers = #tpu.dot_dimension_numbers<[1], [0], [0], [1], [0, 0, 1, 1], [], []>} : vector<256x288xf32>, vector<288x8xf32>, vector<256x8xf32> -> vector<256x8xf32>
    %c8 = arith.constant 8 : index
    %c0_67 = arith.constant 0 : index
    %c0_68 = arith.constant 0 : index
    %81 = vector.load %arg6[%c8, %c0_67, %c0_68] : memref<9x8x4xf32, #tpu.memory_space<vmem>>, vector<1x8x4xf32>
    %82 = vector.shape_cast %81 : vector<1x8x4xf32> to vector<8x4xf32>
    %cst_69 = arith.constant dense<0.000000e+00> : vector<256x4xf32>
    %83 = tpu.matmul %80, %82, %cst_69 {dimension_numbers = #tpu.dot_dimension_numbers<[1], [0], [0], [1], [0, 0, 1, 1], [], []>} : vector<256x8xf32>, vector<8x4xf32>, vector<256x4xf32> -> vector<256x4xf32>
    %84 = arith.addf %77, %83 : vector<256x4xf32>
    %c0_70 = arith.constant 0 : index
    %c0_71 = arith.constant 0 : index
    %85 = vector.load %arg7[%c0_70, %c0_71] : memref<1x4xf32, #tpu.memory_space<vmem>>, vector<1x4xf32>
    %86 = vector.broadcast %85 : vector<1x4xf32> to vector<256x4xf32>
    %87 = arith.addf %84, %86 : vector<256x4xf32>
    %cst_72 = arith.constant 0.000000e+00 : f32
    %88 = vector.broadcast %cst_72 : f32 to vector<256x4xf32>
    %89 = arith.maximumf %87, %88 : vector<256x4xf32>
    %90 = vector.extract_strided_slice %89 {offsets = [0, 0], sizes = [64, 4], strides = [1, 1]} : vector<256x4xf32> to vector<64x4xf32>
    %91 = vector.extract_strided_slice %89 {offsets = [64, 0], sizes = [64, 4], strides = [1, 1]} : vector<256x4xf32> to vector<64x4xf32>
    %92 = arith.maximumf %90, %91 : vector<64x4xf32>
    %93 = vector.extract_strided_slice %89 {offsets = [128, 0], sizes = [64, 4], strides = [1, 1]} : vector<256x4xf32> to vector<64x4xf32>
    %94 = vector.extract_strided_slice %89 {offsets = [192, 0], sizes = [64, 4], strides = [1, 1]} : vector<256x4xf32> to vector<64x4xf32>
    %95 = arith.maximumf %93, %94 : vector<64x4xf32>
    %96 = arith.maximumf %92, %95 : vector<64x4xf32>
    %c0_73 = arith.constant 0 : index
    %c0_74 = arith.constant 0 : index
    %c0_75 = arith.constant 0 : index
    %97 = vector.load %arg9[%c0_73, %c0_74, %c0_75] : memref<1x64x4xf32, #tpu.memory_space<vmem>>, vector<1x64x4xf32>
    %98 = vector.shape_cast %97 : vector<1x64x4xf32> to vector<64x4xf32>
    %99 = vector.shape_cast %96 : vector<64x4xf32> to vector<1x64x4xf32>
    tpu.vector_store %arg9[%c0_73, %c0_74, %c0_75], %99 {strides = array<i32>} : memref<1x64x4xf32, #tpu.memory_space<vmem>>, vector<1x64x4xf32>,
    return
  }
  func.func @transform_0(%arg0: i32) -> (i32, i32, i32) {
    %c0_i32 = arith.constant 0 : i32
    %c0_i32_0 = arith.constant 0 : i32
    %c0_i32_1 = arith.constant 0 : i32
    return %arg0, %c0_i32, %c0_i32_0 : i32, i32, i32
  }
  func.func @transform_1(%arg0: i32) -> (i32, i32) {
    %c0_i32 = arith.constant 0 : i32
    %c0_i32_0 = arith.constant 0 : i32
    %c0_i32_1 = arith.constant 0 : i32
    return %c0_i32, %c0_i32_0 : i32, i32
  }
  func.func @transform_2(%arg0: i32) -> (i32, i32) {
    %c0_i32 = arith.constant 0 : i32
    %c0_i32_0 = arith.constant 0 : i32
    %c0_i32_1 = arith.constant 0 : i32
    return %c0_i32, %c0_i32_0 : i32, i32
  }
  func.func @transform_3(%arg0: i32) -> (i32, i32) {
    %c0_i32 = arith.constant 0 : i32
    %c0_i32_0 = arith.constant 0 : i32
    %c0_i32_1 = arith.constant 0 : i32
    return %c0_i32, %c0_i32_0 : i32, i32
  }
  func.func @transform_4(%arg0: i32) -> (i32, i32) {
    %c0_i32 = arith.constant 0 : i32
    %c0_i32_0 = arith.constant 0 : i32
    %c0_i32_1 = arith.constant 0 : i32
    return %c0_i32, %c0_i32_0 : i32, i32
  }
  func.func @transform_5(%arg0: i32) -> (i32, i32, i32) {
    %c0_i32 = arith.constant 0 : i32
    %c0_i32_0 = arith.constant 0 : i32
    %c0_i32_1 = arith.constant 0 : i32
    %c0_i32_2 = arith.constant 0 : i32
    return %c0_i32, %c0_i32_0, %c0_i32_1 : i32, i32, i32
  }
  func.func @transform_6(%arg0: i32) -> (i32, i32) {
    %c0_i32 = arith.constant 0 : i32
    %c0_i32_0 = arith.constant 0 : i32
    %c0_i32_1 = arith.constant 0 : i32
    return %c0_i32, %c0_i32_0 : i32, i32
  }
  func.func @transform_7(%arg0: i32) -> (i32, i32) {
    %c0_i32 = arith.constant 0 : i32
    %c0_i32_0 = arith.constant 0 : i32
    %c0_i32_1 = arith.constant 0 : i32
    return %c0_i32, %c0_i32_0 : i32, i32
  }
  func.func @transform_8(%arg0: i32) -> (i32, i32, i32) {
    %c0_i32 = arith.constant 0 : i32
    %c0_i32_0 = arith.constant 0 : i32
    %c0_i32_1 = arith.constant 0 : i32
    return %arg0, %c0_i32, %c0_i32_0 : i32, i32, i32
  }
}

</mosaic_0001>

<llo_original>
// kernel: tpu_custom_call.1
$region0: #{tpu_custom_call.1}
  #allocation0 [shape = 'u32[]', space=smem, size = 0x4, offset = 0x4, fixed_abs, tag = 'smem constant byte address 0x4 - core index']
  #allocation1 [shape = 'u32[144,128]{1,0:T(1,128)}', space=vmem, size = 0x12000, scoped, tag = 'internal scratch']
  %s0 = inlined_call_operand.vmem [shape: f32[2,342,8], index: 0, kind: input, shape index: {}]
  %s1 = inlined_call_operand.vmem [shape: f32[8,8], index: 1, kind: input, shape index: {}]
  %s2 = inlined_call_operand.vmem [shape: f32[1,8], index: 2, kind: input, shape index: {}]
  %s3 = inlined_call_operand.vmem [shape: f32[8,8], index: 3, kind: input, shape index: {}]
  %s4 = inlined_call_operand.vmem [shape: f32[1,8], index: 4, kind: input, shape index: {}]
  %s5 = inlined_call_operand.vmem [shape: f32[9,8,4], index: 5, kind: input, shape index: {}]
  %s6 = inlined_call_operand.vmem [shape: f32[1,4], index: 6, kind: input, shape index: {}]
  %s7 = inlined_call_operand.vmem [shape: f32[256,288], index: 7, kind: input, shape index: {}]
  %s8 = inlined_call_operand.vmem [shape: f32[2,64,4], index: 8, kind: output, shape index: {}]
  %s9 = sld [smem:[#allocation0]]
  $region65: #{tpu_custom_call.1} parent=0
    _
  %s11 = ssub.s32 1, %s9
  %s12 = scalar_select 0, %s11, %s9
  loop: start=0, step=1, limit=4
  $region2: #{tpu_custom_call.1} parent=0 // loop_pre_header
    _
  $region3: #{tpu_custom_call.1} parent=0 // loop_header
    %s14 = sphi 0, %s18
    %p15 = scmp.ge.s32.totalorder %s14, 4
    %s24 = sphi 0, %s26
    %s27 = sphi 0, %s24
    %s28 = sphi 0, %s27
    %s44 = sphi 0, %s28
    %s48 = sphi 0, %s48
    %s50 = sphi 0, %s48
    %s51 = sphi 0, %s50
    %s65 = sphi 0, %s51
    %s69 = sphi 0, %s69
    %s71 = sphi 0, %s69
    %s72 = sphi 0, %s71
    %s86 = sphi 0, %s72
    %s90 = sphi 0, %s90
    %s92 = sphi 0, %s90
    %s93 = sphi 0, %s92
    %s107 = sphi 0, %s93
    %s111 = sphi 0, %s111
    %s113 = sphi 0, %s111
    %s114 = sphi 0, %s113
    %s128 = sphi 0, %s114
    %s132 = sphi 0, %s132
    %s134 = sphi 0, %s132
    %s135 = sphi 0, %s134
    %s149 = sphi 0, %s135
    %s153 = sphi 0, %s153
    %s155 = sphi 0, %s153
    %s156 = sphi 0, %s155
    %s170 = sphi 0, %s156
    %s174 = sphi 0, %s174
    %s176 = sphi 0, %s174
    %s177 = sphi 0, %s176
    %s191 = sphi 0, %s177
    %s197 = sphi 0, %s199
    %s200 = sphi 0, %s197
    %s201 = sphi 0, %s200
    %s217 = sphi 0, %s201
  $region4: #{tpu_custom_call.1} parent=0 // loop_header_branch
    %17 = sbr.rel (%p15) target = $region8
  $region5: #{tpu_custom_call.1} parent=0 // loop_body
    %s19 = ssub.s32 %s14, 1
    %s20 = ssub.s32 %s14, 2
    %s21 = sadd.s32 %s14, 1
    %s22 = ssub.s32 %s14, %s21
    %p23 = scmp.eq.s32.totalorder %s22, 0
    %s25 = sadd.s32 %s24, 1
    %s26 = scalar_select %p23, %s24, %s25
    %p29 = pneg %p23
    %p30 = scmp.eq.s32.totalorder %s14, 1
    %p31 = por %p29, %p30
    %p32 = scmp.ne.s32.totalorder %s24, %s27
    %p33 = scmp.eq.s32.totalorder %s14, 0
    %p34 = por %p32, %p33
    %p35 = scmp.ne.s32.totalorder %s24, %s27
    %p36 = scmp.eq.s32.totalorder %s19, 1
    %p37 = por %p35, %p36
    %p38 = scmp.ne.s32.totalorder %s27, %s28
    %p39 = scmp.eq.s32.totalorder %s19, 0
    %p40 = por %p38, %p39
    %p41 = scmp.ne.s32.totalorder %s27, %s28
    %p42 = scmp.eq.s32.totalorder %s20, 1
    %p43 = por %p41, %p42
    %p45 = scmp.ne.s32.totalorder %s28, %s44
    %p46 = scmp.eq.s32.totalorder %s20, 0
    %p47 = por %p45, %p46
    %s49 = sadd.s32 %s48, 1
    %p52 = scmp.eq.s32.totalorder %s14, 1
    %p53 = scmp.ne.s32.totalorder %s48, %s50
    %p54 = scmp.eq.s32.totalorder %s14, 0
    %p55 = por %p53, %p54
    %p56 = scmp.ne.s32.totalorder %s48, %s50
    %p57 = scmp.eq.s32.totalorder %s19, 1
    %p58 = por %p56, %p57
    %p59 = scmp.ne.s32.totalorder %s50, %s51
    %p60 = scmp.eq.s32.totalorder %s19, 0
    %p61 = por %p59, %p60
    %p62 = scmp.ne.s32.totalorder %s50, %s51
    %p63 = scmp.eq.s32.totalorder %s20, 1
    %p64 = por %p62, %p63
    %p66 = scmp.ne.s32.totalorder %s51, %s65
    %p67 = scmp.eq.s32.totalorder %s20, 0
    %p68 = por %p66, %p67
    %s70 = sadd.s32 %s69, 1
    %p73 = scmp.eq.s32.totalorder %s14, 1
    %p74 = scmp.ne.s32.totalorder %s69, %s71
    %p75 = scmp.eq.s32.totalorder %s14, 0
    %p76 = por %p74, %p75
    %p77 = scmp.ne.s32.totalorder %s69, %s71
    %p78 = scmp.eq.s32.totalorder %s19, 1
    %p79 = por %p77, %p78
    %p80 = scmp.ne.s32.totalorder %s71, %s72
    %p81 = scmp.eq.s32.totalorder %s19, 0
    %p82 = por %p80, %p81
    %p83 = scmp.ne.s32.totalorder %s71, %s72
    %p84 = scmp.eq.s32.totalorder %s20, 1
    %p85 = por %p83, %p84
    %p87 = scmp.ne.s32.totalorder %s72, %s86
    %p88 = scmp.eq.s32.totalorder %s20, 0
    %p89 = por %p87, %p88
    %s91 = sadd.s32 %s90, 1
    %p94 = scmp.eq.s32.totalorder %s14, 1
    %p95 = scmp.ne.s32.totalorder %s90, %s92
    %p96 = scmp.eq.s32.totalorder %s14, 0
    %p97 = por %p95, %p96
    %p98 = scmp.ne.s32.totalorder %s90, %s92
    %p99 = scmp.eq.s32.totalorder %s19, 1
    %p100 = por %p98, %p99
    %p101 = scmp.ne.s32.totalorder %s92, %s93
    %p102 = scmp.eq.s32.totalorder %s19, 0
    %p103 = por %p101, %p102
    %p104 = scmp.ne.s32.totalorder %s92, %s93
    %p105 = scmp.eq.s32.totalorder %s20, 1
    %p106 = por %p104, %p105
    %p108 = scmp.ne.s32.totalorder %s93, %s107
    %p109 = scmp.eq.s32.totalorder %s20, 0
    %p110 = por %p108, %p109
    %s112 = sadd.s32 %s111, 1
    %p115 = scmp.eq.s32.totalorder %s14, 1
    %p116 = scmp.ne.s32.totalorder %s111, %s113
    %p117 = scmp.eq.s32.totalorder %s14, 0
    %p118 = por %p116, %p117
    %p119 = scmp.ne.s32.totalorder %s111, %s113
    %p120 = scmp.eq.s32.totalorder %s19, 1
    %p121 = por %p119, %p120
    %p122 = scmp.ne.s32.totalorder %s113, %s114
    %p123 = scmp.eq.s32.totalorder %s19, 0
    %p124 = por %p122, %p123
    %p125 = scmp.ne.s32.totalorder %s113, %s114
    %p126 = scmp.eq.s32.totalorder %s20, 1
    %p127 = por %p125, %p126
    %p129 = scmp.ne.s32.totalorder %s114, %s128
    %p130 = scmp.eq.s32.totalorder %s20, 0
    %p131 = por %p129, %p130
    %s133 = sadd.s32 %s132, 1
    %p136 = scmp.eq.s32.totalorder %s14, 1
    %p137 = scmp.ne.s32.totalorder %s132, %s134
    %p138 = scmp.eq.s32.totalorder %s14, 0
    %p139 = por %p137, %p138
    %p140 = scmp.ne.s32.totalorder %s132, %s134
    %p141 = scmp.eq.s32.totalorder %s19, 1
    %p142 = por %p140, %p141
    %p143 = scmp.ne.s32.totalorder %s134, %s135
    %p144 = scmp.eq.s32.totalorder %s19, 0
    %p145 = por %p143, %p144
    %p146 = scmp.ne.s32.totalorder %s134, %s135
    %p147 = scmp.eq.s32.totalorder %s20, 1
    %p148 = por %p146, %p147
    %p150 = scmp.ne.s32.totalorder %s135, %s149
    %p151 = scmp.eq.s32.totalorder %s20, 0
    %p152 = por %p150, %p151
    %s154 = sadd.s32 %s153, 1
    %p157 = scmp.eq.s32.totalorder %s14, 1
    %p158 = scmp.ne.s32.totalorder %s153, %s155
    %p159 = scmp.eq.s32.totalorder %s14, 0
    %p160 = por %p158, %p159
    %p161 = scmp.ne.s32.totalorder %s153, %s155
    %p162 = scmp.eq.s32.totalorder %s19, 1
    %p163 = por %p161, %p162
    %p164 = scmp.ne.s32.totalorder %s155, %s156
    %p165 = scmp.eq.s32.totalorder %s19, 0
    %p166 = por %p164, %p165
    %p167 = scmp.ne.s32.totalorder %s155, %s156
    %p168 = scmp.eq.s32.totalorder %s20, 1
    %p169 = por %p167, %p168
    %p171 = scmp.ne.s32.totalorder %s156, %s170
    %p172 = scmp.eq.s32.totalorder %s20, 0
    %p173 = por %p171, %p172
    %s175 = sadd.s32 %s174, 1
    %p178 = scmp.eq.s32.totalorder %s14, 1
    %p179 = scmp.ne.s32.totalorder %s174, %s176
    %p180 = scmp.eq.s32.totalorder %s14, 0
    %p181 = por %p179, %p180
    %p182 = scmp.ne.s32.totalorder %s174, %s176
    %p183 = scmp.eq.s32.totalorder %s19, 1
    %p184 = por %p182, %p183
    %p185 = scmp.ne.s32.totalorder %s176, %s177
    %p186 = scmp.eq.s32.totalorder %s19, 0
    %p187 = por %p185, %p186
    %p188 = scmp.ne.s32.totalorder %s176, %s177
    %p189 = scmp.eq.s32.totalorder %s20, 1
    %p190 = por %p188, %p189
    %p192 = scmp.ne.s32.totalorder %s177, %s191
    %p193 = scmp.eq.s32.totalorder %s20, 0
    %p194 = por %p192, %p193
    %s195 = ssub.s32 %s14, %s21
    %p196 = scmp.eq.s32.totalorder %s195, 0
    %s198 = sadd.s32 %s197, 1
    %s199 = scalar_select %p196, %s197, %s198
    %p202 = pneg %p196
    %p203 = scmp.eq.s32.totalorder %s14, 1
    %p204 = por %p202, %p203
    %p205 = scmp.ne.s32.totalorder %s197, %s200
    %p206 = scmp.eq.s32.totalorder %s14, 0
    %p207 = por %p205, %p206
    %p208 = scmp.ne.s32.totalorder %s197, %s200
    %p209 = scmp.eq.s32.totalorder %s19, 1
    %p210 = por %p208, %p209
    %p211 = scmp.ne.s32.totalorder %s200, %s201
    %p212 = scmp.eq.s32.totalorder %s19, 0
    %p213 = por %p211, %p212
    %p214 = scmp.ne.s32.totalorder %s200, %s201
    %p215 = scmp.eq.s32.totalorder %s20, 1
    %p216 = por %p214, %p215
    %p218 = scmp.ne.s32.totalorder %s201, %s217
    %p219 = scmp.eq.s32.totalorder %s20, 0
    %p220 = por %p218, %p219
    %p221 = scmp.le.s32.totalorder 1, %s14
    %p222 = scmp.lt.s32.totalorder %s14, 3
    %p223 = pnand %p221, %p222
    %p224 = pneg %p223
    // Predicated region
    $region9: #{tpu_custom_call.1} parent=5 // pred_check
      _
    $region10: #{tpu_custom_call.1} parent=5 // pred_check_branch
      %226 = sbr.rel (%p223) target = $region12
    $region11: #{tpu_custom_call.1} parent=5 // pred_region
      %s227 = ssub.s32 %s14, 1
      // Predicated region
      $region13: #{tpu_custom_call.1} parent=11 // pred_check
        %p228 = pneg %p61
      $region14: #{tpu_custom_call.1} parent=11 // pred_check_branch
        %230 = sbr.rel (%p228) target = $region16
      $region15: #{tpu_custom_call.1} parent=11 // pred_region
        _
      $region16: #{tpu_custom_call.1} parent=11 // pred_fallthru
        _
      // Predicated region
      $region17: #{tpu_custom_call.1} parent=11 // pred_check
        %p231 = pneg %p82
      $region18: #{tpu_custom_call.1} parent=11 // pred_check_branch
        %233 = sbr.rel (%p231) target = $region20
      $region19: #{tpu_custom_call.1} parent=11 // pred_region
        _
      $region20: #{tpu_custom_call.1} parent=11 // pred_fallthru
        _
      // Predicated region
      $region21: #{tpu_custom_call.1} parent=11 // pred_check
        %p234 = pneg %p103
      $region22: #{tpu_custom_call.1} parent=11 // pred_check_branch
        %236 = sbr.rel (%p234) target = $region24
      $region23: #{tpu_custom_call.1} parent=11 // pred_region
        _
      $region24: #{tpu_custom_call.1} parent=11 // pred_fallthru
        _
      // Predicated region
      $region25: #{tpu_custom_call.1} parent=11 // pred_check
        %p237 = pneg %p124
      $region26: #{tpu_custom_call.1} parent=11 // pred_check_branch
        %239 = sbr.rel (%p237) target = $region28
      $region27: #{tpu_custom_call.1} parent=11 // pred_region
        _
      $region28: #{tpu_custom_call.1} parent=11 // pred_fallthru
        _
      // Predicated region
      $region29: #{tpu_custom_call.1} parent=11 // pred_check
        %p240 = pneg %p145
      $region30: #{tpu_custom_call.1} parent=11 // pred_check_branch
        %242 = sbr.rel (%p240) target = $region32
      $region31: #{tpu_custom_call.1} parent=11 // pred_region
        _
      $region32: #{tpu_custom_call.1} parent=11 // pred_fallthru
        _
      // Predicated region
      $region33: #{tpu_custom_call.1} parent=11 // pred_check
        %p243 = pneg %p166
      $region34: #{tpu_custom_call.1} parent=11 // pred_check_branch
        %245 = sbr.rel (%p243) target = $region36
      $region35: #{tpu_custom_call.1} parent=11 // pred_region
        _
      $region36: #{tpu_custom_call.1} parent=11 // pred_fallthru
        _
      // Predicated region
      $region37: #{tpu_custom_call.1} parent=11 // pred_check
        %p246 = pneg %p187
      $region38: #{tpu_custom_call.1} parent=11 // pred_check_branch
        %248 = sbr.rel (%p246) target = $region40
      $region39: #{tpu_custom_call.1} parent=11 // pred_region
        _
      $region40: #{tpu_custom_call.1} parent=11 // pred_fallthru
        _
    $region12: #{tpu_custom_call.1} parent=5 // pred_fallthru
      _
    %p249 = scmp.lt.s32.totalorder %s14, 2
    // Predicated region
    $region41: #{tpu_custom_call.1} parent=5 // pred_check
      %p250 = pneg %p249
    $region42: #{tpu_custom_call.1} parent=5 // pred_check_branch
      %252 = sbr.rel (%p250) target = $region44
    $region43: #{tpu_custom_call.1} parent=5 // pred_region
      // Predicated region
      $region45: #{tpu_custom_call.1} parent=43 // pred_check
        %p253 = pneg %p34
      $region46: #{tpu_custom_call.1} parent=43 // pred_check_branch
        %255 = sbr.rel (%p253) target = $region48
      $region47: #{tpu_custom_call.1} parent=43 // pred_region
        %p256 = scmp.lt.s32.totalorder %s14, 1
        %s257 = scalar_select %p256, %s14, 1
        %s258 = smul.addr %s257, 43
        %s259 = smul.addr %s258, 8
        %s260 = scalar_lea.vmem %s0, %s259
      $region48: #{tpu_custom_call.1} parent=43 // pred_fallthru
        _
    $region44: #{tpu_custom_call.1} parent=5 // pred_fallthru
      _
    %p261 = scmp.le.s32.totalorder 1, %s14
    %p262 = scmp.lt.s32.totalorder %s14, 3
    %p263 = pnand %p261, %p262
    %p264 = pneg %p263
    // Predicated region
    $region49: #{tpu_custom_call.1} parent=5 // pred_check
      _
    $region50: #{tpu_custom_call.1} parent=5 // pred_check_branch
      %266 = sbr.rel (%p263) target = $region52
    $region51: #{tpu_custom_call.1} parent=5 // pred_region
      %s267 = ssub.s32 %s14, 1
      %p268 = scmp.lt.s32.totalorder %s19, 1
      %s269 = scalar_select %p268, %s19, 1
      %s270 = smul.addr %s269, 43
      %s271 = smul.addr %s270, 8
      %s272 = scalar_lea.vmem %s0, %s271
      %p273 = pneg %p40
      %p274 = pneg %p37
      %p275 = pneg %p61
      %p276 = pneg %p58
      %p277 = pneg %p82
      %p278 = pneg %p79
      %p279 = pneg %p103
      %p280 = pneg %p100
      %p281 = pneg %p124
      %p282 = pneg %p121
      %p283 = pneg %p145
      %p284 = pneg %p142
      %p285 = pneg %p166
      %p286 = pneg %p163
      %p287 = pneg %p187
      %p288 = pneg %p184
      %p289 = pneg %p213
      %p290 = pneg %p210
      %p291 = scmp.lt.s32.totalorder %s19, 1
      %s292 = scalar_select %p291, %s19, 1
      %s293 = smul.addr %s292, 8
      %s294 = smul.addr %s293, 8
      %s295 = scalar_lea.vmem %s8, %s294
      %p296 = scmp.lt.s32.totalorder %s19, 1
      %s297 = scalar_select %p296, %s19, 1
      %s298 = smul.addr %s297, 43
      %s299 = smul.addr %s298, 8
      %s300 = scalar_lea.vmem %s0, %s299
      %p301 = scmp.lt.s32.totalorder %s19, 1
      %s302 = scalar_select %p301, %s19, 1
      %s303 = smul.addr %s302, 8
      %s304 = smul.addr %s303, 8
      %s305 = scalar_lea.vmem %s8, %s304
      %v306 = vld [vmem:[%s300] sm:$0xff]
      %v307 = vld [vmem:[%s300 + $0x8] sm:$0xff]
      %v308 = vld [vmem:[%s300 + $0x10] sm:$0xff]
      %v309 = vld [vmem:[%s300 + $0x18] sm:$0xff]
      %v310 = vld [vmem:[%s300 + $0x20] sm:$0xff]
      %v311 = vld [vmem:[%s300 + $0x28] sm:$0xff]
      %v312 = vld [vmem:[%s300 + $0x30] sm:$0xff]
      %v313 = vld [vmem:[%s300 + $0x38] sm:$0xff]
      %v314 = vld [vmem:[%s300 + $0x40] sm:$0xff]
      %v315 = vld [vmem:[%s300 + $0x48] sm:$0xff]
      %v316 = vld [vmem:[%s300 + $0x50] sm:$0xff]
      %v317 = vld [vmem:[%s300 + $0x58] sm:$0xff]
      %v318 = vld [vmem:[%s300 + $0x60] sm:$0xff]
      %v319 = vld [vmem:[%s300 + $0x68] sm:$0xff]
      %v320 = vld [vmem:[%s300 + $0x70] sm:$0xff]
      %v321 = vld [vmem:[%s300 + $0x78] sm:$0xff]
      %v322 = vld [vmem:[%s300 + $0x80] sm:$0xff]
      %v323 = vld [vmem:[%s300 + $0x88] sm:$0xff]
      %v324 = vld [vmem:[%s300 + $0x90] sm:$0xff]
      %v325 = vld [vmem:[%s300 + $0x98] sm:$0xff]
      %v326 = vld [vmem:[%s300 + $0xa0] sm:$0xff]
      %v327 = vld [vmem:[%s300 + $0xa8] sm:$0xff]
      %v328 = vld [vmem:[%s300 + $0xb0] sm:$0xff]
      %v329 = vld [vmem:[%s300 + $0xb8] sm:$0xff]
      %v330 = vld [vmem:[%s300 + $0xc0] sm:$0xff]
      %v331 = vld [vmem:[%s300 + $0xc8] sm:$0xff]
      %v332 = vld [vmem:[%s300 + $0xd0] sm:$0xff]
      %v333 = vld [vmem:[%s300 + $0xd8] sm:$0xff]
      %v334 = vld [vmem:[%s300 + $0xe0] sm:$0xff]
      %v335 = vld [vmem:[%s300 + $0xe8] sm:$0xff]
      %v336 = vld [vmem:[%s300 + $0xf0] sm:$0xff]
      %v337 = vld [vmem:[%s300 + $0xf8] sm:$0xff]
      %v338 = vld [vmem:[%s300 + $0x100] sm:$0xff]
      %v339 = vld [vmem:[%s300 + $0x108] sm:$0xff]
      %v340 = vld [vmem:[%s300 + $0x110] sm:$0xff]
      %v341 = vld [vmem:[%s300 + $0x118] sm:$0xff]
      %v342 = vld [vmem:[%s300 + $0x120] sm:$0xff]
      %v343 = vld [vmem:[%s300 + $0x128] sm:$0xff]
      %v344 = vld [vmem:[%s300 + $0x130] sm:$0xff]
      %v345 = vld [vmem:[%s300 + $0x138] sm:$0xff]
      %v346 = vld [vmem:[%s300 + $0x140] sm:$0xff]
      %v347 = vld [vmem:[%s300 + $0x148] sm:$0xff]
      %v348 = vld [vmem:[%s300 + $0x150] sm:$0x3f]
      %v349 = vld [vmem:[%s1] sm:$0xff]
      %v350 = vld [vmem:[%s2] sm:$0x1]
      %v352 = vlaneseq
      %v353 = vshrl.u32 %v352, 7
      %v354 = vsub.s32 0, %v353
      %v355 = vrot.slane %v350, %v354
      %vm357 = vcmask 64512
      %v359 = vsel %vm357, %v306, 0
      %v362 = vsel %vm357, %v307, 0
      %v365 = vsel %vm357, %v308, 0
      %v368 = vsel %vm357, %v309, 0
      %v371 = vsel %vm357, %v310, 0
      %v374 = vsel %vm357, %v311, 0
      %v377 = vsel %vm357, %v312, 0
      %v380 = vsel %vm357, %v313, 0
      %v383 = vsel %vm357, %v314, 0
      %v386 = vsel %vm357, %v315, 0
      %v389 = vsel %vm357, %v316, 0
      %v392 = vsel %vm357, %v317, 0
      %v395 = vsel %vm357, %v318, 0
      %v398 = vsel %vm357, %v319, 0
      %v401 = vsel %vm357, %v320, 0
      %v404 = vsel %vm357, %v321, 0
      %v407 = vsel %vm357, %v322, 0
      %v410 = vsel %vm357, %v323, 0
      %v413 = vsel %vm357, %v324, 0
      %v416 = vsel %vm357, %v325, 0
      %v419 = vsel %vm357, %v326, 0
      %v422 = vsel %vm357, %v327, 0
      %v425 = vsel %vm357, %v328, 0
      %v428 = vsel %vm357, %v329, 0
      %v431 = vsel %vm357, %v330, 0
      %v434 = vsel %vm357, %v331, 0
      %v437 = vsel %vm357, %v332, 0
      %v440 = vsel %vm357, %v333, 0
      %v443 = vsel %vm357, %v334, 0
      %v446 = vsel %vm357, %v335, 0
      %v449 = vsel %vm357, %v336, 0
      %v452 = vsel %vm357, %v337, 0
      %v455 = vsel %vm357, %v338, 0
      %v458 = vsel %vm357, %v339, 0
      %v461 = vsel %vm357, %v340, 0
      %v464 = vsel %vm357, %v341, 0
      %v467 = vsel %vm357, %v342, 0
      %v470 = vsel %vm357, %v343, 0
      %v473 = vsel %vm357, %v344, 0
      %v476 = vsel %vm357, %v345, 0
      %v479 = vsel %vm357, %v346, 0
      %v482 = vsel %vm357, %v347, 0
      %v485 = vsel %vm357, %v348, 0
      %487 = vmatprep.subr.mxu0 0.0
      %488 = vmatpush1.msra.mxu0 %v349
      %489 = vmatprep.subr.mxu0 0.0
      %490 = vmatpush1.msra.mxu0 0.0
      %491 = vmatprep.subr.mxu0 0.0
      %492 = vmatpush1.msra.mxu0 0.0
      %493 = vmatprep.subr.mxu0 0.0
      %494 = vmatpush1.msra.mxu0 0.0
      %495 = vmatprep.subr.mxu0 0.0
      %496 = vmatpush1.msra.mxu0 0.0
      %497 = vmatprep.subr.mxu0 0.0
      %498 = vmatpush1.msra.mxu0 0.0
      %499 = vmatprep.subr.mxu0 0.0
      %500 = vmatpush1.msra.mxu0 0.0
      %501 = vmatprep.subr.mxu0 0.0
      %502 = vmatpush1.msra.mxu0 0.0
      %503 = vmatprep.subr.mxu0 0.0
      %504 = vmatpush1.msra.mxu0 0.0
      %505 = vmatprep.subr.mxu0 0.0
      %506 = vmatpush1.msra.mxu0 0.0
      %507 = vmatprep.subr.mxu0 0.0
      %508 = vmatpush1.msra.mxu0 0.0
      %509 = vmatprep.subr.mxu0 0.0
      %510 = vmatpush1.msra.mxu0 0.0
      %511 = vmatprep.subr.mxu0 0.0
      %512 = vmatpush1.msra.mxu0 0.0
      %513 = vmatprep.subr.mxu0 0.0
      %514 = vmatpush1.msra.mxu0 0.0
      %515 = vmatprep.subr.mxu0 0.0
      %516 = vmatpush1.msra.mxu0 0.0
      %517 = vmatprep.subr.mxu0 0.0
      %518 = vmatpush1.msra.mxu0 0.0
      %519 = vmatprep.subr.mxu0 0.0
      %520 = vmatpush1.msra.mxu0 0.0
      %521 = vmatprep.subr.mxu0 0.0
      %522 = vmatpush1.msra.mxu0 0.0
      %523 = vmatprep.subr.mxu0 0.0
      %524 = vmatpush1.msra.mxu0 0.0
      %525 = vmatprep.subr.mxu0 0.0
      %526 = vmatpush1.msra.mxu0 0.0
      %527 = vmatprep.subr.mxu0 0.0
      %528 = vmatpush1.msra.mxu0 0.0
      %529 = vmatprep.subr.mxu0 0.0
      %530 = vmatpush1.msra.mxu0 0.0
      %531 = vmatprep.subr.mxu0 0.0
      %532 = vmatpush1.msra.mxu0 0.0
      %533 = vmatprep.subr.mxu0 0.0
      %534 = vmatpush1.msra.mxu0 0.0
      %535 = vmatprep.subr.mxu0 0.0
      %536 = vmatpush1.msra.mxu0 0.0
      %537 = vmatprep.subr.mxu0 0.0
      %538 = vmatpush1.msra.mxu0 0.0
      %539 = vmatprep.subr.mxu0 0.0
      %540 = vmatpush1.msra.mxu0 0.0
      %541 = vmatprep.subr.mxu0 0.0
      %542 = vmatpush1.msra.mxu0 0.0
      %543 = vmatprep.subr.mxu0 0.0
      %544 = vmatpush1.msra.mxu0 0.0
      %545 = vmatprep.subr.mxu0 0.0
      %546 = vmatpush1.msra.mxu0 0.0
      %547 = vmatprep.subr.mxu0 0.0
      %548 = vmatpush1.msra.mxu0 0.0
      %549 = vmatprep.subr.mxu0 0.0
      %550 = vmatpush1.msra.mxu0 0.0
      %551 = vmatprep.mubr.f32.mxu0 0.0
      %552 = vmatmul.mubr.f32.gmra.mrb[0].mxu0 %v359
      %v553 = vpop.f32.mrb[0].mxu0
      %v554 = vadd.f32 %v355, %v553
      %v555 = vpop.f32.mrb[0].mxu0
      %556 = vmatprep.mubr.f32.mxu0 0.0
      %557 = vmatmul.mubr.f32.gmra.mrb[0].mxu0 %v362
      %v558 = vpop.f32.mrb[0].mxu0
      %v559 = vadd.f32 %v355, %v558
      %v560 = vpop.f32.mrb[0].mxu0
      %561 = vmatprep.mubr.f32.mxu0 0.0
      %562 = vmatmul.mubr.f32.gmra.mrb[0].mxu0 %v365
      %v563 = vpop.f32.mrb[0].mxu0
      %v564 = vadd.f32 %v355, %v563
      %v565 = vpop.f32.mrb[0].mxu0
      %566 = vmatprep.mubr.f32.mxu0 0.0
      %567 = vmatmul.mubr.f32.gmra.mrb[0].mxu0 %v368
      %v568 = vpop.f32.mrb[0].mxu0
      %v569 = vadd.f32 %v355, %v568
      %v570 = vpop.f32.mrb[0].mxu0
      %571 = vmatprep.mubr.f32.mxu0 0.0
      %572 = vmatmul.mubr.f32.gmra.mrb[0].mxu0 %v371
      %v573 = vpop.f32.mrb[0].mxu0
      %v574 = vadd.f32 %v355, %v573
      %v575 = vpop.f32.mrb[0].mxu0
      %576 = vmatprep.mubr.f32.mxu0 0.0
      %577 = vmatmul.mubr.f32.gmra.mrb[0].mxu0 %v374
      %v578 = vpop.f32.mrb[0].mxu0
      %v579 = vadd.f32 %v355, %v578
      %v580 = vpop.f32.mrb[0].mxu0
      %581 = vmatprep.mubr.f32.mxu0 0.0
      %582 = vmatmul.mubr.f32.gmra.mrb[0].mxu0 %v377
      %v583 = vpop.f32.mrb[0].mxu0
      %v584 = vadd.f32 %v355, %v583
      %v585 = vpop.f32.mrb[0].mxu0
      %586 = vmatprep.mubr.f32.mxu0 0.0
      %587 = vmatmul.mubr.f32.gmra.mrb[0].mxu0 %v380
      %v588 = vpop.f32.mrb[0].mxu0
      %v589 = vadd.f32 %v355, %v588
      %v590 = vpop.f32.mrb[0].mxu0
      %591 = vmatprep.mubr.f32.mxu0 0.0
      %592 = vmatmul.mubr.f32.gmra.mrb[0].mxu0 %v383
      %v593 = vpop.f32.mrb[0].mxu0
      %v594 = vadd.f32 %v355, %v593
      %v595 = vpop.f32.mrb[0].mxu0
      %596 = vmatprep.mubr.f32.mxu0 0.0
      %597 = vmatmul.mubr.f32.gmra.mrb[0].mxu0 %v386
      %v598 = vpop.f32.mrb[0].mxu0
      %v599 = vadd.f32 %v355, %v598
      %v600 = vpop.f32.mrb[0].mxu0
      %601 = vmatprep.mubr.f32.mxu0 0.0
      %602 = vmatmul.mubr.f32.gmra.mrb[0].mxu0 %v389
      %v603 = vpop.f32.mrb[0].mxu0
      %v604 = vadd.f32 %v355, %v603
      %v605 = vpop.f32.mrb[0].mxu0
      %606 = vmatprep.mubr.f32.mxu0 0.0
      %607 = vmatmul.mubr.f32.gmra.mrb[0].mxu0 %v392
      %v608 = vpop.f32.mrb[0].mxu0
      %v609 = vadd.f32 %v355, %v608
      %v610 = vpop.f32.mrb[0].mxu0
      %611 = vmatprep.mubr.f32.mxu0 0.0
      %612 = vmatmul.mubr.f32.gmra.mrb[0].mxu0 %v395
      %v613 = vpop.f32.mrb[0].mxu0
      %v614 = vadd.f32 %v355, %v613
      %v615 = vpop.f32.mrb[0].mxu0
      %616 = vmatprep.mubr.f32.mxu0 0.0
      %617 = vmatmul.mubr.f32.gmra.mrb[0].mxu0 %v398
      %v618 = vpop.f32.mrb[0].mxu0
      %v619 = vadd.f32 %v355, %v618
      %v620 = vpop.f32.mrb[0].mxu0
      %621 = vmatprep.mubr.f32.mxu0 0.0
      %622 = vmatmul.mubr.f32.gmra.mrb[0].mxu0 %v401
      %v623 = vpop.f32.mrb[0].mxu0
      %v624 = vadd.f32 %v355, %v623
      %v625 = vpop.f32.mrb[0].mxu0
      %626 = vmatprep.mubr.f32.mxu0 0.0
      %627 = vmatmul.mubr.f32.gmra.mrb[0].mxu0 %v404
      %v628 = vpop.f32.mrb[0].mxu0
      %v629 = vadd.f32 %v355, %v628
      %v630 = vpop.f32.mrb[0].mxu0
      %631 = vmatprep.mubr.f32.mxu0 0.0
      %632 = vmatmul.mubr.f32.gmra.mrb[0].mxu0 %v407
      %v633 = vpop.f32.mrb[0].mxu0
      %v634 = vadd.f32 %v355, %v633
      %v635 = vpop.f32.mrb[0].mxu0
      %636 = vmatprep.mubr.f32.mxu0 0.0
      %637 = vmatmul.mubr.f32.gmra.mrb[0].mxu0 %v410
      %v638 = vpop.f32.mrb[0].mxu0
      %v639 = vadd.f32 %v355, %v638
      %v640 = vpop.f32.mrb[0].mxu0
      %641 = vmatprep.mubr.f32.mxu0 0.0
      %642 = vmatmul.mubr.f32.gmra.mrb[0].mxu0 %v413
      %v643 = vpop.f32.mrb[0].mxu0
      %v644 = vadd.f32 %v355, %v643
      %v645 = vpop.f32.mrb[0].mxu0
      %646 = vmatprep.mubr.f32.mxu0 0.0
      %647 = vmatmul.mubr.f32.gmra.mrb[0].mxu0 %v416
      %v648 = vpop.f32.mrb[0].mxu0
      %v649 = vadd.f32 %v355, %v648
      %v650 = vpop.f32.mrb[0].mxu0
      %651 = vmatprep.mubr.f32.mxu0 0.0
      %652 = vmatmul.mubr.f32.gmra.mrb[0].mxu0 %v419
      %v653 = vpop.f32.mrb[0].mxu0
      %v654 = vadd.f32 %v355, %v653
      %v655 = vpop.f32.mrb[0].mxu0
      %656 = vmatprep.mubr.f32.mxu0 0.0
      %657 = vmatmul.mubr.f32.gmra.mrb[0].mxu0 %v422
      %v658 = vpop.f32.mrb[0].mxu0
      %v659 = vadd.f32 %v355, %v658
      %v660 = vpop.f32.mrb[0].mxu0
      %661 = vmatprep.mubr.f32.mxu0 0.0
      %662 = vmatmul.mubr.f32.gmra.mrb[0].mxu0 %v425
      %v663 = vpop.f32.mrb[0].mxu0
      %v664 = vadd.f32 %v355, %v663
      %v665 = vpop.f32.mrb[0].mxu0
      %666 = vmatprep.mubr.f32.mxu0 0.0
      %667 = vmatmul.mubr.f32.gmra.mrb[0].mxu0 %v428
      %v668 = vpop.f32.mrb[0].mxu0
      %v669 = vadd.f32 %v355, %v668
      %v670 = vpop.f32.mrb[0].mxu0
      %671 = vmatprep.mubr.f32.mxu0 0.0
      %672 = vmatmul.mubr.f32.gmra.mrb[0].mxu0 %v431
      %v673 = vpop.f32.mrb[0].mxu0
      %v674 = vadd.f32 %v355, %v673
      %v675 = vpop.f32.mrb[0].mxu0
      %676 = vmatprep.mubr.f32.mxu0 0.0
      %677 = vmatmul.mubr.f32.gmra.mrb[0].mxu0 %v434
      %v678 = vpop.f32.mrb[0].mxu0
      %v679 = vadd.f32 %v355, %v678
      %v680 = vpop.f32.mrb[0].mxu0
      %681 = vmatprep.mubr.f32.mxu0 0.0
      %682 = vmatmul.mubr.f32.gmra.mrb[0].mxu0 %v437
      %v683 = vpop.f32.mrb[0].mxu0
      %v684 = vadd.f32 %v355, %v683
      %v685 = vpop.f32.mrb[0].mxu0
      %686 = vmatprep.mubr.f32.mxu0 0.0
      %687 = vmatmul.mubr.f32.gmra.mrb[0].mxu0 %v440
      %v688 = vpop.f32.mrb[0].mxu0
      %v689 = vadd.f32 %v355, %v688
      %v690 = vpop.f32.mrb[0].mxu0
      %691 = vmatprep.mubr.f32.mxu0 0.0
      %692 = vmatmul.mubr.f32.gmra.mrb[0].mxu0 %v443
      %v693 = vpop.f32.mrb[0].mxu0
      %v694 = vadd.f32 %v355, %v693
      %v695 = vpop.f32.mrb[0].mxu0
      %696 = vmatprep.mubr.f32.mxu0 0.0
      %697 = vmatmul.mubr.f32.gmra.mrb[0].mxu0 %v446
      %v698 = vpop.f32.mrb[0].mxu0
      %v699 = vadd.f32 %v355, %v698
      %v700 = vpop.f32.mrb[0].mxu0
      %701 = vmatprep.mubr.f32.mxu0 0.0
      %702 = vmatmul.mubr.f32.gmra.mrb[0].mxu0 %v449
      %v703 = vpop.f32.mrb[0].mxu0
      %v704 = vadd.f32 %v355, %v703
      %v705 = vpop.f32.mrb[0].mxu0
      %706 = vmatprep.mubr.f32.mxu0 0.0
      %707 = vmatmul.mubr.f32.gmra.mrb[0].mxu0 %v452
      %v708 = vpop.f32.mrb[0].mxu0
      %v709 = vadd.f32 %v355, %v708
      %v710 = vpop.f32.mrb[0].mxu0
      %711 = vmatprep.mubr.f32.mxu0 0.0
      %712 = vmatmul.mubr.f32.gmra.mrb[0].mxu0 %v455
      %v713 = vpop.f32.mrb[0].mxu0
      %v714 = vadd.f32 %v355, %v713
      %v715 = vpop.f32.mrb[0].mxu0
      %716 = vmatprep.mubr.f32.mxu0 0.0
      %717 = vmatmul.mubr.f32.gmra.mrb[0].mxu0 %v458
      %v718 = vpop.f32.mrb[0].mxu0
      %v719 = vadd.f32 %v355, %v718
      %v720 = vpop.f32.mrb[0].mxu0
      %721 = vmatprep.mubr.f32.mxu0 0.0
      %722 = vmatmul.mubr.f32.gmra.mrb[0].mxu0 %v461
      %v723 = vpop.f32.mrb[0].mxu0
      %v724 = vadd.f32 %v355, %v723
      %v725 = vpop.f32.mrb[0].mxu0
      %726 = vmatprep.mubr.f32.mxu0 0.0
      %727 = vmatmul.mubr.f32.gmra.mrb[0].mxu0 %v464
      %v728 = vpop.f32.mrb[0].mxu0
      %v729 = vadd.f32 %v355, %v728
      %v730 = vpop.f32.mrb[0].mxu0
      %731 = vmatprep.mubr.f32.mxu0 0.0
      %732 = vmatmul.mubr.f32.gmra.mrb[0].mxu0 %v467
      %v733 = vpop.f32.mrb[0].mxu0
      %v734 = vadd.f32 %v355, %v733
      %v735 = vpop.f32.mrb[0].mxu0
      %736 = vmatprep.mubr.f32.mxu0 0.0
      %737 = vmatmul.mubr.f32.gmra.mrb[0].mxu0 %v470
      %v738 = vpop.f32.mrb[0].mxu0
      %v739 = vadd.f32 %v355, %v738
      %v740 = vpop.f32.mrb[0].mxu0
      %741 = vmatprep.mubr.f32.mxu0 0.0
      %742 = vmatmul.mubr.f32.gmra.mrb[0].mxu0 %v473
      %v743 = vpop.f32.mrb[0].mxu0
      %v744 = vadd.f32 %v355, %v743
      %v745 = vpop.f32.mrb[0].mxu0
      %746 = vmatprep.mubr.f32.mxu0 0.0
      %747 = vmatmul.mubr.f32.gmra.mrb[0].mxu0 %v476
      %v748 = vpop.f32.mrb[0].mxu0
      %v749 = vadd.f32 %v355, %v748
      %v750 = vpop.f32.mrb[0].mxu0
      %751 = vmatprep.mubr.f32.mxu0 0.0
      %752 = vmatmul.mubr.f32.gmra.mrb[0].mxu0 %v479
      %v753 = vpop.f32.mrb[0].mxu0
      %v754 = vadd.f32 %v355, %v753
      %v755 = vpop.f32.mrb[0].mxu0
      %756 = vmatprep.mubr.f32.mxu0 0.0
      %757 = vmatmul.mubr.f32.gmra.mrb[0].mxu0 %v482
      %v758 = vpop.f32.mrb[0].mxu0
      %v759 = vadd.f32 %v355, %v758
      %v760 = vpop.f32.mrb[0].mxu0
      %761 = vmatprep.mubr.f32.mxu0 0.0
      %762 = vmatmul.mubr.f32.gmra.mrb[0].mxu0 %v485
      %v763 = vpop.f32.mrb[0].mxu0
      %v764 = vadd.f32 %v355, %v763
      %v765 = vpop.f32.mrb[0].mxu0
      %766 = vdwg.mxu0
      %v767 = vmax.f32 %v554, 0.0
      %v768 = vmax.f32 %v559, 0.0
      %v769 = vmax.f32 %v564, 0.0
      %v770 = vmax.f32 %v569, 0.0
      %v771 = vmax.f32 %v574, 0.0
      %v772 = vmax.f32 %v579, 0.0
      %v773 = vmax.f32 %v584, 0.0
      %v774 = vmax.f32 %v589, 0.0
      %v775 = vmax.f32 %v594, 0.0
      %v776 = vmax.f32 %v599, 0.0
      %v777 = vmax.f32 %v604, 0.0
      %v778 = vmax.f32 %v609, 0.0
      %v779 = vmax.f32 %v614, 0.0
      %v780 = vmax.f32 %v619, 0.0
      %v781 = vmax.f32 %v624, 0.0
      %v782 = vmax.f32 %v629, 0.0
      %v783 = vmax.f32 %v634, 0.0
      %v784 = vmax.f32 %v639, 0.0
      %v785 = vmax.f32 %v644, 0.0
      %v786 = vmax.f32 %v649, 0.0
      %v787 = vmax.f32 %v654, 0.0
      %v788 = vmax.f32 %v659, 0.0
      %v789 = vmax.f32 %v664, 0.0
      %v790 = vmax.f32 %v669, 0.0
      %v791 = vmax.f32 %v674, 0.0
      %v792 = vmax.f32 %v679, 0.0
      %v793 = vmax.f32 %v684, 0.0
      %v794 = vmax.f32 %v689, 0.0
      %v795 = vmax.f32 %v694, 0.0
      %v796 = vmax.f32 %v699, 0.0
      %v797 = vmax.f32 %v704, 0.0
      %v798 = vmax.f32 %v709, 0.0
      %v799 = vmax.f32 %v714, 0.0
      %v800 = vmax.f32 %v719, 0.0
      %v801 = vmax.f32 %v724, 0.0
      %v802 = vmax.f32 %v729, 0.0
      %v803 = vmax.f32 %v734, 0.0
      %v804 = vmax.f32 %v739, 0.0
      %v805 = vmax.f32 %v744, 0.0
      %v806 = vmax.f32 %v749, 0.0
      %v807 = vmax.f32 %v754, 0.0
      %v808 = vmax.f32 %v759, 0.0
      %v809 = vmax.f32 %v764, 0.0
      %v810 = vld [vmem:[%s3] sm:$0xff]
      %v811 = vld [vmem:[%s4] sm:$0x1]
      %v813 = vlaneseq
      %v814 = vshrl.u32 %v813, 7
      %v815 = vsub.s32 0, %v814
      %v816 = vrot.slane %v811, %v815
      %v819 = vsel %vm357, %v767, 0
      %v822 = vsel %vm357, %v768, 0
      %v825 = vsel %vm357, %v769, 0
      %v828 = vsel %vm357, %v770, 0
      %v831 = vsel %vm357, %v771, 0
      %v834 = vsel %vm357, %v772, 0
      %v837 = vsel %vm357, %v773, 0
      %v840 = vsel %vm357, %v774, 0
      %v843 = vsel %vm357, %v775, 0
      %v846 = vsel %vm357, %v776, 0
      %v849 = vsel %vm357, %v777, 0
      %v852 = vsel %vm357, %v778, 0
      %v855 = vsel %vm357, %v779, 0
      %v858 = vsel %vm357, %v780, 0
      %v861 = vsel %vm357, %v781, 0
      %v864 = vsel %vm357, %v782, 0
      %v867 = vsel %vm357, %v783, 0
      %v870 = vsel %vm357, %v784, 0
      %v873 = vsel %vm357, %v785, 0
      %v876 = vsel %vm357, %v786, 0
      %v879 = vsel %vm357, %v787, 0
      %v882 = vsel %vm357, %v788, 0
      %v885 = vsel %vm357, %v789, 0
      %v888 = vsel %vm357, %v790, 0
      %v891 = vsel %vm357, %v791, 0
      %v894 = vsel %vm357, %v792, 0
      %v897 = vsel %vm357, %v793, 0
      %v900 = vsel %vm357, %v794, 0
      %v903 = vsel %vm357, %v795, 0
      %v906 = vsel %vm357, %v796, 0
      %v909 = vsel %vm357, %v797, 0
      %v912 = vsel %vm357, %v798, 0
      %v915 = vsel %vm357, %v799, 0
      %v918 = vsel %vm357, %v800, 0
      %v921 = vsel %vm357, %v801, 0
      %v924 = vsel %vm357, %v802, 0
      %v927 = vsel %vm357, %v803, 0
      %v930 = vsel %vm357, %v804, 0
      %v933 = vsel %vm357, %v805, 0
      %v936 = vsel %vm357, %v806, 0
      %v939 = vsel %vm357, %v807, 0
      %v942 = vsel %vm357, %v808, 0
      %v945 = vsel %vm357, %v809, 0
      %947 = vmatprep.subr.mxu0 0.0
      %948 = vmatpush1.msra.mxu0 %v810
      %949 = vmatprep.subr.mxu0 0.0
      %950 = vmatpush1.msra.mxu0 0.0
      %951 = vmatprep.subr.mxu0 0.0
      %952 = vmatpush1.msra.mxu0 0.0
      %953 = vmatprep.subr.mxu0 0.0
      %954 = vmatpush1.msra.mxu0 0.0
      %955 = vmatprep.subr.mxu0 0.0
      %956 = vmatpush1.msra.mxu0 0.0
      %957 = vmatprep.subr.mxu0 0.0
      %958 = vmatpush1.msra.mxu0 0.0
      %959 = vmatprep.subr.mxu0 0.0
      %960 = vmatpush1.msra.mxu0 0.0
      %961 = vmatprep.subr.mxu0 0.0
      %962 = vmatpush1.msra.mxu0 0.0
      %963 = vmatprep.subr.mxu0 0.0
      %964 = vmatpush1.msra.mxu0 0.0
      %965 = vmatprep.subr.mxu0 0.0
      %966 = vmatpush1.msra.mxu0 0.0
      %967 = vmatprep.subr.mxu0 0.0
      %968 = vmatpush1.msra.mxu0 0.0
      %969 = vmatprep.subr.mxu0 0.0
      %970 = vmatpush1.msra.mxu0 0.0
      %971 = vmatprep.subr.mxu0 0.0
      %972 = vmatpush1.msra.mxu0 0.0
      %973 = vmatprep.subr.mxu0 0.0
      %974 = vmatpush1.msra.mxu0 0.0
      %975 = vmatprep.subr.mxu0 0.0
      %976 = vmatpush1.msra.mxu0 0.0
      %977 = vmatprep.subr.mxu0 0.0
      %978 = vmatpush1.msra.mxu0 0.0
      %979 = vmatprep.subr.mxu0 0.0
      %980 = vmatpush1.msra.mxu0 0.0
      %981 = vmatprep.subr.mxu0 0.0
      %982 = vmatpush1.msra.mxu0 0.0
      %983 = vmatprep.subr.mxu0 0.0
      %984 = vmatpush1.msra.mxu0 0.0
      %985 = vmatprep.subr.mxu0 0.0
      %986 = vmatpush1.msra.mxu0 0.0
      %987 = vmatprep.subr.mxu0 0.0
      %988 = vmatpush1.msra.mxu0 0.0
      %989 = vmatprep.subr.mxu0 0.0
      %990 = vmatpush1.msra.mxu0 0.0
      %991 = vmatprep.subr.mxu0 0.0
      %992 = vmatpush1.msra.mxu0 0.0
      %993 = vmatprep.subr.mxu0 0.0
      %994 = vmatpush1.msra.mxu0 0.0
      %995 = vmatprep.subr.mxu0 0.0
      %996 = vmatpush1.msra.mxu0 0.0
      %997 = vmatprep.subr.mxu0 0.0
      %998 = vmatpush1.msra.mxu0 0.0
      %999 = vmatprep.subr.mxu0 0.0
      %1000 = vmatpush1.msra.mxu0 0.0
      %1001 = vmatprep.subr.mxu0 0.0
      %1002 = vmatpush1.msra.mxu0 0.0
      %1003 = vmatprep.subr.mxu0 0.0
      %1004 = vmatpush1.msra.mxu0 0.0
      %1005 = vmatprep.subr.mxu0 0.0
      %1006 = vmatpush1.msra.mxu0 0.0
      %1007 = vmatprep.subr.mxu0 0.0
      %1008 = vmatpush1.msra.mxu0 0.0
      %1009 = vmatprep.subr.mxu0 0.0
      %1010 = vmatpush1.msra.mxu0 0.0
      %1011 = vmatprep.mubr.f32.mxu0 0.0
      %1012 = vmatmul.mubr.f32.gmra.mrb[0].mxu0 %v819
      %v1013 = vpop.f32.mrb[0].mxu0
      %v1014 = vadd.f32 %v816, %v1013
      %v1015 = vpop.f32.mrb[0].mxu0
      %1016 = vmatprep.mubr.f32.mxu0 0.0
      %1017 = vmatmul.mubr.f32.gmra.mrb[0].mxu0 %v822
      %v1018 = vpop.f32.mrb[0].mxu0
      %v1019 = vadd.f32 %v816, %v1018
      %v1020 = vpop.f32.mrb[0].mxu0
      %1021 = vmatprep.mubr.f32.mxu0 0.0
      %1022 = vmatmul.mubr.f32.gmra.mrb[0].mxu0 %v825
      %v1023 = vpop.f32.mrb[0].mxu0
      %v1024 = vadd.f32 %v816, %v1023
      %v1025 = vpop.f32.mrb[0].mxu0
      %1026 = vmatprep.mubr.f32.mxu0 0.0
      %1027 = vmatmul.mubr.f32.gmra.mrb[0].mxu0 %v828
      %v1028 = vpop.f32.mrb[0].mxu0
      %v1029 = vadd.f32 %v816, %v1028
      %v1030 = vpop.f32.mrb[0].mxu0
      %1031 = vmatprep.mubr.f32.mxu0 0.0
      %1032 = vmatmul.mubr.f32.gmra.mrb[0].mxu0 %v831
      %v1033 = vpop.f32.mrb[0].mxu0
      %v1034 = vadd.f32 %v816, %v1033
      %v1035 = vpop.f32.mrb[0].mxu0
      %1036 = vmatprep.mubr.f32.mxu0 0.0
      %1037 = vmatmul.mubr.f32.gmra.mrb[0].mxu0 %v834
      %v1038 = vpop.f32.mrb[0].mxu0
      %v1039 = vadd.f32 %v816, %v1038
      %v1040 = vpop.f32.mrb[0].mxu0
      %1041 = vmatprep.mubr.f32.mxu0 0.0
      %1042 = vmatmul.mubr.f32.gmra.mrb[0].mxu0 %v837
      %v1043 = vpop.f32.mrb[0].mxu0
      %v1044 = vadd.f32 %v816, %v1043
      %v1045 = vpop.f32.mrb[0].mxu0
      %1046 = vmatprep.mubr.f32.mxu0 0.0
      %1047 = vmatmul.mubr.f32.gmra.mrb[0].mxu0 %v840
      %v1048 = vpop.f32.mrb[0].mxu0
      %v1049 = vadd.f32 %v816, %v1048
      %v1050 = vpop.f32.mrb[0].mxu0
      %1051 = vmatprep.mubr.f32.mxu0 0.0
      %1052 = vmatmul.mubr.f32.gmra.mrb[0].mxu0 %v843
      %v1053 = vpop.f32.mrb[0].mxu0
      %v1054 = vadd.f32 %v816, %v1053
      %v1055 = vpop.f32.mrb[0].mxu0
      %1056 = vmatprep.mubr.f32.mxu0 0.0
      %1057 = vmatmul.mubr.f32.gmra.mrb[0].mxu0 %v846
      %v1058 = vpop.f32.mrb[0].mxu0
      %v1059 = vadd.f32 %v816, %v1058
      %v1060 = vpop.f32.mrb[0].mxu0
      %1061 = vmatprep.mubr.f32.mxu0 0.0
      %1062 = vmatmul.mubr.f32.gmra.mrb[0].mxu0 %v849
      %v1063 = vpop.f32.mrb[0].mxu0
      %v1064 = vadd.f32 %v816, %v1063
      %v1065 = vpop.f32.mrb[0].mxu0
      %1066 = vmatprep.mubr.f32.mxu0 0.0
      %1067 = vmatmul.mubr.f32.gmra.mrb[0].mxu0 %v852
      %v1068 = vpop.f32.mrb[0].mxu0
      %v1069 = vadd.f32 %v816, %v1068
      %v1070 = vpop.f32.mrb[0].mxu0
      %1071 = vmatprep.mubr.f32.mxu0 0.0
      %1072 = vmatmul.mubr.f32.gmra.mrb[0].mxu0 %v855
      %v1073 = vpop.f32.mrb[0].mxu0
      %v1074 = vadd.f32 %v816, %v1073
      %v1075 = vpop.f32.mrb[0].mxu0
      %1076 = vmatprep.mubr.f32.mxu0 0.0
      %1077 = vmatmul.mubr.f32.gmra.mrb[0].mxu0 %v858
      %v1078 = vpop.f32.mrb[0].mxu0
      %v1079 = vadd.f32 %v816, %v1078
      %v1080 = vpop.f32.mrb[0].mxu0
      %1081 = vmatprep.mubr.f32.mxu0 0.0
      %1082 = vmatmul.mubr.f32.gmra.mrb[0].mxu0 %v861
      %v1083 = vpop.f32.mrb[0].mxu0
      %v1084 = vadd.f32 %v816, %v1083
      %v1085 = vpop.f32.mrb[0].mxu0
      %1086 = vmatprep.mubr.f32.mxu0 0.0
      %1087 = vmatmul.mubr.f32.gmra.mrb[0].mxu0 %v864
      %v1088 = vpop.f32.mrb[0].mxu0
      %v1089 = vadd.f32 %v816, %v1088
      %v1090 = vpop.f32.mrb[0].mxu0
      %1091 = vmatprep.mubr.f32.mxu0 0.0
      %1092 = vmatmul.mubr.f32.gmra.mrb[0].mxu0 %v867
      %v1093 = vpop.f32.mrb[0].mxu0
      %v1094 = vadd.f32 %v816, %v1093
      %v1095 = vpop.f32.mrb[0].mxu0
      %1096 = vmatprep.mubr.f32.mxu0 0.0
      %1097 = vmatmul.mubr.f32.gmra.mrb[0].mxu0 %v870
      %v1098 = vpop.f32.mrb[0].mxu0
      %v1099 = vadd.f32 %v816, %v1098
      %v1100 = vpop.f32.mrb[0].mxu0
      %1101 = vmatprep.mubr.f32.mxu0 0.0
      %1102 = vmatmul.mubr.f32.gmra.mrb[0].mxu0 %v873
      %v1103 = vpop.f32.mrb[0].mxu0
      %v1104 = vadd.f32 %v816, %v1103
      %v1105 = vpop.f32.mrb[0].mxu0
      %1106 = vmatprep.mubr.f32.mxu0 0.0
      %1107 = vmatmul.mubr.f32.gmra.mrb[0].mxu0 %v876
      %v1108 = vpop.f32.mrb[0].mxu0
      %v1109 = vadd.f32 %v816, %v1108
      %v1110 = vpop.f32.mrb[0].mxu0
      %1111 = vmatprep.mubr.f32.mxu0 0.0
      %1112 = vmatmul.mubr.f32.gmra.mrb[0].mxu0 %v879
      %v1113 = vpop.f32.mrb[0].mxu0
      %v1114 = vadd.f32 %v816, %v1113
      %v1115 = vpop.f32.mrb[0].mxu0
      %1116 = vmatprep.mubr.f32.mxu0 0.0
      %1117 = vmatmul.mubr.f32.gmra.mrb[0].mxu0 %v882
      %v1118 = vpop.f32.mrb[0].mxu0
      %v1119 = vadd.f32 %v816, %v1118
      %v1120 = vpop.f32.mrb[0].mxu0
      %1121 = vmatprep.mubr.f32.mxu0 0.0
      %1122 = vmatmul.mubr.f32.gmra.mrb[0].mxu0 %v885
      %v1123 = vpop.f32.mrb[0].mxu0
      %v1124 = vadd.f32 %v816, %v1123
      %v1125 = vpop.f32.mrb[0].mxu0
      %1126 = vmatprep.mubr.f32.mxu0 0.0
      %1127 = vmatmul.mubr.f32.gmra.mrb[0].mxu0 %v888
      %v1128 = vpop.f32.mrb[0].mxu0
      %v1129 = vadd.f32 %v816, %v1128
      %v1130 = vpop.f32.mrb[0].mxu0
      %1131 = vmatprep.mubr.f32.mxu0 0.0
      %1132 = vmatmul.mubr.f32.gmra.mrb[0].mxu0 %v891
      %v1133 = vpop.f32.mrb[0].mxu0
      %v1134 = vadd.f32 %v816, %v1133
      %v1135 = vpop.f32.mrb[0].mxu0
      %1136 = vmatprep.mubr.f32.mxu0 0.0
      %1137 = vmatmul.mubr.f32.gmra.mrb[0].mxu0 %v894
      %v1138 = vpop.f32.mrb[0].mxu0
      %v1139 = vadd.f32 %v816, %v1138
      %v1140 = vpop.f32.mrb[0].mxu0
      %1141 = vmatprep.mubr.f32.mxu0 0.0
      %1142 = vmatmul.mubr.f32.gmra.mrb[0].mxu0 %v897
      %v1143 = vpop.f32.mrb[0].mxu0
      %v1144 = vadd.f32 %v816, %v1143
      %v1145 = vpop.f32.mrb[0].mxu0
      %1146 = vmatprep.mubr.f32.mxu0 0.0
      %1147 = vmatmul.mubr.f32.gmra.mrb[0].mxu0 %v900
      %v1148 = vpop.f32.mrb[0].mxu0
      %v1149 = vadd.f32 %v816, %v1148
      %v1150 = vpop.f32.mrb[0].mxu0
      %1151 = vmatprep.mubr.f32.mxu0 0.0
      %1152 = vmatmul.mubr.f32.gmra.mrb[0].mxu0 %v903
      %v1153 = vpop.f32.mrb[0].mxu0
      %v1154 = vadd.f32 %v816, %v1153
      %v1155 = vpop.f32.mrb[0].mxu0
      %1156 = vmatprep.mubr.f32.mxu0 0.0
      %1157 = vmatmul.mubr.f32.gmra.mrb[0].mxu0 %v906
      %v1158 = vpop.f32.mrb[0].mxu0
      %v1159 = vadd.f32 %v816, %v1158
      %v1160 = vpop.f32.mrb[0].mxu0
      %1161 = vmatprep.mubr.f32.mxu0 0.0
      %1162 = vmatmul.mubr.f32.gmra.mrb[0].mxu0 %v909
      %v1163 = vpop.f32.mrb[0].mxu0
      %v1164 = vadd.f32 %v816, %v1163
      %v1165 = vpop.f32.mrb[0].mxu0
      %1166 = vmatprep.mubr.f32.mxu0 0.0
      %1167 = vmatmul.mubr.f32.gmra.mrb[0].mxu0 %v912
      %v1168 = vpop.f32.mrb[0].mxu0
      %v1169 = vadd.f32 %v816, %v1168
      %v1170 = vpop.f32.mrb[0].mxu0
      %1171 = vmatprep.mubr.f32.mxu0 0.0
      %1172 = vmatmul.mubr.f32.gmra.mrb[0].mxu0 %v915
      %v1173 = vpop.f32.mrb[0].mxu0
      %v1174 = vadd.f32 %v816, %v1173
      %v1175 = vpop.f32.mrb[0].mxu0
      %1176 = vmatprep.mubr.f32.mxu0 0.0
      %1177 = vmatmul.mubr.f32.gmra.mrb[0].mxu0 %v918
      %v1178 = vpop.f32.mrb[0].mxu0
      %v1179 = vadd.f32 %v816, %v1178
      %v1180 = vpop.f32.mrb[0].mxu0
      %1181 = vmatprep.mubr.f32.mxu0 0.0
      %1182 = vmatmul.mubr.f32.gmra.mrb[0].mxu0 %v921
      %v1183 = vpop.f32.mrb[0].mxu0
      %v1184 = vadd.f32 %v816, %v1183
      %v1185 = vpop.f32.mrb[0].mxu0
      %1186 = vmatprep.mubr.f32.mxu0 0.0
      %1187 = vmatmul.mubr.f32.gmra.mrb[0].mxu0 %v924
      %v1188 = vpop.f32.mrb[0].mxu0
      %v1189 = vadd.f32 %v816, %v1188
      %v1190 = vpop.f32.mrb[0].mxu0
      %1191 = vmatprep.mubr.f32.mxu0 0.0
      %1192 = vmatmul.mubr.f32.gmra.mrb[0].mxu0 %v927
      %v1193 = vpop.f32.mrb[0].mxu0
      %v1194 = vadd.f32 %v816, %v1193
      %v1195 = vpop.f32.mrb[0].mxu0
      %1196 = vmatprep.mubr.f32.mxu0 0.0
      %1197 = vmatmul.mubr.f32.gmra.mrb[0].mxu0 %v930
      %v1198 = vpop.f32.mrb[0].mxu0
      %v1199 = vadd.f32 %v816, %v1198
      %v1200 = vpop.f32.mrb[0].mxu0
      %1201 = vmatprep.mubr.f32.mxu0 0.0
      %1202 = vmatmul.mubr.f32.gmra.mrb[0].mxu0 %v933
      %v1203 = vpop.f32.mrb[0].mxu0
      %v1204 = vadd.f32 %v816, %v1203
      %v1205 = vpop.f32.mrb[0].mxu0
      %1206 = vmatprep.mubr.f32.mxu0 0.0
      %1207 = vmatmul.mubr.f32.gmra.mrb[0].mxu0 %v936
      %v1208 = vpop.f32.mrb[0].mxu0
      %v1209 = vadd.f32 %v816, %v1208
      %v1210 = vpop.f32.mrb[0].mxu0
      %1211 = vmatprep.mubr.f32.mxu0 0.0
      %1212 = vmatmul.mubr.f32.gmra.mrb[0].mxu0 %v939
      %v1213 = vpop.f32.mrb[0].mxu0
      %v1214 = vadd.f32 %v816, %v1213
      %v1215 = vpop.f32.mrb[0].mxu0
      %1216 = vmatprep.mubr.f32.mxu0 0.0
      %1217 = vmatmul.mubr.f32.gmra.mrb[0].mxu0 %v942
      %v1218 = vpop.f32.mrb[0].mxu0
      %v1219 = vpop.f32.mrb[0].mxu0
      %1220 = vmatprep.mubr.f32.mxu0 0.0
      %1221 = vmatmul.mubr.f32.gmra.mrb[0].mxu0 %v945
      %v1222 = vpop.f32.mrb[0].mxu0
      %v1223 = vpop.f32.mrb[0].mxu0
      %1224 = vdwg.mxu0
      %v1225 = vsub.f32 0.0, %v1014
      %v1226 = vsub.f32 0.0, %v1019
      %v1227 = vsub.f32 0.0, %v1024
      %v1228 = vsub.f32 0.0, %v1029
      %v1229 = vsub.f32 0.0, %v1034
      %v1230 = vsub.f32 0.0, %v1039
      %v1231 = vsub.f32 0.0, %v1044
      %v1232 = vsub.f32 0.0, %v1049
      %v1233 = vsub.f32 0.0, %v1054
      %v1234 = vsub.f32 0.0, %v1059
      %v1235 = vsub.f32 0.0, %v1064
      %v1236 = vsub.f32 0.0, %v1069
      %v1237 = vsub.f32 0.0, %v1074
      %v1238 = vsub.f32 0.0, %v1079
      %v1239 = vsub.f32 0.0, %v1084
      %v1240 = vsub.f32 0.0, %v1089
      %v1241 = vsub.f32 0.0, %v1094
      %v1242 = vsub.f32 0.0, %v1099
      %v1243 = vsub.f32 0.0, %v1104
      %v1244 = vsub.f32 0.0, %v1109
      %v1245 = vsub.f32 0.0, %v1114
      %v1246 = vsub.f32 0.0, %v1119
      %v1247 = vsub.f32 0.0, %v1124
      %v1248 = vsub.f32 0.0, %v1129
      %v1249 = vsub.f32 0.0, %v1134
      %v1250 = vsub.f32 0.0, %v1139
      %v1251 = vsub.f32 0.0, %v1144
      %v1252 = vsub.f32 0.0, %v1149
      %v1253 = vsub.f32 0.0, %v1154
      %v1254 = vsub.f32 0.0, %v1159
      %v1255 = vsub.f32 0.0, %v1164
      %v1256 = vsub.f32 0.0, %v1169
      %v1257 = vsub.f32 0.0, %v1174
      %v1258 = vsub.f32 0.0, %v1179
      %v1259 = vsub.f32 0.0, %v1184
      %v1260 = vsub.f32 0.0, %v1189
      %v1261 = vsub.f32 0.0, %v1194
      %v1262 = vsub.f32 0.0, %v1199
      %v1263 = vsub.f32 0.0, %v1204
      %v1264 = vsub.f32 0.0, %v1209
      %v1265 = vsub.f32 0.0, %v1214
      %v1266 = vmul.f32 %v1225, 1.442695
      %v1267 = vpow.pop %v1266
      %v1268 = vmul.f32 %v1226, 1.442695
      %v1269 = vpow.pop %v1268
      %v1270 = vmul.f32 %v1227, 1.442695
      %v1271 = vpow.pop %v1270
      %v1272 = vmul.f32 %v1228, 1.442695
      %v1273 = vpow.pop %v1272
      %v1274 = vmul.f32 %v1229, 1.442695
      %v1275 = vpow.pop %v1274
      %v1276 = vmul.f32 %v1230, 1.442695
      %v1277 = vpow.pop %v1276
      %v1278 = vmul.f32 %v1231, 1.442695
      %v1279 = vpow.pop %v1278
      %v1280 = vmul.f32 %v1232, 1.442695
      %v1281 = vpow.pop %v1280
      %v1282 = vmul.f32 %v1233, 1.442695
      %v1283 = vpow.pop %v1282
      %v1284 = vmul.f32 %v1234, 1.442695
      %v1285 = vpow.pop %v1284
      %v1286 = vmul.f32 %v1235, 1.442695
      %v1287 = vpow.pop %v1286
      %v1288 = vmul.f32 %v1236, 1.442695
      %v1289 = vpow.pop %v1288
      %v1290 = vmul.f32 %v1237, 1.442695
      %v1291 = vpow.pop %v1290
      %v1292 = vmul.f32 %v1238, 1.442695
      %v1293 = vpow.pop %v1292
      %v1294 = vmul.f32 %v1239, 1.442695
      %v1295 = vpow.pop %v1294
      %v1296 = vmul.f32 %v1240, 1.442695
      %v1297 = vpow.pop %v1296
      %v1298 = vmul.f32 %v1241, 1.442695
      %v1299 = vpow.pop %v1298
      %v1300 = vmul.f32 %v1242, 1.442695
      %v1301 = vpow.pop %v1300
      %v1302 = vmul.f32 %v1243, 1.442695
      %v1303 = vpow.pop %v1302
      %v1304 = vmul.f32 %v1244, 1.442695
      %v1305 = vpow.pop %v1304
      %v1306 = vmul.f32 %v1245, 1.442695
      %v1307 = vpow.pop %v1306
      %v1308 = vmul.f32 %v1246, 1.442695
      %v1309 = vpow.pop %v1308
      %v1310 = vmul.f32 %v1247, 1.442695
      %v1311 = vpow.pop %v1310
      %v1312 = vmul.f32 %v1248, 1.442695
      %v1313 = vpow.pop %v1312
      %v1314 = vmul.f32 %v1249, 1.442695
      %v1315 = vpow.pop %v1314
      %v1316 = vmul.f32 %v1250, 1.442695
      %v1317 = vpow.pop %v1316
      %v1318 = vmul.f32 %v1251, 1.442695
      %v1319 = vpow.pop %v1318
      %v1320 = vmul.f32 %v1252, 1.442695
      %v1321 = vpow.pop %v1320
      %v1322 = vmul.f32 %v1253, 1.442695
      %v1323 = vpow.pop %v1322
      %v1324 = vmul.f32 %v1254, 1.442695
      %v1325 = vpow.pop %v1324
      %v1326 = vmul.f32 %v1255, 1.442695
      %v1327 = vpow.pop %v1326
      %v1328 = vmul.f32 %v1256, 1.442695
      %v1329 = vpow.pop %v1328
      %v1330 = vmul.f32 %v1257, 1.442695
      %v1331 = vpow.pop %v1330
      %v1332 = vmul.f32 %v1258, 1.442695
      %v1333 = vpow.pop %v1332
      %v1334 = vmul.f32 %v1259, 1.442695
      %v1335 = vpow.pop %v1334
      %v1336 = vmul.f32 %v1260, 1.442695
      %v1337 = vpow.pop %v1336
      %v1338 = vmul.f32 %v1261, 1.442695
      %v1339 = vpow.pop %v1338
      %v1340 = vmul.f32 %v1262, 1.442695
      %v1341 = vpow.pop %v1340
      %v1342 = vmul.f32 %v1263, 1.442695
      %v1343 = vpow.pop %v1342
      %v1344 = vmul.f32 %v1264, 1.442695
      %v1345 = vpow.pop %v1344
      %v1346 = vmul.f32 %v1265, 1.442695
      %v1347 = vpow.pop %v1346
      %v1348 = vadd.f32 %v1267, 1.0
      %v1349 = vadd.f32 %v1269, 1.0
      %v1350 = vadd.f32 %v1271, 1.0
      %v1351 = vadd.f32 %v1273, 1.0
      %v1352 = vadd.f32 %v1275, 1.0
      %v1353 = vadd.f32 %v1277, 1.0
      %v1354 = vadd.f32 %v1279, 1.0
      %v1355 = vadd.f32 %v1281, 1.0
      %v1356 = vadd.f32 %v1283, 1.0
      %v1357 = vadd.f32 %v1285, 1.0
      %v1358 = vadd.f32 %v1287, 1.0
      %v1359 = vadd.f32 %v1289, 1.0
      %v1360 = vadd.f32 %v1291, 1.0
      %v1361 = vadd.f32 %v1293, 1.0
      %v1362 = vadd.f32 %v1295, 1.0
      %v1363 = vadd.f32 %v1297, 1.0
      %v1364 = vadd.f32 %v1299, 1.0
      %v1365 = vadd.f32 %v1301, 1.0
      %v1366 = vadd.f32 %v1303, 1.0
      %v1367 = vadd.f32 %v1305, 1.0
      %v1368 = vadd.f32 %v1307, 1.0
      %v1369 = vadd.f32 %v1309, 1.0
      %v1370 = vadd.f32 %v1311, 1.0
      %v1371 = vadd.f32 %v1313, 1.0
      %v1372 = vadd.f32 %v1315, 1.0
      %v1373 = vadd.f32 %v1317, 1.0
      %v1374 = vadd.f32 %v1319, 1.0
      %v1375 = vadd.f32 %v1321, 1.0
      %v1376 = vadd.f32 %v1323, 1.0
      %v1377 = vadd.f32 %v1325, 1.0
      %v1378 = vadd.f32 %v1327, 1.0
      %v1379 = vadd.f32 %v1329, 1.0
      %v1380 = vadd.f32 %v1331, 1.0
      %v1381 = vadd.f32 %v1333, 1.0
      %v1382 = vadd.f32 %v1335, 1.0
      %v1383 = vadd.f32 %v1337, 1.0
      %v1384 = vadd.f32 %v1339, 1.0
      %v1385 = vadd.f32 %v1341, 1.0
      %v1386 = vadd.f32 %v1343, 1.0
      %v1387 = vadd.f32 %v1345, 1.0
      %v1388 = vadd.f32 %v1347, 1.0
      %v1389 = vrcp.pop %v1348
      %v1390 = vrcp.pop %v1349
      %v1391 = vrcp.pop %v1350
      %v1392 = vrcp.pop %v1351
      %v1393 = vrcp.pop %v1352
      %v1394 = vrcp.pop %v1353
      %v1395 = vrcp.pop %v1354
      %v1396 = vrcp.pop %v1355
      %v1397 = vrcp.pop %v1356
      %v1398 = vrcp.pop %v1357
      %v1399 = vrcp.pop %v1358
      %v1400 = vrcp.pop %v1359
      %v1401 = vrcp.pop %v1360
      %v1402 = vrcp.pop %v1361
      %v1403 = vrcp.pop %v1362
      %v1404 = vrcp.pop %v1363
      %v1405 = vrcp.pop %v1364
      %v1406 = vrcp.pop %v1365
      %v1407 = vrcp.pop %v1366
      %v1408 = vrcp.pop %v1367
      %v1409 = vrcp.pop %v1368
      %v1410 = vrcp.pop %v1369
      %v1411 = vrcp.pop %v1370
      %v1412 = vrcp.pop %v1371
      %v1413 = vrcp.pop %v1372
      %v1414 = vrcp.pop %v1373
      %v1415 = vrcp.pop %v1374
      %v1416 = vrcp.pop %v1375
      %v1417 = vrcp.pop %v1376
      %v1418 = vrcp.pop %v1377
      %v1419 = vrcp.pop %v1378
      %v1420 = vrcp.pop %v1379
      %v1421 = vrcp.pop %v1380
      %v1422 = vrcp.pop %v1381
      %v1423 = vrcp.pop %v1382
      %v1424 = vrcp.pop %v1383
      %v1425 = vrcp.pop %v1384
      %v1426 = vrcp.pop %v1385
      %v1427 = vrcp.pop %v1386
      %v1428 = vrcp.pop %v1387
      %v1429 = vrcp.pop %v1388
      %v1430 = vmul.f32 %v1389, %v306
      %v1431 = vmul.f32 %v1390, %v307
      %v1432 = vmul.f32 %v1391, %v308
      %v1433 = vmul.f32 %v1392, %v309
      %v1434 = vmul.f32 %v1393, %v310
      %v1435 = vmul.f32 %v1394, %v311
      %v1436 = vmul.f32 %v1395, %v312
      %v1437 = vmul.f32 %v1396, %v313
      %v1438 = vmul.f32 %v1397, %v314
      %v1439 = vmul.f32 %v1398, %v315
      %v1440 = vmul.f32 %v1399, %v316
      %v1441 = vmul.f32 %v1400, %v317
      %v1442 = vmul.f32 %v1401, %v318
      %v1443 = vmul.f32 %v1402, %v319
      %v1444 = vmul.f32 %v1403, %v320
      %v1445 = vmul.f32 %v1404, %v321
      %v1446 = vmul.f32 %v1405, %v322
      %v1447 = vmul.f32 %v1406, %v323
      %v1448 = vmul.f32 %v1407, %v324
      %v1449 = vmul.f32 %v1408, %v325
      %v1450 = vmul.f32 %v1409, %v326
      %v1451 = vmul.f32 %v1410, %v327
      %v1452 = vmul.f32 %v1411, %v328
      %v1453 = vmul.f32 %v1412, %v329
      %v1454 = vmul.f32 %v1413, %v330
      %v1455 = vmul.f32 %v1414, %v331
      %v1456 = vmul.f32 %v1415, %v332
      %v1457 = vmul.f32 %v1416, %v333
      %v1458 = vmul.f32 %v1417, %v334
      %v1459 = vmul.f32 %v1418, %v335
      %v1460 = vmul.f32 %v1419, %v336
      %v1461 = vmul.f32 %v1420, %v337
      %v1462 = vmul.f32 %v1421, %v338
      %v1463 = vmul.f32 %v1422, %v339
      %v1464 = vmul.f32 %v1423, %v340
      %v1465 = vmul.f32 %v1424, %v341
      %v1466 = vmul.f32 %v1425, %v342
      %v1467 = vmul.f32 %v1426, %v343
      %v1468 = vmul.f32 %v1427, %v344
      %v1469 = vmul.f32 %v1428, %v345
      %v1470 = vmul.f32 %v1429, %v346
      %v1471 = vld [vmem:[%s7] sm:$0xff]
      %v1472 = vld [vmem:[%s7 + $0x8] sm:$0xff]
      %v1473 = vld [vmem:[%s7 + $0x10] sm:$0xff]
      %v1474 = vld [vmem:[%s7 + $0x18] sm:$0xff]
      %v1475 = vld [vmem:[%s7 + $0x20] sm:$0xff]
      %v1476 = vld [vmem:[%s7 + $0x28] sm:$0xff]
      %v1477 = vld [vmem:[%s7 + $0x30] sm:$0xff]
      %v1478 = vld [vmem:[%s7 + $0x38] sm:$0xff]
      %v1479 = vld [vmem:[%s7 + $0x40] sm:$0xff]
      %v1480 = vld [vmem:[%s7 + $0x48] sm:$0xff]
      %v1481 = vld [vmem:[%s7 + $0x50] sm:$0xff]
      %v1482 = vld [vmem:[%s7 + $0x58] sm:$0xff]
      %v1483 = vld [vmem:[%s7 + $0x60] sm:$0xff]
      %v1484 = vld [vmem:[%s7 + $0x68] sm:$0xff]
      %v1485 = vld [vmem:[%s7 + $0x70] sm:$0xff]
      %v1486 = vld [vmem:[%s7 + $0x78] sm:$0xff]
      %v1487 = vld [vmem:[%s7 + $0x80] sm:$0xff]
      %v1488 = vld [vmem:[%s7 + $0x88] sm:$0xff]
      %v1489 = vld [vmem:[%s7 + $0x90] sm:$0xff]
      %v1490 = vld [vmem:[%s7 + $0x98] sm:$0xff]
      %v1491 = vld [vmem:[%s7 + $0xa0] sm:$0xff]
      %v1492 = vld [vmem:[%s7 + $0xa8] sm:$0xff]
      %v1493 = vld [vmem:[%s7 + $0xb0] sm:$0xff]
      %v1494 = vld [vmem:[%s7 + $0xb8] sm:$0xff]
      %v1495 = vld [vmem:[%s7 + $0xc0] sm:$0xff]
      %v1496 = vld [vmem:[%s7 + $0xc8] sm:$0xff]
      %v1497 = vld [vmem:[%s7 + $0xd0] sm:$0xff]
      %v1498 = vld [vmem:[%s7 + $0xd8] sm:$0xff]
      %v1499 = vld [vmem:[%s7 + $0xe0] sm:$0xff]
      %v1500 = vld [vmem:[%s7 + $0xe8] sm:$0xff]
      %v1501 = vld [vmem:[%s7 + $0xf0] sm:$0xff]
      %v1502 = vld [vmem:[%s7 + $0xf8] sm:$0xff]
      %v1503 = vld [vmem:[%s7 + $0x100] sm:$0xff]
      %v1504 = vld [vmem:[%s7 + $0x108] sm:$0xff]
      %v1505 = vld [vmem:[%s7 + $0x110] sm:$0xff]
      %v1506 = vld [vmem:[%s7 + $0x118] sm:$0xff]
      %v1507 = vld [vmem:[%s7 + $0x120] sm:$0xff]
      %v1508 = vld [vmem:[%s7 + $0x128] sm:$0xff]
      %v1509 = vld [vmem:[%s7 + $0x130] sm:$0xff]
      %v1510 = vld [vmem:[%s7 + $0x138] sm:$0xff]
      %v1511 = vld [vmem:[%s7 + $0x140] sm:$0xff]
      %v1512 = vld [vmem:[%s7 + $0x148] sm:$0xff]
      %v1513 = vld [vmem:[%s7 + $0x150] sm:$0xff]
      %v1514 = vld [vmem:[%s7 + $0x158] sm:$0xff]
      %v1515 = vld [vmem:[%s7 + $0x160] sm:$0xff]
      %v1516 = vld [vmem:[%s7 + $0x168] sm:$0xff]
      %v1517 = vld [vmem:[%s7 + $0x170] sm:$0xff]
      %v1518 = vld [vmem:[%s7 + $0x178] sm:$0xff]
      %v1519 = vld [vmem:[%s7 + $0x180] sm:$0xff]
      %v1520 = vld [vmem:[%s7 + $0x188] sm:$0xff]
      %v1521 = vld [vmem:[%s7 + $0x190] sm:$0xff]
      %v1522 = vld [vmem:[%s7 + $0x198] sm:$0xff]
      %v1523 = vld [vmem:[%s7 + $0x1a0] sm:$0xff]
      %v1524 = vld [vmem:[%s7 + $0x1a8] sm:$0xff]
      %v1525 = vld [vmem:[%s7 + $0x1b0] sm:$0xff]
      %v1526 = vld [vmem:[%s7 + $0x1b8] sm:$0xff]
      %v1527 = vld [vmem:[%s7 + $0x1c0] sm:$0xff]
      %v1528 = vld [vmem:[%s7 + $0x1c8] sm:$0xff]
      %v1529 = vld [vmem:[%s7 + $0x1d0] sm:$0xff]
      %v1530 = vld [vmem:[%s7 + $0x1d8] sm:$0xff]
      %v1531 = vld [vmem:[%s7 + $0x1e0] sm:$0xff]
      %v1532 = vld [vmem:[%s7 + $0x1e8] sm:$0xff]
      %v1533 = vld [vmem:[%s7 + $0x1f0] sm:$0xff]
      %v1534 = vld [vmem:[%s7 + $0x1f8] sm:$0xff]
      %v1535 = vld [vmem:[%s7 + $0x200] sm:$0xff]
      %v1536 = vld [vmem:[%s7 + $0x208] sm:$0xff]
      %v1537 = vld [vmem:[%s7 + $0x210] sm:$0xff]
      %v1538 = vld [vmem:[%s7 + $0x218] sm:$0xff]
      %v1539 = vld [vmem:[%s7 + $0x220] sm:$0xff]
      %v1540 = vld [vmem:[%s7 + $0x228] sm:$0xff]
      %v1541 = vld [vmem:[%s7 + $0x230] sm:$0xff]
      %v1542 = vld [vmem:[%s7 + $0x238] sm:$0xff]
      %v1543 = vld [vmem:[%s7 + $0x240] sm:$0xff]
      %v1544 = vld [vmem:[%s7 + $0x248] sm:$0xff]
      %v1545 = vld [vmem:[%s7 + $0x250] sm:$0xff]
      %v1546 = vld [vmem:[%s7 + $0x258] sm:$0xff]
      %v1547 = vld [vmem:[%s7 + $0x260] sm:$0xff]
      %v1548 = vld [vmem:[%s7 + $0x268] sm:$0xff]
      %v1549 = vld [vmem:[%s7 + $0x270] sm:$0xff]
      %v1550 = vld [vmem:[%s7 + $0x278] sm:$0xff]
      %v1551 = vld [vmem:[%s7 + $0x280] sm:$0xff]
      %v1552 = vld [vmem:[%s7 + $0x288] sm:$0xff]
      %v1553 = vld [vmem:[%s7 + $0x290] sm:$0xff]
      %v1554 = vld [vmem:[%s7 + $0x298] sm:$0xff]
      %v1555 = vld [vmem:[%s7 + $0x2a0] sm:$0xff]
      %v1556 = vld [vmem:[%s7 + $0x2a8] sm:$0xff]
      %v1557 = vld [vmem:[%s7 + $0x2b0] sm:$0xff]
      %v1558 = vld [vmem:[%s7 + $0x2b8] sm:$0xff]
      %v1559 = vld [vmem:[%s7 + $0x2c0] sm:$0xff]
      %v1560 = vld [vmem:[%s7 + $0x2c8] sm:$0xff]
      %v1561 = vld [vmem:[%s7 + $0x2d0] sm:$0xff]
      %v1562 = vld [vmem:[%s7 + $0x2d8] sm:$0xff]
      %v1563 = vld [vmem:[%s7 + $0x2e0] sm:$0xff]
      %v1564 = vld [vmem:[%s7 + $0x2e8] sm:$0xff]
      %v1565 = vld [vmem:[%s7 + $0x2f0] sm:$0xff]
      %v1566 = vld [vmem:[%s7 + $0x2f8] sm:$0xff]
      %vm1567 = vcmask 261120
      %v1569 = vsel %vm1567, %v1473, 0
      %v1572 = vsel %vm1567, %v1476, 0
      %v1575 = vsel %vm1567, %v1479, 0
      %v1578 = vsel %vm1567, %v1482, 0
      %v1581 = vsel %vm1567, %v1485, 0
      %v1584 = vsel %vm1567, %v1488, 0
      %v1587 = vsel %vm1567, %v1491, 0
      %v1590 = vsel %vm1567, %v1494, 0
      %v1593 = vsel %vm1567, %v1497, 0
      %v1596 = vsel %vm1567, %v1500, 0
      %v1599 = vsel %vm1567, %v1503, 0
      %v1602 = vsel %vm1567, %v1506, 0
      %v1605 = vsel %vm1567, %v1509, 0
      %v1608 = vsel %vm1567, %v1512, 0
      %v1611 = vsel %vm1567, %v1515, 0
      %v1614 = vsel %vm1567, %v1518, 0
      %v1617 = vsel %vm1567, %v1521, 0
      %v1620 = vsel %vm1567, %v1524, 0
      %v1623 = vsel %vm1567, %v1527, 0
      %v1626 = vsel %vm1567, %v1530, 0
      %v1629 = vsel %vm1567, %v1533, 0
      %v1632 = vsel %vm1567, %v1536, 0
      %v1635 = vsel %vm1567, %v1539, 0
      %v1638 = vsel %vm1567, %v1542, 0
      %v1641 = vsel %vm1567, %v1545, 0
      %v1644 = vsel %vm1567, %v1548, 0
      %v1647 = vsel %vm1567, %v1551, 0
      %v1650 = vsel %vm1567, %v1554, 0
      %v1653 = vsel %vm1567, %v1557, 0
      %v1656 = vsel %vm1567, %v1560, 0
      %v1659 = vsel %vm1567, %v1563, 0
      %v1662 = vsel %vm1567, %v1566, 0
      %1664 = vmatprep.subr.mxu0 0.0
      %1665 = vmatpush1.msra.mxu0 %v1430
      %1666 = vmatprep.subr.mxu0 0.0
      %1667 = vmatpush1.msra.mxu0 %v1431
      %1668 = vmatprep.subr.mxu0 0.0
      %1669 = vmatpush1.msra.mxu0 %v1432
      %1670 = vmatprep.subr.mxu0 0.0
      %1671 = vmatpush1.msra.mxu0 %v1433
      %1672 = vmatprep.subr.mxu0 0.0
      %1673 = vmatpush1.msra.mxu0 %v1434
      %1674 = vmatprep.subr.mxu0 0.0
      %1675 = vmatpush1.msra.mxu0 %v1435
      %1676 = vmatprep.subr.mxu0 0.0
      %1677 = vmatpush1.msra.mxu0 %v1436
      %1678 = vmatprep.subr.mxu0 0.0
      %1679 = vmatpush1.msra.mxu0 %v1437
      %1680 = vmatprep.subr.mxu0 0.0
      %1681 = vmatpush1.msra.mxu0 %v1438
      %1682 = vmatprep.subr.mxu0 0.0
      %1683 = vmatpush1.msra.mxu0 %v1439
      %1684 = vmatprep.subr.mxu0 0.0
      %1685 = vmatpush1.msra.mxu0 %v1440
      %1686 = vmatprep.subr.mxu0 0.0
      %1687 = vmatpush1.msra.mxu0 %v1441
      %1688 = vmatprep.subr.mxu0 0.0
      %1689 = vmatpush1.msra.mxu0 %v1442
      %1690 = vmatprep.subr.mxu0 0.0
      %1691 = vmatpush1.msra.mxu0 %v1443
      %1692 = vmatprep.subr.mxu0 0.0
      %1693 = vmatpush1.msra.mxu0 %v1444
      %1694 = vmatprep.subr.mxu0 0.0
      %1695 = vmatpush1.msra.mxu0 %v1445
      %1696 = vmatprep.subr.mxu0 0.0
      %1697 = vmatpush1.msra.mxu0 %v1446
      %1698 = vmatprep.subr.mxu0 0.0
      %1699 = vmatpush1.msra.mxu0 %v1447
      %1700 = vmatprep.subr.mxu0 0.0
      %1701 = vmatpush1.msra.mxu0 %v1448
      %1702 = vmatprep.subr.mxu0 0.0
      %1703 = vmatpush1.msra.mxu0 %v1449
      %1704 = vmatprep.subr.mxu0 0.0
      %1705 = vmatpush1.msra.mxu0 %v1450
      %1706 = vmatprep.subr.mxu0 0.0
      %1707 = vmatpush1.msra.mxu0 %v1451
      %1708 = vmatprep.subr.mxu0 0.0
      %1709 = vmatpush1.msra.mxu0 %v1452
      %1710 = vmatprep.subr.mxu0 0.0
      %1711 = vmatpush1.msra.mxu0 %v1453
      %1712 = vmatprep.subr.mxu0 0.0
      %1713 = vmatpush1.msra.mxu0 %v1454
      %1714 = vmatprep.subr.mxu0 0.0
      %1715 = vmatpush1.msra.mxu0 %v1455
      %1716 = vmatprep.subr.mxu0 0.0
      %1717 = vmatpush1.msra.mxu0 %v1456
      %1718 = vmatprep.subr.mxu0 0.0
      %1719 = vmatpush1.msra.mxu0 %v1457
      %1720 = vmatprep.subr.mxu0 0.0
      %1721 = vmatpush1.msra.mxu0 %v1458
      %1722 = vmatprep.subr.mxu0 0.0
      %1723 = vmatpush1.msra.mxu0 %v1459
      %1724 = vmatprep.subr.mxu0 0.0
      %1725 = vmatpush1.msra.mxu0 %v1460
      %1726 = vmatprep.subr.mxu0 0.0
      %1727 = vmatpush1.msra.mxu0 %v1461
      %1728 = vmatprep.mubr.f32.mxu0 %v1472
      %1729 = vmatmul.mubr.f32.gmra.mrb[0].mxu0 %v1471
      %v1730 = vpop.f32.mrb[0].mxu0
      %v1731 = vadd.f32 0.0, %v1730
      %v1732 = vpop.f32.mrb[0].mxu0
      %1733 = vmatprep.mubr.f32.mxu0 %v1475
      %1734 = vmatmul.mubr.f32.gmra.mrb[0].mxu0 %v1474
      %v1735 = vpop.f32.mrb[0].mxu0
      %v1736 = vadd.f32 0.0, %v1735
      %v1737 = vpop.f32.mrb[0].mxu0
      %1738 = vmatprep.mubr.f32.mxu0 %v1478
      %1739 = vmatmul.mubr.f32.gmra.mrb[0].mxu0 %v1477
      %v1740 = vpop.f32.mrb[0].mxu0
      %v1741 = vadd.f32 0.0, %v1740
      %v1742 = vpop.f32.mrb[0].mxu0
      %1743 = vmatprep.mubr.f32.mxu0 %v1481
      %1744 = vmatmul.mubr.f32.gmra.mrb[0].mxu0 %v1480
      %v1745 = vpop.f32.mrb[0].mxu0
      %v1746 = vadd.f32 0.0, %v1745
      %v1747 = vpop.f32.mrb[0].mxu0
      %1748 = vmatprep.mubr.f32.mxu0 %v1484
      %1749 = vmatmul.mubr.f32.gmra.mrb[0].mxu0 %v1483
      %v1750 = vpop.f32.mrb[0].mxu0
      %v1751 = vadd.f32 0.0, %v1750
      %v1752 = vpop.f32.mrb[0].mxu0
      %1753 = vmatprep.mubr.f32.mxu0 %v1487
      %1754 = vmatmul.mubr.f32.gmra.mrb[0].mxu0 %v1486
      %v1755 = vpop.f32.mrb[0].mxu0
      %v1756 = vadd.f32 0.0, %v1755
      %v1757 = vpop.f32.mrb[0].mxu0
      %1758 = vmatprep.mubr.f32.mxu0 %v1490
      %1759 = vmatmul.mubr.f32.gmra.mrb[0].mxu0 %v1489
      %v1760 = vpop.f32.mrb[0].mxu0
      %v1761 = vadd.f32 0.0, %v1760
      %v1762 = vpop.f32.mrb[0].mxu0
      %1763 = vmatprep.mubr.f32.mxu0 %v1493
      %1764 = vmatmul.mubr.f32.gmra.mrb[0].mxu0 %v1492
      %v1765 = vpop.f32.mrb[0].mxu0
      %v1766 = vadd.f32 0.0, %v1765
      %v1767 = vpop.f32.mrb[0].mxu0
      %1768 = vmatprep.mubr.f32.mxu0 %v1496
      %1769 = vmatmul.mubr.f32.gmra.mrb[0].mxu0 %v1495
      %v1770 = vpop.f32.mrb[0].mxu0
      %v1771 = vadd.f32 0.0, %v1770
      %v1772 = vpop.f32.mrb[0].mxu0
      %1773 = vmatprep.mubr.f32.mxu0 %v1499
      %1774 = vmatmul.mubr.f32.gmra.mrb[0].mxu0 %v1498
      %v1775 = vpop.f32.mrb[0].mxu0
      %v1776 = vadd.f32 0.0, %v1775
      %v1777 = vpop.f32.mrb[0].mxu0
      %1778 = vmatprep.mubr.f32.mxu0 %v1502
      %1779 = vmatmul.mubr.f32.gmra.mrb[0].mxu0 %v1501
      %v1780 = vpop.f32.mrb[0].mxu0
      %v1781 = vadd.f32 0.0, %v1780
      %v1782 = vpop.f32.mrb[0].mxu0
      %1783 = vmatprep.mubr.f32.mxu0 %v1505
      %1784 = vmatmul.mubr.f32.gmra.mrb[0].mxu0 %v1504
      %v1785 = vpop.f32.mrb[0].mxu0
      %v1786 = vadd.f32 0.0, %v1785
      %v1787 = vpop.f32.mrb[0].mxu0
      %1788 = vmatprep.mubr.f32.mxu0 %v1508
      %1789 = vmatmul.mubr.f32.gmra.mrb[0].mxu0 %v1507
      %v1790 = vpop.f32.mrb[0].mxu0
      %v1791 = vadd.f32 0.0, %v1790
      %v1792 = vpop.f32.mrb[0].mxu0
      %1793 = vmatprep.mubr.f32.mxu0 %v1511
      %1794 = vmatmul.mubr.f32.gmra.mrb[0].mxu0 %v1510
      %v1795 = vpop.f32.mrb[0].mxu0
      %v1796 = vadd.f32 0.0, %v1795
      %v1797 = vpop.f32.mrb[0].mxu0
      %1798 = vmatprep.mubr.f32.mxu0 %v1514
      %1799 = vmatmul.mubr.f32.gmra.mrb[0].mxu0 %v1513
      %v1800 = vpop.f32.mrb[0].mxu0
      %v1801 = vadd.f32 0.0, %v1800
      %v1802 = vpop.f32.mrb[0].mxu0
      %1803 = vmatprep.mubr.f32.mxu0 %v1517
      %1804 = vmatmul.mubr.f32.gmra.mrb[0].mxu0 %v1516
      %v1805 = vpop.f32.mrb[0].mxu0
      %v1806 = vadd.f32 0.0, %v1805
      %v1807 = vpop.f32.mrb[0].mxu0
      %1808 = vmatprep.mubr.f32.mxu0 %v1520
      %1809 = vmatmul.mubr.f32.gmra.mrb[0].mxu0 %v1519
      %v1810 = vpop.f32.mrb[0].mxu0
      %v1811 = vadd.f32 0.0, %v1810
      %v1812 = vpop.f32.mrb[0].mxu0
      %1813 = vmatprep.mubr.f32.mxu0 %v1523
      %1814 = vmatmul.mubr.f32.gmra.mrb[0].mxu0 %v1522
      %v1815 = vpop.f32.mrb[0].mxu0
      %v1816 = vadd.f32 0.0, %v1815
      %v1817 = vpop.f32.mrb[0].mxu0
      %1818 = vmatprep.mubr.f32.mxu0 %v1526
      %1819 = vmatmul.mubr.f32.gmra.mrb[0].mxu0 %v1525
      %v1820 = vpop.f32.mrb[0].mxu0
      %v1821 = vadd.f32 0.0, %v1820
      %v1822 = vpop.f32.mrb[0].mxu0
      %1823 = vmatprep.mubr.f32.mxu0 %v1529
      %1824 = vmatmul.mubr.f32.gmra.mrb[0].mxu0 %v1528
      %v1825 = vpop.f32.mrb[0].mxu0
      %v1826 = vadd.f32 0.0, %v1825
      %v1827 = vpop.f32.mrb[0].mxu0
      %1828 = vmatprep.mubr.f32.mxu0 %v1532
      %1829 = vmatmul.mubr.f32.gmra.mrb[0].mxu0 %v1531
      %v1830 = vpop.f32.mrb[0].mxu0
      %v1831 = vadd.f32 0.0, %v1830
      %v1832 = vpop.f32.mrb[0].mxu0
      %1833 = vmatprep.mubr.f32.mxu0 %v1535
      %1834 = vmatmul.mubr.f32.gmra.mrb[0].mxu0 %v1534
      %v1835 = vpop.f32.mrb[0].mxu0
      %v1836 = vadd.f32 0.0, %v1835
      %v1837 = vpop.f32.mrb[0].mxu0
      %1838 = vmatprep.mubr.f32.mxu0 %v1538
      %1839 = vmatmul.mubr.f32.gmra.mrb[0].mxu0 %v1537
      %v1840 = vpop.f32.mrb[0].mxu0
      %v1841 = vadd.f32 0.0, %v1840
      %v1842 = vpop.f32.mrb[0].mxu0
      %1843 = vmatprep.mubr.f32.mxu0 %v1541
      %1844 = vmatmul.mubr.f32.gmra.mrb[0].mxu0 %v1540
      %v1845 = vpop.f32.mrb[0].mxu0
      %v1846 = vadd.f32 0.0, %v1845
      %v1847 = vpop.f32.mrb[0].mxu0
      %1848 = vmatprep.mubr.f32.mxu0 %v1544
      %1849 = vmatmul.mubr.f32.gmra.mrb[0].mxu0 %v1543
      %v1850 = vpop.f32.mrb[0].mxu0
      %v1851 = vadd.f32 0.0, %v1850
      %v1852 = vpop.f32.mrb[0].mxu0
      %1853 = vmatprep.mubr.f32.mxu0 %v1547
      %1854 = vmatmul.mubr.f32.gmra.mrb[0].mxu0 %v1546
      %v1855 = vpop.f32.mrb[0].mxu0
      %v1856 = vadd.f32 0.0, %v1855
      %v1857 = vpop.f32.mrb[0].mxu0
      %1858 = vmatprep.mubr.f32.mxu0 %v1550
      %1859 = vmatmul.mubr.f32.gmra.mrb[0].mxu0 %v1549
      %v1860 = vpop.f32.mrb[0].mxu0
      %v1861 = vadd.f32 0.0, %v1860
      %v1862 = vpop.f32.mrb[0].mxu0
      %1863 = vmatprep.mubr.f32.mxu0 %v1553
      %1864 = vmatmul.mubr.f32.gmra.mrb[0].mxu0 %v1552
      %v1865 = vpop.f32.mrb[0].mxu0
      %v1866 = vadd.f32 0.0, %v1865
      %v1867 = vpop.f32.mrb[0].mxu0
      %1868 = vmatprep.mubr.f32.mxu0 %v1556
      %1869 = vmatmul.mubr.f32.gmra.mrb[0].mxu0 %v1555
      %v1870 = vpop.f32.mrb[0].mxu0
      %v1871 = vadd.f32 0.0, %v1870
      %v1872 = vpop.f32.mrb[0].mxu0
      %1873 = vmatprep.mubr.f32.mxu0 %v1559
      %1874 = vmatmul.mubr.f32.gmra.mrb[0].mxu0 %v1558
      %v1875 = vpop.f32.mrb[0].mxu0
      %v1876 = vadd.f32 0.0, %v1875
      %v1877 = vpop.f32.mrb[0].mxu0
      %1878 = vmatprep.mubr.f32.mxu0 %v1562
      %1879 = vmatmul.mubr.f32.gmra.mrb[0].mxu0 %v1561
      %v1880 = vpop.f32.mrb[0].mxu0
      %v1881 = vadd.f32 0.0, %v1880
      %v1882 = vpop.f32.mrb[0].mxu0
      %1883 = vmatprep.mubr.f32.mxu0 %v1565
      %1884 = vmatmul.mubr.f32.gmra.mrb[0].mxu0 %v1564
      %v1885 = vpop.f32.mrb[0].mxu0
      %v1886 = vadd.f32 0.0, %v1885
      %v1887 = vpop.f32.mrb[0].mxu0
      %1888 = vdwg.mxu0
      %1889 = vmatprep.subr.mxu0 0.0
      %1890 = vmatpush1.msra.mxu0 %v1462
      %1891 = vmatprep.subr.mxu0 0.0
      %1892 = vmatpush1.msra.mxu0 %v1463
      %1893 = vmatprep.subr.mxu0 0.0
      %1894 = vmatpush1.msra.mxu0 %v1464
      %1895 = vmatprep.subr.mxu0 0.0
      %1896 = vmatpush1.msra.mxu0 %v1465
      %1897 = vmatprep.subr.mxu0 0.0
      %1898 = vmatpush1.msra.mxu0 0.0
      %1899 = vmatprep.subr.mxu0 0.0
      %1900 = vmatpush1.msra.mxu0 0.0
      %1901 = vmatprep.subr.mxu0 0.0
      %1902 = vmatpush1.msra.mxu0 0.0
      %1903 = vmatprep.subr.mxu0 0.0
      %1904 = vmatpush1.msra.mxu0 0.0
      %1905 = vmatprep.subr.mxu0 0.0
      %1906 = vmatpush1.msra.mxu0 0.0
      %1907 = vmatprep.subr.mxu0 0.0
      %1908 = vmatpush1.msra.mxu0 0.0
      %1909 = vmatprep.subr.mxu0 0.0
      %1910 = vmatpush1.msra.mxu0 0.0
      %1911 = vmatprep.subr.mxu0 0.0
      %1912 = vmatpush1.msra.mxu0 0.0
      %1913 = vmatprep.subr.mxu0 0.0
      %1914 = vmatpush1.msra.mxu0 0.0
      %1915 = vmatprep.subr.mxu0 0.0
      %1916 = vmatpush1.msra.mxu0 0.0
      %1917 = vmatprep.subr.mxu0 0.0
      %1918 = vmatpush1.msra.mxu0 0.0
      %1919 = vmatprep.subr.mxu0 0.0
      %1920 = vmatpush1.msra.mxu0 0.0
      %1921 = vmatprep.subr.mxu0 0.0
      %1922 = vmatpush1.msra.mxu0 0.0
      %1923 = vmatprep.subr.mxu0 0.0
      %1924 = vmatpush1.msra.mxu0 0.0
      %1925 = vmatprep.subr.mxu0 0.0
      %1926 = vmatpush1.msra.mxu0 0.0
      %1927 = vmatprep.subr.mxu0 0.0
      %1928 = vmatpush1.msra.mxu0 0.0
      %1929 = vmatprep.subr.mxu0 0.0
      %1930 = vmatpush1.msra.mxu0 0.0
      %1931 = vmatprep.subr.mxu0 0.0
      %1932 = vmatpush1.msra.mxu0 0.0
      %1933 = vmatprep.subr.mxu0 0.0
      %1934 = vmatpush1.msra.mxu0 0.0
      %1935 = vmatprep.subr.mxu0 0.0
      %1936 = vmatpush1.msra.mxu0 0.0
      %1937 = vmatprep.subr.mxu0 0.0
      %1938 = vmatpush1.msra.mxu0 0.0
      %1939 = vmatprep.subr.mxu0 0.0
      %1940 = vmatpush1.msra.mxu0 0.0
      %1941 = vmatprep.subr.mxu0 0.0
      %1942 = vmatpush1.msra.mxu0 0.0
      %1943 = vmatprep.subr.mxu0 0.0
      %1944 = vmatpush1.msra.mxu0 0.0
      %1945 = vmatprep.subr.mxu0 0.0
      %1946 = vmatpush1.msra.mxu0 0.0
      %1947 = vmatprep.subr.mxu0 0.0
      %1948 = vmatpush1.msra.mxu0 0.0
      %1949 = vmatprep.subr.mxu0 0.0
      %1950 = vmatpush1.msra.mxu0 0.0
      %1951 = vmatprep.subr.mxu0 0.0
      %1952 = vmatpush1.msra.mxu0 0.0
      %1953 = vmatprep.mubr.f32.mxu0 0.0
      %1954 = vmatmul.mubr.f32.gmra.mrb[0].mxu0 %v1569
      %v1955 = vpop.f32.mrb[0].mxu0
      %v1956 = vadd.f32 %v1731, %v1955
      %v1957 = vpop.f32.mrb[0].mxu0
      %1958 = vmatprep.mubr.f32.mxu0 0.0
      %1959 = vmatmul.mubr.f32.gmra.mrb[0].mxu0 %v1572
      %v1960 = vpop.f32.mrb[0].mxu0
      %v1961 = vadd.f32 %v1736, %v1960
      %v1962 = vpop.f32.mrb[0].mxu0
      %1963 = vmatprep.mubr.f32.mxu0 0.0
      %1964 = vmatmul.mubr.f32.gmra.mrb[0].mxu0 %v1575
      %v1965 = vpop.f32.mrb[0].mxu0
      %v1966 = vadd.f32 %v1741, %v1965
      %v1967 = vpop.f32.mrb[0].mxu0
      %1968 = vmatprep.mubr.f32.mxu0 0.0
      %1969 = vmatmul.mubr.f32.gmra.mrb[0].mxu0 %v1578
      %v1970 = vpop.f32.mrb[0].mxu0
      %v1971 = vadd.f32 %v1746, %v1970
      %v1972 = vpop.f32.mrb[0].mxu0
      %1973 = vmatprep.mubr.f32.mxu0 0.0
      %1974 = vmatmul.mubr.f32.gmra.mrb[0].mxu0 %v1581
      %v1975 = vpop.f32.mrb[0].mxu0
      %v1976 = vadd.f32 %v1751, %v1975
      %v1977 = vpop.f32.mrb[0].mxu0
      %1978 = vmatprep.mubr.f32.mxu0 0.0
      %1979 = vmatmul.mubr.f32.gmra.mrb[0].mxu0 %v1584
      %v1980 = vpop.f32.mrb[0].mxu0
      %v1981 = vadd.f32 %v1756, %v1980
      %v1982 = vpop.f32.mrb[0].mxu0
      %1983 = vmatprep.mubr.f32.mxu0 0.0
      %1984 = vmatmul.mubr.f32.gmra.mrb[0].mxu0 %v1587
      %v1985 = vpop.f32.mrb[0].mxu0
      %v1986 = vadd.f32 %v1761, %v1985
      %v1987 = vpop.f32.mrb[0].mxu0
      %1988 = vmatprep.mubr.f32.mxu0 0.0
      %1989 = vmatmul.mubr.f32.gmra.mrb[0].mxu0 %v1590
      %v1990 = vpop.f32.mrb[0].mxu0
      %v1991 = vadd.f32 %v1766, %v1990
      %v1992 = vpop.f32.mrb[0].mxu0
      %1993 = vmatprep.mubr.f32.mxu0 0.0
      %1994 = vmatmul.mubr.f32.gmra.mrb[0].mxu0 %v1593
      %v1995 = vpop.f32.mrb[0].mxu0
      %v1996 = vadd.f32 %v1771, %v1995
      %v1997 = vpop.f32.mrb[0].mxu0
      %1998 = vmatprep.mubr.f32.mxu0 0.0
      %1999 = vmatmul.mubr.f32.gmra.mrb[0].mxu0 %v1596
      %v2000 = vpop.f32.mrb[0].mxu0
      %v2001 = vadd.f32 %v1776, %v2000
      %v2002 = vpop.f32.mrb[0].mxu0
      %2003 = vmatprep.mubr.f32.mxu0 0.0
      %2004 = vmatmul.mubr.f32.gmra.mrb[0].mxu0 %v1599
      %v2005 = vpop.f32.mrb[0].mxu0
      %v2006 = vadd.f32 %v1781, %v2005
      %v2007 = vpop.f32.mrb[0].mxu0
      %2008 = vmatprep.mubr.f32.mxu0 0.0
      %2009 = vmatmul.mubr.f32.gmra.mrb[0].mxu0 %v1602
      %v2010 = vpop.f32.mrb[0].mxu0
      %v2011 = vadd.f32 %v1786, %v2010
      %v2012 = vpop.f32.mrb[0].mxu0
      %2013 = vmatprep.mubr.f32.mxu0 0.0
      %2014 = vmatmul.mubr.f32.gmra.mrb[0].mxu0 %v1605
      %v2015 = vpop.f32.mrb[0].mxu0
      %v2016 = vadd.f32 %v1791, %v2015
      %v2017 = vpop.f32.mrb[0].mxu0
      %2018 = vmatprep.mubr.f32.mxu0 0.0
      %2019 = vmatmul.mubr.f32.gmra.mrb[0].mxu0 %v1608
      %v2020 = vpop.f32.mrb[0].mxu0
      %v2021 = vadd.f32 %v1796, %v2020
      %v2022 = vpop.f32.mrb[0].mxu0
      %2023 = vmatprep.mubr.f32.mxu0 0.0
      %2024 = vmatmul.mubr.f32.gmra.mrb[0].mxu0 %v1611
      %v2025 = vpop.f32.mrb[0].mxu0
      %v2026 = vadd.f32 %v1801, %v2025
      %v2027 = vpop.f32.mrb[0].mxu0
      %2028 = vmatprep.mubr.f32.mxu0 0.0
      %2029 = vmatmul.mubr.f32.gmra.mrb[0].mxu0 %v1614
      %v2030 = vpop.f32.mrb[0].mxu0
      %v2031 = vadd.f32 %v1806, %v2030
      %v2032 = vpop.f32.mrb[0].mxu0
      %2033 = vmatprep.mubr.f32.mxu0 0.0
      %2034 = vmatmul.mubr.f32.gmra.mrb[0].mxu0 %v1617
      %v2035 = vpop.f32.mrb[0].mxu0
      %v2036 = vadd.f32 %v1811, %v2035
      %v2037 = vpop.f32.mrb[0].mxu0
      %2038 = vmatprep.mubr.f32.mxu0 0.0
      %2039 = vmatmul.mubr.f32.gmra.mrb[0].mxu0 %v1620
      %v2040 = vpop.f32.mrb[0].mxu0
      %v2041 = vadd.f32 %v1816, %v2040
      %v2042 = vpop.f32.mrb[0].mxu0
      %2043 = vmatprep.mubr.f32.mxu0 0.0
      %2044 = vmatmul.mubr.f32.gmra.mrb[0].mxu0 %v1623
      %v2045 = vpop.f32.mrb[0].mxu0
      %v2046 = vadd.f32 %v1821, %v2045
      %v2047 = vpop.f32.mrb[0].mxu0
      %2048 = vmatprep.mubr.f32.mxu0 0.0
      %2049 = vmatmul.mubr.f32.gmra.mrb[0].mxu0 %v1626
      %v2050 = vpop.f32.mrb[0].mxu0
      %v2051 = vadd.f32 %v1826, %v2050
      %v2052 = vpop.f32.mrb[0].mxu0
      %2053 = vmatprep.mubr.f32.mxu0 0.0
      %2054 = vmatmul.mubr.f32.gmra.mrb[0].mxu0 %v1629
      %v2055 = vpop.f32.mrb[0].mxu0
      %v2056 = vadd.f32 %v1831, %v2055
      %v2057 = vpop.f32.mrb[0].mxu0
      %2058 = vmatprep.mubr.f32.mxu0 0.0
      %2059 = vmatmul.mubr.f32.gmra.mrb[0].mxu0 %v1632
      %v2060 = vpop.f32.mrb[0].mxu0
      %v2061 = vadd.f32 %v1836, %v2060
      %v2062 = vpop.f32.mrb[0].mxu0
      %2063 = vmatprep.mubr.f32.mxu0 0.0
      %2064 = vmatmul.mubr.f32.gmra.mrb[0].mxu0 %v1635
      %v2065 = vpop.f32.mrb[0].mxu0
      %v2066 = vadd.f32 %v1841, %v2065
      %v2067 = vpop.f32.mrb[0].mxu0
      %2068 = vmatprep.mubr.f32.mxu0 0.0
      %2069 = vmatmul.mubr.f32.gmra.mrb[0].mxu0 %v1638
      %v2070 = vpop.f32.mrb[0].mxu0
      %v2071 = vadd.f32 %v1846, %v2070
      %v2072 = vpop.f32.mrb[0].mxu0
      %2073 = vmatprep.mubr.f32.mxu0 0.0
      %2074 = vmatmul.mubr.f32.gmra.mrb[0].mxu0 %v1641
      %v2075 = vpop.f32.mrb[0].mxu0
      %v2076 = vadd.f32 %v1851, %v2075
      %v2077 = vpop.f32.mrb[0].mxu0
      %2078 = vmatprep.mubr.f32.mxu0 0.0
      %2079 = vmatmul.mubr.f32.gmra.mrb[0].mxu0 %v1644
      %v2080 = vpop.f32.mrb[0].mxu0
      %v2081 = vadd.f32 %v1856, %v2080
      %v2082 = vpop.f32.mrb[0].mxu0
      %2083 = vmatprep.mubr.f32.mxu0 0.0
      %2084 = vmatmul.mubr.f32.gmra.mrb[0].mxu0 %v1647
      %v2085 = vpop.f32.mrb[0].mxu0
      %v2086 = vadd.f32 %v1861, %v2085
      %v2087 = vpop.f32.mrb[0].mxu0
      %2088 = vmatprep.mubr.f32.mxu0 0.0
      %2089 = vmatmul.mubr.f32.gmra.mrb[0].mxu0 %v1650
      %v2090 = vpop.f32.mrb[0].mxu0
      %v2091 = vadd.f32 %v1866, %v2090
      %v2092 = vpop.f32.mrb[0].mxu0
      %2093 = vmatprep.mubr.f32.mxu0 0.0
      %2094 = vmatmul.mubr.f32.gmra.mrb[0].mxu0 %v1653
      %v2095 = vpop.f32.mrb[0].mxu0
      %v2096 = vadd.f32 %v1871, %v2095
      %v2097 = vpop.f32.mrb[0].mxu0
      %2098 = vmatprep.mubr.f32.mxu0 0.0
      %2099 = vmatmul.mubr.f32.gmra.mrb[0].mxu0 %v1656
      %v2100 = vpop.f32.mrb[0].mxu0
      %v2101 = vadd.f32 %v1876, %v2100
      %v2102 = vpop.f32.mrb[0].mxu0
      %2103 = vmatprep.mubr.f32.mxu0 0.0
      %2104 = vmatmul.mubr.f32.gmra.mrb[0].mxu0 %v1659
      %v2105 = vpop.f32.mrb[0].mxu0
      %v2106 = vadd.f32 %v1881, %v2105
      %v2107 = vpop.f32.mrb[0].mxu0
      %2108 = vmatprep.mubr.f32.mxu0 0.0
      %2109 = vmatmul.mubr.f32.gmra.mrb[0].mxu0 %v1662
      %v2110 = vpop.f32.mrb[0].mxu0
      %v2111 = vadd.f32 %v1886, %v2110
      %v2112 = vpop.f32.mrb[0].mxu0
      %2113 = vdwg.mxu0
      %v2114 = vld [vmem:[%s5] sm:$0xff]
      %vm2152 = vcmask 1046528
      %v2153 = vrot.slane %v1430, 1
      %v2154 = vrot.slane %v1431, 1
      %v2155 = vsel %vm2152, %v2153, %v2154
      %v2156 = vrot.slane %v1432, 1
      %v2157 = vsel %vm2152, %v2154, %v2156
      %v2158 = vrot.slane %v1433, 1
      %v2159 = vsel %vm2152, %v2156, %v2158
      %v2160 = vrot.slane %v1434, 1
      %v2161 = vsel %vm2152, %v2158, %v2160
      %v2162 = vrot.slane %v1435, 1
      %v2163 = vsel %vm2152, %v2160, %v2162
      %v2164 = vrot.slane %v1436, 1
      %v2165 = vsel %vm2152, %v2162, %v2164
      %v2166 = vrot.slane %v1437, 1
      %v2167 = vsel %vm2152, %v2164, %v2166
      %v2168 = vrot.slane %v1438, 1
      %v2169 = vsel %vm2152, %v2166, %v2168
      %v2170 = vrot.slane %v1439, 1
      %v2171 = vsel %vm2152, %v2168, %v2170
      %v2172 = vrot.slane %v1440, 1
      %v2173 = vsel %vm2152, %v2170, %v2172
      %v2174 = vrot.slane %v1441, 1
      %v2175 = vsel %vm2152, %v2172, %v2174
      %v2176 = vrot.slane %v1442, 1
      %v2177 = vsel %vm2152, %v2174, %v2176
      %v2178 = vrot.slane %v1443, 1
      %v2179 = vsel %vm2152, %v2176, %v2178
      %v2180 = vrot.slane %v1444, 1
      %v2181 = vsel %vm2152, %v2178, %v2180
      %v2182 = vrot.slane %v1445, 1
      %v2183 = vsel %vm2152, %v2180, %v2182
      %v2184 = vrot.slane %v1446, 1
      %v2185 = vsel %vm2152, %v2182, %v2184
      %v2186 = vrot.slane %v1447, 1
      %v2187 = vsel %vm2152, %v2184, %v2186
      %v2188 = vrot.slane %v1448, 1
      %v2189 = vsel %vm2152, %v2186, %v2188
      %v2190 = vrot.slane %v1449, 1
      %v2191 = vsel %vm2152, %v2188, %v2190
      %v2192 = vrot.slane %v1450, 1
      %v2193 = vsel %vm2152, %v2190, %v2192
      %v2194 = vrot.slane %v1451, 1
      %v2195 = vsel %vm2152, %v2192, %v2194
      %v2196 = vrot.slane %v1452, 1
      %v2197 = vsel %vm2152, %v2194, %v2196
      %v2198 = vrot.slane %v1453, 1
      %v2199 = vsel %vm2152, %v2196, %v2198
      %v2200 = vrot.slane %v1454, 1
      %v2201 = vsel %vm2152, %v2198, %v2200
      %v2202 = vrot.slane %v1455, 1
      %v2203 = vsel %vm2152, %v2200, %v2202
      %v2204 = vrot.slane %v1456, 1
      %v2205 = vsel %vm2152, %v2202, %v2204
      %v2206 = vrot.slane %v1457, 1
      %v2207 = vsel %vm2152, %v2204, %v2206
      %v2208 = vrot.slane %v1458, 1
      %v2209 = vsel %vm2152, %v2206, %v2208
      %v2210 = vrot.slane %v1459, 1
      %v2211 = vsel %vm2152, %v2208, %v2210
      %v2212 = vrot.slane %v1460, 1
      %v2213 = vsel %vm2152, %v2210, %v2212
      %v2214 = vrot.slane %v1461, 1
      %v2215 = vsel %vm2152, %v2212, %v2214
      %v2216 = vrot.slane %v1462, 1
      %v2217 = vsel %vm2152, %v2214, %v2216
      %v2218 = vrot.slane %v1463, 1
      %v2219 = vsel %vm2152, %v2216, %v2218
      %v2220 = vrot.slane %v1464, 1
      %v2221 = vsel %vm2152, %v2218, %v2220
      %v2222 = vrot.slane %v1465, 1
      %v2223 = vsel %vm2152, %v2220, %v2222
      %v2224 = vrot.slane %v1466, 1
      %v2225 = vsel %vm2152, %v2222, %v2224
      %2262 = vmatprep.subr.mxu0 0.0
      %2263 = vmatpush1.msra.mxu0 %v2155
      %2264 = vmatprep.subr.mxu0 0.0
      %2265 = vmatpush1.msra.mxu0 %v2157
      %2266 = vmatprep.subr.mxu0 0.0
      %2267 = vmatpush1.msra.mxu0 %v2159
      %2268 = vmatprep.subr.mxu0 0.0
      %2269 = vmatpush1.msra.mxu0 %v2161
      %2270 = vmatprep.subr.mxu0 0.0
      %2271 = vmatpush1.msra.mxu0 %v2163
      %2272 = vmatprep.subr.mxu0 0.0
      %2273 = vmatpush1.msra.mxu0 %v2165
      %2274 = vmatprep.subr.mxu0 0.0
      %2275 = vmatpush1.msra.mxu0 %v2167
      %2276 = vmatprep.subr.mxu0 0.0
      %2277 = vmatpush1.msra.mxu0 %v2169
      %2278 = vmatprep.subr.mxu0 0.0
      %2279 = vmatpush1.msra.mxu0 %v2171
      %2280 = vmatprep.subr.mxu0 0.0
      %2281 = vmatpush1.msra.mxu0 %v2173
      %2282 = vmatprep.subr.mxu0 0.0
      %2283 = vmatpush1.msra.mxu0 %v2175
      %2284 = vmatprep.subr.mxu0 0.0
      %2285 = vmatpush1.msra.mxu0 %v2177
      %2286 = vmatprep.subr.mxu0 0.0
      %2287 = vmatpush1.msra.mxu0 %v2179
      %2288 = vmatprep.subr.mxu0 0.0
      %2289 = vmatpush1.msra.mxu0 %v2181
      %2290 = vmatprep.subr.mxu0 0.0
      %2291 = vmatpush1.msra.mxu0 %v2183
      %2292 = vmatprep.subr.mxu0 0.0
      %2293 = vmatpush1.msra.mxu0 %v2185
      %2294 = vmatprep.subr.mxu0 0.0
      %2295 = vmatpush1.msra.mxu0 %v2187
      %2296 = vmatprep.subr.mxu0 0.0
      %2297 = vmatpush1.msra.mxu0 %v2189
      %2298 = vmatprep.subr.mxu0 0.0
      %2299 = vmatpush1.msra.mxu0 %v2191
      %2300 = vmatprep.subr.mxu0 0.0
      %2301 = vmatpush1.msra.mxu0 %v2193
      %2302 = vmatprep.subr.mxu0 0.0
      %2303 = vmatpush1.msra.mxu0 %v2195
      %2304 = vmatprep.subr.mxu0 0.0
      %2305 = vmatpush1.msra.mxu0 %v2197
      %2306 = vmatprep.subr.mxu0 0.0
      %2307 = vmatpush1.msra.mxu0 %v2199
      %2308 = vmatprep.subr.mxu0 0.0
      %2309 = vmatpush1.msra.mxu0 %v2201
      %2310 = vmatprep.subr.mxu0 0.0
      %2311 = vmatpush1.msra.mxu0 %v2203
      %2312 = vmatprep.subr.mxu0 0.0
      %2313 = vmatpush1.msra.mxu0 %v2205
      %2314 = vmatprep.subr.mxu0 0.0
      %2315 = vmatpush1.msra.mxu0 %v2207
      %2316 = vmatprep.subr.mxu0 0.0
      %2317 = vmatpush1.msra.mxu0 %v2209
      %2318 = vmatprep.subr.mxu0 0.0
      %2319 = vmatpush1.msra.mxu0 %v2211
      %2320 = vmatprep.subr.mxu0 0.0
      %2321 = vmatpush1.msra.mxu0 %v2213
      %2322 = vmatprep.subr.mxu0 0.0
      %2323 = vmatpush1.msra.mxu0 %v2215
      %2324 = vmatprep.subr.mxu0 0.0
      %2325 = vmatpush1.msra.mxu0 %v2217
      %2326 = vmatprep.mubr.f32.mxu0 %v1472
      %2327 = vmatmul.mubr.f32.gmra.mrb[0].mxu0 %v1471
      %v2328 = vpop.f32.mrb[0].mxu0
      %v2329 = vadd.f32 0.0, %v2328
      %v2330 = vpop.f32.mrb[0].mxu0
      %2331 = vmatprep.mubr.f32.mxu0 %v1475
      %2332 = vmatmul.mubr.f32.gmra.mrb[0].mxu0 %v1474
      %v2333 = vpop.f32.mrb[0].mxu0
      %v2334 = vadd.f32 0.0, %v2333
      %v2335 = vpop.f32.mrb[0].mxu0
      %2336 = vmatprep.mubr.f32.mxu0 %v1478
      %2337 = vmatmul.mubr.f32.gmra.mrb[0].mxu0 %v1477
      %v2338 = vpop.f32.mrb[0].mxu0
      %v2339 = vadd.f32 0.0, %v2338
      %v2340 = vpop.f32.mrb[0].mxu0
      %2341 = vmatprep.mubr.f32.mxu0 %v1481
      %2342 = vmatmul.mubr.f32.gmra.mrb[0].mxu0 %v1480
      %v2343 = vpop.f32.mrb[0].mxu0
      %v2344 = vadd.f32 0.0, %v2343
      %v2345 = vpop.f32.mrb[0].mxu0
      %2346 = vmatprep.mubr.f32.mxu0 %v1484
      %2347 = vmatmul.mubr.f32.gmra.mrb[0].mxu0 %v1483
      %v2348 = vpop.f32.mrb[0].mxu0
      %v2349 = vadd.f32 0.0, %v2348
      %v2350 = vpop.f32.mrb[0].mxu0
      %2351 = vmatprep.mubr.f32.mxu0 %v1487
      %2352 = vmatmul.mubr.f32.gmra.mrb[0].mxu0 %v1486
      %v2353 = vpop.f32.mrb[0].mxu0
      %v2354 = vadd.f32 0.0, %v2353
      %v2355 = vpop.f32.mrb[0].mxu0
      %2356 = vmatprep.mubr.f32.mxu0 %v1490
      %2357 = vmatmul.mubr.f32.gmra.mrb[0].mxu0 %v1489
      %v2358 = vpop.f32.mrb[0].mxu0
      %v2359 = vadd.f32 0.0, %v2358
      %v2360 = vpop.f32.mrb[0].mxu0
      %2361 = vmatprep.mubr.f32.mxu0 %v1493
      %2362 = vmatmul.mubr.f32.gmra.mrb[0].mxu0 %v1492
      %v2363 = vpop.f32.mrb[0].mxu0
      %v2364 = vadd.f32 0.0, %v2363
      %v2365 = vpop.f32.mrb[0].mxu0
      %2366 = vmatprep.mubr.f32.mxu0 %v1496
      %2367 = vmatmul.mubr.f32.gmra.mrb[0].mxu0 %v1495
      %v2368 = vpop.f32.mrb[0].mxu0
      %v2369 = vadd.f32 0.0, %v2368
      %v2370 = vpop.f32.mrb[0].mxu0
      %2371 = vmatprep.mubr.f32.mxu0 %v1499
      %2372 = vmatmul.mubr.f32.gmra.mrb[0].mxu0 %v1498
      %v2373 = vpop.f32.mrb[0].mxu0
      %v2374 = vadd.f32 0.0, %v2373
      %v2375 = vpop.f32.mrb[0].mxu0
      %2376 = vmatprep.mubr.f32.mxu0 %v1502
      %2377 = vmatmul.mubr.f32.gmra.mrb[0].mxu0 %v1501
      %v2378 = vpop.f32.mrb[0].mxu0
      %v2379 = vadd.f32 0.0, %v2378
      %v2380 = vpop.f32.mrb[0].mxu0
      %2381 = vmatprep.mubr.f32.mxu0 %v1505
      %2382 = vmatmul.mubr.f32.gmra.mrb[0].mxu0 %v1504
      %v2383 = vpop.f32.mrb[0].mxu0
      %v2384 = vadd.f32 0.0, %v2383
      %v2385 = vpop.f32.mrb[0].mxu0
      %2386 = vmatprep.mubr.f32.mxu0 %v1508
      %2387 = vmatmul.mubr.f32.gmra.mrb[0].mxu0 %v1507
      %v2388 = vpop.f32.mrb[0].mxu0
      %v2389 = vadd.f32 0.0, %v2388
      %v2390 = vpop.f32.mrb[0].mxu0
      %2391 = vmatprep.mubr.f32.mxu0 %v1511
      %2392 = vmatmul.mubr.f32.gmra.mrb[0].mxu0 %v1510
      %v2393 = vpop.f32.mrb[0].mxu0
      %v2394 = vadd.f32 0.0, %v2393
      %v2395 = vpop.f32.mrb[0].mxu0
      %2396 = vmatprep.mubr.f32.mxu0 %v1514
      %2397 = vmatmul.mubr.f32.gmra.mrb[0].mxu0 %v1513
      %v2398 = vpop.f32.mrb[0].mxu0
      %v2399 = vadd.f32 0.0, %v2398
      %v2400 = vpop.f32.mrb[0].mxu0
      %2401 = vmatprep.mubr.f32.mxu0 %v1517
      %2402 = vmatmul.mubr.f32.gmra.mrb[0].mxu0 %v1516
      %v2403 = vpop.f32.mrb[0].mxu0
      %v2404 = vadd.f32 0.0, %v2403
      %v2405 = vpop.f32.mrb[0].mxu0
      %2406 = vmatprep.mubr.f32.mxu0 %v1520
      %2407 = vmatmul.mubr.f32.gmra.mrb[0].mxu0 %v1519
      %v2408 = vpop.f32.mrb[0].mxu0
      %v2409 = vadd.f32 0.0, %v2408
      %v2410 = vpop.f32.mrb[0].mxu0
      %2411 = vmatprep.mubr.f32.mxu0 %v1523
      %2412 = vmatmul.mubr.f32.gmra.mrb[0].mxu0 %v1522
      %v2413 = vpop.f32.mrb[0].mxu0
      %v2414 = vadd.f32 0.0, %v2413
      %v2415 = vpop.f32.mrb[0].mxu0
      %2416 = vmatprep.mubr.f32.mxu0 %v1526
      %2417 = vmatmul.mubr.f32.gmra.mrb[0].mxu0 %v1525
      %v2418 = vpop.f32.mrb[0].mxu0
      %v2419 = vadd.f32 0.0, %v2418
      %v2420 = vpop.f32.mrb[0].mxu0
      %2421 = vmatprep.mubr.f32.mxu0 %v1529
      %2422 = vmatmul.mubr.f32.gmra.mrb[0].mxu0 %v1528
      %v2423 = vpop.f32.mrb[0].mxu0
      %v2424 = vadd.f32 0.0, %v2423
      %v2425 = vpop.f32.mrb[0].mxu0
      %2426 = vmatprep.mubr.f32.mxu0 %v1532
      %2427 = vmatmul.mubr.f32.gmra.mrb[0].mxu0 %v1531
      %v2428 = vpop.f32.mrb[0].mxu0
      %v2429 = vadd.f32 0.0, %v2428
      %v2430 = vpop.f32.mrb[0].mxu0
      %2431 = vmatprep.mubr.f32.mxu0 %v1535
      %2432 = vmatmul.mubr.f32.gmra.mrb[0].mxu0 %v1534
      %v2433 = vpop.f32.mrb[0].mxu0
      %v2434 = vadd.f32 0.0, %v2433
      %v2435 = vpop.f32.mrb[0].mxu0
      %2436 = vmatprep.mubr.f32.mxu0 %v1538
      %2437 = vmatmul.mubr.f32.gmra.mrb[0].mxu0 %v1537
      %v2438 = vpop.f32.mrb[0].mxu0
      %v2439 = vadd.f32 0.0, %v2438
      %v2440 = vpop.f32.mrb[0].mxu0
      %2441 = vmatprep.mubr.f32.mxu0 %v1541
      %2442 = vmatmul.mubr.f32.gmra.mrb[0].mxu0 %v1540
      %v2443 = vpop.f32.mrb[0].mxu0
      %v2444 = vadd.f32 0.0, %v2443
      %v2445 = vpop.f32.mrb[0].mxu0
      %2446 = vmatprep.mubr.f32.mxu0 %v1544
      %2447 = vmatmul.mubr.f32.gmra.mrb[0].mxu0 %v1543
      %v2448 = vpop.f32.mrb[0].mxu0
      %v2449 = vadd.f32 0.0, %v2448
      %v2450 = vpop.f32.mrb[0].mxu0
      %2451 = vmatprep.mubr.f32.mxu0 %v1547
      %2452 = vmatmul.mubr.f32.gmra.mrb[0].mxu0 %v1546
      %v2453 = vpop.f32.mrb[0].mxu0
      %v2454 = vadd.f32 0.0, %v2453
      %v2455 = vpop.f32.mrb[0].mxu0
      %2456 = vmatprep.mubr.f32.mxu0 %v1550
      %2457 = vmatmul.mubr.f32.gmra.mrb[0].mxu0 %v1549
      %v2458 = vpop.f32.mrb[0].mxu0
      %v2459 = vadd.f32 0.0, %v2458
      %v2460 = vpop.f32.mrb[0].mxu0
      %2461 = vmatprep.mubr.f32.mxu0 %v1553
      %2462 = vmatmul.mubr.f32.gmra.mrb[0].mxu0 %v1552
      %v2463 = vpop.f32.mrb[0].mxu0
      %v2464 = vadd.f32 0.0, %v2463
      %v2465 = vpop.f32.mrb[0].mxu0
      %2466 = vmatprep.mubr.f32.mxu0 %v1556
      %2467 = vmatmul.mubr.f32.gmra.mrb[0].mxu0 %v1555
      %v2468 = vpop.f32.mrb[0].mxu0
      %v2469 = vadd.f32 0.0, %v2468
      %v2470 = vpop.f32.mrb[0].mxu0
      %2471 = vmatprep.mubr.f32.mxu0 %v1559
      %2472 = vmatmul.mubr.f32.gmra.mrb[0].mxu0 %v1558
      %v2473 = vpop.f32.mrb[0].mxu0
      %v2474 = vadd.f32 0.0, %v2473
      %v2475 = vpop.f32.mrb[0].mxu0
      %2476 = vmatprep.mubr.f32.mxu0 %v1562
      %2477 = vmatmul.mubr.f32.gmra.mrb[0].mxu0 %v1561
      %v2478 = vpop.f32.mrb[0].mxu0
      %v2479 = vadd.f32 0.0, %v2478
      %v2480 = vpop.f32.mrb[0].mxu0
      %2481 = vmatprep.mubr.f32.mxu0 %v1565
      %2482 = vmatmul.mubr.f32.gmra.mrb[0].mxu0 %v1564
      %v2483 = vpop.f32.mrb[0].mxu0
      %v2484 = vadd.f32 0.0, %v2483
      %v2485 = vpop.f32.mrb[0].mxu0
      %2486 = vdwg.mxu0
      %2487 = vmatprep.subr.mxu0 0.0
      %2488 = vmatpush1.msra.mxu0 %v2219
      %2489 = vmatprep.subr.mxu0 0.0
      %2490 = vmatpush1.msra.mxu0 %v2221
      %2491 = vmatprep.subr.mxu0 0.0
      %2492 = vmatpush1.msra.mxu0 %v2223
      %2493 = vmatprep.subr.mxu0 0.0
      %2494 = vmatpush1.msra.mxu0 %v2225
      %2495 = vmatprep.subr.mxu0 0.0
      %2496 = vmatpush1.msra.mxu0 0.0
      %2497 = vmatprep.subr.mxu0 0.0
      %2498 = vmatpush1.msra.mxu0 0.0
      %2499 = vmatprep.subr.mxu0 0.0
      %2500 = vmatpush1.msra.mxu0 0.0
      %2501 = vmatprep.subr.mxu0 0.0
      %2502 = vmatpush1.msra.mxu0 0.0
      %2503 = vmatprep.subr.mxu0 0.0
      %2504 = vmatpush1.msra.mxu0 0.0
      %2505 = vmatprep.subr.mxu0 0.0
      %2506 = vmatpush1.msra.mxu0 0.0
      %2507 = vmatprep.subr.mxu0 0.0
      %2508 = vmatpush1.msra.mxu0 0.0
      %2509 = vmatprep.subr.mxu0 0.0
      %2510 = vmatpush1.msra.mxu0 0.0
      %2511 = vmatprep.subr.mxu0 0.0
      %2512 = vmatpush1.msra.mxu0 0.0
      %2513 = vmatprep.subr.mxu0 0.0
      %2514 = vmatpush1.msra.mxu0 0.0
      %2515 = vmatprep.subr.mxu0 0.0
      %2516 = vmatpush1.msra.mxu0 0.0
      %2517 = vmatprep.subr.mxu0 0.0
      %2518 = vmatpush1.msra.mxu0 0.0
      %2519 = vmatprep.subr.mxu0 0.0
      %2520 = vmatpush1.msra.mxu0 0.0
      %2521 = vmatprep.subr.mxu0 0.0
      %2522 = vmatpush1.msra.mxu0 0.0
      %2523 = vmatprep.subr.mxu0 0.0
      %2524 = vmatpush1.msra.mxu0 0.0
      %2525 = vmatprep.subr.mxu0 0.0
      %2526 = vmatpush1.msra.mxu0 0.0
      %2527 = vmatprep.subr.mxu0 0.0
      %2528 = vmatpush1.msra.mxu0 0.0
      %2529 = vmatprep.subr.mxu0 0.0
      %2530 = vmatpush1.msra.mxu0 0.0
      %2531 = vmatprep.subr.mxu0 0.0
      %2532 = vmatpush1.msra.mxu0 0.0
      %2533 = vmatprep.subr.mxu0 0.0
      %2534 = vmatpush1.msra.mxu0 0.0
      %2535 = vmatprep.subr.mxu0 0.0
      %2536 = vmatpush1.msra.mxu0 0.0
      %2537 = vmatprep.subr.mxu0 0.0
      %2538 = vmatpush1.msra.mxu0 0.0
      %2539 = vmatprep.subr.mxu0 0.0
      %2540 = vmatpush1.msra.mxu0 0.0
      %2541 = vmatprep.subr.mxu0 0.0
      %2542 = vmatpush1.msra.mxu0 0.0
      %2543 = vmatprep.subr.mxu0 0.0
      %2544 = vmatpush1.msra.mxu0 0.0
      %2545 = vmatprep.subr.mxu0 0.0
      %2546 = vmatpush1.msra.mxu0 0.0
      %2547 = vmatprep.subr.mxu0 0.0
      %2548 = vmatpush1.msra.mxu0 0.0
      %2549 = vmatprep.subr.mxu0 0.0
      %2550 = vmatpush1.msra.mxu0 0.0
      %2551 = vmatprep.mubr.f32.mxu0 0.0
      %2552 = vmatmul.mubr.f32.gmra.mrb[0].mxu0 %v1569
      %v2553 = vpop.f32.mrb[0].mxu0
      %v2554 = vadd.f32 %v2329, %v2553
      %v2555 = vpop.f32.mrb[0].mxu0
      %2556 = vmatprep.mubr.f32.mxu0 0.0
      %2557 = vmatmul.mubr.f32.gmra.mrb[0].mxu0 %v1572
      %v2558 = vpop.f32.mrb[0].mxu0
      %v2559 = vadd.f32 %v2334, %v2558
      %v2560 = vpop.f32.mrb[0].mxu0
      %2561 = vmatprep.mubr.f32.mxu0 0.0
      %2562 = vmatmul.mubr.f32.gmra.mrb[0].mxu0 %v1575
      %v2563 = vpop.f32.mrb[0].mxu0
      %v2564 = vadd.f32 %v2339, %v2563
      %v2565 = vpop.f32.mrb[0].mxu0
      %2566 = vmatprep.mubr.f32.mxu0 0.0
      %2567 = vmatmul.mubr.f32.gmra.mrb[0].mxu0 %v1578
      %v2568 = vpop.f32.mrb[0].mxu0
      %v2569 = vadd.f32 %v2344, %v2568
      %v2570 = vpop.f32.mrb[0].mxu0
      %2571 = vmatprep.mubr.f32.mxu0 0.0
      %2572 = vmatmul.mubr.f32.gmra.mrb[0].mxu0 %v1581
      %v2573 = vpop.f32.mrb[0].mxu0
      %v2574 = vadd.f32 %v2349, %v2573
      %v2575 = vpop.f32.mrb[0].mxu0
      %2576 = vmatprep.mubr.f32.mxu0 0.0
      %2577 = vmatmul.mubr.f32.gmra.mrb[0].mxu0 %v1584
      %v2578 = vpop.f32.mrb[0].mxu0
      %v2579 = vadd.f32 %v2354, %v2578
      %v2580 = vpop.f32.mrb[0].mxu0
      %2581 = vmatprep.mubr.f32.mxu0 0.0
      %2582 = vmatmul.mubr.f32.gmra.mrb[0].mxu0 %v1587
      %v2583 = vpop.f32.mrb[0].mxu0
      %v2584 = vadd.f32 %v2359, %v2583
      %v2585 = vpop.f32.mrb[0].mxu0
      %2586 = vmatprep.mubr.f32.mxu0 0.0
      %2587 = vmatmul.mubr.f32.gmra.mrb[0].mxu0 %v1590
      %v2588 = vpop.f32.mrb[0].mxu0
      %v2589 = vadd.f32 %v2364, %v2588
      %v2590 = vpop.f32.mrb[0].mxu0
      %2591 = vmatprep.mubr.f32.mxu0 0.0
      %2592 = vmatmul.mubr.f32.gmra.mrb[0].mxu0 %v1593
      %v2593 = vpop.f32.mrb[0].mxu0
      %v2594 = vadd.f32 %v2369, %v2593
      %v2595 = vpop.f32.mrb[0].mxu0
      %2596 = vmatprep.mubr.f32.mxu0 0.0
      %2597 = vmatmul.mubr.f32.gmra.mrb[0].mxu0 %v1596
      %v2598 = vpop.f32.mrb[0].mxu0
      %v2599 = vadd.f32 %v2374, %v2598
      %v2600 = vpop.f32.mrb[0].mxu0
      %2601 = vmatprep.mubr.f32.mxu0 0.0
      %2602 = vmatmul.mubr.f32.gmra.mrb[0].mxu0 %v1599
      %v2603 = vpop.f32.mrb[0].mxu0
      %v2604 = vadd.f32 %v2379, %v2603
      %v2605 = vpop.f32.mrb[0].mxu0
      %2606 = vmatprep.mubr.f32.mxu0 0.0
      %2607 = vmatmul.mubr.f32.gmra.mrb[0].mxu0 %v1602
      %v2608 = vpop.f32.mrb[0].mxu0
      %v2609 = vadd.f32 %v2384, %v2608
      %v2610 = vpop.f32.mrb[0].mxu0
      %2611 = vmatprep.mubr.f32.mxu0 0.0
      %2612 = vmatmul.mubr.f32.gmra.mrb[0].mxu0 %v1605
      %v2613 = vpop.f32.mrb[0].mxu0
      %v2614 = vadd.f32 %v2389, %v2613
      %v2615 = vpop.f32.mrb[0].mxu0
      %2616 = vmatprep.mubr.f32.mxu0 0.0
      %2617 = vmatmul.mubr.f32.gmra.mrb[0].mxu0 %v1608
      %v2618 = vpop.f32.mrb[0].mxu0
      %v2619 = vadd.f32 %v2394, %v2618
      %v2620 = vpop.f32.mrb[0].mxu0
      %2621 = vmatprep.mubr.f32.mxu0 0.0
      %2622 = vmatmul.mubr.f32.gmra.mrb[0].mxu0 %v1611
      %v2623 = vpop.f32.mrb[0].mxu0
      %v2624 = vadd.f32 %v2399, %v2623
      %v2625 = vpop.f32.mrb[0].mxu0
      %2626 = vmatprep.mubr.f32.mxu0 0.0
      %2627 = vmatmul.mubr.f32.gmra.mrb[0].mxu0 %v1614
      %v2628 = vpop.f32.mrb[0].mxu0
      %v2629 = vadd.f32 %v2404, %v2628
      %v2630 = vpop.f32.mrb[0].mxu0
      %2631 = vmatprep.mubr.f32.mxu0 0.0
      %2632 = vmatmul.mubr.f32.gmra.mrb[0].mxu0 %v1617
      %v2633 = vpop.f32.mrb[0].mxu0
      %v2634 = vadd.f32 %v2409, %v2633
      %v2635 = vpop.f32.mrb[0].mxu0
      %2636 = vmatprep.mubr.f32.mxu0 0.0
      %2637 = vmatmul.mubr.f32.gmra.mrb[0].mxu0 %v1620
      %v2638 = vpop.f32.mrb[0].mxu0
      %v2639 = vadd.f32 %v2414, %v2638
      %v2640 = vpop.f32.mrb[0].mxu0
      %2641 = vmatprep.mubr.f32.mxu0 0.0
      %2642 = vmatmul.mubr.f32.gmra.mrb[0].mxu0 %v1623
      %v2643 = vpop.f32.mrb[0].mxu0
      %v2644 = vadd.f32 %v2419, %v2643
      %v2645 = vpop.f32.mrb[0].mxu0
      %2646 = vmatprep.mubr.f32.mxu0 0.0
      %2647 = vmatmul.mubr.f32.gmra.mrb[0].mxu0 %v1626
      %v2648 = vpop.f32.mrb[0].mxu0
      %v2649 = vadd.f32 %v2424, %v2648
      %v2650 = vpop.f32.mrb[0].mxu0
      %2651 = vmatprep.mubr.f32.mxu0 0.0
      %2652 = vmatmul.mubr.f32.gmra.mrb[0].mxu0 %v1629
      %v2653 = vpop.f32.mrb[0].mxu0
      %v2654 = vadd.f32 %v2429, %v2653
      %v2655 = vpop.f32.mrb[0].mxu0
      %2656 = vmatprep.mubr.f32.mxu0 0.0
      %2657 = vmatmul.mubr.f32.gmra.mrb[0].mxu0 %v1632
      %v2658 = vpop.f32.mrb[0].mxu0
      %v2659 = vadd.f32 %v2434, %v2658
      %v2660 = vpop.f32.mrb[0].mxu0
      %2661 = vmatprep.mubr.f32.mxu0 0.0
      %2662 = vmatmul.mubr.f32.gmra.mrb[0].mxu0 %v1635
      %v2663 = vpop.f32.mrb[0].mxu0
      %v2664 = vadd.f32 %v2439, %v2663
      %v2665 = vpop.f32.mrb[0].mxu0
      %2666 = vmatprep.mubr.f32.mxu0 0.0
      %2667 = vmatmul.mubr.f32.gmra.mrb[0].mxu0 %v1638
      %v2668 = vpop.f32.mrb[0].mxu0
      %v2669 = vadd.f32 %v2444, %v2668
      %v2670 = vpop.f32.mrb[0].mxu0
      %2671 = vmatprep.mubr.f32.mxu0 0.0
      %2672 = vmatmul.mubr.f32.gmra.mrb[0].mxu0 %v1641
      %v2673 = vpop.f32.mrb[0].mxu0
      %v2674 = vadd.f32 %v2449, %v2673
      %v2675 = vpop.f32.mrb[0].mxu0
      %2676 = vmatprep.mubr.f32.mxu0 0.0
      %2677 = vmatmul.mubr.f32.gmra.mrb[0].mxu0 %v1644
      %v2678 = vpop.f32.mrb[0].mxu0
      %v2679 = vadd.f32 %v2454, %v2678
      %v2680 = vpop.f32.mrb[0].mxu0
      %2681 = vmatprep.mubr.f32.mxu0 0.0
      %2682 = vmatmul.mubr.f32.gmra.mrb[0].mxu0 %v1647
      %v2683 = vpop.f32.mrb[0].mxu0
      %v2684 = vadd.f32 %v2459, %v2683
      %v2685 = vpop.f32.mrb[0].mxu0
      %2686 = vmatprep.mubr.f32.mxu0 0.0
      %2687 = vmatmul.mubr.f32.gmra.mrb[0].mxu0 %v1650
      %v2688 = vpop.f32.mrb[0].mxu0
      %v2689 = vadd.f32 %v2464, %v2688
      %v2690 = vpop.f32.mrb[0].mxu0
      %2691 = vmatprep.mubr.f32.mxu0 0.0
      %2692 = vmatmul.mubr.f32.gmra.mrb[0].mxu0 %v1653
      %v2693 = vpop.f32.mrb[0].mxu0
      %v2694 = vadd.f32 %v2469, %v2693
      %v2695 = vpop.f32.mrb[0].mxu0
      %2696 = vmatprep.mubr.f32.mxu0 0.0
      %2697 = vmatmul.mubr.f32.gmra.mrb[0].mxu0 %v1656
      %v2698 = vpop.f32.mrb[0].mxu0
      %v2699 = vadd.f32 %v2474, %v2698
      %v2700 = vpop.f32.mrb[0].mxu0
      %2701 = vmatprep.mubr.f32.mxu0 0.0
      %2702 = vmatmul.mubr.f32.gmra.mrb[0].mxu0 %v1659
      %v2703 = vpop.f32.mrb[0].mxu0
      %v2704 = vadd.f32 %v2479, %v2703
      %v2705 = vpop.f32.mrb[0].mxu0
      %2706 = vmatprep.mubr.f32.mxu0 0.0
      %2707 = vmatmul.mubr.f32.gmra.mrb[0].mxu0 %v1662
      %v2708 = vpop.f32.mrb[0].mxu0
      %v2709 = vadd.f32 %v2484, %v2708
      %v2710 = vpop.f32.mrb[0].mxu0
      %2711 = vdwg.mxu0
      %s2712 = scalar_lea.vmem %s5, 8
      %v2713 = vld [vmem:[%s2712] sm:$0xff]
      %v2715 = vsel %vm357, %v2554, 0
      %v2718 = vsel %vm357, %v2559, 0
      %v2721 = vsel %vm357, %v2564, 0
      %v2724 = vsel %vm357, %v2569, 0
      %v2727 = vsel %vm357, %v2574, 0
      %v2730 = vsel %vm357, %v2579, 0
      %v2733 = vsel %vm357, %v2584, 0
      %v2736 = vsel %vm357, %v2589, 0
      %v2739 = vsel %vm357, %v2594, 0
      %v2742 = vsel %vm357, %v2599, 0
      %v2745 = vsel %vm357, %v2604, 0
      %v2748 = vsel %vm357, %v2609, 0
      %v2751 = vsel %vm357, %v2614, 0
      %v2754 = vsel %vm357, %v2619, 0
      %v2757 = vsel %vm357, %v2624, 0
      %v2760 = vsel %vm357, %v2629, 0
      %v2763 = vsel %vm357, %v2634, 0
      %v2766 = vsel %vm357, %v2639, 0
      %v2769 = vsel %vm357, %v2644, 0
      %v2772 = vsel %vm357, %v2649, 0
      %v2775 = vsel %vm357, %v2654, 0
      %v2778 = vsel %vm357, %v2659, 0
      %v2781 = vsel %vm357, %v2664, 0
      %v2784 = vsel %vm357, %v2669, 0
      %v2787 = vsel %vm357, %v2674, 0
      %v2790 = vsel %vm357, %v2679, 0
      %v2793 = vsel %vm357, %v2684, 0
      %v2796 = vsel %vm357, %v2689, 0
      %v2799 = vsel %vm357, %v2694, 0
      %v2802 = vsel %vm357, %v2699, 0
      %v2805 = vsel %vm357, %v2704, 0
      %v2808 = vsel %vm357, %v2709, 0
      %2810 = vmatprep.subr.mxu0 0.0
      %2811 = vmatpush1.msra.mxu0 %v2713
      %2812 = vmatprep.subr.mxu0 0.0
      %2813 = vmatpush1.msra.mxu0 0.0
      %2814 = vmatprep.subr.mxu0 0.0
      %2815 = vmatpush1.msra.mxu0 0.0
      %2816 = vmatprep.subr.mxu0 0.0
      %2817 = vmatpush1.msra.mxu0 0.0
      %2818 = vmatprep.subr.mxu0 0.0
      %2819 = vmatpush1.msra.mxu0 0.0
      %2820 = vmatprep.subr.mxu0 0.0
      %2821 = vmatpush1.msra.mxu0 0.0
      %2822 = vmatprep.subr.mxu0 0.0
      %2823 = vmatpush1.msra.mxu0 0.0
      %2824 = vmatprep.subr.mxu0 0.0
      %2825 = vmatpush1.msra.mxu0 0.0
      %2826 = vmatprep.subr.mxu0 0.0
      %2827 = vmatpush1.msra.mxu0 0.0
      %2828 = vmatprep.subr.mxu0 0.0
      %2829 = vmatpush1.msra.mxu0 0.0
      %2830 = vmatprep.subr.mxu0 0.0
      %2831 = vmatpush1.msra.mxu0 0.0
      %2832 = vmatprep.subr.mxu0 0.0
      %2833 = vmatpush1.msra.mxu0 0.0
      %2834 = vmatprep.subr.mxu0 0.0
      %2835 = vmatpush1.msra.mxu0 0.0
      %2836 = vmatprep.subr.mxu0 0.0
      %2837 = vmatpush1.msra.mxu0 0.0
      %2838 = vmatprep.subr.mxu0 0.0
      %2839 = vmatpush1.msra.mxu0 0.0
      %2840 = vmatprep.subr.mxu0 0.0
      %2841 = vmatpush1.msra.mxu0 0.0
      %2842 = vmatprep.subr.mxu0 0.0
      %2843 = vmatpush1.msra.mxu0 0.0
      %2844 = vmatprep.subr.mxu0 0.0
      %2845 = vmatpush1.msra.mxu0 0.0
      %2846 = vmatprep.subr.mxu0 0.0
      %2847 = vmatpush1.msra.mxu0 0.0
      %2848 = vmatprep.subr.mxu0 0.0
      %2849 = vmatpush1.msra.mxu0 0.0
      %2850 = vmatprep.subr.mxu0 0.0
      %2851 = vmatpush1.msra.mxu0 0.0
      %2852 = vmatprep.subr.mxu0 0.0
      %2853 = vmatpush1.msra.mxu0 0.0
      %2854 = vmatprep.subr.mxu0 0.0
      %2855 = vmatpush1.msra.mxu0 0.0
      %2856 = vmatprep.subr.mxu0 0.0
      %2857 = vmatpush1.msra.mxu0 0.0
      %2858 = vmatprep.subr.mxu0 0.0
      %2859 = vmatpush1.msra.mxu0 0.0
      %2860 = vmatprep.subr.mxu0 0.0
      %2861 = vmatpush1.msra.mxu0 0.0
      %2862 = vmatprep.subr.mxu0 0.0
      %2863 = vmatpush1.msra.mxu0 0.0
      %2864 = vmatprep.subr.mxu0 0.0
      %2865 = vmatpush1.msra.mxu0 0.0
      %2866 = vmatprep.subr.mxu0 0.0
      %2867 = vmatpush1.msra.mxu0 0.0
      %2868 = vmatprep.subr.mxu0 0.0
      %2869 = vmatpush1.msra.mxu0 0.0
      %2870 = vmatprep.subr.mxu0 0.0
      %2871 = vmatpush1.msra.mxu0 0.0
      %2872 = vmatprep.subr.mxu0 0.0
      %2873 = vmatpush1.msra.mxu0 0.0
      %2874 = vmatprep.mubr.f32.mxu0 0.0
      %2875 = vmatmul.mubr.f32.gmra.mrb[0].mxu0 %v2715
      %v2876 = vpop.f32.mrb[0].mxu0
      %v2877 = vadd.f32 0.0, %v2876
      %v2878 = vpop.f32.mrb[0].mxu0
      %2879 = vmatprep.mubr.f32.mxu0 0.0
      %2880 = vmatmul.mubr.f32.gmra.mrb[0].mxu0 %v2718
      %v2881 = vpop.f32.mrb[0].mxu0
      %v2882 = vadd.f32 0.0, %v2881
      %v2883 = vpop.f32.mrb[0].mxu0
      %2884 = vmatprep.mubr.f32.mxu0 0.0
      %2885 = vmatmul.mubr.f32.gmra.mrb[0].mxu0 %v2721
      %v2886 = vpop.f32.mrb[0].mxu0
      %v2887 = vadd.f32 0.0, %v2886
      %v2888 = vpop.f32.mrb[0].mxu0
      %2889 = vmatprep.mubr.f32.mxu0 0.0
      %2890 = vmatmul.mubr.f32.gmra.mrb[0].mxu0 %v2724
      %v2891 = vpop.f32.mrb[0].mxu0
      %v2892 = vadd.f32 0.0, %v2891
      %v2893 = vpop.f32.mrb[0].mxu0
      %2894 = vmatprep.mubr.f32.mxu0 0.0
      %2895 = vmatmul.mubr.f32.gmra.mrb[0].mxu0 %v2727
      %v2896 = vpop.f32.mrb[0].mxu0
      %v2897 = vadd.f32 0.0, %v2896
      %v2898 = vpop.f32.mrb[0].mxu0
      %2899 = vmatprep.mubr.f32.mxu0 0.0
      %2900 = vmatmul.mubr.f32.gmra.mrb[0].mxu0 %v2730
      %v2901 = vpop.f32.mrb[0].mxu0
      %v2902 = vadd.f32 0.0, %v2901
      %v2903 = vpop.f32.mrb[0].mxu0
      %2904 = vmatprep.mubr.f32.mxu0 0.0
      %2905 = vmatmul.mubr.f32.gmra.mrb[0].mxu0 %v2733
      %v2906 = vpop.f32.mrb[0].mxu0
      %v2907 = vadd.f32 0.0, %v2906
      %v2908 = vpop.f32.mrb[0].mxu0
      %2909 = vmatprep.mubr.f32.mxu0 0.0
      %2910 = vmatmul.mubr.f32.gmra.mrb[0].mxu0 %v2736
      %v2911 = vpop.f32.mrb[0].mxu0
      %v2912 = vadd.f32 0.0, %v2911
      %v2913 = vpop.f32.mrb[0].mxu0
      %2914 = vmatprep.mubr.f32.mxu0 0.0
      %2915 = vmatmul.mubr.f32.gmra.mrb[0].mxu0 %v2739
      %v2916 = vpop.f32.mrb[0].mxu0
      %v2917 = vadd.f32 0.0, %v2916
      %v2918 = vpop.f32.mrb[0].mxu0
      %2919 = vmatprep.mubr.f32.mxu0 0.0
      %2920 = vmatmul.mubr.f32.gmra.mrb[0].mxu0 %v2742
      %v2921 = vpop.f32.mrb[0].mxu0
      %v2922 = vadd.f32 0.0, %v2921
      %v2923 = vpop.f32.mrb[0].mxu0
      %2924 = vmatprep.mubr.f32.mxu0 0.0
      %2925 = vmatmul.mubr.f32.gmra.mrb[0].mxu0 %v2745
      %v2926 = vpop.f32.mrb[0].mxu0
      %v2927 = vadd.f32 0.0, %v2926
      %v2928 = vpop.f32.mrb[0].mxu0
      %2929 = vmatprep.mubr.f32.mxu0 0.0
      %2930 = vmatmul.mubr.f32.gmra.mrb[0].mxu0 %v2748
      %v2931 = vpop.f32.mrb[0].mxu0
      %v2932 = vadd.f32 0.0, %v2931
      %v2933 = vpop.f32.mrb[0].mxu0
      %2934 = vmatprep.mubr.f32.mxu0 0.0
      %2935 = vmatmul.mubr.f32.gmra.mrb[0].mxu0 %v2751
      %v2936 = vpop.f32.mrb[0].mxu0
      %v2937 = vadd.f32 0.0, %v2936
      %v2938 = vpop.f32.mrb[0].mxu0
      %2939 = vmatprep.mubr.f32.mxu0 0.0
      %2940 = vmatmul.mubr.f32.gmra.mrb[0].mxu0 %v2754
      %v2941 = vpop.f32.mrb[0].mxu0
      %v2942 = vadd.f32 0.0, %v2941
      %v2943 = vpop.f32.mrb[0].mxu0
      %2944 = vmatprep.mubr.f32.mxu0 0.0
      %2945 = vmatmul.mubr.f32.gmra.mrb[0].mxu0 %v2757
      %v2946 = vpop.f32.mrb[0].mxu0
      %v2947 = vadd.f32 0.0, %v2946
      %v2948 = vpop.f32.mrb[0].mxu0
      %2949 = vmatprep.mubr.f32.mxu0 0.0
      %2950 = vmatmul.mubr.f32.gmra.mrb[0].mxu0 %v2760
      %v2951 = vpop.f32.mrb[0].mxu0
      %v2952 = vadd.f32 0.0, %v2951
      %v2953 = vpop.f32.mrb[0].mxu0
      %2954 = vmatprep.mubr.f32.mxu0 0.0
      %2955 = vmatmul.mubr.f32.gmra.mrb[0].mxu0 %v2763
      %v2956 = vpop.f32.mrb[0].mxu0
      %v2957 = vadd.f32 0.0, %v2956
      %v2958 = vpop.f32.mrb[0].mxu0
      %2959 = vmatprep.mubr.f32.mxu0 0.0
      %2960 = vmatmul.mubr.f32.gmra.mrb[0].mxu0 %v2766
      %v2961 = vpop.f32.mrb[0].mxu0
      %v2962 = vadd.f32 0.0, %v2961
      %v2963 = vpop.f32.mrb[0].mxu0
      %2964 = vmatprep.mubr.f32.mxu0 0.0
      %2965 = vmatmul.mubr.f32.gmra.mrb[0].mxu0 %v2769
      %v2966 = vpop.f32.mrb[0].mxu0
      %v2967 = vadd.f32 0.0, %v2966
      %v2968 = vpop.f32.mrb[0].mxu0
      %2969 = vmatprep.mubr.f32.mxu0 0.0
      %2970 = vmatmul.mubr.f32.gmra.mrb[0].mxu0 %v2772
      %v2971 = vpop.f32.mrb[0].mxu0
      %v2972 = vadd.f32 0.0, %v2971
      %v2973 = vpop.f32.mrb[0].mxu0
      %2974 = vmatprep.mubr.f32.mxu0 0.0
      %2975 = vmatmul.mubr.f32.gmra.mrb[0].mxu0 %v2775
      %v2976 = vpop.f32.mrb[0].mxu0
      %v2977 = vadd.f32 0.0, %v2976
      %v2978 = vpop.f32.mrb[0].mxu0
      %2979 = vmatprep.mubr.f32.mxu0 0.0
      %2980 = vmatmul.mubr.f32.gmra.mrb[0].mxu0 %v2778
      %v2981 = vpop.f32.mrb[0].mxu0
      %v2982 = vadd.f32 0.0, %v2981
      %v2983 = vpop.f32.mrb[0].mxu0
      %2984 = vmatprep.mubr.f32.mxu0 0.0
      %2985 = vmatmul.mubr.f32.gmra.mrb[0].mxu0 %v2781
      %v2986 = vpop.f32.mrb[0].mxu0
      %v2987 = vadd.f32 0.0, %v2986
      %v2988 = vpop.f32.mrb[0].mxu0
      %2989 = vmatprep.mubr.f32.mxu0 0.0
      %2990 = vmatmul.mubr.f32.gmra.mrb[0].mxu0 %v2784
      %v2991 = vpop.f32.mrb[0].mxu0
      %v2992 = vadd.f32 0.0, %v2991
      %v2993 = vpop.f32.mrb[0].mxu0
      %2994 = vmatprep.mubr.f32.mxu0 0.0
      %2995 = vmatmul.mubr.f32.gmra.mrb[0].mxu0 %v2787
      %v2996 = vpop.f32.mrb[0].mxu0
      %v2997 = vadd.f32 0.0, %v2996
      %v2998 = vpop.f32.mrb[0].mxu0
      %2999 = vmatprep.mubr.f32.mxu0 0.0
      %3000 = vmatmul.mubr.f32.gmra.mrb[0].mxu0 %v2790
      %v3001 = vpop.f32.mrb[0].mxu0
      %v3002 = vadd.f32 0.0, %v3001
      %v3003 = vpop.f32.mrb[0].mxu0
      %3004 = vmatprep.mubr.f32.mxu0 0.0
      %3005 = vmatmul.mubr.f32.gmra.mrb[0].mxu0 %v2793
      %v3006 = vpop.f32.mrb[0].mxu0
      %v3007 = vadd.f32 0.0, %v3006
      %v3008 = vpop.f32.mrb[0].mxu0
      %3009 = vmatprep.mubr.f32.mxu0 0.0
      %3010 = vmatmul.mubr.f32.gmra.mrb[0].mxu0 %v2796
      %v3011 = vpop.f32.mrb[0].mxu0
      %v3012 = vadd.f32 0.0, %v3011
      %v3013 = vpop.f32.mrb[0].mxu0
      %3014 = vmatprep.mubr.f32.mxu0 0.0
      %3015 = vmatmul.mubr.f32.gmra.mrb[0].mxu0 %v2799
      %v3016 = vpop.f32.mrb[0].mxu0
      %v3017 = vadd.f32 0.0, %v3016
      %v3018 = vpop.f32.mrb[0].mxu0
      %3019 = vmatprep.mubr.f32.mxu0 0.0
      %3020 = vmatmul.mubr.f32.gmra.mrb[0].mxu0 %v2802
      %v3021 = vpop.f32.mrb[0].mxu0
      %v3022 = vadd.f32 0.0, %v3021
      %v3023 = vpop.f32.mrb[0].mxu0
      %3024 = vmatprep.mubr.f32.mxu0 0.0
      %3025 = vmatmul.mubr.f32.gmra.mrb[0].mxu0 %v2805
      %v3026 = vpop.f32.mrb[0].mxu0
      %v3027 = vadd.f32 0.0, %v3026
      %v3028 = vpop.f32.mrb[0].mxu0
      %3029 = vmatprep.mubr.f32.mxu0 0.0
      %3030 = vmatmul.mubr.f32.gmra.mrb[0].mxu0 %v2808
      %v3031 = vpop.f32.mrb[0].mxu0
      %v3032 = vadd.f32 0.0, %v3031
      %v3033 = vpop.f32.mrb[0].mxu0
      %3034 = vdwg.mxu0
      %v3036 = vsel %vm357, %v1956, 0
      %v3039 = vsel %vm357, %v1961, 0
      %v3042 = vsel %vm357, %v1966, 0
      %v3045 = vsel %vm357, %v1971, 0
      %v3048 = vsel %vm357, %v1976, 0
      %v3051 = vsel %vm357, %v1981, 0
      %v3054 = vsel %vm357, %v1986, 0
      %v3057 = vsel %vm357, %v1991, 0
      %v3060 = vsel %vm357, %v1996, 0
      %v3063 = vsel %vm357, %v2001, 0
      %v3066 = vsel %vm357, %v2006, 0
      %v3069 = vsel %vm357, %v2011, 0
      %v3072 = vsel %vm357, %v2016, 0
      %v3075 = vsel %vm357, %v2021, 0
      %v3078 = vsel %vm357, %v2026, 0
      %v3081 = vsel %vm357, %v2031, 0
      %v3084 = vsel %vm357, %v2036, 0
      %v3087 = vsel %vm357, %v2041, 0
      %v3090 = vsel %vm357, %v2046, 0
      %v3093 = vsel %vm357, %v2051, 0
      %v3096 = vsel %vm357, %v2056, 0
      %v3099 = vsel %vm357, %v2061, 0
      %v3102 = vsel %vm357, %v2066, 0
      %v3105 = vsel %vm357, %v2071, 0
      %v3108 = vsel %vm357, %v2076, 0
      %v3111 = vsel %vm357, %v2081, 0
      %v3114 = vsel %vm357, %v2086, 0
      %v3117 = vsel %vm357, %v2091, 0
      %v3120 = vsel %vm357, %v2096, 0
      %v3123 = vsel %vm357, %v2101, 0
      %v3126 = vsel %vm357, %v2106, 0
      %v3129 = vsel %vm357, %v2111, 0
      %3131 = vmatprep.subr.mxu0 0.0
      %3132 = vmatpush1.msra.mxu0 %v2114
      %3133 = vmatprep.subr.mxu0 0.0
      %3134 = vmatpush1.msra.mxu0 0.0
      %3135 = vmatprep.subr.mxu0 0.0
      %3136 = vmatpush1.msra.mxu0 0.0
      %3137 = vmatprep.subr.mxu0 0.0
      %3138 = vmatpush1.msra.mxu0 0.0
      %3139 = vmatprep.subr.mxu0 0.0
      %3140 = vmatpush1.msra.mxu0 0.0
      %3141 = vmatprep.subr.mxu0 0.0
      %3142 = vmatpush1.msra.mxu0 0.0
      %3143 = vmatprep.subr.mxu0 0.0
      %3144 = vmatpush1.msra.mxu0 0.0
      %3145 = vmatprep.subr.mxu0 0.0
      %3146 = vmatpush1.msra.mxu0 0.0
      %3147 = vmatprep.subr.mxu0 0.0
      %3148 = vmatpush1.msra.mxu0 0.0
      %3149 = vmatprep.subr.mxu0 0.0
      %3150 = vmatpush1.msra.mxu0 0.0
      %3151 = vmatprep.subr.mxu0 0.0
      %3152 = vmatpush1.msra.mxu0 0.0
      %3153 = vmatprep.subr.mxu0 0.0
      %3154 = vmatpush1.msra.mxu0 0.0
      %3155 = vmatprep.subr.mxu0 0.0
      %3156 = vmatpush1.msra.mxu0 0.0
      %3157 = vmatprep.subr.mxu0 0.0
      %3158 = vmatpush1.msra.mxu0 0.0
      %3159 = vmatprep.subr.mxu0 0.0
      %3160 = vmatpush1.msra.mxu0 0.0
      %3161 = vmatprep.subr.mxu0 0.0
      %3162 = vmatpush1.msra.mxu0 0.0
      %3163 = vmatprep.subr.mxu0 0.0
      %3164 = vmatpush1.msra.mxu0 0.0
      %3165 = vmatprep.subr.mxu0 0.0
      %3166 = vmatpush1.msra.mxu0 0.0
      %3167 = vmatprep.subr.mxu0 0.0
      %3168 = vmatpush1.msra.mxu0 0.0
      %3169 = vmatprep.subr.mxu0 0.0
      %3170 = vmatpush1.msra.mxu0 0.0
      %3171 = vmatprep.subr.mxu0 0.0
      %3172 = vmatpush1.msra.mxu0 0.0
      %3173 = vmatprep.subr.mxu0 0.0
      %3174 = vmatpush1.msra.mxu0 0.0
      %3175 = vmatprep.subr.mxu0 0.0
      %3176 = vmatpush1.msra.mxu0 0.0
      %3177 = vmatprep.subr.mxu0 0.0
      %3178 = vmatpush1.msra.mxu0 0.0
      %3179 = vmatprep.subr.mxu0 0.0
      %3180 = vmatpush1.msra.mxu0 0.0
      %3181 = vmatprep.subr.mxu0 0.0
      %3182 = vmatpush1.msra.mxu0 0.0
      %3183 = vmatprep.subr.mxu0 0.0
      %3184 = vmatpush1.msra.mxu0 0.0
      %3185 = vmatprep.subr.mxu0 0.0
      %3186 = vmatpush1.msra.mxu0 0.0
      %3187 = vmatprep.subr.mxu0 0.0
      %3188 = vmatpush1.msra.mxu0 0.0
      %3189 = vmatprep.subr.mxu0 0.0
      %3190 = vmatpush1.msra.mxu0 0.0
      %3191 = vmatprep.subr.mxu0 0.0
      %3192 = vmatpush1.msra.mxu0 0.0
      %3193 = vmatprep.subr.mxu0 0.0
      %3194 = vmatpush1.msra.mxu0 0.0
      %3195 = vmatprep.mubr.f32.mxu0 0.0
      %3196 = vmatmul.mubr.f32.gmra.mrb[0].mxu0 %v3036
      %v3197 = vpop.f32.mrb[0].mxu0
      %v3198 = vadd.f32 %v2877, %v3197
      %v3199 = vpop.f32.mrb[0].mxu0
      %3200 = vmatprep.mubr.f32.mxu0 0.0
      %3201 = vmatmul.mubr.f32.gmra.mrb[0].mxu0 %v3039
      %v3202 = vpop.f32.mrb[0].mxu0
      %v3203 = vadd.f32 %v2882, %v3202
      %v3204 = vpop.f32.mrb[0].mxu0
      %3205 = vmatprep.mubr.f32.mxu0 0.0
      %3206 = vmatmul.mubr.f32.gmra.mrb[0].mxu0 %v3042
      %v3207 = vpop.f32.mrb[0].mxu0
      %v3208 = vadd.f32 %v2887, %v3207
      %v3209 = vpop.f32.mrb[0].mxu0
      %3210 = vmatprep.mubr.f32.mxu0 0.0
      %3211 = vmatmul.mubr.f32.gmra.mrb[0].mxu0 %v3045
      %v3212 = vpop.f32.mrb[0].mxu0
      %v3213 = vadd.f32 %v2892, %v3212
      %v3214 = vpop.f32.mrb[0].mxu0
      %3215 = vmatprep.mubr.f32.mxu0 0.0
      %3216 = vmatmul.mubr.f32.gmra.mrb[0].mxu0 %v3048
      %v3217 = vpop.f32.mrb[0].mxu0
      %v3218 = vadd.f32 %v2897, %v3217
      %v3219 = vpop.f32.mrb[0].mxu0
      %3220 = vmatprep.mubr.f32.mxu0 0.0
      %3221 = vmatmul.mubr.f32.gmra.mrb[0].mxu0 %v3051
      %v3222 = vpop.f32.mrb[0].mxu0
      %v3223 = vadd.f32 %v2902, %v3222
      %v3224 = vpop.f32.mrb[0].mxu0
      %3225 = vmatprep.mubr.f32.mxu0 0.0
      %3226 = vmatmul.mubr.f32.gmra.mrb[0].mxu0 %v3054
      %v3227 = vpop.f32.mrb[0].mxu0
      %v3228 = vadd.f32 %v2907, %v3227
      %v3229 = vpop.f32.mrb[0].mxu0
      %3230 = vmatprep.mubr.f32.mxu0 0.0
      %3231 = vmatmul.mubr.f32.gmra.mrb[0].mxu0 %v3057
      %v3232 = vpop.f32.mrb[0].mxu0
      %v3233 = vadd.f32 %v2912, %v3232
      %v3234 = vpop.f32.mrb[0].mxu0
      %3235 = vmatprep.mubr.f32.mxu0 0.0
      %3236 = vmatmul.mubr.f32.gmra.mrb[0].mxu0 %v3060
      %v3237 = vpop.f32.mrb[0].mxu0
      %v3238 = vadd.f32 %v2917, %v3237
      %v3239 = vpop.f32.mrb[0].mxu0
      %3240 = vmatprep.mubr.f32.mxu0 0.0
      %3241 = vmatmul.mubr.f32.gmra.mrb[0].mxu0 %v3063
      %v3242 = vpop.f32.mrb[0].mxu0
      %v3243 = vadd.f32 %v2922, %v3242
      %v3244 = vpop.f32.mrb[0].mxu0
      %3245 = vmatprep.mubr.f32.mxu0 0.0
      %3246 = vmatmul.mubr.f32.gmra.mrb[0].mxu0 %v3066
      %v3247 = vpop.f32.mrb[0].mxu0
      %v3248 = vadd.f32 %v2927, %v3247
      %v3249 = vpop.f32.mrb[0].mxu0
      %3250 = vmatprep.mubr.f32.mxu0 0.0
      %3251 = vmatmul.mubr.f32.gmra.mrb[0].mxu0 %v3069
      %v3252 = vpop.f32.mrb[0].mxu0
      %v3253 = vadd.f32 %v2932, %v3252
      %v3254 = vpop.f32.mrb[0].mxu0
      %3255 = vmatprep.mubr.f32.mxu0 0.0
      %3256 = vmatmul.mubr.f32.gmra.mrb[0].mxu0 %v3072
      %v3257 = vpop.f32.mrb[0].mxu0
      %v3258 = vadd.f32 %v2937, %v3257
      %v3259 = vpop.f32.mrb[0].mxu0
      %3260 = vmatprep.mubr.f32.mxu0 0.0
      %3261 = vmatmul.mubr.f32.gmra.mrb[0].mxu0 %v3075
      %v3262 = vpop.f32.mrb[0].mxu0
      %v3263 = vadd.f32 %v2942, %v3262
      %v3264 = vpop.f32.mrb[0].mxu0
      %3265 = vmatprep.mubr.f32.mxu0 0.0
      %3266 = vmatmul.mubr.f32.gmra.mrb[0].mxu0 %v3078
      %v3267 = vpop.f32.mrb[0].mxu0
      %v3268 = vadd.f32 %v2947, %v3267
      %v3269 = vpop.f32.mrb[0].mxu0
      %3270 = vmatprep.mubr.f32.mxu0 0.0
      %3271 = vmatmul.mubr.f32.gmra.mrb[0].mxu0 %v3081
      %v3272 = vpop.f32.mrb[0].mxu0
      %v3273 = vadd.f32 %v2952, %v3272
      %v3274 = vpop.f32.mrb[0].mxu0
      %3275 = vmatprep.mubr.f32.mxu0 0.0
      %3276 = vmatmul.mubr.f32.gmra.mrb[0].mxu0 %v3084
      %v3277 = vpop.f32.mrb[0].mxu0
      %v3278 = vadd.f32 %v2957, %v3277
      %v3279 = vpop.f32.mrb[0].mxu0
      %3280 = vmatprep.mubr.f32.mxu0 0.0
      %3281 = vmatmul.mubr.f32.gmra.mrb[0].mxu0 %v3087
      %v3282 = vpop.f32.mrb[0].mxu0
      %v3283 = vadd.f32 %v2962, %v3282
      %v3284 = vpop.f32.mrb[0].mxu0
      %3285 = vmatprep.mubr.f32.mxu0 0.0
      %3286 = vmatmul.mubr.f32.gmra.mrb[0].mxu0 %v3090
      %v3287 = vpop.f32.mrb[0].mxu0
      %v3288 = vadd.f32 %v2967, %v3287
      %v3289 = vpop.f32.mrb[0].mxu0
      %3290 = vmatprep.mubr.f32.mxu0 0.0
      %3291 = vmatmul.mubr.f32.gmra.mrb[0].mxu0 %v3093
      %v3292 = vpop.f32.mrb[0].mxu0
      %v3293 = vadd.f32 %v2972, %v3292
      %v3294 = vpop.f32.mrb[0].mxu0
      %3295 = vmatprep.mubr.f32.mxu0 0.0
      %3296 = vmatmul.mubr.f32.gmra.mrb[0].mxu0 %v3096
      %v3297 = vpop.f32.mrb[0].mxu0
      %v3298 = vadd.f32 %v2977, %v3297
      %v3299 = vpop.f32.mrb[0].mxu0
      %3300 = vmatprep.mubr.f32.mxu0 0.0
      %3301 = vmatmul.mubr.f32.gmra.mrb[0].mxu0 %v3099
      %v3302 = vpop.f32.mrb[0].mxu0
      %v3303 = vadd.f32 %v2982, %v3302
      %v3304 = vpop.f32.mrb[0].mxu0
      %3305 = vmatprep.mubr.f32.mxu0 0.0
      %3306 = vmatmul.mubr.f32.gmra.mrb[0].mxu0 %v3102
      %v3307 = vpop.f32.mrb[0].mxu0
      %v3308 = vadd.f32 %v2987, %v3307
      %v3309 = vpop.f32.mrb[0].mxu0
      %3310 = vmatprep.mubr.f32.mxu0 0.0
      %3311 = vmatmul.mubr.f32.gmra.mrb[0].mxu0 %v3105
      %v3312 = vpop.f32.mrb[0].mxu0
      %v3313 = vadd.f32 %v2992, %v3312
      %v3314 = vpop.f32.mrb[0].mxu0
      %3315 = vmatprep.mubr.f32.mxu0 0.0
      %3316 = vmatmul.mubr.f32.gmra.mrb[0].mxu0 %v3108
      %v3317 = vpop.f32.mrb[0].mxu0
      %v3318 = vadd.f32 %v2997, %v3317
      %v3319 = vpop.f32.mrb[0].mxu0
      %3320 = vmatprep.mubr.f32.mxu0 0.0
      %3321 = vmatmul.mubr.f32.gmra.mrb[0].mxu0 %v3111
      %v3322 = vpop.f32.mrb[0].mxu0
      %v3323 = vadd.f32 %v3002, %v3322
      %v3324 = vpop.f32.mrb[0].mxu0
      %3325 = vmatprep.mubr.f32.mxu0 0.0
      %3326 = vmatmul.mubr.f32.gmra.mrb[0].mxu0 %v3114
      %v3327 = vpop.f32.mrb[0].mxu0
      %v3328 = vadd.f32 %v3007, %v3327
      %v3329 = vpop.f32.mrb[0].mxu0
      %3330 = vmatprep.mubr.f32.mxu0 0.0
      %3331 = vmatmul.mubr.f32.gmra.mrb[0].mxu0 %v3117
      %v3332 = vpop.f32.mrb[0].mxu0
      %v3333 = vadd.f32 %v3012, %v3332
      %v3334 = vpop.f32.mrb[0].mxu0
      %3335 = vmatprep.mubr.f32.mxu0 0.0
      %3336 = vmatmul.mubr.f32.gmra.mrb[0].mxu0 %v3120
      %v3337 = vpop.f32.mrb[0].mxu0
      %v3338 = vadd.f32 %v3017, %v3337
      %v3339 = vpop.f32.mrb[0].mxu0
      %3340 = vmatprep.mubr.f32.mxu0 0.0
      %3341 = vmatmul.mubr.f32.gmra.mrb[0].mxu0 %v3123
      %v3342 = vpop.f32.mrb[0].mxu0
      %v3343 = vadd.f32 %v3022, %v3342
      %v3344 = vpop.f32.mrb[0].mxu0
      %3345 = vmatprep.mubr.f32.mxu0 0.0
      %3346 = vmatmul.mubr.f32.gmra.mrb[0].mxu0 %v3126
      %v3347 = vpop.f32.mrb[0].mxu0
      %v3348 = vadd.f32 %v3027, %v3347
      %v3349 = vpop.f32.mrb[0].mxu0
      %3350 = vmatprep.mubr.f32.mxu0 0.0
      %3351 = vmatmul.mubr.f32.gmra.mrb[0].mxu0 %v3129
      %v3352 = vpop.f32.mrb[0].mxu0
      %v3353 = vadd.f32 %v3032, %v3352
      %v3354 = vpop.f32.mrb[0].mxu0
      %3355 = vdwg.mxu0
      %vm3356 = vcmask 1045504
      %v3357 = vrot.slane %v1430, 2
      %v3358 = vrot.slane %v1431, 2
      %v3359 = vsel %vm3356, %v3357, %v3358
      %v3360 = vrot.slane %v1432, 2
      %v3361 = vsel %vm3356, %v3358, %v3360
      %v3362 = vrot.slane %v1433, 2
      %v3363 = vsel %vm3356, %v3360, %v3362
      %v3364 = vrot.slane %v1434, 2
      %v3365 = vsel %vm3356, %v3362, %v3364
      %v3366 = vrot.slane %v1435, 2
      %v3367 = vsel %vm3356, %v3364, %v3366
      %v3368 = vrot.slane %v1436, 2
      %v3369 = vsel %vm3356, %v3366, %v3368
      %v3370 = vrot.slane %v1437, 2
      %v3371 = vsel %vm3356, %v3368, %v3370
      %v3372 = vrot.slane %v1438, 2
      %v3373 = vsel %vm3356, %v3370, %v3372
      %v3374 = vrot.slane %v1439, 2
      %v3375 = vsel %vm3356, %v3372, %v3374
      %v3376 = vrot.slane %v1440, 2
      %v3377 = vsel %vm3356, %v3374, %v3376
      %v3378 = vrot.slane %v1441, 2
      %v3379 = vsel %vm3356, %v3376, %v3378
      %v3380 = vrot.slane %v1442, 2
      %v3381 = vsel %vm3356, %v3378, %v3380
      %v3382 = vrot.slane %v1443, 2
      %v3383 = vsel %vm3356, %v3380, %v3382
      %v3384 = vrot.slane %v1444, 2
      %v3385 = vsel %vm3356, %v3382, %v3384
      %v3386 = vrot.slane %v1445, 2
      %v3387 = vsel %vm3356, %v3384, %v3386
      %v3388 = vrot.slane %v1446, 2
      %v3389 = vsel %vm3356, %v3386, %v3388
      %v3390 = vrot.slane %v1447, 2
      %v3391 = vsel %vm3356, %v3388, %v3390
      %v3392 = vrot.slane %v1448, 2
      %v3393 = vsel %vm3356, %v3390, %v3392
      %v3394 = vrot.slane %v1449, 2
      %v3395 = vsel %vm3356, %v3392, %v3394
      %v3396 = vrot.slane %v1450, 2
      %v3397 = vsel %vm3356, %v3394, %v3396
      %v3398 = vrot.slane %v1451, 2
      %v3399 = vsel %vm3356, %v3396, %v3398
      %v3400 = vrot.slane %v1452, 2
      %v3401 = vsel %vm3356, %v3398, %v3400
      %v3402 = vrot.slane %v1453, 2
      %v3403 = vsel %vm3356, %v3400, %v3402
      %v3404 = vrot.slane %v1454, 2
      %v3405 = vsel %vm3356, %v3402, %v3404
      %v3406 = vrot.slane %v1455, 2
      %v3407 = vsel %vm3356, %v3404, %v3406
      %v3408 = vrot.slane %v1456, 2
      %v3409 = vsel %vm3356, %v3406, %v3408
      %v3410 = vrot.slane %v1457, 2
      %v3411 = vsel %vm3356, %v3408, %v3410
      %v3412 = vrot.slane %v1458, 2
      %v3413 = vsel %vm3356, %v3410, %v3412
      %v3414 = vrot.slane %v1459, 2
      %v3415 = vsel %vm3356, %v3412, %v3414
      %v3416 = vrot.slane %v1460, 2
      %v3417 = vsel %vm3356, %v3414, %v3416
      %v3418 = vrot.slane %v1461, 2
      %v3419 = vsel %vm3356, %v3416, %v3418
      %v3420 = vrot.slane %v1462, 2
      %v3421 = vsel %vm3356, %v3418, %v3420
      %v3422 = vrot.slane %v1463, 2
      %v3423 = vsel %vm3356, %v3420, %v3422
      %v3424 = vrot.slane %v1464, 2
      %v3425 = vsel %vm3356, %v3422, %v3424
      %v3426 = vrot.slane %v1465, 2
      %v3427 = vsel %vm3356, %v3424, %v3426
      %v3428 = vrot.slane %v1466, 2
      %v3429 = vsel %vm3356, %v3426, %v3428
      %3466 = vmatprep.subr.mxu0 0.0
      %3467 = vmatpush1.msra.mxu0 %v3359
      %3468 = vmatprep.subr.mxu0 0.0
      %3469 = vmatpush1.msra.mxu0 %v3361
      %3470 = vmatprep.subr.mxu0 0.0
      %3471 = vmatpush1.msra.mxu0 %v3363
      %3472 = vmatprep.subr.mxu0 0.0
      %3473 = vmatpush1.msra.mxu0 %v3365
      %3474 = vmatprep.subr.mxu0 0.0
      %3475 = vmatpush1.msra.mxu0 %v3367
      %3476 = vmatprep.subr.mxu0 0.0
      %3477 = vmatpush1.msra.mxu0 %v3369
      %3478 = vmatprep.subr.mxu0 0.0
      %3479 = vmatpush1.msra.mxu0 %v3371
      %3480 = vmatprep.subr.mxu0 0.0
      %3481 = vmatpush1.msra.mxu0 %v3373
      %3482 = vmatprep.subr.mxu0 0.0
      %3483 = vmatpush1.msra.mxu0 %v3375
      %3484 = vmatprep.subr.mxu0 0.0
      %3485 = vmatpush1.msra.mxu0 %v3377
      %3486 = vmatprep.subr.mxu0 0.0
      %3487 = vmatpush1.msra.mxu0 %v3379
      %3488 = vmatprep.subr.mxu0 0.0
      %3489 = vmatpush1.msra.mxu0 %v3381
      %3490 = vmatprep.subr.mxu0 0.0
      %3491 = vmatpush1.msra.mxu0 %v3383
      %3492 = vmatprep.subr.mxu0 0.0
      %3493 = vmatpush1.msra.mxu0 %v3385
      %3494 = vmatprep.subr.mxu0 0.0
      %3495 = vmatpush1.msra.mxu0 %v3387
      %3496 = vmatprep.subr.mxu0 0.0
      %3497 = vmatpush1.msra.mxu0 %v3389
      %3498 = vmatprep.subr.mxu0 0.0
      %3499 = vmatpush1.msra.mxu0 %v3391
      %3500 = vmatprep.subr.mxu0 0.0
      %3501 = vmatpush1.msra.mxu0 %v3393
      %3502 = vmatprep.subr.mxu0 0.0
      %3503 = vmatpush1.msra.mxu0 %v3395
      %3504 = vmatprep.subr.mxu0 0.0
      %3505 = vmatpush1.msra.mxu0 %v3397
      %3506 = vmatprep.subr.mxu0 0.0
      %3507 = vmatpush1.msra.mxu0 %v3399
      %3508 = vmatprep.subr.mxu0 0.0
      %3509 = vmatpush1.msra.mxu0 %v3401
      %3510 = vmatprep.subr.mxu0 0.0
      %3511 = vmatpush1.msra.mxu0 %v3403
      %3512 = vmatprep.subr.mxu0 0.0
      %3513 = vmatpush1.msra.mxu0 %v3405
      %3514 = vmatprep.subr.mxu0 0.0
      %3515 = vmatpush1.msra.mxu0 %v3407
      %3516 = vmatprep.subr.mxu0 0.0
      %3517 = vmatpush1.msra.mxu0 %v3409
      %3518 = vmatprep.subr.mxu0 0.0
      %3519 = vmatpush1.msra.mxu0 %v3411
      %3520 = vmatprep.subr.mxu0 0.0
      %3521 = vmatpush1.msra.mxu0 %v3413
      %3522 = vmatprep.subr.mxu0 0.0
      %3523 = vmatpush1.msra.mxu0 %v3415
      %3524 = vmatprep.subr.mxu0 0.0
      %3525 = vmatpush1.msra.mxu0 %v3417
      %3526 = vmatprep.subr.mxu0 0.0
      %3527 = vmatpush1.msra.mxu0 %v3419
      %3528 = vmatprep.subr.mxu0 0.0
      %3529 = vmatpush1.msra.mxu0 %v3421
      %3530 = vmatprep.mubr.f32.mxu0 %v1472
      %3531 = vmatmul.mubr.f32.gmra.mrb[0].mxu0 %v1471
      %v3532 = vpop.f32.mrb[0].mxu0
      %v3533 = vadd.f32 0.0, %v3532
      %v3534 = vpop.f32.mrb[0].mxu0
      %3535 = vmatprep.mubr.f32.mxu0 %v1475
      %3536 = vmatmul.mubr.f32.gmra.mrb[0].mxu0 %v1474
      %v3537 = vpop.f32.mrb[0].mxu0
      %v3538 = vadd.f32 0.0, %v3537
      %v3539 = vpop.f32.mrb[0].mxu0
      %3540 = vmatprep.mubr.f32.mxu0 %v1478
      %3541 = vmatmul.mubr.f32.gmra.mrb[0].mxu0 %v1477
      %v3542 = vpop.f32.mrb[0].mxu0
      %v3543 = vadd.f32 0.0, %v3542
      %v3544 = vpop.f32.mrb[0].mxu0
      %3545 = vmatprep.mubr.f32.mxu0 %v1481
      %3546 = vmatmul.mubr.f32.gmra.mrb[0].mxu0 %v1480
      %v3547 = vpop.f32.mrb[0].mxu0
      %v3548 = vadd.f32 0.0, %v3547
      %v3549 = vpop.f32.mrb[0].mxu0
      %3550 = vmatprep.mubr.f32.mxu0 %v1484
      %3551 = vmatmul.mubr.f32.gmra.mrb[0].mxu0 %v1483
      %v3552 = vpop.f32.mrb[0].mxu0
      %v3553 = vadd.f32 0.0, %v3552
      %v3554 = vpop.f32.mrb[0].mxu0
      %3555 = vmatprep.mubr.f32.mxu0 %v1487
      %3556 = vmatmul.mubr.f32.gmra.mrb[0].mxu0 %v1486
      %v3557 = vpop.f32.mrb[0].mxu0
      %v3558 = vadd.f32 0.0, %v3557
      %v3559 = vpop.f32.mrb[0].mxu0
      %3560 = vmatprep.mubr.f32.mxu0 %v1490
      %3561 = vmatmul.mubr.f32.gmra.mrb[0].mxu0 %v1489
      %v3562 = vpop.f32.mrb[0].mxu0
      %v3563 = vadd.f32 0.0, %v3562
      %v3564 = vpop.f32.mrb[0].mxu0
      %3565 = vmatprep.mubr.f32.mxu0 %v1493
      %3566 = vmatmul.mubr.f32.gmra.mrb[0].mxu0 %v1492
      %v3567 = vpop.f32.mrb[0].mxu0
      %v3568 = vadd.f32 0.0, %v3567
      %v3569 = vpop.f32.mrb[0].mxu0
      %3570 = vmatprep.mubr.f32.mxu0 %v1496
      %3571 = vmatmul.mubr.f32.gmra.mrb[0].mxu0 %v1495
      %v3572 = vpop.f32.mrb[0].mxu0
      %v3573 = vadd.f32 0.0, %v3572
      %v3574 = vpop.f32.mrb[0].mxu0
      %3575 = vmatprep.mubr.f32.mxu0 %v1499
      %3576 = vmatmul.mubr.f32.gmra.mrb[0].mxu0 %v1498
      %v3577 = vpop.f32.mrb[0].mxu0
      %v3578 = vadd.f32 0.0, %v3577
      %v3579 = vpop.f32.mrb[0].mxu0
      %3580 = vmatprep.mubr.f32.mxu0 %v1502
      %3581 = vmatmul.mubr.f32.gmra.mrb[0].mxu0 %v1501
      %v3582 = vpop.f32.mrb[0].mxu0
      %v3583 = vadd.f32 0.0, %v3582
      %v3584 = vpop.f32.mrb[0].mxu0
      %3585 = vmatprep.mubr.f32.mxu0 %v1505
      %3586 = vmatmul.mubr.f32.gmra.mrb[0].mxu0 %v1504
      %v3587 = vpop.f32.mrb[0].mxu0
      %v3588 = vadd.f32 0.0, %v3587
      %v3589 = vpop.f32.mrb[0].mxu0
      %3590 = vmatprep.mubr.f32.mxu0 %v1508
      %3591 = vmatmul.mubr.f32.gmra.mrb[0].mxu0 %v1507
      %v3592 = vpop.f32.mrb[0].mxu0
      %v3593 = vadd.f32 0.0, %v3592
      %v3594 = vpop.f32.mrb[0].mxu0
      %3595 = vmatprep.mubr.f32.mxu0 %v1511
      %3596 = vmatmul.mubr.f32.gmra.mrb[0].mxu0 %v1510
      %v3597 = vpop.f32.mrb[0].mxu0
      %v3598 = vadd.f32 0.0, %v3597
      %v3599 = vpop.f32.mrb[0].mxu0
      %3600 = vmatprep.mubr.f32.mxu0 %v1514
      %3601 = vmatmul.mubr.f32.gmra.mrb[0].mxu0 %v1513
      %v3602 = vpop.f32.mrb[0].mxu0
      %v3603 = vadd.f32 0.0, %v3602
      %v3604 = vpop.f32.mrb[0].mxu0
      %3605 = vmatprep.mubr.f32.mxu0 %v1517
      %3606 = vmatmul.mubr.f32.gmra.mrb[0].mxu0 %v1516
      %v3607 = vpop.f32.mrb[0].mxu0
      %v3608 = vadd.f32 0.0, %v3607
      %v3609 = vpop.f32.mrb[0].mxu0
      %3610 = vmatprep.mubr.f32.mxu0 %v1520
      %3611 = vmatmul.mubr.f32.gmra.mrb[0].mxu0 %v1519
      %v3612 = vpop.f32.mrb[0].mxu0
      %v3613 = vadd.f32 0.0, %v3612
      %v3614 = vpop.f32.mrb[0].mxu0
      %3615 = vmatprep.mubr.f32.mxu0 %v1523
      %3616 = vmatmul.mubr.f32.gmra.mrb[0].mxu0 %v1522
      %v3617 = vpop.f32.mrb[0].mxu0
      %v3618 = vadd.f32 0.0, %v3617
      %v3619 = vpop.f32.mrb[0].mxu0
      %3620 = vmatprep.mubr.f32.mxu0 %v1526
      %3621 = vmatmul.mubr.f32.gmra.mrb[0].mxu0 %v1525
      %v3622 = vpop.f32.mrb[0].mxu0
      %v3623 = vadd.f32 0.0, %v3622
      %v3624 = vpop.f32.mrb[0].mxu0
      %3625 = vmatprep.mubr.f32.mxu0 %v1529
      %3626 = vmatmul.mubr.f32.gmra.mrb[0].mxu0 %v1528
      %v3627 = vpop.f32.mrb[0].mxu0
      %v3628 = vadd.f32 0.0, %v3627
      %v3629 = vpop.f32.mrb[0].mxu0
      %3630 = vmatprep.mubr.f32.mxu0 %v1532
      %3631 = vmatmul.mubr.f32.gmra.mrb[0].mxu0 %v1531
      %v3632 = vpop.f32.mrb[0].mxu0
      %v3633 = vadd.f32 0.0, %v3632
      %v3634 = vpop.f32.mrb[0].mxu0
      %3635 = vmatprep.mubr.f32.mxu0 %v1535
      %3636 = vmatmul.mubr.f32.gmra.mrb[0].mxu0 %v1534
      %v3637 = vpop.f32.mrb[0].mxu0
      %v3638 = vadd.f32 0.0, %v3637
      %v3639 = vpop.f32.mrb[0].mxu0
      %3640 = vmatprep.mubr.f32.mxu0 %v1538
      %3641 = vmatmul.mubr.f32.gmra.mrb[0].mxu0 %v1537
      %v3642 = vpop.f32.mrb[0].mxu0
      %v3643 = vadd.f32 0.0, %v3642
      %v3644 = vpop.f32.mrb[0].mxu0
      %3645 = vmatprep.mubr.f32.mxu0 %v1541
      %3646 = vmatmul.mubr.f32.gmra.mrb[0].mxu0 %v1540
      %v3647 = vpop.f32.mrb[0].mxu0
      %v3648 = vadd.f32 0.0, %v3647
      %v3649 = vpop.f32.mrb[0].mxu0
      %3650 = vmatprep.mubr.f32.mxu0 %v1544
      %3651 = vmatmul.mubr.f32.gmra.mrb[0].mxu0 %v1543
      %v3652 = vpop.f32.mrb[0].mxu0
      %v3653 = vadd.f32 0.0, %v3652
      %v3654 = vpop.f32.mrb[0].mxu0
      %3655 = vmatprep.mubr.f32.mxu0 %v1547
      %3656 = vmatmul.mubr.f32.gmra.mrb[0].mxu0 %v1546
      %v3657 = vpop.f32.mrb[0].mxu0
      %v3658 = vadd.f32 0.0, %v3657
      %v3659 = vpop.f32.mrb[0].mxu0
      %3660 = vmatprep.mubr.f32.mxu0 %v1550
      %3661 = vmatmul.mubr.f32.gmra.mrb[0].mxu0 %v1549
      %v3662 = vpop.f32.mrb[0].mxu0
      %v3663 = vadd.f32 0.0, %v3662
      %v3664 = vpop.f32.mrb[0].mxu0
      %3665 = vmatprep.mubr.f32.mxu0 %v1553
      %3666 = vmatmul.mubr.f32.gmra.mrb[0].mxu0 %v1552
      %v3667 = vpop.f32.mrb[0].mxu0
      %v3668 = vadd.f32 0.0, %v3667
      %v3669 = vpop.f32.mrb[0].mxu0
      %3670 = vmatprep.mubr.f32.mxu0 %v1556
      %3671 = vmatmul.mubr.f32.gmra.mrb[0].mxu0 %v1555
      %v3672 = vpop.f32.mrb[0].mxu0
      %v3673 = vadd.f32 0.0, %v3672
      %v3674 = vpop.f32.mrb[0].mxu0
      %3675 = vmatprep.mubr.f32.mxu0 %v1559
      %3676 = vmatmul.mubr.f32.gmra.mrb[0].mxu0 %v1558
      %v3677 = vpop.f32.mrb[0].mxu0
      %v3678 = vadd.f32 0.0, %v3677
      %v3679 = vpop.f32.mrb[0].mxu0
      %3680 = vmatprep.mubr.f32.mxu0 %v1562
      %3681 = vmatmul.mubr.f32.gmra.mrb[0].mxu0 %v1561
      %v3682 = vpop.f32.mrb[0].mxu0
      %v3683 = vadd.f32 0.0, %v3682
      %v3684 = vpop.f32.mrb[0].mxu0
      %3685 = vmatprep.mubr.f32.mxu0 %v1565
      %3686 = vmatmul.mubr.f32.gmra.mrb[0].mxu0 %v1564
      %v3687 = vpop.f32.mrb[0].mxu0
      %v3688 = vadd.f32 0.0, %v3687
      %v3689 = vpop.f32.mrb[0].mxu0
      %3690 = vdwg.mxu0
      %3691 = vmatprep.subr.mxu0 0.0
      %3692 = vmatpush1.msra.mxu0 %v3423
      %3693 = vmatprep.subr.mxu0 0.0
      %3694 = vmatpush1.msra.mxu0 %v3425
      %3695 = vmatprep.subr.mxu0 0.0
      %3696 = vmatpush1.msra.mxu0 %v3427
      %3697 = vmatprep.subr.mxu0 0.0
      %3698 = vmatpush1.msra.mxu0 %v3429
      %3699 = vmatprep.subr.mxu0 0.0
      %3700 = vmatpush1.msra.mxu0 0.0
      %3701 = vmatprep.subr.mxu0 0.0
      %3702 = vmatpush1.msra.mxu0 0.0
      %3703 = vmatprep.subr.mxu0 0.0
      %3704 = vmatpush1.msra.mxu0 0.0
      %3705 = vmatprep.subr.mxu0 0.0
      %3706 = vmatpush1.msra.mxu0 0.0
      %3707 = vmatprep.subr.mxu0 0.0
      %3708 = vmatpush1.msra.mxu0 0.0
      %3709 = vmatprep.subr.mxu0 0.0
      %3710 = vmatpush1.msra.mxu0 0.0
      %3711 = vmatprep.subr.mxu0 0.0
      %3712 = vmatpush1.msra.mxu0 0.0
      %3713 = vmatprep.subr.mxu0 0.0
      %3714 = vmatpush1.msra.mxu0 0.0
      %3715 = vmatprep.subr.mxu0 0.0
      %3716 = vmatpush1.msra.mxu0 0.0
      %3717 = vmatprep.subr.mxu0 0.0
      %3718 = vmatpush1.msra.mxu0 0.0
      %3719 = vmatprep.subr.mxu0 0.0
      %3720 = vmatpush1.msra.mxu0 0.0
      %3721 = vmatprep.subr.mxu0 0.0
      %3722 = vmatpush1.msra.mxu0 0.0
      %3723 = vmatprep.subr.mxu0 0.0
      %3724 = vmatpush1.msra.mxu0 0.0
      %3725 = vmatprep.subr.mxu0 0.0
      %3726 = vmatpush1.msra.mxu0 0.0
      %3727 = vmatprep.subr.mxu0 0.0
      %3728 = vmatpush1.msra.mxu0 0.0
      %3729 = vmatprep.subr.mxu0 0.0
      %3730 = vmatpush1.msra.mxu0 0.0
      %3731 = vmatprep.subr.mxu0 0.0
      %3732 = vmatpush1.msra.mxu0 0.0
      %3733 = vmatprep.subr.mxu0 0.0
      %3734 = vmatpush1.msra.mxu0 0.0
      %3735 = vmatprep.subr.mxu0 0.0
      %3736 = vmatpush1.msra.mxu0 0.0
      %3737 = vmatprep.subr.mxu0 0.0
      %3738 = vmatpush1.msra.mxu0 0.0
      %3739 = vmatprep.subr.mxu0 0.0
      %3740 = vmatpush1.msra.mxu0 0.0
      %3741 = vmatprep.subr.mxu0 0.0
      %3742 = vmatpush1.msra.mxu0 0.0
      %3743 = vmatprep.subr.mxu0 0.0
      %3744 = vmatpush1.msra.mxu0 0.0
      %3745 = vmatprep.subr.mxu0 0.0
      %3746 = vmatpush1.msra.mxu0 0.0
      %3747 = vmatprep.subr.mxu0 0.0
      %3748 = vmatpush1.msra.mxu0 0.0
      %3749 = vmatprep.subr.mxu0 0.0
      %3750 = vmatpush1.msra.mxu0 0.0
      %3751 = vmatprep.subr.mxu0 0.0
      %3752 = vmatpush1.msra.mxu0 0.0
      %3753 = vmatprep.subr.mxu0 0.0
      %3754 = vmatpush1.msra.mxu0 0.0
      %3755 = vmatprep.mubr.f32.mxu0 0.0
      %3756 = vmatmul.mubr.f32.gmra.mrb[0].mxu0 %v1569
      %v3757 = vpop.f32.mrb[0].mxu0
      %v3758 = vadd.f32 %v3533, %v3757
      %v3759 = vpop.f32.mrb[0].mxu0
      %3760 = vmatprep.mubr.f32.mxu0 0.0
      %3761 = vmatmul.mubr.f32.gmra.mrb[0].mxu0 %v1572
      %v3762 = vpop.f32.mrb[0].mxu0
      %v3763 = vadd.f32 %v3538, %v3762
      %v3764 = vpop.f32.mrb[0].mxu0
      %3765 = vmatprep.mubr.f32.mxu0 0.0
      %3766 = vmatmul.mubr.f32.gmra.mrb[0].mxu0 %v1575
      %v3767 = vpop.f32.mrb[0].mxu0
      %v3768 = vadd.f32 %v3543, %v3767
      %v3769 = vpop.f32.mrb[0].mxu0
      %3770 = vmatprep.mubr.f32.mxu0 0.0
      %3771 = vmatmul.mubr.f32.gmra.mrb[0].mxu0 %v1578
      %v3772 = vpop.f32.mrb[0].mxu0
      %v3773 = vadd.f32 %v3548, %v3772
      %v3774 = vpop.f32.mrb[0].mxu0
      %3775 = vmatprep.mubr.f32.mxu0 0.0
      %3776 = vmatmul.mubr.f32.gmra.mrb[0].mxu0 %v1581
      %v3777 = vpop.f32.mrb[0].mxu0
      %v3778 = vadd.f32 %v3553, %v3777
      %v3779 = vpop.f32.mrb[0].mxu0
      %3780 = vmatprep.mubr.f32.mxu0 0.0
      %3781 = vmatmul.mubr.f32.gmra.mrb[0].mxu0 %v1584
      %v3782 = vpop.f32.mrb[0].mxu0
      %v3783 = vadd.f32 %v3558, %v3782
      %v3784 = vpop.f32.mrb[0].mxu0
      %3785 = vmatprep.mubr.f32.mxu0 0.0
      %3786 = vmatmul.mubr.f32.gmra.mrb[0].mxu0 %v1587
      %v3787 = vpop.f32.mrb[0].mxu0
      %v3788 = vadd.f32 %v3563, %v3787
      %v3789 = vpop.f32.mrb[0].mxu0
      %3790 = vmatprep.mubr.f32.mxu0 0.0
      %3791 = vmatmul.mubr.f32.gmra.mrb[0].mxu0 %v1590
      %v3792 = vpop.f32.mrb[0].mxu0
      %v3793 = vadd.f32 %v3568, %v3792
      %v3794 = vpop.f32.mrb[0].mxu0
      %3795 = vmatprep.mubr.f32.mxu0 0.0
      %3796 = vmatmul.mubr.f32.gmra.mrb[0].mxu0 %v1593
      %v3797 = vpop.f32.mrb[0].mxu0
      %v3798 = vadd.f32 %v3573, %v3797
      %v3799 = vpop.f32.mrb[0].mxu0
      %3800 = vmatprep.mubr.f32.mxu0 0.0
      %3801 = vmatmul.mubr.f32.gmra.mrb[0].mxu0 %v1596
      %v3802 = vpop.f32.mrb[0].mxu0
      %v3803 = vadd.f32 %v3578, %v3802
      %v3804 = vpop.f32.mrb[0].mxu0
      %3805 = vmatprep.mubr.f32.mxu0 0.0
      %3806 = vmatmul.mubr.f32.gmra.mrb[0].mxu0 %v1599
      %v3807 = vpop.f32.mrb[0].mxu0
      %v3808 = vadd.f32 %v3583, %v3807
      %v3809 = vpop.f32.mrb[0].mxu0
      %3810 = vmatprep.mubr.f32.mxu0 0.0
      %3811 = vmatmul.mubr.f32.gmra.mrb[0].mxu0 %v1602
      %v3812 = vpop.f32.mrb[0].mxu0
      %v3813 = vadd.f32 %v3588, %v3812
      %v3814 = vpop.f32.mrb[0].mxu0
      %3815 = vmatprep.mubr.f32.mxu0 0.0
      %3816 = vmatmul.mubr.f32.gmra.mrb[0].mxu0 %v1605
      %v3817 = vpop.f32.mrb[0].mxu0
      %v3818 = vadd.f32 %v3593, %v3817
      %v3819 = vpop.f32.mrb[0].mxu0
      %3820 = vmatprep.mubr.f32.mxu0 0.0
      %3821 = vmatmul.mubr.f32.gmra.mrb[0].mxu0 %v1608
      %v3822 = vpop.f32.mrb[0].mxu0
      %v3823 = vadd.f32 %v3598, %v3822
      %v3824 = vpop.f32.mrb[0].mxu0
      %3825 = vmatprep.mubr.f32.mxu0 0.0
      %3826 = vmatmul.mubr.f32.gmra.mrb[0].mxu0 %v1611
      %v3827 = vpop.f32.mrb[0].mxu0
      %v3828 = vadd.f32 %v3603, %v3827
      %v3829 = vpop.f32.mrb[0].mxu0
      %3830 = vmatprep.mubr.f32.mxu0 0.0
      %3831 = vmatmul.mubr.f32.gmra.mrb[0].mxu0 %v1614
      %v3832 = vpop.f32.mrb[0].mxu0
      %v3833 = vadd.f32 %v3608, %v3832
      %v3834 = vpop.f32.mrb[0].mxu0
      %3835 = vmatprep.mubr.f32.mxu0 0.0
      %3836 = vmatmul.mubr.f32.gmra.mrb[0].mxu0 %v1617
      %v3837 = vpop.f32.mrb[0].mxu0
      %v3838 = vadd.f32 %v3613, %v3837
      %v3839 = vpop.f32.mrb[0].mxu0
      %3840 = vmatprep.mubr.f32.mxu0 0.0
      %3841 = vmatmul.mubr.f32.gmra.mrb[0].mxu0 %v1620
      %v3842 = vpop.f32.mrb[0].mxu0
      %v3843 = vadd.f32 %v3618, %v3842
      %v3844 = vpop.f32.mrb[0].mxu0
      %3845 = vmatprep.mubr.f32.mxu0 0.0
      %3846 = vmatmul.mubr.f32.gmra.mrb[0].mxu0 %v1623
      %v3847 = vpop.f32.mrb[0].mxu0
      %v3848 = vadd.f32 %v3623, %v3847
      %v3849 = vpop.f32.mrb[0].mxu0
      %3850 = vmatprep.mubr.f32.mxu0 0.0
      %3851 = vmatmul.mubr.f32.gmra.mrb[0].mxu0 %v1626
      %v3852 = vpop.f32.mrb[0].mxu0
      %v3853 = vadd.f32 %v3628, %v3852
      %v3854 = vpop.f32.mrb[0].mxu0
      %3855 = vmatprep.mubr.f32.mxu0 0.0
      %3856 = vmatmul.mubr.f32.gmra.mrb[0].mxu0 %v1629
      %v3857 = vpop.f32.mrb[0].mxu0
      %v3858 = vadd.f32 %v3633, %v3857
      %v3859 = vpop.f32.mrb[0].mxu0
      %3860 = vmatprep.mubr.f32.mxu0 0.0
      %3861 = vmatmul.mubr.f32.gmra.mrb[0].mxu0 %v1632
      %v3862 = vpop.f32.mrb[0].mxu0
      %v3863 = vadd.f32 %v3638, %v3862
      %v3864 = vpop.f32.mrb[0].mxu0
      %3865 = vmatprep.mubr.f32.mxu0 0.0
      %3866 = vmatmul.mubr.f32.gmra.mrb[0].mxu0 %v1635
      %v3867 = vpop.f32.mrb[0].mxu0
      %v3868 = vadd.f32 %v3643, %v3867
      %v3869 = vpop.f32.mrb[0].mxu0
      %3870 = vmatprep.mubr.f32.mxu0 0.0
      %3871 = vmatmul.mubr.f32.gmra.mrb[0].mxu0 %v1638
      %v3872 = vpop.f32.mrb[0].mxu0
      %v3873 = vadd.f32 %v3648, %v3872
      %v3874 = vpop.f32.mrb[0].mxu0
      %3875 = vmatprep.mubr.f32.mxu0 0.0
      %3876 = vmatmul.mubr.f32.gmra.mrb[0].mxu0 %v1641
      %v3877 = vpop.f32.mrb[0].mxu0
      %v3878 = vadd.f32 %v3653, %v3877
      %v3879 = vpop.f32.mrb[0].mxu0
      %3880 = vmatprep.mubr.f32.mxu0 0.0
      %3881 = vmatmul.mubr.f32.gmra.mrb[0].mxu0 %v1644
      %v3882 = vpop.f32.mrb[0].mxu0
      %v3883 = vadd.f32 %v3658, %v3882
      %v3884 = vpop.f32.mrb[0].mxu0
      %3885 = vmatprep.mubr.f32.mxu0 0.0
      %3886 = vmatmul.mubr.f32.gmra.mrb[0].mxu0 %v1647
      %v3887 = vpop.f32.mrb[0].mxu0
      %v3888 = vadd.f32 %v3663, %v3887
      %v3889 = vpop.f32.mrb[0].mxu0
      %3890 = vmatprep.mubr.f32.mxu0 0.0
      %3891 = vmatmul.mubr.f32.gmra.mrb[0].mxu0 %v1650
      %v3892 = vpop.f32.mrb[0].mxu0
      %v3893 = vadd.f32 %v3668, %v3892
      %v3894 = vpop.f32.mrb[0].mxu0
      %3895 = vmatprep.mubr.f32.mxu0 0.0
      %3896 = vmatmul.mubr.f32.gmra.mrb[0].mxu0 %v1653
      %v3897 = vpop.f32.mrb[0].mxu0
      %v3898 = vadd.f32 %v3673, %v3897
      %v3899 = vpop.f32.mrb[0].mxu0
      %3900 = vmatprep.mubr.f32.mxu0 0.0
      %3901 = vmatmul.mubr.f32.gmra.mrb[0].mxu0 %v1656
      %v3902 = vpop.f32.mrb[0].mxu0
      %v3903 = vadd.f32 %v3678, %v3902
      %v3904 = vpop.f32.mrb[0].mxu0
      %3905 = vmatprep.mubr.f32.mxu0 0.0
      %3906 = vmatmul.mubr.f32.gmra.mrb[0].mxu0 %v1659
      %v3907 = vpop.f32.mrb[0].mxu0
      %v3908 = vadd.f32 %v3683, %v3907
      %v3909 = vpop.f32.mrb[0].mxu0
      %3910 = vmatprep.mubr.f32.mxu0 0.0
      %3911 = vmatmul.mubr.f32.gmra.mrb[0].mxu0 %v1662
      %v3912 = vpop.f32.mrb[0].mxu0
      %v3913 = vadd.f32 %v3688, %v3912
      %v3914 = vpop.f32.mrb[0].mxu0
      %3915 = vdwg.mxu0
      %s3916 = scalar_lea.vmem %s5, 16
      %v3917 = vld [vmem:[%s3916] sm:$0xff]
      %v3919 = vsel %vm357, %v3758, 0
      %v3922 = vsel %vm357, %v3763, 0
      %v3925 = vsel %vm357, %v3768, 0
      %v3928 = vsel %vm357, %v3773, 0
      %v3931 = vsel %vm357, %v3778, 0
      %v3934 = vsel %vm357, %v3783, 0
      %v3937 = vsel %vm357, %v3788, 0
      %v3940 = vsel %vm357, %v3793, 0
      %v3943 = vsel %vm357, %v3798, 0
      %v3946 = vsel %vm357, %v3803, 0
      %v3949 = vsel %vm357, %v3808, 0
      %v3952 = vsel %vm357, %v3813, 0
      %v3955 = vsel %vm357, %v3818, 0
      %v3958 = vsel %vm357, %v3823, 0
      %v3961 = vsel %vm357, %v3828, 0
      %v3964 = vsel %vm357, %v3833, 0
      %v3967 = vsel %vm357, %v3838, 0
      %v3970 = vsel %vm357, %v3843, 0
      %v3973 = vsel %vm357, %v3848, 0
      %v3976 = vsel %vm357, %v3853, 0
      %v3979 = vsel %vm357, %v3858, 0
      %v3982 = vsel %vm357, %v3863, 0
      %v3985 = vsel %vm357, %v3868, 0
      %v3988 = vsel %vm357, %v3873, 0
      %v3991 = vsel %vm357, %v3878, 0
      %v3994 = vsel %vm357, %v3883, 0
      %v3997 = vsel %vm357, %v3888, 0
      %v4000 = vsel %vm357, %v3893, 0
      %v4003 = vsel %vm357, %v3898, 0
      %v4006 = vsel %vm357, %v3903, 0
      %v4009 = vsel %vm357, %v3908, 0
      %v4012 = vsel %vm357, %v3913, 0
      %4014 = vmatprep.subr.mxu0 0.0
      %4015 = vmatpush1.msra.mxu0 %v3917
      %4016 = vmatprep.subr.mxu0 0.0
      %4017 = vmatpush1.msra.mxu0 0.0
      %4018 = vmatprep.subr.mxu0 0.0
      %4019 = vmatpush1.msra.mxu0 0.0
      %4020 = vmatprep.subr.mxu0 0.0
      %4021 = vmatpush1.msra.mxu0 0.0
      %4022 = vmatprep.subr.mxu0 0.0
      %4023 = vmatpush1.msra.mxu0 0.0
      %4024 = vmatprep.subr.mxu0 0.0
      %4025 = vmatpush1.msra.mxu0 0.0
      %4026 = vmatprep.subr.mxu0 0.0
      %4027 = vmatpush1.msra.mxu0 0.0
      %4028 = vmatprep.subr.mxu0 0.0
      %4029 = vmatpush1.msra.mxu0 0.0
      %4030 = vmatprep.subr.mxu0 0.0
      %4031 = vmatpush1.msra.mxu0 0.0
      %4032 = vmatprep.subr.mxu0 0.0
      %4033 = vmatpush1.msra.mxu0 0.0
      %4034 = vmatprep.subr.mxu0 0.0
      %4035 = vmatpush1.msra.mxu0 0.0
      %4036 = vmatprep.subr.mxu0 0.0
      %4037 = vmatpush1.msra.mxu0 0.0
      %4038 = vmatprep.subr.mxu0 0.0
      %4039 = vmatpush1.msra.mxu0 0.0
      %4040 = vmatprep.subr.mxu0 0.0
      %4041 = vmatpush1.msra.mxu0 0.0
      %4042 = vmatprep.subr.mxu0 0.0
      %4043 = vmatpush1.msra.mxu0 0.0
      %4044 = vmatprep.subr.mxu0 0.0
      %4045 = vmatpush1.msra.mxu0 0.0
      %4046 = vmatprep.subr.mxu0 0.0
      %4047 = vmatpush1.msra.mxu0 0.0
      %4048 = vmatprep.subr.mxu0 0.0
      %4049 = vmatpush1.msra.mxu0 0.0
      %4050 = vmatprep.subr.mxu0 0.0
      %4051 = vmatpush1.msra.mxu0 0.0
      %4052 = vmatprep.subr.mxu0 0.0
      %4053 = vmatpush1.msra.mxu0 0.0
      %4054 = vmatprep.subr.mxu0 0.0
      %4055 = vmatpush1.msra.mxu0 0.0
      %4056 = vmatprep.subr.mxu0 0.0
      %4057 = vmatpush1.msra.mxu0 0.0
      %4058 = vmatprep.subr.mxu0 0.0
      %4059 = vmatpush1.msra.mxu0 0.0
      %4060 = vmatprep.subr.mxu0 0.0
      %4061 = vmatpush1.msra.mxu0 0.0
      %4062 = vmatprep.subr.mxu0 0.0
      %4063 = vmatpush1.msra.mxu0 0.0
      %4064 = vmatprep.subr.mxu0 0.0
      %4065 = vmatpush1.msra.mxu0 0.0
      %4066 = vmatprep.subr.mxu0 0.0
      %4067 = vmatpush1.msra.mxu0 0.0
      %4068 = vmatprep.subr.mxu0 0.0
      %4069 = vmatpush1.msra.mxu0 0.0
      %4070 = vmatprep.subr.mxu0 0.0
      %4071 = vmatpush1.msra.mxu0 0.0
      %4072 = vmatprep.subr.mxu0 0.0
      %4073 = vmatpush1.msra.mxu0 0.0
      %4074 = vmatprep.subr.mxu0 0.0
      %4075 = vmatpush1.msra.mxu0 0.0
      %4076 = vmatprep.subr.mxu0 0.0
      %4077 = vmatpush1.msra.mxu0 0.0
      %4078 = vmatprep.mubr.f32.mxu0 0.0
      %4079 = vmatmul.mubr.f32.gmra.mrb[0].mxu0 %v3919
      %v4080 = vpop.f32.mrb[0].mxu0
      %v4081 = vadd.f32 0.0, %v4080
      %v4082 = vpop.f32.mrb[0].mxu0
      %4083 = vmatprep.mubr.f32.mxu0 0.0
      %4084 = vmatmul.mubr.f32.gmra.mrb[0].mxu0 %v3922
      %v4085 = vpop.f32.mrb[0].mxu0
      %v4086 = vadd.f32 0.0, %v4085
      %v4087 = vpop.f32.mrb[0].mxu0
      %4088 = vmatprep.mubr.f32.mxu0 0.0
      %4089 = vmatmul.mubr.f32.gmra.mrb[0].mxu0 %v3925
      %v4090 = vpop.f32.mrb[0].mxu0
      %v4091 = vadd.f32 0.0, %v4090
      %v4092 = vpop.f32.mrb[0].mxu0
      %4093 = vmatprep.mubr.f32.mxu0 0.0
      %4094 = vmatmul.mubr.f32.gmra.mrb[0].mxu0 %v3928
      %v4095 = vpop.f32.mrb[0].mxu0
      %v4096 = vadd.f32 0.0, %v4095
      %v4097 = vpop.f32.mrb[0].mxu0
      %4098 = vmatprep.mubr.f32.mxu0 0.0
      %4099 = vmatmul.mubr.f32.gmra.mrb[0].mxu0 %v3931
      %v4100 = vpop.f32.mrb[0].mxu0
      %v4101 = vadd.f32 0.0, %v4100
      %v4102 = vpop.f32.mrb[0].mxu0
      %4103 = vmatprep.mubr.f32.mxu0 0.0
      %4104 = vmatmul.mubr.f32.gmra.mrb[0].mxu0 %v3934
      %v4105 = vpop.f32.mrb[0].mxu0
      %v4106 = vadd.f32 0.0, %v4105
      %v4107 = vpop.f32.mrb[0].mxu0
      %4108 = vmatprep.mubr.f32.mxu0 0.0
      %4109 = vmatmul.mubr.f32.gmra.mrb[0].mxu0 %v3937
      %v4110 = vpop.f32.mrb[0].mxu0
      %v4111 = vadd.f32 0.0, %v4110
      %v4112 = vpop.f32.mrb[0].mxu0
      %4113 = vmatprep.mubr.f32.mxu0 0.0
      %4114 = vmatmul.mubr.f32.gmra.mrb[0].mxu0 %v3940
      %v4115 = vpop.f32.mrb[0].mxu0
      %v4116 = vadd.f32 0.0, %v4115
      %v4117 = vpop.f32.mrb[0].mxu0
      %4118 = vmatprep.mubr.f32.mxu0 0.0
      %4119 = vmatmul.mubr.f32.gmra.mrb[0].mxu0 %v3943
      %v4120 = vpop.f32.mrb[0].mxu0
      %v4121 = vadd.f32 0.0, %v4120
      %v4122 = vpop.f32.mrb[0].mxu0
      %4123 = vmatprep.mubr.f32.mxu0 0.0
      %4124 = vmatmul.mubr.f32.gmra.mrb[0].mxu0 %v3946
      %v4125 = vpop.f32.mrb[0].mxu0
      %v4126 = vadd.f32 0.0, %v4125
      %v4127 = vpop.f32.mrb[0].mxu0
      %4128 = vmatprep.mubr.f32.mxu0 0.0
      %4129 = vmatmul.mubr.f32.gmra.mrb[0].mxu0 %v3949
      %v4130 = vpop.f32.mrb[0].mxu0
      %v4131 = vadd.f32 0.0, %v4130
      %v4132 = vpop.f32.mrb[0].mxu0
      %4133 = vmatprep.mubr.f32.mxu0 0.0
      %4134 = vmatmul.mubr.f32.gmra.mrb[0].mxu0 %v3952
      %v4135 = vpop.f32.mrb[0].mxu0
      %v4136 = vadd.f32 0.0, %v4135
      %v4137 = vpop.f32.mrb[0].mxu0
      %4138 = vmatprep.mubr.f32.mxu0 0.0
      %4139 = vmatmul.mubr.f32.gmra.mrb[0].mxu0 %v3955
      %v4140 = vpop.f32.mrb[0].mxu0
      %v4141 = vadd.f32 0.0, %v4140
      %v4142 = vpop.f32.mrb[0].mxu0
      %4143 = vmatprep.mubr.f32.mxu0 0.0
      %4144 = vmatmul.mubr.f32.gmra.mrb[0].mxu0 %v3958
      %v4145 = vpop.f32.mrb[0].mxu0
      %v4146 = vadd.f32 0.0, %v4145
      %v4147 = vpop.f32.mrb[0].mxu0
      %4148 = vmatprep.mubr.f32.mxu0 0.0
      %4149 = vmatmul.mubr.f32.gmra.mrb[0].mxu0 %v3961
      %v4150 = vpop.f32.mrb[0].mxu0
      %v4151 = vadd.f32 0.0, %v4150
      %v4152 = vpop.f32.mrb[0].mxu0
      %4153 = vmatprep.mubr.f32.mxu0 0.0
      %4154 = vmatmul.mubr.f32.gmra.mrb[0].mxu0 %v3964
      %v4155 = vpop.f32.mrb[0].mxu0
      %v4156 = vadd.f32 0.0, %v4155
      %v4157 = vpop.f32.mrb[0].mxu0
      %4158 = vmatprep.mubr.f32.mxu0 0.0
      %4159 = vmatmul.mubr.f32.gmra.mrb[0].mxu0 %v3967
      %v4160 = vpop.f32.mrb[0].mxu0
      %v4161 = vadd.f32 0.0, %v4160
      %v4162 = vpop.f32.mrb[0].mxu0
      %4163 = vmatprep.mubr.f32.mxu0 0.0
      %4164 = vmatmul.mubr.f32.gmra.mrb[0].mxu0 %v3970
      %v4165 = vpop.f32.mrb[0].mxu0
      %v4166 = vadd.f32 0.0, %v4165
      %v4167 = vpop.f32.mrb[0].mxu0
      %4168 = vmatprep.mubr.f32.mxu0 0.0
      %4169 = vmatmul.mubr.f32.gmra.mrb[0].mxu0 %v3973
      %v4170 = vpop.f32.mrb[0].mxu0
      %v4171 = vadd.f32 0.0, %v4170
      %v4172 = vpop.f32.mrb[0].mxu0
      %4173 = vmatprep.mubr.f32.mxu0 0.0
      %4174 = vmatmul.mubr.f32.gmra.mrb[0].mxu0 %v3976
      %v4175 = vpop.f32.mrb[0].mxu0
      %v4176 = vadd.f32 0.0, %v4175
      %v4177 = vpop.f32.mrb[0].mxu0
      %4178 = vmatprep.mubr.f32.mxu0 0.0
      %4179 = vmatmul.mubr.f32.gmra.mrb[0].mxu0 %v3979
      %v4180 = vpop.f32.mrb[0].mxu0
      %v4181 = vadd.f32 0.0, %v4180
      %v4182 = vpop.f32.mrb[0].mxu0
      %4183 = vmatprep.mubr.f32.mxu0 0.0
      %4184 = vmatmul.mubr.f32.gmra.mrb[0].mxu0 %v3982
      %v4185 = vpop.f32.mrb[0].mxu0
      %v4186 = vadd.f32 0.0, %v4185
      %v4187 = vpop.f32.mrb[0].mxu0
      %4188 = vmatprep.mubr.f32.mxu0 0.0
      %4189 = vmatmul.mubr.f32.gmra.mrb[0].mxu0 %v3985
      %v4190 = vpop.f32.mrb[0].mxu0
      %v4191 = vadd.f32 0.0, %v4190
      %v4192 = vpop.f32.mrb[0].mxu0
      %4193 = vmatprep.mubr.f32.mxu0 0.0
      %4194 = vmatmul.mubr.f32.gmra.mrb[0].mxu0 %v3988
      %v4195 = vpop.f32.mrb[0].mxu0
      %v4196 = vadd.f32 0.0, %v4195
      %v4197 = vpop.f32.mrb[0].mxu0
      %4198 = vmatprep.mubr.f32.mxu0 0.0
      %4199 = vmatmul.mubr.f32.gmra.mrb[0].mxu0 %v3991
      %v4200 = vpop.f32.mrb[0].mxu0
      %v4201 = vadd.f32 0.0, %v4200
      %v4202 = vpop.f32.mrb[0].mxu0
      %4203 = vmatprep.mubr.f32.mxu0 0.0
      %4204 = vmatmul.mubr.f32.gmra.mrb[0].mxu0 %v3994
      %v4205 = vpop.f32.mrb[0].mxu0
      %v4206 = vadd.f32 0.0, %v4205
      %v4207 = vpop.f32.mrb[0].mxu0
      %4208 = vmatprep.mubr.f32.mxu0 0.0
      %4209 = vmatmul.mubr.f32.gmra.mrb[0].mxu0 %v3997
      %v4210 = vpop.f32.mrb[0].mxu0
      %v4211 = vadd.f32 0.0, %v4210
      %v4212 = vpop.f32.mrb[0].mxu0
      %4213 = vmatprep.mubr.f32.mxu0 0.0
      %4214 = vmatmul.mubr.f32.gmra.mrb[0].mxu0 %v4000
      %v4215 = vpop.f32.mrb[0].mxu0
      %v4216 = vadd.f32 0.0, %v4215
      %v4217 = vpop.f32.mrb[0].mxu0
      %4218 = vmatprep.mubr.f32.mxu0 0.0
      %4219 = vmatmul.mubr.f32.gmra.mrb[0].mxu0 %v4003
      %v4220 = vpop.f32.mrb[0].mxu0
      %v4221 = vadd.f32 0.0, %v4220
      %v4222 = vpop.f32.mrb[0].mxu0
      %4223 = vmatprep.mubr.f32.mxu0 0.0
      %4224 = vmatmul.mubr.f32.gmra.mrb[0].mxu0 %v4006
      %v4225 = vpop.f32.mrb[0].mxu0
      %v4226 = vadd.f32 0.0, %v4225
      %v4227 = vpop.f32.mrb[0].mxu0
      %4228 = vmatprep.mubr.f32.mxu0 0.0
      %4229 = vmatmul.mubr.f32.gmra.mrb[0].mxu0 %v4009
      %v4230 = vpop.f32.mrb[0].mxu0
      %v4231 = vadd.f32 0.0, %v4230
      %v4232 = vpop.f32.mrb[0].mxu0
      %4233 = vmatprep.mubr.f32.mxu0 0.0
      %4234 = vmatmul.mubr.f32.gmra.mrb[0].mxu0 %v4012
      %v4235 = vpop.f32.mrb[0].mxu0
      %v4236 = vadd.f32 0.0, %v4235
      %v4237 = vpop.f32.mrb[0].mxu0
      %4238 = vdwg.mxu0
      %v4239 = vadd.f32 %v3198, %v4081
      %v4240 = vadd.f32 %v3203, %v4086
      %v4241 = vadd.f32 %v3208, %v4091
      %v4242 = vadd.f32 %v3213, %v4096
      %v4243 = vadd.f32 %v3218, %v4101
      %v4244 = vadd.f32 %v3223, %v4106
      %v4245 = vadd.f32 %v3228, %v4111
      %v4246 = vadd.f32 %v3233, %v4116
      %v4247 = vadd.f32 %v3238, %v4121
      %v4248 = vadd.f32 %v3243, %v4126
      %v4249 = vadd.f32 %v3248, %v4131
      %v4250 = vadd.f32 %v3253, %v4136
      %v4251 = vadd.f32 %v3258, %v4141
      %v4252 = vadd.f32 %v3263, %v4146
      %v4253 = vadd.f32 %v3268, %v4151
      %v4254 = vadd.f32 %v3273, %v4156
      %v4255 = vadd.f32 %v3278, %v4161
      %v4256 = vadd.f32 %v3283, %v4166
      %v4257 = vadd.f32 %v3288, %v4171
      %v4258 = vadd.f32 %v3293, %v4176
      %v4259 = vadd.f32 %v3298, %v4181
      %v4260 = vadd.f32 %v3303, %v4186
      %v4261 = vadd.f32 %v3308, %v4191
      %v4262 = vadd.f32 %v3313, %v4196
      %v4263 = vadd.f32 %v3318, %v4201
      %v4264 = vadd.f32 %v3323, %v4206
      %v4265 = vadd.f32 %v3328, %v4211
      %v4266 = vadd.f32 %v3333, %v4216
      %v4267 = vadd.f32 %v3338, %v4221
      %v4268 = vadd.f32 %v3343, %v4226
      %v4269 = vadd.f32 %v3348, %v4231
      %v4270 = vadd.f32 %v3353, %v4236
      %v4273 = vrot.slane %v1467, 2
      %v4274 = vsel %vm3356, %v3428, %v4273
      %v4275 = vrot.slane %v1468, 2
      %v4276 = vsel %vm3356, %v4273, %v4275
      %4279 = vmatprep.subr.mxu0 0.0
      %4280 = vmatpush1.msra.mxu0 %v3363
      %4281 = vmatprep.subr.mxu0 0.0
      %4282 = vmatpush1.msra.mxu0 %v3365
      %4283 = vmatprep.subr.mxu0 0.0
      %4284 = vmatpush1.msra.mxu0 %v3367
      %4285 = vmatprep.subr.mxu0 0.0
      %4286 = vmatpush1.msra.mxu0 %v3369
      %4287 = vmatprep.subr.mxu0 0.0
      %4288 = vmatpush1.msra.mxu0 %v3371
      %4289 = vmatprep.subr.mxu0 0.0
      %4290 = vmatpush1.msra.mxu0 %v3373
      %4291 = vmatprep.subr.mxu0 0.0
      %4292 = vmatpush1.msra.mxu0 %v3375
      %4293 = vmatprep.subr.mxu0 0.0
      %4294 = vmatpush1.msra.mxu0 %v3377
      %4295 = vmatprep.subr.mxu0 0.0
      %4296 = vmatpush1.msra.mxu0 %v3379
      %4297 = vmatprep.subr.mxu0 0.0
      %4298 = vmatpush1.msra.mxu0 %v3381
      %4299 = vmatprep.subr.mxu0 0.0
      %4300 = vmatpush1.msra.mxu0 %v3383
      %4301 = vmatprep.subr.mxu0 0.0
      %4302 = vmatpush1.msra.mxu0 %v3385
      %4303 = vmatprep.subr.mxu0 0.0
      %4304 = vmatpush1.msra.mxu0 %v3387
      %4305 = vmatprep.subr.mxu0 0.0
      %4306 = vmatpush1.msra.mxu0 %v3389
      %4307 = vmatprep.subr.mxu0 0.0
      %4308 = vmatpush1.msra.mxu0 %v3391
      %4309 = vmatprep.subr.mxu0 0.0
      %4310 = vmatpush1.msra.mxu0 %v3393
      %4311 = vmatprep.subr.mxu0 0.0
      %4312 = vmatpush1.msra.mxu0 %v3395
      %4313 = vmatprep.subr.mxu0 0.0
      %4314 = vmatpush1.msra.mxu0 %v3397
      %4315 = vmatprep.subr.mxu0 0.0
      %4316 = vmatpush1.msra.mxu0 %v3399
      %4317 = vmatprep.subr.mxu0 0.0
      %4318 = vmatpush1.msra.mxu0 %v3401
      %4319 = vmatprep.subr.mxu0 0.0
      %4320 = vmatpush1.msra.mxu0 %v3403
      %4321 = vmatprep.subr.mxu0 0.0
      %4322 = vmatpush1.msra.mxu0 %v3405
      %4323 = vmatprep.subr.mxu0 0.0
      %4324 = vmatpush1.msra.mxu0 %v3407
      %4325 = vmatprep.subr.mxu0 0.0
      %4326 = vmatpush1.msra.mxu0 %v3409
      %4327 = vmatprep.subr.mxu0 0.0
      %4328 = vmatpush1.msra.mxu0 %v3411
      %4329 = vmatprep.subr.mxu0 0.0
      %4330 = vmatpush1.msra.mxu0 %v3413
      %4331 = vmatprep.subr.mxu0 0.0
      %4332 = vmatpush1.msra.mxu0 %v3415
      %4333 = vmatprep.subr.mxu0 0.0
      %4334 = vmatpush1.msra.mxu0 %v3417
      %4335 = vmatprep.subr.mxu0 0.0
      %4336 = vmatpush1.msra.mxu0 %v3419
      %4337 = vmatprep.subr.mxu0 0.0
      %4338 = vmatpush1.msra.mxu0 %v3421
      %4339 = vmatprep.subr.mxu0 0.0
      %4340 = vmatpush1.msra.mxu0 %v3423
      %4341 = vmatprep.subr.mxu0 0.0
      %4342 = vmatpush1.msra.mxu0 %v3425
      %4343 = vmatprep.mubr.f32.mxu0 %v1472
      %4344 = vmatmul.mubr.f32.gmra.mrb[0].mxu0 %v1471
      %v4345 = vpop.f32.mrb[0].mxu0
      %v4346 = vadd.f32 0.0, %v4345
      %v4347 = vpop.f32.mrb[0].mxu0
      %4348 = vmatprep.mubr.f32.mxu0 %v1475
      %4349 = vmatmul.mubr.f32.gmra.mrb[0].mxu0 %v1474
      %v4350 = vpop.f32.mrb[0].mxu0
      %v4351 = vadd.f32 0.0, %v4350
      %v4352 = vpop.f32.mrb[0].mxu0
      %4353 = vmatprep.mubr.f32.mxu0 %v1478
      %4354 = vmatmul.mubr.f32.gmra.mrb[0].mxu0 %v1477
      %v4355 = vpop.f32.mrb[0].mxu0
      %v4356 = vadd.f32 0.0, %v4355
      %v4357 = vpop.f32.mrb[0].mxu0
      %4358 = vmatprep.mubr.f32.mxu0 %v1481
      %4359 = vmatmul.mubr.f32.gmra.mrb[0].mxu0 %v1480
      %v4360 = vpop.f32.mrb[0].mxu0
      %v4361 = vadd.f32 0.0, %v4360
      %v4362 = vpop.f32.mrb[0].mxu0
      %4363 = vmatprep.mubr.f32.mxu0 %v1484
      %4364 = vmatmul.mubr.f32.gmra.mrb[0].mxu0 %v1483
      %v4365 = vpop.f32.mrb[0].mxu0
      %v4366 = vadd.f32 0.0, %v4365
      %v4367 = vpop.f32.mrb[0].mxu0
      %4368 = vmatprep.mubr.f32.mxu0 %v1487
      %4369 = vmatmul.mubr.f32.gmra.mrb[0].mxu0 %v1486
      %v4370 = vpop.f32.mrb[0].mxu0
      %v4371 = vadd.f32 0.0, %v4370
      %v4372 = vpop.f32.mrb[0].mxu0
      %4373 = vmatprep.mubr.f32.mxu0 %v1490
      %4374 = vmatmul.mubr.f32.gmra.mrb[0].mxu0 %v1489
      %v4375 = vpop.f32.mrb[0].mxu0
      %v4376 = vadd.f32 0.0, %v4375
      %v4377 = vpop.f32.mrb[0].mxu0
      %4378 = vmatprep.mubr.f32.mxu0 %v1493
      %4379 = vmatmul.mubr.f32.gmra.mrb[0].mxu0 %v1492
      %v4380 = vpop.f32.mrb[0].mxu0
      %v4381 = vadd.f32 0.0, %v4380
      %v4382 = vpop.f32.mrb[0].mxu0
      %4383 = vmatprep.mubr.f32.mxu0 %v1496
      %4384 = vmatmul.mubr.f32.gmra.mrb[0].mxu0 %v1495
      %v4385 = vpop.f32.mrb[0].mxu0
      %v4386 = vadd.f32 0.0, %v4385
      %v4387 = vpop.f32.mrb[0].mxu0
      %4388 = vmatprep.mubr.f32.mxu0 %v1499
      %4389 = vmatmul.mubr.f32.gmra.mrb[0].mxu0 %v1498
      %v4390 = vpop.f32.mrb[0].mxu0
      %v4391 = vadd.f32 0.0, %v4390
      %v4392 = vpop.f32.mrb[0].mxu0
      %4393 = vmatprep.mubr.f32.mxu0 %v1502
      %4394 = vmatmul.mubr.f32.gmra.mrb[0].mxu0 %v1501
      %v4395 = vpop.f32.mrb[0].mxu0
      %v4396 = vadd.f32 0.0, %v4395
      %v4397 = vpop.f32.mrb[0].mxu0
      %4398 = vmatprep.mubr.f32.mxu0 %v1505
      %4399 = vmatmul.mubr.f32.gmra.mrb[0].mxu0 %v1504
      %v4400 = vpop.f32.mrb[0].mxu0
      %v4401 = vadd.f32 0.0, %v4400
      %v4402 = vpop.f32.mrb[0].mxu0
      %4403 = vmatprep.mubr.f32.mxu0 %v1508
      %4404 = vmatmul.mubr.f32.gmra.mrb[0].mxu0 %v1507
      %v4405 = vpop.f32.mrb[0].mxu0
      %v4406 = vadd.f32 0.0, %v4405
      %v4407 = vpop.f32.mrb[0].mxu0
      %4408 = vmatprep.mubr.f32.mxu0 %v1511
      %4409 = vmatmul.mubr.f32.gmra.mrb[0].mxu0 %v1510
      %v4410 = vpop.f32.mrb[0].mxu0
      %v4411 = vadd.f32 0.0, %v4410
      %v4412 = vpop.f32.mrb[0].mxu0
      %4413 = vmatprep.mubr.f32.mxu0 %v1514
      %4414 = vmatmul.mubr.f32.gmra.mrb[0].mxu0 %v1513
      %v4415 = vpop.f32.mrb[0].mxu0
      %v4416 = vadd.f32 0.0, %v4415
      %v4417 = vpop.f32.mrb[0].mxu0
      %4418 = vmatprep.mubr.f32.mxu0 %v1517
      %4419 = vmatmul.mubr.f32.gmra.mrb[0].mxu0 %v1516
      %v4420 = vpop.f32.mrb[0].mxu0
      %v4421 = vadd.f32 0.0, %v4420
      %v4422 = vpop.f32.mrb[0].mxu0
      %4423 = vmatprep.mubr.f32.mxu0 %v1520
      %4424 = vmatmul.mubr.f32.gmra.mrb[0].mxu0 %v1519
      %v4425 = vpop.f32.mrb[0].mxu0
      %v4426 = vadd.f32 0.0, %v4425
      %v4427 = vpop.f32.mrb[0].mxu0
      %4428 = vmatprep.mubr.f32.mxu0 %v1523
      %4429 = vmatmul.mubr.f32.gmra.mrb[0].mxu0 %v1522
      %v4430 = vpop.f32.mrb[0].mxu0
      %v4431 = vadd.f32 0.0, %v4430
      %v4432 = vpop.f32.mrb[0].mxu0
      %4433 = vmatprep.mubr.f32.mxu0 %v1526
      %4434 = vmatmul.mubr.f32.gmra.mrb[0].mxu0 %v1525
      %v4435 = vpop.f32.mrb[0].mxu0
      %v4436 = vadd.f32 0.0, %v4435
      %v4437 = vpop.f32.mrb[0].mxu0
      %4438 = vmatprep.mubr.f32.mxu0 %v1529
      %4439 = vmatmul.mubr.f32.gmra.mrb[0].mxu0 %v1528
      %v4440 = vpop.f32.mrb[0].mxu0
      %v4441 = vadd.f32 0.0, %v4440
      %v4442 = vpop.f32.mrb[0].mxu0
      %4443 = vmatprep.mubr.f32.mxu0 %v1532
      %4444 = vmatmul.mubr.f32.gmra.mrb[0].mxu0 %v1531
      %v4445 = vpop.f32.mrb[0].mxu0
      %v4446 = vadd.f32 0.0, %v4445
      %v4447 = vpop.f32.mrb[0].mxu0
      %4448 = vmatprep.mubr.f32.mxu0 %v1535
      %4449 = vmatmul.mubr.f32.gmra.mrb[0].mxu0 %v1534
      %v4450 = vpop.f32.mrb[0].mxu0
      %v4451 = vadd.f32 0.0, %v4450
      %v4452 = vpop.f32.mrb[0].mxu0
      %4453 = vmatprep.mubr.f32.mxu0 %v1538
      %4454 = vmatmul.mubr.f32.gmra.mrb[0].mxu0 %v1537
      %v4455 = vpop.f32.mrb[0].mxu0
      %v4456 = vadd.f32 0.0, %v4455
      %v4457 = vpop.f32.mrb[0].mxu0
      %4458 = vmatprep.mubr.f32.mxu0 %v1541
      %4459 = vmatmul.mubr.f32.gmra.mrb[0].mxu0 %v1540
      %v4460 = vpop.f32.mrb[0].mxu0
      %v4461 = vadd.f32 0.0, %v4460
      %v4462 = vpop.f32.mrb[0].mxu0
      %4463 = vmatprep.mubr.f32.mxu0 %v1544
      %4464 = vmatmul.mubr.f32.gmra.mrb[0].mxu0 %v1543
      %v4465 = vpop.f32.mrb[0].mxu0
      %v4466 = vadd.f32 0.0, %v4465
      %v4467 = vpop.f32.mrb[0].mxu0
      %4468 = vmatprep.mubr.f32.mxu0 %v1547
      %4469 = vmatmul.mubr.f32.gmra.mrb[0].mxu0 %v1546
      %v4470 = vpop.f32.mrb[0].mxu0
      %v4471 = vadd.f32 0.0, %v4470
      %v4472 = vpop.f32.mrb[0].mxu0
      %4473 = vmatprep.mubr.f32.mxu0 %v1550
      %4474 = vmatmul.mubr.f32.gmra.mrb[0].mxu0 %v1549
      %v4475 = vpop.f32.mrb[0].mxu0
      %v4476 = vadd.f32 0.0, %v4475
      %v4477 = vpop.f32.mrb[0].mxu0
      %4478 = vmatprep.mubr.f32.mxu0 %v1553
      %4479 = vmatmul.mubr.f32.gmra.mrb[0].mxu0 %v1552
      %v4480 = vpop.f32.mrb[0].mxu0
      %v4481 = vadd.f32 0.0, %v4480
      %v4482 = vpop.f32.mrb[0].mxu0
      %4483 = vmatprep.mubr.f32.mxu0 %v1556
      %4484 = vmatmul.mubr.f32.gmra.mrb[0].mxu0 %v1555
      %v4485 = vpop.f32.mrb[0].mxu0
      %v4486 = vadd.f32 0.0, %v4485
      %v4487 = vpop.f32.mrb[0].mxu0
      %4488 = vmatprep.mubr.f32.mxu0 %v1559
      %4489 = vmatmul.mubr.f32.gmra.mrb[0].mxu0 %v1558
      %v4490 = vpop.f32.mrb[0].mxu0
      %v4491 = vadd.f32 0.0, %v4490
      %v4492 = vpop.f32.mrb[0].mxu0
      %4493 = vmatprep.mubr.f32.mxu0 %v1562
      %4494 = vmatmul.mubr.f32.gmra.mrb[0].mxu0 %v1561
      %v4495 = vpop.f32.mrb[0].mxu0
      %v4496 = vadd.f32 0.0, %v4495
      %v4497 = vpop.f32.mrb[0].mxu0
      %4498 = vmatprep.mubr.f32.mxu0 %v1565
      %4499 = vmatmul.mubr.f32.gmra.mrb[0].mxu0 %v1564
      %v4500 = vpop.f32.mrb[0].mxu0
      %v4501 = vadd.f32 0.0, %v4500
      %v4502 = vpop.f32.mrb[0].mxu0
      %4503 = vdwg.mxu0
      %4504 = vmatprep.subr.mxu0 0.0
      %4505 = vmatpush1.msra.mxu0 %v3427
      %4506 = vmatprep.subr.mxu0 0.0
      %4507 = vmatpush1.msra.mxu0 %v3429
      %4508 = vmatprep.subr.mxu0 0.0
      %4509 = vmatpush1.msra.mxu0 %v4274
      %4510 = vmatprep.subr.mxu0 0.0
      %4511 = vmatpush1.msra.mxu0 %v4276
      %4512 = vmatprep.subr.mxu0 0.0
      %4513 = vmatpush1.msra.mxu0 0.0
      %4514 = vmatprep.subr.mxu0 0.0
      %4515 = vmatpush1.msra.mxu0 0.0
      %4516 = vmatprep.subr.mxu0 0.0
      %4517 = vmatpush1.msra.mxu0 0.0
      %4518 = vmatprep.subr.mxu0 0.0
      %4519 = vmatpush1.msra.mxu0 0.0
      %4520 = vmatprep.subr.mxu0 0.0
      %4521 = vmatpush1.msra.mxu0 0.0
      %4522 = vmatprep.subr.mxu0 0.0
      %4523 = vmatpush1.msra.mxu0 0.0
      %4524 = vmatprep.subr.mxu0 0.0
      %4525 = vmatpush1.msra.mxu0 0.0
      %4526 = vmatprep.subr.mxu0 0.0
      %4527 = vmatpush1.msra.mxu0 0.0
      %4528 = vmatprep.subr.mxu0 0.0
      %4529 = vmatpush1.msra.mxu0 0.0
      %4530 = vmatprep.subr.mxu0 0.0
      %4531 = vmatpush1.msra.mxu0 0.0
      %4532 = vmatprep.subr.mxu0 0.0
      %4533 = vmatpush1.msra.mxu0 0.0
      %4534 = vmatprep.subr.mxu0 0.0
      %4535 = vmatpush1.msra.mxu0 0.0
      %4536 = vmatprep.subr.mxu0 0.0
      %4537 = vmatpush1.msra.mxu0 0.0
      %4538 = vmatprep.subr.mxu0 0.0
      %4539 = vmatpush1.msra.mxu0 0.0
      %4540 = vmatprep.subr.mxu0 0.0
      %4541 = vmatpush1.msra.mxu0 0.0
      %4542 = vmatprep.subr.mxu0 0.0
      %4543 = vmatpush1.msra.mxu0 0.0
      %4544 = vmatprep.subr.mxu0 0.0
      %4545 = vmatpush1.msra.mxu0 0.0
      %4546 = vmatprep.subr.mxu0 0.0
      %4547 = vmatpush1.msra.mxu0 0.0
      %4548 = vmatprep.subr.mxu0 0.0
      %4549 = vmatpush1.msra.mxu0 0.0
      %4550 = vmatprep.subr.mxu0 0.0
      %4551 = vmatpush1.msra.mxu0 0.0
      %4552 = vmatprep.subr.mxu0 0.0
      %4553 = vmatpush1.msra.mxu0 0.0
      %4554 = vmatprep.subr.mxu0 0.0
      %4555 = vmatpush1.msra.mxu0 0.0
      %4556 = vmatprep.subr.mxu0 0.0
      %4557 = vmatpush1.msra.mxu0 0.0
      %4558 = vmatprep.subr.mxu0 0.0
      %4559 = vmatpush1.msra.mxu0 0.0
      %4560 = vmatprep.subr.mxu0 0.0
      %4561 = vmatpush1.msra.mxu0 0.0
      %4562 = vmatprep.subr.mxu0 0.0
      %4563 = vmatpush1.msra.mxu0 0.0
      %4564 = vmatprep.subr.mxu0 0.0
      %4565 = vmatpush1.msra.mxu0 0.0
      %4566 = vmatprep.subr.mxu0 0.0
      %4567 = vmatpush1.msra.mxu0 0.0
      %4568 = vmatprep.mubr.f32.mxu0 0.0
      %4569 = vmatmul.mubr.f32.gmra.mrb[0].mxu0 %v1569
      %v4570 = vpop.f32.mrb[0].mxu0
      %v4571 = vadd.f32 %v4346, %v4570
      %v4572 = vpop.f32.mrb[0].mxu0
      %4573 = vmatprep.mubr.f32.mxu0 0.0
      %4574 = vmatmul.mubr.f32.gmra.mrb[0].mxu0 %v1572
      %v4575 = vpop.f32.mrb[0].mxu0
      %v4576 = vadd.f32 %v4351, %v4575
      %v4577 = vpop.f32.mrb[0].mxu0
      %4578 = vmatprep.mubr.f32.mxu0 0.0
      %4579 = vmatmul.mubr.f32.gmra.mrb[0].mxu0 %v1575
      %v4580 = vpop.f32.mrb[0].mxu0
      %v4581 = vadd.f32 %v4356, %v4580
      %v4582 = vpop.f32.mrb[0].mxu0
      %4583 = vmatprep.mubr.f32.mxu0 0.0
      %4584 = vmatmul.mubr.f32.gmra.mrb[0].mxu0 %v1578
      %v4585 = vpop.f32.mrb[0].mxu0
      %v4586 = vadd.f32 %v4361, %v4585
      %v4587 = vpop.f32.mrb[0].mxu0
      %4588 = vmatprep.mubr.f32.mxu0 0.0
      %4589 = vmatmul.mubr.f32.gmra.mrb[0].mxu0 %v1581
      %v4590 = vpop.f32.mrb[0].mxu0
      %v4591 = vadd.f32 %v4366, %v4590
      %v4592 = vpop.f32.mrb[0].mxu0
      %4593 = vmatprep.mubr.f32.mxu0 0.0
      %4594 = vmatmul.mubr.f32.gmra.mrb[0].mxu0 %v1584
      %v4595 = vpop.f32.mrb[0].mxu0
      %v4596 = vadd.f32 %v4371, %v4595
      %v4597 = vpop.f32.mrb[0].mxu0
      %4598 = vmatprep.mubr.f32.mxu0 0.0
      %4599 = vmatmul.mubr.f32.gmra.mrb[0].mxu0 %v1587
      %v4600 = vpop.f32.mrb[0].mxu0
      %v4601 = vadd.f32 %v4376, %v4600
      %v4602 = vpop.f32.mrb[0].mxu0
      %4603 = vmatprep.mubr.f32.mxu0 0.0
      %4604 = vmatmul.mubr.f32.gmra.mrb[0].mxu0 %v1590
      %v4605 = vpop.f32.mrb[0].mxu0
      %v4606 = vadd.f32 %v4381, %v4605
      %v4607 = vpop.f32.mrb[0].mxu0
      %4608 = vmatprep.mubr.f32.mxu0 0.0
      %4609 = vmatmul.mubr.f32.gmra.mrb[0].mxu0 %v1593
      %v4610 = vpop.f32.mrb[0].mxu0
      %v4611 = vadd.f32 %v4386, %v4610
      %v4612 = vpop.f32.mrb[0].mxu0
      %4613 = vmatprep.mubr.f32.mxu0 0.0
      %4614 = vmatmul.mubr.f32.gmra.mrb[0].mxu0 %v1596
      %v4615 = vpop.f32.mrb[0].mxu0
      %v4616 = vadd.f32 %v4391, %v4615
      %v4617 = vpop.f32.mrb[0].mxu0
      %4618 = vmatprep.mubr.f32.mxu0 0.0
      %4619 = vmatmul.mubr.f32.gmra.mrb[0].mxu0 %v1599
      %v4620 = vpop.f32.mrb[0].mxu0
      %v4621 = vadd.f32 %v4396, %v4620
      %v4622 = vpop.f32.mrb[0].mxu0
      %4623 = vmatprep.mubr.f32.mxu0 0.0
      %4624 = vmatmul.mubr.f32.gmra.mrb[0].mxu0 %v1602
      %v4625 = vpop.f32.mrb[0].mxu0
      %v4626 = vadd.f32 %v4401, %v4625
      %v4627 = vpop.f32.mrb[0].mxu0
      %4628 = vmatprep.mubr.f32.mxu0 0.0
      %4629 = vmatmul.mubr.f32.gmra.mrb[0].mxu0 %v1605
      %v4630 = vpop.f32.mrb[0].mxu0
      %v4631 = vadd.f32 %v4406, %v4630
      %v4632 = vpop.f32.mrb[0].mxu0
      %4633 = vmatprep.mubr.f32.mxu0 0.0
      %4634 = vmatmul.mubr.f32.gmra.mrb[0].mxu0 %v1608
      %v4635 = vpop.f32.mrb[0].mxu0
      %v4636 = vadd.f32 %v4411, %v4635
      %v4637 = vpop.f32.mrb[0].mxu0
      %4638 = vmatprep.mubr.f32.mxu0 0.0
      %4639 = vmatmul.mubr.f32.gmra.mrb[0].mxu0 %v1611
      %v4640 = vpop.f32.mrb[0].mxu0
      %v4641 = vadd.f32 %v4416, %v4640
      %v4642 = vpop.f32.mrb[0].mxu0
      %4643 = vmatprep.mubr.f32.mxu0 0.0
      %4644 = vmatmul.mubr.f32.gmra.mrb[0].mxu0 %v1614
      %v4645 = vpop.f32.mrb[0].mxu0
      %v4646 = vadd.f32 %v4421, %v4645
      %v4647 = vpop.f32.mrb[0].mxu0
      %4648 = vmatprep.mubr.f32.mxu0 0.0
      %4649 = vmatmul.mubr.f32.gmra.mrb[0].mxu0 %v1617
      %v4650 = vpop.f32.mrb[0].mxu0
      %v4651 = vadd.f32 %v4426, %v4650
      %v4652 = vpop.f32.mrb[0].mxu0
      %4653 = vmatprep.mubr.f32.mxu0 0.0
      %4654 = vmatmul.mubr.f32.gmra.mrb[0].mxu0 %v1620
      %v4655 = vpop.f32.mrb[0].mxu0
      %v4656 = vadd.f32 %v4431, %v4655
      %v4657 = vpop.f32.mrb[0].mxu0
      %4658 = vmatprep.mubr.f32.mxu0 0.0
      %4659 = vmatmul.mubr.f32.gmra.mrb[0].mxu0 %v1623
      %v4660 = vpop.f32.mrb[0].mxu0
      %v4661 = vadd.f32 %v4436, %v4660
      %v4662 = vpop.f32.mrb[0].mxu0
      %4663 = vmatprep.mubr.f32.mxu0 0.0
      %4664 = vmatmul.mubr.f32.gmra.mrb[0].mxu0 %v1626
      %v4665 = vpop.f32.mrb[0].mxu0
      %v4666 = vadd.f32 %v4441, %v4665
      %v4667 = vpop.f32.mrb[0].mxu0
      %4668 = vmatprep.mubr.f32.mxu0 0.0
      %4669 = vmatmul.mubr.f32.gmra.mrb[0].mxu0 %v1629
      %v4670 = vpop.f32.mrb[0].mxu0
      %v4671 = vadd.f32 %v4446, %v4670
      %v4672 = vpop.f32.mrb[0].mxu0
      %4673 = vmatprep.mubr.f32.mxu0 0.0
      %4674 = vmatmul.mubr.f32.gmra.mrb[0].mxu0 %v1632
      %v4675 = vpop.f32.mrb[0].mxu0
      %v4676 = vadd.f32 %v4451, %v4675
      %v4677 = vpop.f32.mrb[0].mxu0
      %4678 = vmatprep.mubr.f32.mxu0 0.0
      %4679 = vmatmul.mubr.f32.gmra.mrb[0].mxu0 %v1635
      %v4680 = vpop.f32.mrb[0].mxu0
      %v4681 = vadd.f32 %v4456, %v4680
      %v4682 = vpop.f32.mrb[0].mxu0
      %4683 = vmatprep.mubr.f32.mxu0 0.0
      %4684 = vmatmul.mubr.f32.gmra.mrb[0].mxu0 %v1638
      %v4685 = vpop.f32.mrb[0].mxu0
      %v4686 = vadd.f32 %v4461, %v4685
      %v4687 = vpop.f32.mrb[0].mxu0
      %4688 = vmatprep.mubr.f32.mxu0 0.0
      %4689 = vmatmul.mubr.f32.gmra.mrb[0].mxu0 %v1641
      %v4690 = vpop.f32.mrb[0].mxu0
      %v4691 = vadd.f32 %v4466, %v4690
      %v4692 = vpop.f32.mrb[0].mxu0
      %4693 = vmatprep.mubr.f32.mxu0 0.0
      %4694 = vmatmul.mubr.f32.gmra.mrb[0].mxu0 %v1644
      %v4695 = vpop.f32.mrb[0].mxu0
      %v4696 = vadd.f32 %v4471, %v4695
      %v4697 = vpop.f32.mrb[0].mxu0
      %4698 = vmatprep.mubr.f32.mxu0 0.0
      %4699 = vmatmul.mubr.f32.gmra.mrb[0].mxu0 %v1647
      %v4700 = vpop.f32.mrb[0].mxu0
      %v4701 = vadd.f32 %v4476, %v4700
      %v4702 = vpop.f32.mrb[0].mxu0
      %4703 = vmatprep.mubr.f32.mxu0 0.0
      %4704 = vmatmul.mubr.f32.gmra.mrb[0].mxu0 %v1650
      %v4705 = vpop.f32.mrb[0].mxu0
      %v4706 = vadd.f32 %v4481, %v4705
      %v4707 = vpop.f32.mrb[0].mxu0
      %4708 = vmatprep.mubr.f32.mxu0 0.0
      %4709 = vmatmul.mubr.f32.gmra.mrb[0].mxu0 %v1653
      %v4710 = vpop.f32.mrb[0].mxu0
      %v4711 = vadd.f32 %v4486, %v4710
      %v4712 = vpop.f32.mrb[0].mxu0
      %4713 = vmatprep.mubr.f32.mxu0 0.0
      %4714 = vmatmul.mubr.f32.gmra.mrb[0].mxu0 %v1656
      %v4715 = vpop.f32.mrb[0].mxu0
      %v4716 = vadd.f32 %v4491, %v4715
      %v4717 = vpop.f32.mrb[0].mxu0
      %4718 = vmatprep.mubr.f32.mxu0 0.0
      %4719 = vmatmul.mubr.f32.gmra.mrb[0].mxu0 %v1659
      %v4720 = vpop.f32.mrb[0].mxu0
      %v4721 = vadd.f32 %v4496, %v4720
      %v4722 = vpop.f32.mrb[0].mxu0
      %4723 = vmatprep.mubr.f32.mxu0 0.0
      %4724 = vmatmul.mubr.f32.gmra.mrb[0].mxu0 %v1662
      %v4725 = vpop.f32.mrb[0].mxu0
      %v4726 = vadd.f32 %v4501, %v4725
      %v4727 = vpop.f32.mrb[0].mxu0
      %4728 = vdwg.mxu0
      %s4729 = scalar_lea.vmem %s5, 24
      %v4730 = vld [vmem:[%s4729] sm:$0xff]
      %v4732 = vsel %vm357, %v4571, 0
      %v4735 = vsel %vm357, %v4576, 0
      %v4738 = vsel %vm357, %v4581, 0
      %v4741 = vsel %vm357, %v4586, 0
      %v4744 = vsel %vm357, %v4591, 0
      %v4747 = vsel %vm357, %v4596, 0
      %v4750 = vsel %vm357, %v4601, 0
      %v4753 = vsel %vm357, %v4606, 0
      %v4756 = vsel %vm357, %v4611, 0
      %v4759 = vsel %vm357, %v4616, 0
      %v4762 = vsel %vm357, %v4621, 0
      %v4765 = vsel %vm357, %v4626, 0
      %v4768 = vsel %vm357, %v4631, 0
      %v4771 = vsel %vm357, %v4636, 0
      %v4774 = vsel %vm357, %v4641, 0
      %v4777 = vsel %vm357, %v4646, 0
      %v4780 = vsel %vm357, %v4651, 0
      %v4783 = vsel %vm357, %v4656, 0
      %v4786 = vsel %vm357, %v4661, 0
      %v4789 = vsel %vm357, %v4666, 0
      %v4792 = vsel %vm357, %v4671, 0
      %v4795 = vsel %vm357, %v4676, 0
      %v4798 = vsel %vm357, %v4681, 0
      %v4801 = vsel %vm357, %v4686, 0
      %v4804 = vsel %vm357, %v4691, 0
      %v4807 = vsel %vm357, %v4696, 0
      %v4810 = vsel %vm357, %v4701, 0
      %v4813 = vsel %vm357, %v4706, 0
      %v4816 = vsel %vm357, %v4711, 0
      %v4819 = vsel %vm357, %v4716, 0
      %v4822 = vsel %vm357, %v4721, 0
      %v4825 = vsel %vm357, %v4726, 0
      %4827 = vmatprep.subr.mxu0 0.0
      %4828 = vmatpush1.msra.mxu0 %v4730
      %4829 = vmatprep.subr.mxu0 0.0
      %4830 = vmatpush1.msra.mxu0 0.0
      %4831 = vmatprep.subr.mxu0 0.0
      %4832 = vmatpush1.msra.mxu0 0.0
      %4833 = vmatprep.subr.mxu0 0.0
      %4834 = vmatpush1.msra.mxu0 0.0
      %4835 = vmatprep.subr.mxu0 0.0
      %4836 = vmatpush1.msra.mxu0 0.0
      %4837 = vmatprep.subr.mxu0 0.0
      %4838 = vmatpush1.msra.mxu0 0.0
      %4839 = vmatprep.subr.mxu0 0.0
      %4840 = vmatpush1.msra.mxu0 0.0
      %4841 = vmatprep.subr.mxu0 0.0
      %4842 = vmatpush1.msra.mxu0 0.0
      %4843 = vmatprep.subr.mxu0 0.0
      %4844 = vmatpush1.msra.mxu0 0.0
      %4845 = vmatprep.subr.mxu0 0.0
      %4846 = vmatpush1.msra.mxu0 0.0
      %4847 = vmatprep.subr.mxu0 0.0
      %4848 = vmatpush1.msra.mxu0 0.0
      %4849 = vmatprep.subr.mxu0 0.0
      %4850 = vmatpush1.msra.mxu0 0.0
      %4851 = vmatprep.subr.mxu0 0.0
      %4852 = vmatpush1.msra.mxu0 0.0
      %4853 = vmatprep.subr.mxu0 0.0
      %4854 = vmatpush1.msra.mxu0 0.0
      %4855 = vmatprep.subr.mxu0 0.0
      %4856 = vmatpush1.msra.mxu0 0.0
      %4857 = vmatprep.subr.mxu0 0.0
      %4858 = vmatpush1.msra.mxu0 0.0
      %4859 = vmatprep.subr.mxu0 0.0
      %4860 = vmatpush1.msra.mxu0 0.0
      %4861 = vmatprep.subr.mxu0 0.0
      %4862 = vmatpush1.msra.mxu0 0.0
      %4863 = vmatprep.subr.mxu0 0.0
      %4864 = vmatpush1.msra.mxu0 0.0
      %4865 = vmatprep.subr.mxu0 0.0
      %4866 = vmatpush1.msra.mxu0 0.0
      %4867 = vmatprep.subr.mxu0 0.0
      %4868 = vmatpush1.msra.mxu0 0.0
      %4869 = vmatprep.subr.mxu0 0.0
      %4870 = vmatpush1.msra.mxu0 0.0
      %4871 = vmatprep.subr.mxu0 0.0
      %4872 = vmatpush1.msra.mxu0 0.0
      %4873 = vmatprep.subr.mxu0 0.0
      %4874 = vmatpush1.msra.mxu0 0.0
      %4875 = vmatprep.subr.mxu0 0.0
      %4876 = vmatpush1.msra.mxu0 0.0
      %4877 = vmatprep.subr.mxu0 0.0
      %4878 = vmatpush1.msra.mxu0 0.0
      %4879 = vmatprep.subr.mxu0 0.0
      %4880 = vmatpush1.msra.mxu0 0.0
      %4881 = vmatprep.subr.mxu0 0.0
      %4882 = vmatpush1.msra.mxu0 0.0
      %4883 = vmatprep.subr.mxu0 0.0
      %4884 = vmatpush1.msra.mxu0 0.0
      %4885 = vmatprep.subr.mxu0 0.0
      %4886 = vmatpush1.msra.mxu0 0.0
      %4887 = vmatprep.subr.mxu0 0.0
      %4888 = vmatpush1.msra.mxu0 0.0
      %4889 = vmatprep.subr.mxu0 0.0
      %4890 = vmatpush1.msra.mxu0 0.0
      %4891 = vmatprep.mubr.f32.mxu0 0.0
      %4892 = vmatmul.mubr.f32.gmra.mrb[0].mxu0 %v4732
      %v4893 = vpop.f32.mrb[0].mxu0
      %v4894 = vadd.f32 0.0, %v4893
      %v4895 = vpop.f32.mrb[0].mxu0
      %4896 = vmatprep.mubr.f32.mxu0 0.0
      %4897 = vmatmul.mubr.f32.gmra.mrb[0].mxu0 %v4735
      %v4898 = vpop.f32.mrb[0].mxu0
      %v4899 = vadd.f32 0.0, %v4898
      %v4900 = vpop.f32.mrb[0].mxu0
      %4901 = vmatprep.mubr.f32.mxu0 0.0
      %4902 = vmatmul.mubr.f32.gmra.mrb[0].mxu0 %v4738
      %v4903 = vpop.f32.mrb[0].mxu0
      %v4904 = vadd.f32 0.0, %v4903
      %v4905 = vpop.f32.mrb[0].mxu0
      %4906 = vmatprep.mubr.f32.mxu0 0.0
      %4907 = vmatmul.mubr.f32.gmra.mrb[0].mxu0 %v4741
      %v4908 = vpop.f32.mrb[0].mxu0
      %v4909 = vadd.f32 0.0, %v4908
      %v4910 = vpop.f32.mrb[0].mxu0
      %4911 = vmatprep.mubr.f32.mxu0 0.0
      %4912 = vmatmul.mubr.f32.gmra.mrb[0].mxu0 %v4744
      %v4913 = vpop.f32.mrb[0].mxu0
      %v4914 = vadd.f32 0.0, %v4913
      %v4915 = vpop.f32.mrb[0].mxu0
      %4916 = vmatprep.mubr.f32.mxu0 0.0
      %4917 = vmatmul.mubr.f32.gmra.mrb[0].mxu0 %v4747
      %v4918 = vpop.f32.mrb[0].mxu0
      %v4919 = vadd.f32 0.0, %v4918
      %v4920 = vpop.f32.mrb[0].mxu0
      %4921 = vmatprep.mubr.f32.mxu0 0.0
      %4922 = vmatmul.mubr.f32.gmra.mrb[0].mxu0 %v4750
      %v4923 = vpop.f32.mrb[0].mxu0
      %v4924 = vadd.f32 0.0, %v4923
      %v4925 = vpop.f32.mrb[0].mxu0
      %4926 = vmatprep.mubr.f32.mxu0 0.0
      %4927 = vmatmul.mubr.f32.gmra.mrb[0].mxu0 %v4753
      %v4928 = vpop.f32.mrb[0].mxu0
      %v4929 = vadd.f32 0.0, %v4928
      %v4930 = vpop.f32.mrb[0].mxu0
      %4931 = vmatprep.mubr.f32.mxu0 0.0
      %4932 = vmatmul.mubr.f32.gmra.mrb[0].mxu0 %v4756
      %v4933 = vpop.f32.mrb[0].mxu0
      %v4934 = vadd.f32 0.0, %v4933
      %v4935 = vpop.f32.mrb[0].mxu0
      %4936 = vmatprep.mubr.f32.mxu0 0.0
      %4937 = vmatmul.mubr.f32.gmra.mrb[0].mxu0 %v4759
      %v4938 = vpop.f32.mrb[0].mxu0
      %v4939 = vadd.f32 0.0, %v4938
      %v4940 = vpop.f32.mrb[0].mxu0
      %4941 = vmatprep.mubr.f32.mxu0 0.0
      %4942 = vmatmul.mubr.f32.gmra.mrb[0].mxu0 %v4762
      %v4943 = vpop.f32.mrb[0].mxu0
      %v4944 = vadd.f32 0.0, %v4943
      %v4945 = vpop.f32.mrb[0].mxu0
      %4946 = vmatprep.mubr.f32.mxu0 0.0
      %4947 = vmatmul.mubr.f32.gmra.mrb[0].mxu0 %v4765
      %v4948 = vpop.f32.mrb[0].mxu0
      %v4949 = vadd.f32 0.0, %v4948
      %v4950 = vpop.f32.mrb[0].mxu0
      %4951 = vmatprep.mubr.f32.mxu0 0.0
      %4952 = vmatmul.mubr.f32.gmra.mrb[0].mxu0 %v4768
      %v4953 = vpop.f32.mrb[0].mxu0
      %v4954 = vadd.f32 0.0, %v4953
      %v4955 = vpop.f32.mrb[0].mxu0
      %4956 = vmatprep.mubr.f32.mxu0 0.0
      %4957 = vmatmul.mubr.f32.gmra.mrb[0].mxu0 %v4771
      %v4958 = vpop.f32.mrb[0].mxu0
      %v4959 = vadd.f32 0.0, %v4958
      %v4960 = vpop.f32.mrb[0].mxu0
      %4961 = vmatprep.mubr.f32.mxu0 0.0
      %4962 = vmatmul.mubr.f32.gmra.mrb[0].mxu0 %v4774
      %v4963 = vpop.f32.mrb[0].mxu0
      %v4964 = vadd.f32 0.0, %v4963
      %v4965 = vpop.f32.mrb[0].mxu0
      %4966 = vmatprep.mubr.f32.mxu0 0.0
      %4967 = vmatmul.mubr.f32.gmra.mrb[0].mxu0 %v4777
      %v4968 = vpop.f32.mrb[0].mxu0
      %v4969 = vadd.f32 0.0, %v4968
      %v4970 = vpop.f32.mrb[0].mxu0
      %4971 = vmatprep.mubr.f32.mxu0 0.0
      %4972 = vmatmul.mubr.f32.gmra.mrb[0].mxu0 %v4780
      %v4973 = vpop.f32.mrb[0].mxu0
      %v4974 = vadd.f32 0.0, %v4973
      %v4975 = vpop.f32.mrb[0].mxu0
      %4976 = vmatprep.mubr.f32.mxu0 0.0
      %4977 = vmatmul.mubr.f32.gmra.mrb[0].mxu0 %v4783
      %v4978 = vpop.f32.mrb[0].mxu0
      %v4979 = vadd.f32 0.0, %v4978
      %v4980 = vpop.f32.mrb[0].mxu0
      %4981 = vmatprep.mubr.f32.mxu0 0.0
      %4982 = vmatmul.mubr.f32.gmra.mrb[0].mxu0 %v4786
      %v4983 = vpop.f32.mrb[0].mxu0
      %v4984 = vadd.f32 0.0, %v4983
      %v4985 = vpop.f32.mrb[0].mxu0
      %4986 = vmatprep.mubr.f32.mxu0 0.0
      %4987 = vmatmul.mubr.f32.gmra.mrb[0].mxu0 %v4789
      %v4988 = vpop.f32.mrb[0].mxu0
      %v4989 = vadd.f32 0.0, %v4988
      %v4990 = vpop.f32.mrb[0].mxu0
      %4991 = vmatprep.mubr.f32.mxu0 0.0
      %4992 = vmatmul.mubr.f32.gmra.mrb[0].mxu0 %v4792
      %v4993 = vpop.f32.mrb[0].mxu0
      %v4994 = vadd.f32 0.0, %v4993
      %v4995 = vpop.f32.mrb[0].mxu0
      %4996 = vmatprep.mubr.f32.mxu0 0.0
      %4997 = vmatmul.mubr.f32.gmra.mrb[0].mxu0 %v4795
      %v4998 = vpop.f32.mrb[0].mxu0
      %v4999 = vadd.f32 0.0, %v4998
      %v5000 = vpop.f32.mrb[0].mxu0
      %5001 = vmatprep.mubr.f32.mxu0 0.0
      %5002 = vmatmul.mubr.f32.gmra.mrb[0].mxu0 %v4798
      %v5003 = vpop.f32.mrb[0].mxu0
      %v5004 = vadd.f32 0.0, %v5003
      %v5005 = vpop.f32.mrb[0].mxu0
      %5006 = vmatprep.mubr.f32.mxu0 0.0
      %5007 = vmatmul.mubr.f32.gmra.mrb[0].mxu0 %v4801
      %v5008 = vpop.f32.mrb[0].mxu0
      %v5009 = vadd.f32 0.0, %v5008
      %v5010 = vpop.f32.mrb[0].mxu0
      %5011 = vmatprep.mubr.f32.mxu0 0.0
      %5012 = vmatmul.mubr.f32.gmra.mrb[0].mxu0 %v4804
      %v5013 = vpop.f32.mrb[0].mxu0
      %v5014 = vadd.f32 0.0, %v5013
      %v5015 = vpop.f32.mrb[0].mxu0
      %5016 = vmatprep.mubr.f32.mxu0 0.0
      %5017 = vmatmul.mubr.f32.gmra.mrb[0].mxu0 %v4807
      %v5018 = vpop.f32.mrb[0].mxu0
      %v5019 = vadd.f32 0.0, %v5018
      %v5020 = vpop.f32.mrb[0].mxu0
      %5021 = vmatprep.mubr.f32.mxu0 0.0
      %5022 = vmatmul.mubr.f32.gmra.mrb[0].mxu0 %v4810
      %v5023 = vpop.f32.mrb[0].mxu0
      %v5024 = vadd.f32 0.0, %v5023
      %v5025 = vpop.f32.mrb[0].mxu0
      %5026 = vmatprep.mubr.f32.mxu0 0.0
      %5027 = vmatmul.mubr.f32.gmra.mrb[0].mxu0 %v4813
      %v5028 = vpop.f32.mrb[0].mxu0
      %v5029 = vadd.f32 0.0, %v5028
      %v5030 = vpop.f32.mrb[0].mxu0
      %5031 = vmatprep.mubr.f32.mxu0 0.0
      %5032 = vmatmul.mubr.f32.gmra.mrb[0].mxu0 %v4816
      %v5033 = vpop.f32.mrb[0].mxu0
      %v5034 = vadd.f32 0.0, %v5033
      %v5035 = vpop.f32.mrb[0].mxu0
      %5036 = vmatprep.mubr.f32.mxu0 0.0
      %5037 = vmatmul.mubr.f32.gmra.mrb[0].mxu0 %v4819
      %v5038 = vpop.f32.mrb[0].mxu0
      %v5039 = vadd.f32 0.0, %v5038
      %v5040 = vpop.f32.mrb[0].mxu0
      %5041 = vmatprep.mubr.f32.mxu0 0.0
      %5042 = vmatmul.mubr.f32.gmra.mrb[0].mxu0 %v4822
      %v5043 = vpop.f32.mrb[0].mxu0
      %v5044 = vadd.f32 0.0, %v5043
      %v5045 = vpop.f32.mrb[0].mxu0
      %5046 = vmatprep.mubr.f32.mxu0 0.0
      %5047 = vmatmul.mubr.f32.gmra.mrb[0].mxu0 %v4825
      %v5048 = vpop.f32.mrb[0].mxu0
      %v5049 = vadd.f32 0.0, %v5048
      %v5050 = vpop.f32.mrb[0].mxu0
      %5051 = vdwg.mxu0
      %v5052 = vadd.f32 %v4239, %v4894
      %v5053 = vadd.f32 %v4240, %v4899
      %v5054 = vadd.f32 %v4241, %v4904
      %v5055 = vadd.f32 %v4242, %v4909
      %v5056 = vadd.f32 %v4243, %v4914
      %v5057 = vadd.f32 %v4244, %v4919
      %v5058 = vadd.f32 %v4245, %v4924
      %v5059 = vadd.f32 %v4246, %v4929
      %v5060 = vadd.f32 %v4247, %v4934
      %v5061 = vadd.f32 %v4248, %v4939
      %v5062 = vadd.f32 %v4249, %v4944
      %v5063 = vadd.f32 %v4250, %v4949
      %v5064 = vadd.f32 %v4251, %v4954
      %v5065 = vadd.f32 %v4252, %v4959
      %v5066 = vadd.f32 %v4253, %v4964
      %v5067 = vadd.f32 %v4254, %v4969
      %v5068 = vadd.f32 %v4255, %v4974
      %v5069 = vadd.f32 %v4256, %v4979
      %v5070 = vadd.f32 %v4257, %v4984
      %v5071 = vadd.f32 %v4258, %v4989
      %v5072 = vadd.f32 %v4259, %v4994
      %v5073 = vadd.f32 %v4260, %v4999
      %v5074 = vadd.f32 %v4261, %v5004
      %v5075 = vadd.f32 %v4262, %v5009
      %v5076 = vadd.f32 %v4263, %v5014
      %v5077 = vadd.f32 %v4264, %v5019
      %v5078 = vadd.f32 %v4265, %v5024
      %v5079 = vadd.f32 %v4266, %v5029
      %v5080 = vadd.f32 %v4267, %v5034
      %v5081 = vadd.f32 %v4268, %v5039
      %v5082 = vadd.f32 %v4269, %v5044
      %v5083 = vadd.f32 %v4270, %v5049
      %vm5084 = vcmask 1044480
      %v5085 = vrot.slane %v1432, 3
      %v5086 = vrot.slane %v1433, 3
      %v5087 = vsel %vm5084, %v5085, %v5086
      %v5088 = vrot.slane %v1434, 3
      %v5089 = vsel %vm5084, %v5086, %v5088
      %v5090 = vrot.slane %v1435, 3
      %v5091 = vsel %vm5084, %v5088, %v5090
      %v5092 = vrot.slane %v1436, 3
      %v5093 = vsel %vm5084, %v5090, %v5092
      %v5094 = vrot.slane %v1437, 3
      %v5095 = vsel %vm5084, %v5092, %v5094
      %v5096 = vrot.slane %v1438, 3
      %v5097 = vsel %vm5084, %v5094, %v5096
      %v5098 = vrot.slane %v1439, 3
      %v5099 = vsel %vm5084, %v5096, %v5098
      %v5100 = vrot.slane %v1440, 3
      %v5101 = vsel %vm5084, %v5098, %v5100
      %v5102 = vrot.slane %v1441, 3
      %v5103 = vsel %vm5084, %v5100, %v5102
      %v5104 = vrot.slane %v1442, 3
      %v5105 = vsel %vm5084, %v5102, %v5104
      %v5106 = vrot.slane %v1443, 3
      %v5107 = vsel %vm5084, %v5104, %v5106
      %v5108 = vrot.slane %v1444, 3
      %v5109 = vsel %vm5084, %v5106, %v5108
      %v5110 = vrot.slane %v1445, 3
      %v5111 = vsel %vm5084, %v5108, %v5110
      %v5112 = vrot.slane %v1446, 3
      %v5113 = vsel %vm5084, %v5110, %v5112
      %v5114 = vrot.slane %v1447, 3
      %v5115 = vsel %vm5084, %v5112, %v5114
      %v5116 = vrot.slane %v1448, 3
      %v5117 = vsel %vm5084, %v5114, %v5116
      %v5118 = vrot.slane %v1449, 3
      %v5119 = vsel %vm5084, %v5116, %v5118
      %v5120 = vrot.slane %v1450, 3
      %v5121 = vsel %vm5084, %v5118, %v5120
      %v5122 = vrot.slane %v1451, 3
      %v5123 = vsel %vm5084, %v5120, %v5122
      %v5124 = vrot.slane %v1452, 3
      %v5125 = vsel %vm5084, %v5122, %v5124
      %v5126 = vrot.slane %v1453, 3
      %v5127 = vsel %vm5084, %v5124, %v5126
      %v5128 = vrot.slane %v1454, 3
      %v5129 = vsel %vm5084, %v5126, %v5128
      %v5130 = vrot.slane %v1455, 3
      %v5131 = vsel %vm5084, %v5128, %v5130
      %v5132 = vrot.slane %v1456, 3
      %v5133 = vsel %vm5084, %v5130, %v5132
      %v5134 = vrot.slane %v1457, 3
      %v5135 = vsel %vm5084, %v5132, %v5134
      %v5136 = vrot.slane %v1458, 3
      %v5137 = vsel %vm5084, %v5134, %v5136
      %v5138 = vrot.slane %v1459, 3
      %v5139 = vsel %vm5084, %v5136, %v5138
      %v5140 = vrot.slane %v1460, 3
      %v5141 = vsel %vm5084, %v5138, %v5140
      %v5142 = vrot.slane %v1461, 3
      %v5143 = vsel %vm5084, %v5140, %v5142
      %v5144 = vrot.slane %v1462, 3
      %v5145 = vsel %vm5084, %v5142, %v5144
      %v5146 = vrot.slane %v1463, 3
      %v5147 = vsel %vm5084, %v5144, %v5146
      %v5148 = vrot.slane %v1464, 3
      %v5149 = vsel %vm5084, %v5146, %v5148
      %v5150 = vrot.slane %v1465, 3
      %v5151 = vsel %vm5084, %v5148, %v5150
      %v5152 = vrot.slane %v1466, 3
      %v5153 = vsel %vm5084, %v5150, %v5152
      %v5154 = vrot.slane %v1467, 3
      %v5155 = vsel %vm5084, %v5152, %v5154
      %v5156 = vrot.slane %v1468, 3
      %v5157 = vsel %vm5084, %v5154, %v5156
      %5194 = vmatprep.subr.mxu0 0.0
      %5195 = vmatpush1.msra.mxu0 %v5087
      %5196 = vmatprep.subr.mxu0 0.0
      %5197 = vmatpush1.msra.mxu0 %v5089
      %5198 = vmatprep.subr.mxu0 0.0
      %5199 = vmatpush1.msra.mxu0 %v5091
      %5200 = vmatprep.subr.mxu0 0.0
      %5201 = vmatpush1.msra.mxu0 %v5093
      %5202 = vmatprep.subr.mxu0 0.0
      %5203 = vmatpush1.msra.mxu0 %v5095
      %5204 = vmatprep.subr.mxu0 0.0
      %5205 = vmatpush1.msra.mxu0 %v5097
      %5206 = vmatprep.subr.mxu0 0.0
      %5207 = vmatpush1.msra.mxu0 %v5099
      %5208 = vmatprep.subr.mxu0 0.0
      %5209 = vmatpush1.msra.mxu0 %v5101
      %5210 = vmatprep.subr.mxu0 0.0
      %5211 = vmatpush1.msra.mxu0 %v5103
      %5212 = vmatprep.subr.mxu0 0.0
      %5213 = vmatpush1.msra.mxu0 %v5105
      %5214 = vmatprep.subr.mxu0 0.0
      %5215 = vmatpush1.msra.mxu0 %v5107
      %5216 = vmatprep.subr.mxu0 0.0
      %5217 = vmatpush1.msra.mxu0 %v5109
      %5218 = vmatprep.subr.mxu0 0.0
      %5219 = vmatpush1.msra.mxu0 %v5111
      %5220 = vmatprep.subr.mxu0 0.0
      %5221 = vmatpush1.msra.mxu0 %v5113
      %5222 = vmatprep.subr.mxu0 0.0
      %5223 = vmatpush1.msra.mxu0 %v5115
      %5224 = vmatprep.subr.mxu0 0.0
      %5225 = vmatpush1.msra.mxu0 %v5117
      %5226 = vmatprep.subr.mxu0 0.0
      %5227 = vmatpush1.msra.mxu0 %v5119
      %5228 = vmatprep.subr.mxu0 0.0
      %5229 = vmatpush1.msra.mxu0 %v5121
      %5230 = vmatprep.subr.mxu0 0.0
      %5231 = vmatpush1.msra.mxu0 %v5123
      %5232 = vmatprep.subr.mxu0 0.0
      %5233 = vmatpush1.msra.mxu0 %v5125
      %5234 = vmatprep.subr.mxu0 0.0
      %5235 = vmatpush1.msra.mxu0 %v5127
      %5236 = vmatprep.subr.mxu0 0.0
      %5237 = vmatpush1.msra.mxu0 %v5129
      %5238 = vmatprep.subr.mxu0 0.0
      %5239 = vmatpush1.msra.mxu0 %v5131
      %5240 = vmatprep.subr.mxu0 0.0
      %5241 = vmatpush1.msra.mxu0 %v5133
      %5242 = vmatprep.subr.mxu0 0.0
      %5243 = vmatpush1.msra.mxu0 %v5135
      %5244 = vmatprep.subr.mxu0 0.0
      %5245 = vmatpush1.msra.mxu0 %v5137
      %5246 = vmatprep.subr.mxu0 0.0
      %5247 = vmatpush1.msra.mxu0 %v5139
      %5248 = vmatprep.subr.mxu0 0.0
      %5249 = vmatpush1.msra.mxu0 %v5141
      %5250 = vmatprep.subr.mxu0 0.0
      %5251 = vmatpush1.msra.mxu0 %v5143
      %5252 = vmatprep.subr.mxu0 0.0
      %5253 = vmatpush1.msra.mxu0 %v5145
      %5254 = vmatprep.subr.mxu0 0.0
      %5255 = vmatpush1.msra.mxu0 %v5147
      %5256 = vmatprep.subr.mxu0 0.0
      %5257 = vmatpush1.msra.mxu0 %v5149
      %5258 = vmatprep.mubr.f32.mxu0 %v1472
      %5259 = vmatmul.mubr.f32.gmra.mrb[0].mxu0 %v1471
      %v5260 = vpop.f32.mrb[0].mxu0
      %v5261 = vadd.f32 0.0, %v5260
      %v5262 = vpop.f32.mrb[0].mxu0
      %5263 = vmatprep.mubr.f32.mxu0 %v1475
      %5264 = vmatmul.mubr.f32.gmra.mrb[0].mxu0 %v1474
      %v5265 = vpop.f32.mrb[0].mxu0
      %v5266 = vadd.f32 0.0, %v5265
      %v5267 = vpop.f32.mrb[0].mxu0
      %5268 = vmatprep.mubr.f32.mxu0 %v1478
      %5269 = vmatmul.mubr.f32.gmra.mrb[0].mxu0 %v1477
      %v5270 = vpop.f32.mrb[0].mxu0
      %v5271 = vadd.f32 0.0, %v5270
      %v5272 = vpop.f32.mrb[0].mxu0
      %5273 = vmatprep.mubr.f32.mxu0 %v1481
      %5274 = vmatmul.mubr.f32.gmra.mrb[0].mxu0 %v1480
      %v5275 = vpop.f32.mrb[0].mxu0
      %v5276 = vadd.f32 0.0, %v5275
      %v5277 = vpop.f32.mrb[0].mxu0
      %5278 = vmatprep.mubr.f32.mxu0 %v1484
      %5279 = vmatmul.mubr.f32.gmra.mrb[0].mxu0 %v1483
      %v5280 = vpop.f32.mrb[0].mxu0
      %v5281 = vadd.f32 0.0, %v5280
      %v5282 = vpop.f32.mrb[0].mxu0
      %5283 = vmatprep.mubr.f32.mxu0 %v1487
      %5284 = vmatmul.mubr.f32.gmra.mrb[0].mxu0 %v1486
      %v5285 = vpop.f32.mrb[0].mxu0
      %v5286 = vadd.f32 0.0, %v5285
      %v5287 = vpop.f32.mrb[0].mxu0
      %5288 = vmatprep.mubr.f32.mxu0 %v1490
      %5289 = vmatmul.mubr.f32.gmra.mrb[0].mxu0 %v1489
      %v5290 = vpop.f32.mrb[0].mxu0
      %v5291 = vadd.f32 0.0, %v5290
      %v5292 = vpop.f32.mrb[0].mxu0
      %5293 = vmatprep.mubr.f32.mxu0 %v1493
      %5294 = vmatmul.mubr.f32.gmra.mrb[0].mxu0 %v1492
      %v5295 = vpop.f32.mrb[0].mxu0
      %v5296 = vadd.f32 0.0, %v5295
      %v5297 = vpop.f32.mrb[0].mxu0
      %5298 = vmatprep.mubr.f32.mxu0 %v1496
      %5299 = vmatmul.mubr.f32.gmra.mrb[0].mxu0 %v1495
      %v5300 = vpop.f32.mrb[0].mxu0
      %v5301 = vadd.f32 0.0, %v5300
      %v5302 = vpop.f32.mrb[0].mxu0
      %5303 = vmatprep.mubr.f32.mxu0 %v1499
      %5304 = vmatmul.mubr.f32.gmra.mrb[0].mxu0 %v1498
      %v5305 = vpop.f32.mrb[0].mxu0
      %v5306 = vadd.f32 0.0, %v5305
      %v5307 = vpop.f32.mrb[0].mxu0
      %5308 = vmatprep.mubr.f32.mxu0 %v1502
      %5309 = vmatmul.mubr.f32.gmra.mrb[0].mxu0 %v1501
      %v5310 = vpop.f32.mrb[0].mxu0
      %v5311 = vadd.f32 0.0, %v5310
      %v5312 = vpop.f32.mrb[0].mxu0
      %5313 = vmatprep.mubr.f32.mxu0 %v1505
      %5314 = vmatmul.mubr.f32.gmra.mrb[0].mxu0 %v1504
      %v5315 = vpop.f32.mrb[0].mxu0
      %v5316 = vadd.f32 0.0, %v5315
      %v5317 = vpop.f32.mrb[0].mxu0
      %5318 = vmatprep.mubr.f32.mxu0 %v1508
      %5319 = vmatmul.mubr.f32.gmra.mrb[0].mxu0 %v1507
      %v5320 = vpop.f32.mrb[0].mxu0
      %v5321 = vadd.f32 0.0, %v5320
      %v5322 = vpop.f32.mrb[0].mxu0
      %5323 = vmatprep.mubr.f32.mxu0 %v1511
      %5324 = vmatmul.mubr.f32.gmra.mrb[0].mxu0 %v1510
      %v5325 = vpop.f32.mrb[0].mxu0
      %v5326 = vadd.f32 0.0, %v5325
      %v5327 = vpop.f32.mrb[0].mxu0
      %5328 = vmatprep.mubr.f32.mxu0 %v1514
      %5329 = vmatmul.mubr.f32.gmra.mrb[0].mxu0 %v1513
      %v5330 = vpop.f32.mrb[0].mxu0
      %v5331 = vadd.f32 0.0, %v5330
      %v5332 = vpop.f32.mrb[0].mxu0
      %5333 = vmatprep.mubr.f32.mxu0 %v1517
      %5334 = vmatmul.mubr.f32.gmra.mrb[0].mxu0 %v1516
      %v5335 = vpop.f32.mrb[0].mxu0
      %v5336 = vadd.f32 0.0, %v5335
      %v5337 = vpop.f32.mrb[0].mxu0
      %5338 = vmatprep.mubr.f32.mxu0 %v1520
      %5339 = vmatmul.mubr.f32.gmra.mrb[0].mxu0 %v1519
      %v5340 = vpop.f32.mrb[0].mxu0
      %v5341 = vadd.f32 0.0, %v5340
      %v5342 = vpop.f32.mrb[0].mxu0
      %5343 = vmatprep.mubr.f32.mxu0 %v1523
      %5344 = vmatmul.mubr.f32.gmra.mrb[0].mxu0 %v1522
      %v5345 = vpop.f32.mrb[0].mxu0
      %v5346 = vadd.f32 0.0, %v5345
      %v5347 = vpop.f32.mrb[0].mxu0
      %5348 = vmatprep.mubr.f32.mxu0 %v1526
      %5349 = vmatmul.mubr.f32.gmra.mrb[0].mxu0 %v1525
      %v5350 = vpop.f32.mrb[0].mxu0
      %v5351 = vadd.f32 0.0, %v5350
      %v5352 = vpop.f32.mrb[0].mxu0
      %5353 = vmatprep.mubr.f32.mxu0 %v1529
      %5354 = vmatmul.mubr.f32.gmra.mrb[0].mxu0 %v1528
      %v5355 = vpop.f32.mrb[0].mxu0
      %v5356 = vadd.f32 0.0, %v5355
      %v5357 = vpop.f32.mrb[0].mxu0
      %5358 = vmatprep.mubr.f32.mxu0 %v1532
      %5359 = vmatmul.mubr.f32.gmra.mrb[0].mxu0 %v1531
      %v5360 = vpop.f32.mrb[0].mxu0
      %v5361 = vadd.f32 0.0, %v5360
      %v5362 = vpop.f32.mrb[0].mxu0
      %5363 = vmatprep.mubr.f32.mxu0 %v1535
      %5364 = vmatmul.mubr.f32.gmra.mrb[0].mxu0 %v1534
      %v5365 = vpop.f32.mrb[0].mxu0
      %v5366 = vadd.f32 0.0, %v5365
      %v5367 = vpop.f32.mrb[0].mxu0
      %5368 = vmatprep.mubr.f32.mxu0 %v1538
      %5369 = vmatmul.mubr.f32.gmra.mrb[0].mxu0 %v1537
      %v5370 = vpop.f32.mrb[0].mxu0
      %v5371 = vadd.f32 0.0, %v5370
      %v5372 = vpop.f32.mrb[0].mxu0
      %5373 = vmatprep.mubr.f32.mxu0 %v1541
      %5374 = vmatmul.mubr.f32.gmra.mrb[0].mxu0 %v1540
      %v5375 = vpop.f32.mrb[0].mxu0
      %v5376 = vadd.f32 0.0, %v5375
      %v5377 = vpop.f32.mrb[0].mxu0
      %5378 = vmatprep.mubr.f32.mxu0 %v1544
      %5379 = vmatmul.mubr.f32.gmra.mrb[0].mxu0 %v1543
      %v5380 = vpop.f32.mrb[0].mxu0
      %v5381 = vadd.f32 0.0, %v5380
      %v5382 = vpop.f32.mrb[0].mxu0
      %5383 = vmatprep.mubr.f32.mxu0 %v1547
      %5384 = vmatmul.mubr.f32.gmra.mrb[0].mxu0 %v1546
      %v5385 = vpop.f32.mrb[0].mxu0
      %v5386 = vadd.f32 0.0, %v5385
      %v5387 = vpop.f32.mrb[0].mxu0
      %5388 = vmatprep.mubr.f32.mxu0 %v1550
      %5389 = vmatmul.mubr.f32.gmra.mrb[0].mxu0 %v1549
      %v5390 = vpop.f32.mrb[0].mxu0
      %v5391 = vadd.f32 0.0, %v5390
      %v5392 = vpop.f32.mrb[0].mxu0
      %5393 = vmatprep.mubr.f32.mxu0 %v1553
      %5394 = vmatmul.mubr.f32.gmra.mrb[0].mxu0 %v1552
      %v5395 = vpop.f32.mrb[0].mxu0
      %v5396 = vadd.f32 0.0, %v5395
      %v5397 = vpop.f32.mrb[0].mxu0
      %5398 = vmatprep.mubr.f32.mxu0 %v1556
      %5399 = vmatmul.mubr.f32.gmra.mrb[0].mxu0 %v1555
      %v5400 = vpop.f32.mrb[0].mxu0
      %v5401 = vadd.f32 0.0, %v5400
      %v5402 = vpop.f32.mrb[0].mxu0
      %5403 = vmatprep.mubr.f32.mxu0 %v1559
      %5404 = vmatmul.mubr.f32.gmra.mrb[0].mxu0 %v1558
      %v5405 = vpop.f32.mrb[0].mxu0
      %v5406 = vadd.f32 0.0, %v5405
      %v5407 = vpop.f32.mrb[0].mxu0
      %5408 = vmatprep.mubr.f32.mxu0 %v1562
      %5409 = vmatmul.mubr.f32.gmra.mrb[0].mxu0 %v1561
      %v5410 = vpop.f32.mrb[0].mxu0
      %v5411 = vadd.f32 0.0, %v5410
      %v5412 = vpop.f32.mrb[0].mxu0
      %5413 = vmatprep.mubr.f32.mxu0 %v1565
      %5414 = vmatmul.mubr.f32.gmra.mrb[0].mxu0 %v1564
      %v5415 = vpop.f32.mrb[0].mxu0
      %v5416 = vadd.f32 0.0, %v5415
      %v5417 = vpop.f32.mrb[0].mxu0
      %5418 = vdwg.mxu0
      %5419 = vmatprep.subr.mxu0 0.0
      %5420 = vmatpush1.msra.mxu0 %v5151
      %5421 = vmatprep.subr.mxu0 0.0
      %5422 = vmatpush1.msra.mxu0 %v5153
      %5423 = vmatprep.subr.mxu0 0.0
      %5424 = vmatpush1.msra.mxu0 %v5155
      %5425 = vmatprep.subr.mxu0 0.0
      %5426 = vmatpush1.msra.mxu0 %v5157
      %5427 = vmatprep.subr.mxu0 0.0
      %5428 = vmatpush1.msra.mxu0 0.0
      %5429 = vmatprep.subr.mxu0 0.0
      %5430 = vmatpush1.msra.mxu0 0.0
      %5431 = vmatprep.subr.mxu0 0.0
      %5432 = vmatpush1.msra.mxu0 0.0
      %5433 = vmatprep.subr.mxu0 0.0
      %5434 = vmatpush1.msra.mxu0 0.0
      %5435 = vmatprep.subr.mxu0 0.0
      %5436 = vmatpush1.msra.mxu0 0.0
      %5437 = vmatprep.subr.mxu0 0.0
      %5438 = vmatpush1.msra.mxu0 0.0
      %5439 = vmatprep.subr.mxu0 0.0
      %5440 = vmatpush1.msra.mxu0 0.0
      %5441 = vmatprep.subr.mxu0 0.0
      %5442 = vmatpush1.msra.mxu0 0.0
      %5443 = vmatprep.subr.mxu0 0.0
      %5444 = vmatpush1.msra.mxu0 0.0
      %5445 = vmatprep.subr.mxu0 0.0
      %5446 = vmatpush1.msra.mxu0 0.0
      %5447 = vmatprep.subr.mxu0 0.0
      %5448 = vmatpush1.msra.mxu0 0.0
      %5449 = vmatprep.subr.mxu0 0.0
      %5450 = vmatpush1.msra.mxu0 0.0
      %5451 = vmatprep.subr.mxu0 0.0
      %5452 = vmatpush1.msra.mxu0 0.0
      %5453 = vmatprep.subr.mxu0 0.0
      %5454 = vmatpush1.msra.mxu0 0.0
      %5455 = vmatprep.subr.mxu0 0.0
      %5456 = vmatpush1.msra.mxu0 0.0
      %5457 = vmatprep.subr.mxu0 0.0
      %5458 = vmatpush1.msra.mxu0 0.0
      %5459 = vmatprep.subr.mxu0 0.0
      %5460 = vmatpush1.msra.mxu0 0.0
      %5461 = vmatprep.subr.mxu0 0.0
      %5462 = vmatpush1.msra.mxu0 0.0
      %5463 = vmatprep.subr.mxu0 0.0
      %5464 = vmatpush1.msra.mxu0 0.0
      %5465 = vmatprep.subr.mxu0 0.0
      %5466 = vmatpush1.msra.mxu0 0.0
      %5467 = vmatprep.subr.mxu0 0.0
      %5468 = vmatpush1.msra.mxu0 0.0
      %5469 = vmatprep.subr.mxu0 0.0
      %5470 = vmatpush1.msra.mxu0 0.0
      %5471 = vmatprep.subr.mxu0 0.0
      %5472 = vmatpush1.msra.mxu0 0.0
      %5473 = vmatprep.subr.mxu0 0.0
      %5474 = vmatpush1.msra.mxu0 0.0
      %5475 = vmatprep.subr.mxu0 0.0
      %5476 = vmatpush1.msra.mxu0 0.0
      %5477 = vmatprep.subr.mxu0 0.0
      %5478 = vmatpush1.msra.mxu0 0.0
      %5479 = vmatprep.subr.mxu0 0.0
      %5480 = vmatpush1.msra.mxu0 0.0
      %5481 = vmatprep.subr.mxu0 0.0
      %5482 = vmatpush1.msra.mxu0 0.0
      %5483 = vmatprep.mubr.f32.mxu0 0.0
      %5484 = vmatmul.mubr.f32.gmra.mrb[0].mxu0 %v1569
      %v5485 = vpop.f32.mrb[0].mxu0
      %v5486 = vadd.f32 %v5261, %v5485
      %v5487 = vpop.f32.mrb[0].mxu0
      %5488 = vmatprep.mubr.f32.mxu0 0.0
      %5489 = vmatmul.mubr.f32.gmra.mrb[0].mxu0 %v1572
      %v5490 = vpop.f32.mrb[0].mxu0
      %v5491 = vadd.f32 %v5266, %v5490
      %v5492 = vpop.f32.mrb[0].mxu0
      %5493 = vmatprep.mubr.f32.mxu0 0.0
      %5494 = vmatmul.mubr.f32.gmra.mrb[0].mxu0 %v1575
      %v5495 = vpop.f32.mrb[0].mxu0
      %v5496 = vadd.f32 %v5271, %v5495
      %v5497 = vpop.f32.mrb[0].mxu0
      %5498 = vmatprep.mubr.f32.mxu0 0.0
      %5499 = vmatmul.mubr.f32.gmra.mrb[0].mxu0 %v1578
      %v5500 = vpop.f32.mrb[0].mxu0
      %v5501 = vadd.f32 %v5276, %v5500
      %v5502 = vpop.f32.mrb[0].mxu0
      %5503 = vmatprep.mubr.f32.mxu0 0.0
      %5504 = vmatmul.mubr.f32.gmra.mrb[0].mxu0 %v1581
      %v5505 = vpop.f32.mrb[0].mxu0
      %v5506 = vadd.f32 %v5281, %v5505
      %v5507 = vpop.f32.mrb[0].mxu0
      %5508 = vmatprep.mubr.f32.mxu0 0.0
      %5509 = vmatmul.mubr.f32.gmra.mrb[0].mxu0 %v1584
      %v5510 = vpop.f32.mrb[0].mxu0
      %v5511 = vadd.f32 %v5286, %v5510
      %v5512 = vpop.f32.mrb[0].mxu0
      %5513 = vmatprep.mubr.f32.mxu0 0.0
      %5514 = vmatmul.mubr.f32.gmra.mrb[0].mxu0 %v1587
      %v5515 = vpop.f32.mrb[0].mxu0
      %v5516 = vadd.f32 %v5291, %v5515
      %v5517 = vpop.f32.mrb[0].mxu0
      %5518 = vmatprep.mubr.f32.mxu0 0.0
      %5519 = vmatmul.mubr.f32.gmra.mrb[0].mxu0 %v1590
      %v5520 = vpop.f32.mrb[0].mxu0
      %v5521 = vadd.f32 %v5296, %v5520
      %v5522 = vpop.f32.mrb[0].mxu0
      %5523 = vmatprep.mubr.f32.mxu0 0.0
      %5524 = vmatmul.mubr.f32.gmra.mrb[0].mxu0 %v1593
      %v5525 = vpop.f32.mrb[0].mxu0
      %v5526 = vadd.f32 %v5301, %v5525
      %v5527 = vpop.f32.mrb[0].mxu0
      %5528 = vmatprep.mubr.f32.mxu0 0.0
      %5529 = vmatmul.mubr.f32.gmra.mrb[0].mxu0 %v1596
      %v5530 = vpop.f32.mrb[0].mxu0
      %v5531 = vadd.f32 %v5306, %v5530
      %v5532 = vpop.f32.mrb[0].mxu0
      %5533 = vmatprep.mubr.f32.mxu0 0.0
      %5534 = vmatmul.mubr.f32.gmra.mrb[0].mxu0 %v1599
      %v5535 = vpop.f32.mrb[0].mxu0
      %v5536 = vadd.f32 %v5311, %v5535
      %v5537 = vpop.f32.mrb[0].mxu0
      %5538 = vmatprep.mubr.f32.mxu0 0.0
      %5539 = vmatmul.mubr.f32.gmra.mrb[0].mxu0 %v1602
      %v5540 = vpop.f32.mrb[0].mxu0
      %v5541 = vadd.f32 %v5316, %v5540
      %v5542 = vpop.f32.mrb[0].mxu0
      %5543 = vmatprep.mubr.f32.mxu0 0.0
      %5544 = vmatmul.mubr.f32.gmra.mrb[0].mxu0 %v1605
      %v5545 = vpop.f32.mrb[0].mxu0
      %v5546 = vadd.f32 %v5321, %v5545
      %v5547 = vpop.f32.mrb[0].mxu0
      %5548 = vmatprep.mubr.f32.mxu0 0.0
      %5549 = vmatmul.mubr.f32.gmra.mrb[0].mxu0 %v1608
      %v5550 = vpop.f32.mrb[0].mxu0
      %v5551 = vadd.f32 %v5326, %v5550
      %v5552 = vpop.f32.mrb[0].mxu0
      %5553 = vmatprep.mubr.f32.mxu0 0.0
      %5554 = vmatmul.mubr.f32.gmra.mrb[0].mxu0 %v1611
      %v5555 = vpop.f32.mrb[0].mxu0
      %v5556 = vadd.f32 %v5331, %v5555
      %v5557 = vpop.f32.mrb[0].mxu0
      %5558 = vmatprep.mubr.f32.mxu0 0.0
      %5559 = vmatmul.mubr.f32.gmra.mrb[0].mxu0 %v1614
      %v5560 = vpop.f32.mrb[0].mxu0
      %v5561 = vadd.f32 %v5336, %v5560
      %v5562 = vpop.f32.mrb[0].mxu0
      %5563 = vmatprep.mubr.f32.mxu0 0.0
      %5564 = vmatmul.mubr.f32.gmra.mrb[0].mxu0 %v1617
      %v5565 = vpop.f32.mrb[0].mxu0
      %v5566 = vadd.f32 %v5341, %v5565
      %v5567 = vpop.f32.mrb[0].mxu0
      %5568 = vmatprep.mubr.f32.mxu0 0.0
      %5569 = vmatmul.mubr.f32.gmra.mrb[0].mxu0 %v1620
      %v5570 = vpop.f32.mrb[0].mxu0
      %v5571 = vadd.f32 %v5346, %v5570
      %v5572 = vpop.f32.mrb[0].mxu0
      %5573 = vmatprep.mubr.f32.mxu0 0.0
      %5574 = vmatmul.mubr.f32.gmra.mrb[0].mxu0 %v1623
      %v5575 = vpop.f32.mrb[0].mxu0
      %v5576 = vadd.f32 %v5351, %v5575
      %v5577 = vpop.f32.mrb[0].mxu0
      %5578 = vmatprep.mubr.f32.mxu0 0.0
      %5579 = vmatmul.mubr.f32.gmra.mrb[0].mxu0 %v1626
      %v5580 = vpop.f32.mrb[0].mxu0
      %v5581 = vadd.f32 %v5356, %v5580
      %v5582 = vpop.f32.mrb[0].mxu0
      %5583 = vmatprep.mubr.f32.mxu0 0.0
      %5584 = vmatmul.mubr.f32.gmra.mrb[0].mxu0 %v1629
      %v5585 = vpop.f32.mrb[0].mxu0
      %v5586 = vadd.f32 %v5361, %v5585
      %v5587 = vpop.f32.mrb[0].mxu0
      %5588 = vmatprep.mubr.f32.mxu0 0.0
      %5589 = vmatmul.mubr.f32.gmra.mrb[0].mxu0 %v1632
      %v5590 = vpop.f32.mrb[0].mxu0
      %v5591 = vadd.f32 %v5366, %v5590
      %v5592 = vpop.f32.mrb[0].mxu0
      %5593 = vmatprep.mubr.f32.mxu0 0.0
      %5594 = vmatmul.mubr.f32.gmra.mrb[0].mxu0 %v1635
      %v5595 = vpop.f32.mrb[0].mxu0
      %v5596 = vadd.f32 %v5371, %v5595
      %v5597 = vpop.f32.mrb[0].mxu0
      %5598 = vmatprep.mubr.f32.mxu0 0.0
      %5599 = vmatmul.mubr.f32.gmra.mrb[0].mxu0 %v1638
      %v5600 = vpop.f32.mrb[0].mxu0
      %v5601 = vadd.f32 %v5376, %v5600
      %v5602 = vpop.f32.mrb[0].mxu0
      %5603 = vmatprep.mubr.f32.mxu0 0.0
      %5604 = vmatmul.mubr.f32.gmra.mrb[0].mxu0 %v1641
      %v5605 = vpop.f32.mrb[0].mxu0
      %v5606 = vadd.f32 %v5381, %v5605
      %v5607 = vpop.f32.mrb[0].mxu0
      %5608 = vmatprep.mubr.f32.mxu0 0.0
      %5609 = vmatmul.mubr.f32.gmra.mrb[0].mxu0 %v1644
      %v5610 = vpop.f32.mrb[0].mxu0
      %v5611 = vadd.f32 %v5386, %v5610
      %v5612 = vpop.f32.mrb[0].mxu0
      %5613 = vmatprep.mubr.f32.mxu0 0.0
      %5614 = vmatmul.mubr.f32.gmra.mrb[0].mxu0 %v1647
      %v5615 = vpop.f32.mrb[0].mxu0
      %v5616 = vadd.f32 %v5391, %v5615
      %v5617 = vpop.f32.mrb[0].mxu0
      %5618 = vmatprep.mubr.f32.mxu0 0.0
      %5619 = vmatmul.mubr.f32.gmra.mrb[0].mxu0 %v1650
      %v5620 = vpop.f32.mrb[0].mxu0
      %v5621 = vadd.f32 %v5396, %v5620
      %v5622 = vpop.f32.mrb[0].mxu0
      %5623 = vmatprep.mubr.f32.mxu0 0.0
      %5624 = vmatmul.mubr.f32.gmra.mrb[0].mxu0 %v1653
      %v5625 = vpop.f32.mrb[0].mxu0
      %v5626 = vadd.f32 %v5401, %v5625
      %v5627 = vpop.f32.mrb[0].mxu0
      %5628 = vmatprep.mubr.f32.mxu0 0.0
      %5629 = vmatmul.mubr.f32.gmra.mrb[0].mxu0 %v1656
      %v5630 = vpop.f32.mrb[0].mxu0
      %v5631 = vadd.f32 %v5406, %v5630
      %v5632 = vpop.f32.mrb[0].mxu0
      %5633 = vmatprep.mubr.f32.mxu0 0.0
      %5634 = vmatmul.mubr.f32.gmra.mrb[0].mxu0 %v1659
      %v5635 = vpop.f32.mrb[0].mxu0
      %v5636 = vadd.f32 %v5411, %v5635
      %v5637 = vpop.f32.mrb[0].mxu0
      %5638 = vmatprep.mubr.f32.mxu0 0.0
      %5639 = vmatmul.mubr.f32.gmra.mrb[0].mxu0 %v1662
      %v5640 = vpop.f32.mrb[0].mxu0
      %v5641 = vadd.f32 %v5416, %v5640
      %v5642 = vpop.f32.mrb[0].mxu0
      %5643 = vdwg.mxu0
      %s5644 = scalar_lea.vmem %s5, 32
      %v5645 = vld [vmem:[%s5644] sm:$0xff]
      %v5647 = vsel %vm357, %v5486, 0
      %v5650 = vsel %vm357, %v5491, 0
      %v5653 = vsel %vm357, %v5496, 0
      %v5656 = vsel %vm357, %v5501, 0
      %v5659 = vsel %vm357, %v5506, 0
      %v5662 = vsel %vm357, %v5511, 0
      %v5665 = vsel %vm357, %v5516, 0
      %v5668 = vsel %vm357, %v5521, 0
      %v5671 = vsel %vm357, %v5526, 0
      %v5674 = vsel %vm357, %v5531, 0
      %v5677 = vsel %vm357, %v5536, 0
      %v5680 = vsel %vm357, %v5541, 0
      %v5683 = vsel %vm357, %v5546, 0
      %v5686 = vsel %vm357, %v5551, 0
      %v5689 = vsel %vm357, %v5556, 0
      %v5692 = vsel %vm357, %v5561, 0
      %v5695 = vsel %vm357, %v5566, 0
      %v5698 = vsel %vm357, %v5571, 0
      %v5701 = vsel %vm357, %v5576, 0
      %v5704 = vsel %vm357, %v5581, 0
      %v5707 = vsel %vm357, %v5586, 0
      %v5710 = vsel %vm357, %v5591, 0
      %v5713 = vsel %vm357, %v5596, 0
      %v5716 = vsel %vm357, %v5601, 0
      %v5719 = vsel %vm357, %v5606, 0
      %v5722 = vsel %vm357, %v5611, 0
      %v5725 = vsel %vm357, %v5616, 0
      %v5728 = vsel %vm357, %v5621, 0
      %v5731 = vsel %vm357, %v5626, 0
      %v5734 = vsel %vm357, %v5631, 0
      %v5737 = vsel %vm357, %v5636, 0
      %v5740 = vsel %vm357, %v5641, 0
      %5742 = vmatprep.subr.mxu0 0.0
      %5743 = vmatpush1.msra.mxu0 %v5645
      %5744 = vmatprep.subr.mxu0 0.0
      %5745 = vmatpush1.msra.mxu0 0.0
      %5746 = vmatprep.subr.mxu0 0.0
      %5747 = vmatpush1.msra.mxu0 0.0
      %5748 = vmatprep.subr.mxu0 0.0
      %5749 = vmatpush1.msra.mxu0 0.0
      %5750 = vmatprep.subr.mxu0 0.0
      %5751 = vmatpush1.msra.mxu0 0.0
      %5752 = vmatprep.subr.mxu0 0.0
      %5753 = vmatpush1.msra.mxu0 0.0
      %5754 = vmatprep.subr.mxu0 0.0
      %5755 = vmatpush1.msra.mxu0 0.0
      %5756 = vmatprep.subr.mxu0 0.0
      %5757 = vmatpush1.msra.mxu0 0.0
      %5758 = vmatprep.subr.mxu0 0.0
      %5759 = vmatpush1.msra.mxu0 0.0
      %5760 = vmatprep.subr.mxu0 0.0
      %5761 = vmatpush1.msra.mxu0 0.0
      %5762 = vmatprep.subr.mxu0 0.0
      %5763 = vmatpush1.msra.mxu0 0.0
      %5764 = vmatprep.subr.mxu0 0.0
      %5765 = vmatpush1.msra.mxu0 0.0
      %5766 = vmatprep.subr.mxu0 0.0
      %5767 = vmatpush1.msra.mxu0 0.0
      %5768 = vmatprep.subr.mxu0 0.0
      %5769 = vmatpush1.msra.mxu0 0.0
      %5770 = vmatprep.subr.mxu0 0.0
      %5771 = vmatpush1.msra.mxu0 0.0
      %5772 = vmatprep.subr.mxu0 0.0
      %5773 = vmatpush1.msra.mxu0 0.0
      %5774 = vmatprep.subr.mxu0 0.0
      %5775 = vmatpush1.msra.mxu0 0.0
      %5776 = vmatprep.subr.mxu0 0.0
      %5777 = vmatpush1.msra.mxu0 0.0
      %5778 = vmatprep.subr.mxu0 0.0
      %5779 = vmatpush1.msra.mxu0 0.0
      %5780 = vmatprep.subr.mxu0 0.0
      %5781 = vmatpush1.msra.mxu0 0.0
      %5782 = vmatprep.subr.mxu0 0.0
      %5783 = vmatpush1.msra.mxu0 0.0
      %5784 = vmatprep.subr.mxu0 0.0
      %5785 = vmatpush1.msra.mxu0 0.0
      %5786 = vmatprep.subr.mxu0 0.0
      %5787 = vmatpush1.msra.mxu0 0.0
      %5788 = vmatprep.subr.mxu0 0.0
      %5789 = vmatpush1.msra.mxu0 0.0
      %5790 = vmatprep.subr.mxu0 0.0
      %5791 = vmatpush1.msra.mxu0 0.0
      %5792 = vmatprep.subr.mxu0 0.0
      %5793 = vmatpush1.msra.mxu0 0.0
      %5794 = vmatprep.subr.mxu0 0.0
      %5795 = vmatpush1.msra.mxu0 0.0
      %5796 = vmatprep.subr.mxu0 0.0
      %5797 = vmatpush1.msra.mxu0 0.0
      %5798 = vmatprep.subr.mxu0 0.0
      %5799 = vmatpush1.msra.mxu0 0.0
      %5800 = vmatprep.subr.mxu0 0.0
      %5801 = vmatpush1.msra.mxu0 0.0
      %5802 = vmatprep.subr.mxu0 0.0
      %5803 = vmatpush1.msra.mxu0 0.0
      %5804 = vmatprep.subr.mxu0 0.0
      %5805 = vmatpush1.msra.mxu0 0.0
      %5806 = vmatprep.mubr.f32.mxu0 0.0
      %5807 = vmatmul.mubr.f32.gmra.mrb[0].mxu0 %v5647
      %v5808 = vpop.f32.mrb[0].mxu0
      %v5809 = vadd.f32 0.0, %v5808
      %v5810 = vpop.f32.mrb[0].mxu0
      %5811 = vmatprep.mubr.f32.mxu0 0.0
      %5812 = vmatmul.mubr.f32.gmra.mrb[0].mxu0 %v5650
      %v5813 = vpop.f32.mrb[0].mxu0
      %v5814 = vadd.f32 0.0, %v5813
      %v5815 = vpop.f32.mrb[0].mxu0
      %5816 = vmatprep.mubr.f32.mxu0 0.0
      %5817 = vmatmul.mubr.f32.gmra.mrb[0].mxu0 %v5653
      %v5818 = vpop.f32.mrb[0].mxu0
      %v5819 = vadd.f32 0.0, %v5818
      %v5820 = vpop.f32.mrb[0].mxu0
      %5821 = vmatprep.mubr.f32.mxu0 0.0
      %5822 = vmatmul.mubr.f32.gmra.mrb[0].mxu0 %v5656
      %v5823 = vpop.f32.mrb[0].mxu0
      %v5824 = vadd.f32 0.0, %v5823
      %v5825 = vpop.f32.mrb[0].mxu0
      %5826 = vmatprep.mubr.f32.mxu0 0.0
      %5827 = vmatmul.mubr.f32.gmra.mrb[0].mxu0 %v5659
      %v5828 = vpop.f32.mrb[0].mxu0
      %v5829 = vadd.f32 0.0, %v5828
      %v5830 = vpop.f32.mrb[0].mxu0
      %5831 = vmatprep.mubr.f32.mxu0 0.0
      %5832 = vmatmul.mubr.f32.gmra.mrb[0].mxu0 %v5662
      %v5833 = vpop.f32.mrb[0].mxu0
      %v5834 = vadd.f32 0.0, %v5833
      %v5835 = vpop.f32.mrb[0].mxu0
      %5836 = vmatprep.mubr.f32.mxu0 0.0
      %5837 = vmatmul.mubr.f32.gmra.mrb[0].mxu0 %v5665
      %v5838 = vpop.f32.mrb[0].mxu0
      %v5839 = vadd.f32 0.0, %v5838
      %v5840 = vpop.f32.mrb[0].mxu0
      %5841 = vmatprep.mubr.f32.mxu0 0.0
      %5842 = vmatmul.mubr.f32.gmra.mrb[0].mxu0 %v5668
      %v5843 = vpop.f32.mrb[0].mxu0
      %v5844 = vadd.f32 0.0, %v5843
      %v5845 = vpop.f32.mrb[0].mxu0
      %5846 = vmatprep.mubr.f32.mxu0 0.0
      %5847 = vmatmul.mubr.f32.gmra.mrb[0].mxu0 %v5671
      %v5848 = vpop.f32.mrb[0].mxu0
      %v5849 = vadd.f32 0.0, %v5848
      %v5850 = vpop.f32.mrb[0].mxu0
      %5851 = vmatprep.mubr.f32.mxu0 0.0
      %5852 = vmatmul.mubr.f32.gmra.mrb[0].mxu0 %v5674
      %v5853 = vpop.f32.mrb[0].mxu0
      %v5854 = vadd.f32 0.0, %v5853
      %v5855 = vpop.f32.mrb[0].mxu0
      %5856 = vmatprep.mubr.f32.mxu0 0.0
      %5857 = vmatmul.mubr.f32.gmra.mrb[0].mxu0 %v5677
      %v5858 = vpop.f32.mrb[0].mxu0
      %v5859 = vadd.f32 0.0, %v5858
      %v5860 = vpop.f32.mrb[0].mxu0
      %5861 = vmatprep.mubr.f32.mxu0 0.0
      %5862 = vmatmul.mubr.f32.gmra.mrb[0].mxu0 %v5680
      %v5863 = vpop.f32.mrb[0].mxu0
      %v5864 = vadd.f32 0.0, %v5863
      %v5865 = vpop.f32.mrb[0].mxu0
      %5866 = vmatprep.mubr.f32.mxu0 0.0
      %5867 = vmatmul.mubr.f32.gmra.mrb[0].mxu0 %v5683
      %v5868 = vpop.f32.mrb[0].mxu0
      %v5869 = vadd.f32 0.0, %v5868
      %v5870 = vpop.f32.mrb[0].mxu0
      %5871 = vmatprep.mubr.f32.mxu0 0.0
      %5872 = vmatmul.mubr.f32.gmra.mrb[0].mxu0 %v5686
      %v5873 = vpop.f32.mrb[0].mxu0
      %v5874 = vadd.f32 0.0, %v5873
      %v5875 = vpop.f32.mrb[0].mxu0
      %5876 = vmatprep.mubr.f32.mxu0 0.0
      %5877 = vmatmul.mubr.f32.gmra.mrb[0].mxu0 %v5689
      %v5878 = vpop.f32.mrb[0].mxu0
      %v5879 = vadd.f32 0.0, %v5878
      %v5880 = vpop.f32.mrb[0].mxu0
      %5881 = vmatprep.mubr.f32.mxu0 0.0
      %5882 = vmatmul.mubr.f32.gmra.mrb[0].mxu0 %v5692
      %v5883 = vpop.f32.mrb[0].mxu0
      %v5884 = vadd.f32 0.0, %v5883
      %v5885 = vpop.f32.mrb[0].mxu0
      %5886 = vmatprep.mubr.f32.mxu0 0.0
      %5887 = vmatmul.mubr.f32.gmra.mrb[0].mxu0 %v5695
      %v5888 = vpop.f32.mrb[0].mxu0
      %v5889 = vadd.f32 0.0, %v5888
      %v5890 = vpop.f32.mrb[0].mxu0
      %5891 = vmatprep.mubr.f32.mxu0 0.0
      %5892 = vmatmul.mubr.f32.gmra.mrb[0].mxu0 %v5698
      %v5893 = vpop.f32.mrb[0].mxu0
      %v5894 = vadd.f32 0.0, %v5893
      %v5895 = vpop.f32.mrb[0].mxu0
      %5896 = vmatprep.mubr.f32.mxu0 0.0
      %5897 = vmatmul.mubr.f32.gmra.mrb[0].mxu0 %v5701
      %v5898 = vpop.f32.mrb[0].mxu0
      %v5899 = vadd.f32 0.0, %v5898
      %v5900 = vpop.f32.mrb[0].mxu0
      %5901 = vmatprep.mubr.f32.mxu0 0.0
      %5902 = vmatmul.mubr.f32.gmra.mrb[0].mxu0 %v5704
      %v5903 = vpop.f32.mrb[0].mxu0
      %v5904 = vadd.f32 0.0, %v5903
      %v5905 = vpop.f32.mrb[0].mxu0
      %5906 = vmatprep.mubr.f32.mxu0 0.0
      %5907 = vmatmul.mubr.f32.gmra.mrb[0].mxu0 %v5707
      %v5908 = vpop.f32.mrb[0].mxu0
      %v5909 = vadd.f32 0.0, %v5908
      %v5910 = vpop.f32.mrb[0].mxu0
      %5911 = vmatprep.mubr.f32.mxu0 0.0
      %5912 = vmatmul.mubr.f32.gmra.mrb[0].mxu0 %v5710
      %v5913 = vpop.f32.mrb[0].mxu0
      %v5914 = vadd.f32 0.0, %v5913
      %v5915 = vpop.f32.mrb[0].mxu0
      %5916 = vmatprep.mubr.f32.mxu0 0.0
      %5917 = vmatmul.mubr.f32.gmra.mrb[0].mxu0 %v5713
      %v5918 = vpop.f32.mrb[0].mxu0
      %v5919 = vadd.f32 0.0, %v5918
      %v5920 = vpop.f32.mrb[0].mxu0
      %5921 = vmatprep.mubr.f32.mxu0 0.0
      %5922 = vmatmul.mubr.f32.gmra.mrb[0].mxu0 %v5716
      %v5923 = vpop.f32.mrb[0].mxu0
      %v5924 = vadd.f32 0.0, %v5923
      %v5925 = vpop.f32.mrb[0].mxu0
      %5926 = vmatprep.mubr.f32.mxu0 0.0
      %5927 = vmatmul.mubr.f32.gmra.mrb[0].mxu0 %v5719
      %v5928 = vpop.f32.mrb[0].mxu0
      %v5929 = vadd.f32 0.0, %v5928
      %v5930 = vpop.f32.mrb[0].mxu0
      %5931 = vmatprep.mubr.f32.mxu0 0.0
      %5932 = vmatmul.mubr.f32.gmra.mrb[0].mxu0 %v5722
      %v5933 = vpop.f32.mrb[0].mxu0
      %v5934 = vadd.f32 0.0, %v5933
      %v5935 = vpop.f32.mrb[0].mxu0
      %5936 = vmatprep.mubr.f32.mxu0 0.0
      %5937 = vmatmul.mubr.f32.gmra.mrb[0].mxu0 %v5725
      %v5938 = vpop.f32.mrb[0].mxu0
      %v5939 = vadd.f32 0.0, %v5938
      %v5940 = vpop.f32.mrb[0].mxu0
      %5941 = vmatprep.mubr.f32.mxu0 0.0
      %5942 = vmatmul.mubr.f32.gmra.mrb[0].mxu0 %v5728
      %v5943 = vpop.f32.mrb[0].mxu0
      %v5944 = vadd.f32 0.0, %v5943
      %v5945 = vpop.f32.mrb[0].mxu0
      %5946 = vmatprep.mubr.f32.mxu0 0.0
      %5947 = vmatmul.mubr.f32.gmra.mrb[0].mxu0 %v5731
      %v5948 = vpop.f32.mrb[0].mxu0
      %v5949 = vadd.f32 0.0, %v5948
      %v5950 = vpop.f32.mrb[0].mxu0
      %5951 = vmatprep.mubr.f32.mxu0 0.0
      %5952 = vmatmul.mubr.f32.gmra.mrb[0].mxu0 %v5734
      %v5953 = vpop.f32.mrb[0].mxu0
      %v5954 = vadd.f32 0.0, %v5953
      %v5955 = vpop.f32.mrb[0].mxu0
      %5956 = vmatprep.mubr.f32.mxu0 0.0
      %5957 = vmatmul.mubr.f32.gmra.mrb[0].mxu0 %v5737
      %v5958 = vpop.f32.mrb[0].mxu0
      %v5959 = vadd.f32 0.0, %v5958
      %v5960 = vpop.f32.mrb[0].mxu0
      %5961 = vmatprep.mubr.f32.mxu0 0.0
      %5962 = vmatmul.mubr.f32.gmra.mrb[0].mxu0 %v5740
      %v5963 = vpop.f32.mrb[0].mxu0
      %v5964 = vadd.f32 0.0, %v5963
      %v5965 = vpop.f32.mrb[0].mxu0
      %5966 = vdwg.mxu0
      %v5967 = vadd.f32 %v5052, %v5809
      %v5968 = vadd.f32 %v5053, %v5814
      %v5969 = vadd.f32 %v5054, %v5819
      %v5970 = vadd.f32 %v5055, %v5824
      %v5971 = vadd.f32 %v5056, %v5829
      %v5972 = vadd.f32 %v5057, %v5834
      %v5973 = vadd.f32 %v5058, %v5839
      %v5974 = vadd.f32 %v5059, %v5844
      %v5975 = vadd.f32 %v5060, %v5849
      %v5976 = vadd.f32 %v5061, %v5854
      %v5977 = vadd.f32 %v5062, %v5859
      %v5978 = vadd.f32 %v5063, %v5864
      %v5979 = vadd.f32 %v5064, %v5869
      %v5980 = vadd.f32 %v5065, %v5874
      %v5981 = vadd.f32 %v5066, %v5879
      %v5982 = vadd.f32 %v5067, %v5884
      %v5983 = vadd.f32 %v5068, %v5889
      %v5984 = vadd.f32 %v5069, %v5894
      %v5985 = vadd.f32 %v5070, %v5899
      %v5986 = vadd.f32 %v5071, %v5904
      %v5987 = vadd.f32 %v5072, %v5909
      %v5988 = vadd.f32 %v5073, %v5914
      %v5989 = vadd.f32 %v5074, %v5919
      %v5990 = vadd.f32 %v5075, %v5924
      %v5991 = vadd.f32 %v5076, %v5929
      %v5992 = vadd.f32 %v5077, %v5934
      %v5993 = vadd.f32 %v5078, %v5939
      %v5994 = vadd.f32 %v5079, %v5944
      %v5995 = vadd.f32 %v5080, %v5949
      %v5996 = vadd.f32 %v5081, %v5954
      %v5997 = vadd.f32 %v5082, %v5959
      %v5998 = vadd.f32 %v5083, %v5964
      %vm5999 = vcmask 1043456
      %v6000 = vrot.slane %v1432, 4
      %v6001 = vrot.slane %v1433, 4
      %v6002 = vsel %vm5999, %v6000, %v6001
      %v6003 = vrot.slane %v1434, 4
      %v6004 = vsel %vm5999, %v6001, %v6003
      %v6005 = vrot.slane %v1435, 4
      %v6006 = vsel %vm5999, %v6003, %v6005
      %v6007 = vrot.slane %v1436, 4
      %v6008 = vsel %vm5999, %v6005, %v6007
      %v6009 = vrot.slane %v1437, 4
      %v6010 = vsel %vm5999, %v6007, %v6009
      %v6011 = vrot.slane %v1438, 4
      %v6012 = vsel %vm5999, %v6009, %v6011
      %v6013 = vrot.slane %v1439, 4
      %v6014 = vsel %vm5999, %v6011, %v6013
      %v6015 = vrot.slane %v1440, 4
      %v6016 = vsel %vm5999, %v6013, %v6015
      %v6017 = vrot.slane %v1441, 4
      %v6018 = vsel %vm5999, %v6015, %v6017
      %v6019 = vrot.slane %v1442, 4
      %v6020 = vsel %vm5999, %v6017, %v6019
      %v6021 = vrot.slane %v1443, 4
      %v6022 = vsel %vm5999, %v6019, %v6021
      %v6023 = vrot.slane %v1444, 4
      %v6024 = vsel %vm5999, %v6021, %v6023
      %v6025 = vrot.slane %v1445, 4
      %v6026 = vsel %vm5999, %v6023, %v6025
      %v6027 = vrot.slane %v1446, 4
      %v6028 = vsel %vm5999, %v6025, %v6027
      %v6029 = vrot.slane %v1447, 4
      %v6030 = vsel %vm5999, %v6027, %v6029
      %v6031 = vrot.slane %v1448, 4
      %v6032 = vsel %vm5999, %v6029, %v6031
      %v6033 = vrot.slane %v1449, 4
      %v6034 = vsel %vm5999, %v6031, %v6033
      %v6035 = vrot.slane %v1450, 4
      %v6036 = vsel %vm5999, %v6033, %v6035
      %v6037 = vrot.slane %v1451, 4
      %v6038 = vsel %vm5999, %v6035, %v6037
      %v6039 = vrot.slane %v1452, 4
      %v6040 = vsel %vm5999, %v6037, %v6039
      %v6041 = vrot.slane %v1453, 4
      %v6042 = vsel %vm5999, %v6039, %v6041
      %v6043 = vrot.slane %v1454, 4
      %v6044 = vsel %vm5999, %v6041, %v6043
      %v6045 = vrot.slane %v1455, 4
      %v6046 = vsel %vm5999, %v6043, %v6045
      %v6047 = vrot.slane %v1456, 4
      %v6048 = vsel %vm5999, %v6045, %v6047
      %v6049 = vrot.slane %v1457, 4
      %v6050 = vsel %vm5999, %v6047, %v6049
      %v6051 = vrot.slane %v1458, 4
      %v6052 = vsel %vm5999, %v6049, %v6051
      %v6053 = vrot.slane %v1459, 4
      %v6054 = vsel %vm5999, %v6051, %v6053
      %v6055 = vrot.slane %v1460, 4
      %v6056 = vsel %vm5999, %v6053, %v6055
      %v6057 = vrot.slane %v1461, 4
      %v6058 = vsel %vm5999, %v6055, %v6057
      %v6059 = vrot.slane %v1462, 4
      %v6060 = vsel %vm5999, %v6057, %v6059
      %v6061 = vrot.slane %v1463, 4
      %v6062 = vsel %vm5999, %v6059, %v6061
      %v6063 = vrot.slane %v1464, 4
      %v6064 = vsel %vm5999, %v6061, %v6063
      %v6065 = vrot.slane %v1465, 4
      %v6066 = vsel %vm5999, %v6063, %v6065
      %v6067 = vrot.slane %v1466, 4
      %v6068 = vsel %vm5999, %v6065, %v6067
      %v6069 = vrot.slane %v1467, 4
      %v6070 = vsel %vm5999, %v6067, %v6069
      %v6071 = vrot.slane %v1468, 4
      %v6072 = vsel %vm5999, %v6069, %v6071
      %6109 = vmatprep.subr.mxu0 0.0
      %6110 = vmatpush1.msra.mxu0 %v6002
      %6111 = vmatprep.subr.mxu0 0.0
      %6112 = vmatpush1.msra.mxu0 %v6004
      %6113 = vmatprep.subr.mxu0 0.0
      %6114 = vmatpush1.msra.mxu0 %v6006
      %6115 = vmatprep.subr.mxu0 0.0
      %6116 = vmatpush1.msra.mxu0 %v6008
      %6117 = vmatprep.subr.mxu0 0.0
      %6118 = vmatpush1.msra.mxu0 %v6010
      %6119 = vmatprep.subr.mxu0 0.0
      %6120 = vmatpush1.msra.mxu0 %v6012
      %6121 = vmatprep.subr.mxu0 0.0
      %6122 = vmatpush1.msra.mxu0 %v6014
      %6123 = vmatprep.subr.mxu0 0.0
      %6124 = vmatpush1.msra.mxu0 %v6016
      %6125 = vmatprep.subr.mxu0 0.0
      %6126 = vmatpush1.msra.mxu0 %v6018
      %6127 = vmatprep.subr.mxu0 0.0
      %6128 = vmatpush1.msra.mxu0 %v6020
      %6129 = vmatprep.subr.mxu0 0.0
      %6130 = vmatpush1.msra.mxu0 %v6022
      %6131 = vmatprep.subr.mxu0 0.0
      %6132 = vmatpush1.msra.mxu0 %v6024
      %6133 = vmatprep.subr.mxu0 0.0
      %6134 = vmatpush1.msra.mxu0 %v6026
      %6135 = vmatprep.subr.mxu0 0.0
      %6136 = vmatpush1.msra.mxu0 %v6028
      %6137 = vmatprep.subr.mxu0 0.0
      %6138 = vmatpush1.msra.mxu0 %v6030
      %6139 = vmatprep.subr.mxu0 0.0
      %6140 = vmatpush1.msra.mxu0 %v6032
      %6141 = vmatprep.subr.mxu0 0.0
      %6142 = vmatpush1.msra.mxu0 %v6034
      %6143 = vmatprep.subr.mxu0 0.0
      %6144 = vmatpush1.msra.mxu0 %v6036
      %6145 = vmatprep.subr.mxu0 0.0
      %6146 = vmatpush1.msra.mxu0 %v6038
      %6147 = vmatprep.subr.mxu0 0.0
      %6148 = vmatpush1.msra.mxu0 %v6040
      %6149 = vmatprep.subr.mxu0 0.0
      %6150 = vmatpush1.msra.mxu0 %v6042
      %6151 = vmatprep.subr.mxu0 0.0
      %6152 = vmatpush1.msra.mxu0 %v6044
      %6153 = vmatprep.subr.mxu0 0.0
      %6154 = vmatpush1.msra.mxu0 %v6046
      %6155 = vmatprep.subr.mxu0 0.0
      %6156 = vmatpush1.msra.mxu0 %v6048
      %6157 = vmatprep.subr.mxu0 0.0
      %6158 = vmatpush1.msra.mxu0 %v6050
      %6159 = vmatprep.subr.mxu0 0.0
      %6160 = vmatpush1.msra.mxu0 %v6052
      %6161 = vmatprep.subr.mxu0 0.0
      %6162 = vmatpush1.msra.mxu0 %v6054
      %6163 = vmatprep.subr.mxu0 0.0
      %6164 = vmatpush1.msra.mxu0 %v6056
      %6165 = vmatprep.subr.mxu0 0.0
      %6166 = vmatpush1.msra.mxu0 %v6058
      %6167 = vmatprep.subr.mxu0 0.0
      %6168 = vmatpush1.msra.mxu0 %v6060
      %6169 = vmatprep.subr.mxu0 0.0
      %6170 = vmatpush1.msra.mxu0 %v6062
      %6171 = vmatprep.subr.mxu0 0.0
      %6172 = vmatpush1.msra.mxu0 %v6064
      %6173 = vmatprep.mubr.f32.mxu0 %v1472
      %6174 = vmatmul.mubr.f32.gmra.mrb[0].mxu0 %v1471
      %v6175 = vpop.f32.mrb[0].mxu0
      %v6176 = vadd.f32 0.0, %v6175
      %v6177 = vpop.f32.mrb[0].mxu0
      %6178 = vmatprep.mubr.f32.mxu0 %v1475
      %6179 = vmatmul.mubr.f32.gmra.mrb[0].mxu0 %v1474
      %v6180 = vpop.f32.mrb[0].mxu0
      %v6181 = vadd.f32 0.0, %v6180
      %v6182 = vpop.f32.mrb[0].mxu0
      %6183 = vmatprep.mubr.f32.mxu0 %v1478
      %6184 = vmatmul.mubr.f32.gmra.mrb[0].mxu0 %v1477
      %v6185 = vpop.f32.mrb[0].mxu0
      %v6186 = vadd.f32 0.0, %v6185
      %v6187 = vpop.f32.mrb[0].mxu0
      %6188 = vmatprep.mubr.f32.mxu0 %v1481
      %6189 = vmatmul.mubr.f32.gmra.mrb[0].mxu0 %v1480
      %v6190 = vpop.f32.mrb[0].mxu0
      %v6191 = vadd.f32 0.0, %v6190
      %v6192 = vpop.f32.mrb[0].mxu0
      %6193 = vmatprep.mubr.f32.mxu0 %v1484
      %6194 = vmatmul.mubr.f32.gmra.mrb[0].mxu0 %v1483
      %v6195 = vpop.f32.mrb[0].mxu0
      %v6196 = vadd.f32 0.0, %v6195
      %v6197 = vpop.f32.mrb[0].mxu0
      %6198 = vmatprep.mubr.f32.mxu0 %v1487
      %6199 = vmatmul.mubr.f32.gmra.mrb[0].mxu0 %v1486
      %v6200 = vpop.f32.mrb[0].mxu0
      %v6201 = vadd.f32 0.0, %v6200
      %v6202 = vpop.f32.mrb[0].mxu0
      %6203 = vmatprep.mubr.f32.mxu0 %v1490
      %6204 = vmatmul.mubr.f32.gmra.mrb[0].mxu0 %v1489
      %v6205 = vpop.f32.mrb[0].mxu0
      %v6206 = vadd.f32 0.0, %v6205
      %v6207 = vpop.f32.mrb[0].mxu0
      %6208 = vmatprep.mubr.f32.mxu0 %v1493
      %6209 = vmatmul.mubr.f32.gmra.mrb[0].mxu0 %v1492
      %v6210 = vpop.f32.mrb[0].mxu0
      %v6211 = vadd.f32 0.0, %v6210
      %v6212 = vpop.f32.mrb[0].mxu0
      %6213 = vmatprep.mubr.f32.mxu0 %v1496
      %6214 = vmatmul.mubr.f32.gmra.mrb[0].mxu0 %v1495
      %v6215 = vpop.f32.mrb[0].mxu0
      %v6216 = vadd.f32 0.0, %v6215
      %v6217 = vpop.f32.mrb[0].mxu0
      %6218 = vmatprep.mubr.f32.mxu0 %v1499
      %6219 = vmatmul.mubr.f32.gmra.mrb[0].mxu0 %v1498
      %v6220 = vpop.f32.mrb[0].mxu0
      %v6221 = vadd.f32 0.0, %v6220
      %v6222 = vpop.f32.mrb[0].mxu0
      %6223 = vmatprep.mubr.f32.mxu0 %v1502
      %6224 = vmatmul.mubr.f32.gmra.mrb[0].mxu0 %v1501
      %v6225 = vpop.f32.mrb[0].mxu0
      %v6226 = vadd.f32 0.0, %v6225
      %v6227 = vpop.f32.mrb[0].mxu0
      %6228 = vmatprep.mubr.f32.mxu0 %v1505
      %6229 = vmatmul.mubr.f32.gmra.mrb[0].mxu0 %v1504
      %v6230 = vpop.f32.mrb[0].mxu0
      %v6231 = vadd.f32 0.0, %v6230
      %v6232 = vpop.f32.mrb[0].mxu0
      %6233 = vmatprep.mubr.f32.mxu0 %v1508
      %6234 = vmatmul.mubr.f32.gmra.mrb[0].mxu0 %v1507
      %v6235 = vpop.f32.mrb[0].mxu0
      %v6236 = vadd.f32 0.0, %v6235
      %v6237 = vpop.f32.mrb[0].mxu0
      %6238 = vmatprep.mubr.f32.mxu0 %v1511
      %6239 = vmatmul.mubr.f32.gmra.mrb[0].mxu0 %v1510
      %v6240 = vpop.f32.mrb[0].mxu0
      %v6241 = vadd.f32 0.0, %v6240
      %v6242 = vpop.f32.mrb[0].mxu0
      %6243 = vmatprep.mubr.f32.mxu0 %v1514
      %6244 = vmatmul.mubr.f32.gmra.mrb[0].mxu0 %v1513
      %v6245 = vpop.f32.mrb[0].mxu0
      %v6246 = vadd.f32 0.0, %v6245
      %v6247 = vpop.f32.mrb[0].mxu0
      %6248 = vmatprep.mubr.f32.mxu0 %v1517
      %6249 = vmatmul.mubr.f32.gmra.mrb[0].mxu0 %v1516
      %v6250 = vpop.f32.mrb[0].mxu0
      %v6251 = vadd.f32 0.0, %v6250
      %v6252 = vpop.f32.mrb[0].mxu0
      %6253 = vmatprep.mubr.f32.mxu0 %v1520
      %6254 = vmatmul.mubr.f32.gmra.mrb[0].mxu0 %v1519
      %v6255 = vpop.f32.mrb[0].mxu0
      %v6256 = vadd.f32 0.0, %v6255
      %v6257 = vpop.f32.mrb[0].mxu0
      %6258 = vmatprep.mubr.f32.mxu0 %v1523
      %6259 = vmatmul.mubr.f32.gmra.mrb[0].mxu0 %v1522
      %v6260 = vpop.f32.mrb[0].mxu0
      %v6261 = vadd.f32 0.0, %v6260
      %v6262 = vpop.f32.mrb[0].mxu0
      %6263 = vmatprep.mubr.f32.mxu0 %v1526
      %6264 = vmatmul.mubr.f32.gmra.mrb[0].mxu0 %v1525
      %v6265 = vpop.f32.mrb[0].mxu0
      %v6266 = vadd.f32 0.0, %v6265
      %v6267 = vpop.f32.mrb[0].mxu0
      %6268 = vmatprep.mubr.f32.mxu0 %v1529
      %6269 = vmatmul.mubr.f32.gmra.mrb[0].mxu0 %v1528
      %v6270 = vpop.f32.mrb[0].mxu0
      %v6271 = vadd.f32 0.0, %v6270
      %v6272 = vpop.f32.mrb[0].mxu0
      %6273 = vmatprep.mubr.f32.mxu0 %v1532
      %6274 = vmatmul.mubr.f32.gmra.mrb[0].mxu0 %v1531
      %v6275 = vpop.f32.mrb[0].mxu0
      %v6276 = vadd.f32 0.0, %v6275
      %v6277 = vpop.f32.mrb[0].mxu0
      %6278 = vmatprep.mubr.f32.mxu0 %v1535
      %6279 = vmatmul.mubr.f32.gmra.mrb[0].mxu0 %v1534
      %v6280 = vpop.f32.mrb[0].mxu0
      %v6281 = vadd.f32 0.0, %v6280
      %v6282 = vpop.f32.mrb[0].mxu0
      %6283 = vmatprep.mubr.f32.mxu0 %v1538
      %6284 = vmatmul.mubr.f32.gmra.mrb[0].mxu0 %v1537
      %v6285 = vpop.f32.mrb[0].mxu0
      %v6286 = vadd.f32 0.0, %v6285
      %v6287 = vpop.f32.mrb[0].mxu0
      %6288 = vmatprep.mubr.f32.mxu0 %v1541
      %6289 = vmatmul.mubr.f32.gmra.mrb[0].mxu0 %v1540
      %v6290 = vpop.f32.mrb[0].mxu0
      %v6291 = vadd.f32 0.0, %v6290
      %v6292 = vpop.f32.mrb[0].mxu0
      %6293 = vmatprep.mubr.f32.mxu0 %v1544
      %6294 = vmatmul.mubr.f32.gmra.mrb[0].mxu0 %v1543
      %v6295 = vpop.f32.mrb[0].mxu0
      %v6296 = vadd.f32 0.0, %v6295
      %v6297 = vpop.f32.mrb[0].mxu0
      %6298 = vmatprep.mubr.f32.mxu0 %v1547
      %6299 = vmatmul.mubr.f32.gmra.mrb[0].mxu0 %v1546
      %v6300 = vpop.f32.mrb[0].mxu0
      %v6301 = vadd.f32 0.0, %v6300
      %v6302 = vpop.f32.mrb[0].mxu0
      %6303 = vmatprep.mubr.f32.mxu0 %v1550
      %6304 = vmatmul.mubr.f32.gmra.mrb[0].mxu0 %v1549
      %v6305 = vpop.f32.mrb[0].mxu0
      %v6306 = vadd.f32 0.0, %v6305
      %v6307 = vpop.f32.mrb[0].mxu0
      %6308 = vmatprep.mubr.f32.mxu0 %v1553
      %6309 = vmatmul.mubr.f32.gmra.mrb[0].mxu0 %v1552
      %v6310 = vpop.f32.mrb[0].mxu0
      %v6311 = vadd.f32 0.0, %v6310
      %v6312 = vpop.f32.mrb[0].mxu0
      %6313 = vmatprep.mubr.f32.mxu0 %v1556
      %6314 = vmatmul.mubr.f32.gmra.mrb[0].mxu0 %v1555
      %v6315 = vpop.f32.mrb[0].mxu0
      %v6316 = vadd.f32 0.0, %v6315
      %v6317 = vpop.f32.mrb[0].mxu0
      %6318 = vmatprep.mubr.f32.mxu0 %v1559
      %6319 = vmatmul.mubr.f32.gmra.mrb[0].mxu0 %v1558
      %v6320 = vpop.f32.mrb[0].mxu0
      %v6321 = vadd.f32 0.0, %v6320
      %v6322 = vpop.f32.mrb[0].mxu0
      %6323 = vmatprep.mubr.f32.mxu0 %v1562
      %6324 = vmatmul.mubr.f32.gmra.mrb[0].mxu0 %v1561
      %v6325 = vpop.f32.mrb[0].mxu0
      %v6326 = vadd.f32 0.0, %v6325
      %v6327 = vpop.f32.mrb[0].mxu0
      %6328 = vmatprep.mubr.f32.mxu0 %v1565
      %6329 = vmatmul.mubr.f32.gmra.mrb[0].mxu0 %v1564
      %v6330 = vpop.f32.mrb[0].mxu0
      %v6331 = vadd.f32 0.0, %v6330
      %v6332 = vpop.f32.mrb[0].mxu0
      %6333 = vdwg.mxu0
      %6334 = vmatprep.subr.mxu0 0.0
      %6335 = vmatpush1.msra.mxu0 %v6066
      %6336 = vmatprep.subr.mxu0 0.0
      %6337 = vmatpush1.msra.mxu0 %v6068
      %6338 = vmatprep.subr.mxu0 0.0
      %6339 = vmatpush1.msra.mxu0 %v6070
      %6340 = vmatprep.subr.mxu0 0.0
      %6341 = vmatpush1.msra.mxu0 %v6072
      %6342 = vmatprep.subr.mxu0 0.0
      %6343 = vmatpush1.msra.mxu0 0.0
      %6344 = vmatprep.subr.mxu0 0.0
      %6345 = vmatpush1.msra.mxu0 0.0
      %6346 = vmatprep.subr.mxu0 0.0
      %6347 = vmatpush1.msra.mxu0 0.0
      %6348 = vmatprep.subr.mxu0 0.0
      %6349 = vmatpush1.msra.mxu0 0.0
      %6350 = vmatprep.subr.mxu0 0.0
      %6351 = vmatpush1.msra.mxu0 0.0
      %6352 = vmatprep.subr.mxu0 0.0
      %6353 = vmatpush1.msra.mxu0 0.0
      %6354 = vmatprep.subr.mxu0 0.0
      %6355 = vmatpush1.msra.mxu0 0.0
      %6356 = vmatprep.subr.mxu0 0.0
      %6357 = vmatpush1.msra.mxu0 0.0
      %6358 = vmatprep.subr.mxu0 0.0
      %6359 = vmatpush1.msra.mxu0 0.0
      %6360 = vmatprep.subr.mxu0 0.0
      %6361 = vmatpush1.msra.mxu0 0.0
      %6362 = vmatprep.subr.mxu0 0.0
      %6363 = vmatpush1.msra.mxu0 0.0
      %6364 = vmatprep.subr.mxu0 0.0
      %6365 = vmatpush1.msra.mxu0 0.0
      %6366 = vmatprep.subr.mxu0 0.0
      %6367 = vmatpush1.msra.mxu0 0.0
      %6368 = vmatprep.subr.mxu0 0.0
      %6369 = vmatpush1.msra.mxu0 0.0
      %6370 = vmatprep.subr.mxu0 0.0
      %6371 = vmatpush1.msra.mxu0 0.0
      %6372 = vmatprep.subr.mxu0 0.0
      %6373 = vmatpush1.msra.mxu0 0.0
      %6374 = vmatprep.subr.mxu0 0.0
      %6375 = vmatpush1.msra.mxu0 0.0
      %6376 = vmatprep.subr.mxu0 0.0
      %6377 = vmatpush1.msra.mxu0 0.0
      %6378 = vmatprep.subr.mxu0 0.0
      %6379 = vmatpush1.msra.mxu0 0.0
      %6380 = vmatprep.subr.mxu0 0.0
      %6381 = vmatpush1.msra.mxu0 0.0
      %6382 = vmatprep.subr.mxu0 0.0
      %6383 = vmatpush1.msra.mxu0 0.0
      %6384 = vmatprep.subr.mxu0 0.0
      %6385 = vmatpush1.msra.mxu0 0.0
      %6386 = vmatprep.subr.mxu0 0.0
      %6387 = vmatpush1.msra.mxu0 0.0
      %6388 = vmatprep.subr.mxu0 0.0
      %6389 = vmatpush1.msra.mxu0 0.0
      %6390 = vmatprep.subr.mxu0 0.0
      %6391 = vmatpush1.msra.mxu0 0.0
      %6392 = vmatprep.subr.mxu0 0.0
      %6393 = vmatpush1.msra.mxu0 0.0
      %6394 = vmatprep.subr.mxu0 0.0
      %6395 = vmatpush1.msra.mxu0 0.0
      %6396 = vmatprep.subr.mxu0 0.0
      %6397 = vmatpush1.msra.mxu0 0.0
      %6398 = vmatprep.mubr.f32.mxu0 0.0
      %6399 = vmatmul.mubr.f32.gmra.mrb[0].mxu0 %v1569
      %v6400 = vpop.f32.mrb[0].mxu0
      %v6401 = vadd.f32 %v6176, %v6400
      %v6402 = vpop.f32.mrb[0].mxu0
      %6403 = vmatprep.mubr.f32.mxu0 0.0
      %6404 = vmatmul.mubr.f32.gmra.mrb[0].mxu0 %v1572
      %v6405 = vpop.f32.mrb[0].mxu0
      %v6406 = vadd.f32 %v6181, %v6405
      %v6407 = vpop.f32.mrb[0].mxu0
      %6408 = vmatprep.mubr.f32.mxu0 0.0
      %6409 = vmatmul.mubr.f32.gmra.mrb[0].mxu0 %v1575
      %v6410 = vpop.f32.mrb[0].mxu0
      %v6411 = vadd.f32 %v6186, %v6410
      %v6412 = vpop.f32.mrb[0].mxu0
      %6413 = vmatprep.mubr.f32.mxu0 0.0
      %6414 = vmatmul.mubr.f32.gmra.mrb[0].mxu0 %v1578
      %v6415 = vpop.f32.mrb[0].mxu0
      %v6416 = vadd.f32 %v6191, %v6415
      %v6417 = vpop.f32.mrb[0].mxu0
      %6418 = vmatprep.mubr.f32.mxu0 0.0
      %6419 = vmatmul.mubr.f32.gmra.mrb[0].mxu0 %v1581
      %v6420 = vpop.f32.mrb[0].mxu0
      %v6421 = vadd.f32 %v6196, %v6420
      %v6422 = vpop.f32.mrb[0].mxu0
      %6423 = vmatprep.mubr.f32.mxu0 0.0
      %6424 = vmatmul.mubr.f32.gmra.mrb[0].mxu0 %v1584
      %v6425 = vpop.f32.mrb[0].mxu0
      %v6426 = vadd.f32 %v6201, %v6425
      %v6427 = vpop.f32.mrb[0].mxu0
      %6428 = vmatprep.mubr.f32.mxu0 0.0
      %6429 = vmatmul.mubr.f32.gmra.mrb[0].mxu0 %v1587
      %v6430 = vpop.f32.mrb[0].mxu0
      %v6431 = vadd.f32 %v6206, %v6430
      %v6432 = vpop.f32.mrb[0].mxu0
      %6433 = vmatprep.mubr.f32.mxu0 0.0
      %6434 = vmatmul.mubr.f32.gmra.mrb[0].mxu0 %v1590
      %v6435 = vpop.f32.mrb[0].mxu0
      %v6436 = vadd.f32 %v6211, %v6435
      %v6437 = vpop.f32.mrb[0].mxu0
      %6438 = vmatprep.mubr.f32.mxu0 0.0
      %6439 = vmatmul.mubr.f32.gmra.mrb[0].mxu0 %v1593
      %v6440 = vpop.f32.mrb[0].mxu0
      %v6441 = vadd.f32 %v6216, %v6440
      %v6442 = vpop.f32.mrb[0].mxu0
      %6443 = vmatprep.mubr.f32.mxu0 0.0
      %6444 = vmatmul.mubr.f32.gmra.mrb[0].mxu0 %v1596
      %v6445 = vpop.f32.mrb[0].mxu0
      %v6446 = vadd.f32 %v6221, %v6445
      %v6447 = vpop.f32.mrb[0].mxu0
      %6448 = vmatprep.mubr.f32.mxu0 0.0
      %6449 = vmatmul.mubr.f32.gmra.mrb[0].mxu0 %v1599
      %v6450 = vpop.f32.mrb[0].mxu0
      %v6451 = vadd.f32 %v6226, %v6450
      %v6452 = vpop.f32.mrb[0].mxu0
      %6453 = vmatprep.mubr.f32.mxu0 0.0
      %6454 = vmatmul.mubr.f32.gmra.mrb[0].mxu0 %v1602
      %v6455 = vpop.f32.mrb[0].mxu0
      %v6456 = vadd.f32 %v6231, %v6455
      %v6457 = vpop.f32.mrb[0].mxu0
      %6458 = vmatprep.mubr.f32.mxu0 0.0
      %6459 = vmatmul.mubr.f32.gmra.mrb[0].mxu0 %v1605
      %v6460 = vpop.f32.mrb[0].mxu0
      %v6461 = vadd.f32 %v6236, %v6460
      %v6462 = vpop.f32.mrb[0].mxu0
      %6463 = vmatprep.mubr.f32.mxu0 0.0
      %6464 = vmatmul.mubr.f32.gmra.mrb[0].mxu0 %v1608
      %v6465 = vpop.f32.mrb[0].mxu0
      %v6466 = vadd.f32 %v6241, %v6465
      %v6467 = vpop.f32.mrb[0].mxu0
      %6468 = vmatprep.mubr.f32.mxu0 0.0
      %6469 = vmatmul.mubr.f32.gmra.mrb[0].mxu0 %v1611
      %v6470 = vpop.f32.mrb[0].mxu0
      %v6471 = vadd.f32 %v6246, %v6470
      %v6472 = vpop.f32.mrb[0].mxu0
      %6473 = vmatprep.mubr.f32.mxu0 0.0
      %6474 = vmatmul.mubr.f32.gmra.mrb[0].mxu0 %v1614
      %v6475 = vpop.f32.mrb[0].mxu0
      %v6476 = vadd.f32 %v6251, %v6475
      %v6477 = vpop.f32.mrb[0].mxu0
      %6478 = vmatprep.mubr.f32.mxu0 0.0
      %6479 = vmatmul.mubr.f32.gmra.mrb[0].mxu0 %v1617
      %v6480 = vpop.f32.mrb[0].mxu0
      %v6481 = vadd.f32 %v6256, %v6480
      %v6482 = vpop.f32.mrb[0].mxu0
      %6483 = vmatprep.mubr.f32.mxu0 0.0
      %6484 = vmatmul.mubr.f32.gmra.mrb[0].mxu0 %v1620
      %v6485 = vpop.f32.mrb[0].mxu0
      %v6486 = vadd.f32 %v6261, %v6485
      %v6487 = vpop.f32.mrb[0].mxu0
      %6488 = vmatprep.mubr.f32.mxu0 0.0
      %6489 = vmatmul.mubr.f32.gmra.mrb[0].mxu0 %v1623
      %v6490 = vpop.f32.mrb[0].mxu0
      %v6491 = vadd.f32 %v6266, %v6490
      %v6492 = vpop.f32.mrb[0].mxu0
      %6493 = vmatprep.mubr.f32.mxu0 0.0
      %6494 = vmatmul.mubr.f32.gmra.mrb[0].mxu0 %v1626
      %v6495 = vpop.f32.mrb[0].mxu0
      %v6496 = vadd.f32 %v6271, %v6495
      %v6497 = vpop.f32.mrb[0].mxu0
      %6498 = vmatprep.mubr.f32.mxu0 0.0
      %6499 = vmatmul.mubr.f32.gmra.mrb[0].mxu0 %v1629
      %v6500 = vpop.f32.mrb[0].mxu0
      %v6501 = vadd.f32 %v6276, %v6500
      %v6502 = vpop.f32.mrb[0].mxu0
      %6503 = vmatprep.mubr.f32.mxu0 0.0
      %6504 = vmatmul.mubr.f32.gmra.mrb[0].mxu0 %v1632
      %v6505 = vpop.f32.mrb[0].mxu0
      %v6506 = vadd.f32 %v6281, %v6505
      %v6507 = vpop.f32.mrb[0].mxu0
      %6508 = vmatprep.mubr.f32.mxu0 0.0
      %6509 = vmatmul.mubr.f32.gmra.mrb[0].mxu0 %v1635
      %v6510 = vpop.f32.mrb[0].mxu0
      %v6511 = vadd.f32 %v6286, %v6510
      %v6512 = vpop.f32.mrb[0].mxu0
      %6513 = vmatprep.mubr.f32.mxu0 0.0
      %6514 = vmatmul.mubr.f32.gmra.mrb[0].mxu0 %v1638
      %v6515 = vpop.f32.mrb[0].mxu0
      %v6516 = vadd.f32 %v6291, %v6515
      %v6517 = vpop.f32.mrb[0].mxu0
      %6518 = vmatprep.mubr.f32.mxu0 0.0
      %6519 = vmatmul.mubr.f32.gmra.mrb[0].mxu0 %v1641
      %v6520 = vpop.f32.mrb[0].mxu0
      %v6521 = vadd.f32 %v6296, %v6520
      %v6522 = vpop.f32.mrb[0].mxu0
      %6523 = vmatprep.mubr.f32.mxu0 0.0
      %6524 = vmatmul.mubr.f32.gmra.mrb[0].mxu0 %v1644
      %v6525 = vpop.f32.mrb[0].mxu0
      %v6526 = vadd.f32 %v6301, %v6525
      %v6527 = vpop.f32.mrb[0].mxu0
      %6528 = vmatprep.mubr.f32.mxu0 0.0
      %6529 = vmatmul.mubr.f32.gmra.mrb[0].mxu0 %v1647
      %v6530 = vpop.f32.mrb[0].mxu0
      %v6531 = vadd.f32 %v6306, %v6530
      %v6532 = vpop.f32.mrb[0].mxu0
      %6533 = vmatprep.mubr.f32.mxu0 0.0
      %6534 = vmatmul.mubr.f32.gmra.mrb[0].mxu0 %v1650
      %v6535 = vpop.f32.mrb[0].mxu0
      %v6536 = vadd.f32 %v6311, %v6535
      %v6537 = vpop.f32.mrb[0].mxu0
      %6538 = vmatprep.mubr.f32.mxu0 0.0
      %6539 = vmatmul.mubr.f32.gmra.mrb[0].mxu0 %v1653
      %v6540 = vpop.f32.mrb[0].mxu0
      %v6541 = vadd.f32 %v6316, %v6540
      %v6542 = vpop.f32.mrb[0].mxu0
      %6543 = vmatprep.mubr.f32.mxu0 0.0
      %6544 = vmatmul.mubr.f32.gmra.mrb[0].mxu0 %v1656
      %v6545 = vpop.f32.mrb[0].mxu0
      %v6546 = vadd.f32 %v6321, %v6545
      %v6547 = vpop.f32.mrb[0].mxu0
      %6548 = vmatprep.mubr.f32.mxu0 0.0
      %6549 = vmatmul.mubr.f32.gmra.mrb[0].mxu0 %v1659
      %v6550 = vpop.f32.mrb[0].mxu0
      %v6551 = vadd.f32 %v6326, %v6550
      %v6552 = vpop.f32.mrb[0].mxu0
      %6553 = vmatprep.mubr.f32.mxu0 0.0
      %6554 = vmatmul.mubr.f32.gmra.mrb[0].mxu0 %v1662
      %v6555 = vpop.f32.mrb[0].mxu0
      %v6556 = vadd.f32 %v6331, %v6555
      %v6557 = vpop.f32.mrb[0].mxu0
      %6558 = vdwg.mxu0
      %s6559 = scalar_lea.vmem %s5, 40
      %v6560 = vld [vmem:[%s6559] sm:$0xff]
      %v6562 = vsel %vm357, %v6401, 0
      %v6565 = vsel %vm357, %v6406, 0
      %v6568 = vsel %vm357, %v6411, 0
      %v6571 = vsel %vm357, %v6416, 0
      %v6574 = vsel %vm357, %v6421, 0
      %v6577 = vsel %vm357, %v6426, 0
      %v6580 = vsel %vm357, %v6431, 0
      %v6583 = vsel %vm357, %v6436, 0
      %v6586 = vsel %vm357, %v6441, 0
      %v6589 = vsel %vm357, %v6446, 0
      %v6592 = vsel %vm357, %v6451, 0
      %v6595 = vsel %vm357, %v6456, 0
      %v6598 = vsel %vm357, %v6461, 0
      %v6601 = vsel %vm357, %v6466, 0
      %v6604 = vsel %vm357, %v6471, 0
      %v6607 = vsel %vm357, %v6476, 0
      %v6610 = vsel %vm357, %v6481, 0
      %v6613 = vsel %vm357, %v6486, 0
      %v6616 = vsel %vm357, %v6491, 0
      %v6619 = vsel %vm357, %v6496, 0
      %v6622 = vsel %vm357, %v6501, 0
      %v6625 = vsel %vm357, %v6506, 0
      %v6628 = vsel %vm357, %v6511, 0
      %v6631 = vsel %vm357, %v6516, 0
      %v6634 = vsel %vm357, %v6521, 0
      %v6637 = vsel %vm357, %v6526, 0
      %v6640 = vsel %vm357, %v6531, 0
      %v6643 = vsel %vm357, %v6536, 0
      %v6646 = vsel %vm357, %v6541, 0
      %v6649 = vsel %vm357, %v6546, 0
      %v6652 = vsel %vm357, %v6551, 0
      %v6655 = vsel %vm357, %v6556, 0
      %6657 = vmatprep.subr.mxu0 0.0
      %6658 = vmatpush1.msra.mxu0 %v6560
      %6659 = vmatprep.subr.mxu0 0.0
      %6660 = vmatpush1.msra.mxu0 0.0
      %6661 = vmatprep.subr.mxu0 0.0
      %6662 = vmatpush1.msra.mxu0 0.0
      %6663 = vmatprep.subr.mxu0 0.0
      %6664 = vmatpush1.msra.mxu0 0.0
      %6665 = vmatprep.subr.mxu0 0.0
      %6666 = vmatpush1.msra.mxu0 0.0
      %6667 = vmatprep.subr.mxu0 0.0
      %6668 = vmatpush1.msra.mxu0 0.0
      %6669 = vmatprep.subr.mxu0 0.0
      %6670 = vmatpush1.msra.mxu0 0.0
      %6671 = vmatprep.subr.mxu0 0.0
      %6672 = vmatpush1.msra.mxu0 0.0
      %6673 = vmatprep.subr.mxu0 0.0
      %6674 = vmatpush1.msra.mxu0 0.0
      %6675 = vmatprep.subr.mxu0 0.0
      %6676 = vmatpush1.msra.mxu0 0.0
      %6677 = vmatprep.subr.mxu0 0.0
      %6678 = vmatpush1.msra.mxu0 0.0
      %6679 = vmatprep.subr.mxu0 0.0
      %6680 = vmatpush1.msra.mxu0 0.0
      %6681 = vmatprep.subr.mxu0 0.0
      %6682 = vmatpush1.msra.mxu0 0.0
      %6683 = vmatprep.subr.mxu0 0.0
      %6684 = vmatpush1.msra.mxu0 0.0
      %6685 = vmatprep.subr.mxu0 0.0
      %6686 = vmatpush1.msra.mxu0 0.0
      %6687 = vmatprep.subr.mxu0 0.0
      %6688 = vmatpush1.msra.mxu0 0.0
      %6689 = vmatprep.subr.mxu0 0.0
      %6690 = vmatpush1.msra.mxu0 0.0
      %6691 = vmatprep.subr.mxu0 0.0
      %6692 = vmatpush1.msra.mxu0 0.0
      %6693 = vmatprep.subr.mxu0 0.0
      %6694 = vmatpush1.msra.mxu0 0.0
      %6695 = vmatprep.subr.mxu0 0.0
      %6696 = vmatpush1.msra.mxu0 0.0
      %6697 = vmatprep.subr.mxu0 0.0
      %6698 = vmatpush1.msra.mxu0 0.0
      %6699 = vmatprep.subr.mxu0 0.0
      %6700 = vmatpush1.msra.mxu0 0.0
      %6701 = vmatprep.subr.mxu0 0.0
      %6702 = vmatpush1.msra.mxu0 0.0
      %6703 = vmatprep.subr.mxu0 0.0
      %6704 = vmatpush1.msra.mxu0 0.0
      %6705 = vmatprep.subr.mxu0 0.0
      %6706 = vmatpush1.msra.mxu0 0.0
      %6707 = vmatprep.subr.mxu0 0.0
      %6708 = vmatpush1.msra.mxu0 0.0
      %6709 = vmatprep.subr.mxu0 0.0
      %6710 = vmatpush1.msra.mxu0 0.0
      %6711 = vmatprep.subr.mxu0 0.0
      %6712 = vmatpush1.msra.mxu0 0.0
      %6713 = vmatprep.subr.mxu0 0.0
      %6714 = vmatpush1.msra.mxu0 0.0
      %6715 = vmatprep.subr.mxu0 0.0
      %6716 = vmatpush1.msra.mxu0 0.0
      %6717 = vmatprep.subr.mxu0 0.0
      %6718 = vmatpush1.msra.mxu0 0.0
      %6719 = vmatprep.subr.mxu0 0.0
      %6720 = vmatpush1.msra.mxu0 0.0
      %6721 = vmatprep.mubr.f32.mxu0 0.0
      %6722 = vmatmul.mubr.f32.gmra.mrb[0].mxu0 %v6562
      %v6723 = vpop.f32.mrb[0].mxu0
      %v6724 = vadd.f32 0.0, %v6723
      %v6725 = vpop.f32.mrb[0].mxu0
      %6726 = vmatprep.mubr.f32.mxu0 0.0
      %6727 = vmatmul.mubr.f32.gmra.mrb[0].mxu0 %v6565
      %v6728 = vpop.f32.mrb[0].mxu0
      %v6729 = vadd.f32 0.0, %v6728
      %v6730 = vpop.f32.mrb[0].mxu0
      %6731 = vmatprep.mubr.f32.mxu0 0.0
      %6732 = vmatmul.mubr.f32.gmra.mrb[0].mxu0 %v6568
      %v6733 = vpop.f32.mrb[0].mxu0
      %v6734 = vadd.f32 0.0, %v6733
      %v6735 = vpop.f32.mrb[0].mxu0
      %6736 = vmatprep.mubr.f32.mxu0 0.0
      %6737 = vmatmul.mubr.f32.gmra.mrb[0].mxu0 %v6571
      %v6738 = vpop.f32.mrb[0].mxu0
      %v6739 = vadd.f32 0.0, %v6738
      %v6740 = vpop.f32.mrb[0].mxu0
      %6741 = vmatprep.mubr.f32.mxu0 0.0
      %6742 = vmatmul.mubr.f32.gmra.mrb[0].mxu0 %v6574
      %v6743 = vpop.f32.mrb[0].mxu0
      %v6744 = vadd.f32 0.0, %v6743
      %v6745 = vpop.f32.mrb[0].mxu0
      %6746 = vmatprep.mubr.f32.mxu0 0.0
      %6747 = vmatmul.mubr.f32.gmra.mrb[0].mxu0 %v6577
      %v6748 = vpop.f32.mrb[0].mxu0
      %v6749 = vadd.f32 0.0, %v6748
      %v6750 = vpop.f32.mrb[0].mxu0
      %6751 = vmatprep.mubr.f32.mxu0 0.0
      %6752 = vmatmul.mubr.f32.gmra.mrb[0].mxu0 %v6580
      %v6753 = vpop.f32.mrb[0].mxu0
      %v6754 = vadd.f32 0.0, %v6753
      %v6755 = vpop.f32.mrb[0].mxu0
      %6756 = vmatprep.mubr.f32.mxu0 0.0
      %6757 = vmatmul.mubr.f32.gmra.mrb[0].mxu0 %v6583
      %v6758 = vpop.f32.mrb[0].mxu0
      %v6759 = vadd.f32 0.0, %v6758
      %v6760 = vpop.f32.mrb[0].mxu0
      %6761 = vmatprep.mubr.f32.mxu0 0.0
      %6762 = vmatmul.mubr.f32.gmra.mrb[0].mxu0 %v6586
      %v6763 = vpop.f32.mrb[0].mxu0
      %v6764 = vadd.f32 0.0, %v6763
      %v6765 = vpop.f32.mrb[0].mxu0
      %6766 = vmatprep.mubr.f32.mxu0 0.0
      %6767 = vmatmul.mubr.f32.gmra.mrb[0].mxu0 %v6589
      %v6768 = vpop.f32.mrb[0].mxu0
      %v6769 = vadd.f32 0.0, %v6768
      %v6770 = vpop.f32.mrb[0].mxu0
      %6771 = vmatprep.mubr.f32.mxu0 0.0
      %6772 = vmatmul.mubr.f32.gmra.mrb[0].mxu0 %v6592
      %v6773 = vpop.f32.mrb[0].mxu0
      %v6774 = vadd.f32 0.0, %v6773
      %v6775 = vpop.f32.mrb[0].mxu0
      %6776 = vmatprep.mubr.f32.mxu0 0.0
      %6777 = vmatmul.mubr.f32.gmra.mrb[0].mxu0 %v6595
      %v6778 = vpop.f32.mrb[0].mxu0
      %v6779 = vadd.f32 0.0, %v6778
      %v6780 = vpop.f32.mrb[0].mxu0
      %6781 = vmatprep.mubr.f32.mxu0 0.0
      %6782 = vmatmul.mubr.f32.gmra.mrb[0].mxu0 %v6598
      %v6783 = vpop.f32.mrb[0].mxu0
      %v6784 = vadd.f32 0.0, %v6783
      %v6785 = vpop.f32.mrb[0].mxu0
      %6786 = vmatprep.mubr.f32.mxu0 0.0
      %6787 = vmatmul.mubr.f32.gmra.mrb[0].mxu0 %v6601
      %v6788 = vpop.f32.mrb[0].mxu0
      %v6789 = vadd.f32 0.0, %v6788
      %v6790 = vpop.f32.mrb[0].mxu0
      %6791 = vmatprep.mubr.f32.mxu0 0.0
      %6792 = vmatmul.mubr.f32.gmra.mrb[0].mxu0 %v6604
      %v6793 = vpop.f32.mrb[0].mxu0
      %v6794 = vadd.f32 0.0, %v6793
      %v6795 = vpop.f32.mrb[0].mxu0
      %6796 = vmatprep.mubr.f32.mxu0 0.0
      %6797 = vmatmul.mubr.f32.gmra.mrb[0].mxu0 %v6607
      %v6798 = vpop.f32.mrb[0].mxu0
      %v6799 = vadd.f32 0.0, %v6798
      %v6800 = vpop.f32.mrb[0].mxu0
      %6801 = vmatprep.mubr.f32.mxu0 0.0
      %6802 = vmatmul.mubr.f32.gmra.mrb[0].mxu0 %v6610
      %v6803 = vpop.f32.mrb[0].mxu0
      %v6804 = vadd.f32 0.0, %v6803
      %v6805 = vpop.f32.mrb[0].mxu0
      %6806 = vmatprep.mubr.f32.mxu0 0.0
      %6807 = vmatmul.mubr.f32.gmra.mrb[0].mxu0 %v6613
      %v6808 = vpop.f32.mrb[0].mxu0
      %v6809 = vadd.f32 0.0, %v6808
      %v6810 = vpop.f32.mrb[0].mxu0
      %6811 = vmatprep.mubr.f32.mxu0 0.0
      %6812 = vmatmul.mubr.f32.gmra.mrb[0].mxu0 %v6616
      %v6813 = vpop.f32.mrb[0].mxu0
      %v6814 = vadd.f32 0.0, %v6813
      %v6815 = vpop.f32.mrb[0].mxu0
      %6816 = vmatprep.mubr.f32.mxu0 0.0
      %6817 = vmatmul.mubr.f32.gmra.mrb[0].mxu0 %v6619
      %v6818 = vpop.f32.mrb[0].mxu0
      %v6819 = vadd.f32 0.0, %v6818
      %v6820 = vpop.f32.mrb[0].mxu0
      %6821 = vmatprep.mubr.f32.mxu0 0.0
      %6822 = vmatmul.mubr.f32.gmra.mrb[0].mxu0 %v6622
      %v6823 = vpop.f32.mrb[0].mxu0
      %v6824 = vadd.f32 0.0, %v6823
      %v6825 = vpop.f32.mrb[0].mxu0
      %6826 = vmatprep.mubr.f32.mxu0 0.0
      %6827 = vmatmul.mubr.f32.gmra.mrb[0].mxu0 %v6625
      %v6828 = vpop.f32.mrb[0].mxu0
      %v6829 = vadd.f32 0.0, %v6828
      %v6830 = vpop.f32.mrb[0].mxu0
      %6831 = vmatprep.mubr.f32.mxu0 0.0
      %6832 = vmatmul.mubr.f32.gmra.mrb[0].mxu0 %v6628
      %v6833 = vpop.f32.mrb[0].mxu0
      %v6834 = vadd.f32 0.0, %v6833
      %v6835 = vpop.f32.mrb[0].mxu0
      %6836 = vmatprep.mubr.f32.mxu0 0.0
      %6837 = vmatmul.mubr.f32.gmra.mrb[0].mxu0 %v6631
      %v6838 = vpop.f32.mrb[0].mxu0
      %v6839 = vadd.f32 0.0, %v6838
      %v6840 = vpop.f32.mrb[0].mxu0
      %6841 = vmatprep.mubr.f32.mxu0 0.0
      %6842 = vmatmul.mubr.f32.gmra.mrb[0].mxu0 %v6634
      %v6843 = vpop.f32.mrb[0].mxu0
      %v6844 = vadd.f32 0.0, %v6843
      %v6845 = vpop.f32.mrb[0].mxu0
      %6846 = vmatprep.mubr.f32.mxu0 0.0
      %6847 = vmatmul.mubr.f32.gmra.mrb[0].mxu0 %v6637
      %v6848 = vpop.f32.mrb[0].mxu0
      %v6849 = vadd.f32 0.0, %v6848
      %v6850 = vpop.f32.mrb[0].mxu0
      %6851 = vmatprep.mubr.f32.mxu0 0.0
      %6852 = vmatmul.mubr.f32.gmra.mrb[0].mxu0 %v6640
      %v6853 = vpop.f32.mrb[0].mxu0
      %v6854 = vadd.f32 0.0, %v6853
      %v6855 = vpop.f32.mrb[0].mxu0
      %6856 = vmatprep.mubr.f32.mxu0 0.0
      %6857 = vmatmul.mubr.f32.gmra.mrb[0].mxu0 %v6643
      %v6858 = vpop.f32.mrb[0].mxu0
      %v6859 = vadd.f32 0.0, %v6858
      %v6860 = vpop.f32.mrb[0].mxu0
      %6861 = vmatprep.mubr.f32.mxu0 0.0
      %6862 = vmatmul.mubr.f32.gmra.mrb[0].mxu0 %v6646
      %v6863 = vpop.f32.mrb[0].mxu0
      %v6864 = vadd.f32 0.0, %v6863
      %v6865 = vpop.f32.mrb[0].mxu0
      %6866 = vmatprep.mubr.f32.mxu0 0.0
      %6867 = vmatmul.mubr.f32.gmra.mrb[0].mxu0 %v6649
      %v6868 = vpop.f32.mrb[0].mxu0
      %v6869 = vadd.f32 0.0, %v6868
      %v6870 = vpop.f32.mrb[0].mxu0
      %6871 = vmatprep.mubr.f32.mxu0 0.0
      %6872 = vmatmul.mubr.f32.gmra.mrb[0].mxu0 %v6652
      %v6873 = vpop.f32.mrb[0].mxu0
      %v6874 = vadd.f32 0.0, %v6873
      %v6875 = vpop.f32.mrb[0].mxu0
      %6876 = vmatprep.mubr.f32.mxu0 0.0
      %6877 = vmatmul.mubr.f32.gmra.mrb[0].mxu0 %v6655
      %v6878 = vpop.f32.mrb[0].mxu0
      %v6879 = vadd.f32 0.0, %v6878
      %v6880 = vpop.f32.mrb[0].mxu0
      %6881 = vdwg.mxu0
      %v6882 = vadd.f32 %v5967, %v6724
      %v6883 = vadd.f32 %v5968, %v6729
      %v6884 = vadd.f32 %v5969, %v6734
      %v6885 = vadd.f32 %v5970, %v6739
      %v6886 = vadd.f32 %v5971, %v6744
      %v6887 = vadd.f32 %v5972, %v6749
      %v6888 = vadd.f32 %v5973, %v6754
      %v6889 = vadd.f32 %v5974, %v6759
      %v6890 = vadd.f32 %v5975, %v6764
      %v6891 = vadd.f32 %v5976, %v6769
      %v6892 = vadd.f32 %v5977, %v6774
      %v6893 = vadd.f32 %v5978, %v6779
      %v6894 = vadd.f32 %v5979, %v6784
      %v6895 = vadd.f32 %v5980, %v6789
      %v6896 = vadd.f32 %v5981, %v6794
      %v6897 = vadd.f32 %v5982, %v6799
      %v6898 = vadd.f32 %v5983, %v6804
      %v6899 = vadd.f32 %v5984, %v6809
      %v6900 = vadd.f32 %v5985, %v6814
      %v6901 = vadd.f32 %v5986, %v6819
      %v6902 = vadd.f32 %v5987, %v6824
      %v6903 = vadd.f32 %v5988, %v6829
      %v6904 = vadd.f32 %v5989, %v6834
      %v6905 = vadd.f32 %v5990, %v6839
      %v6906 = vadd.f32 %v5991, %v6844
      %v6907 = vadd.f32 %v5992, %v6849
      %v6908 = vadd.f32 %v5993, %v6854
      %v6909 = vadd.f32 %v5994, %v6859
      %v6910 = vadd.f32 %v5995, %v6864
      %v6911 = vadd.f32 %v5996, %v6869
      %v6912 = vadd.f32 %v5997, %v6874
      %v6913 = vadd.f32 %v5998, %v6879
      %v6916 = vrot.slane %v1469, 4
      %v6917 = vsel %vm5999, %v6071, %v6916
      %v6918 = vrot.slane %v1470, 4
      %v6919 = vsel %vm5999, %v6916, %v6918
      %6922 = vmatprep.subr.mxu0 0.0
      %6923 = vmatpush1.msra.mxu0 %v6006
      %6924 = vmatprep.subr.mxu0 0.0
      %6925 = vmatpush1.msra.mxu0 %v6008
      %6926 = vmatprep.subr.mxu0 0.0
      %6927 = vmatpush1.msra.mxu0 %v6010
      %6928 = vmatprep.subr.mxu0 0.0
      %6929 = vmatpush1.msra.mxu0 %v6012
      %6930 = vmatprep.subr.mxu0 0.0
      %6931 = vmatpush1.msra.mxu0 %v6014
      %6932 = vmatprep.subr.mxu0 0.0
      %6933 = vmatpush1.msra.mxu0 %v6016
      %6934 = vmatprep.subr.mxu0 0.0
      %6935 = vmatpush1.msra.mxu0 %v6018
      %6936 = vmatprep.subr.mxu0 0.0
      %6937 = vmatpush1.msra.mxu0 %v6020
      %6938 = vmatprep.subr.mxu0 0.0
      %6939 = vmatpush1.msra.mxu0 %v6022
      %6940 = vmatprep.subr.mxu0 0.0
      %6941 = vmatpush1.msra.mxu0 %v6024
      %6942 = vmatprep.subr.mxu0 0.0
      %6943 = vmatpush1.msra.mxu0 %v6026
      %6944 = vmatprep.subr.mxu0 0.0
      %6945 = vmatpush1.msra.mxu0 %v6028
      %6946 = vmatprep.subr.mxu0 0.0
      %6947 = vmatpush1.msra.mxu0 %v6030
      %6948 = vmatprep.subr.mxu0 0.0
      %6949 = vmatpush1.msra.mxu0 %v6032
      %6950 = vmatprep.subr.mxu0 0.0
      %6951 = vmatpush1.msra.mxu0 %v6034
      %6952 = vmatprep.subr.mxu0 0.0
      %6953 = vmatpush1.msra.mxu0 %v6036
      %6954 = vmatprep.subr.mxu0 0.0
      %6955 = vmatpush1.msra.mxu0 %v6038
      %6956 = vmatprep.subr.mxu0 0.0
      %6957 = vmatpush1.msra.mxu0 %v6040
      %6958 = vmatprep.subr.mxu0 0.0
      %6959 = vmatpush1.msra.mxu0 %v6042
      %6960 = vmatprep.subr.mxu0 0.0
      %6961 = vmatpush1.msra.mxu0 %v6044
      %6962 = vmatprep.subr.mxu0 0.0
      %6963 = vmatpush1.msra.mxu0 %v6046
      %6964 = vmatprep.subr.mxu0 0.0
      %6965 = vmatpush1.msra.mxu0 %v6048
      %6966 = vmatprep.subr.mxu0 0.0
      %6967 = vmatpush1.msra.mxu0 %v6050
      %6968 = vmatprep.subr.mxu0 0.0
      %6969 = vmatpush1.msra.mxu0 %v6052
      %6970 = vmatprep.subr.mxu0 0.0
      %6971 = vmatpush1.msra.mxu0 %v6054
      %6972 = vmatprep.subr.mxu0 0.0
      %6973 = vmatpush1.msra.mxu0 %v6056
      %6974 = vmatprep.subr.mxu0 0.0
      %6975 = vmatpush1.msra.mxu0 %v6058
      %6976 = vmatprep.subr.mxu0 0.0
      %6977 = vmatpush1.msra.mxu0 %v6060
      %6978 = vmatprep.subr.mxu0 0.0
      %6979 = vmatpush1.msra.mxu0 %v6062
      %6980 = vmatprep.subr.mxu0 0.0
      %6981 = vmatpush1.msra.mxu0 %v6064
      %6982 = vmatprep.subr.mxu0 0.0
      %6983 = vmatpush1.msra.mxu0 %v6066
      %6984 = vmatprep.subr.mxu0 0.0
      %6985 = vmatpush1.msra.mxu0 %v6068
      %6986 = vmatprep.mubr.f32.mxu0 %v1472
      %6987 = vmatmul.mubr.f32.gmra.mrb[0].mxu0 %v1471
      %v6988 = vpop.f32.mrb[0].mxu0
      %v6989 = vadd.f32 0.0, %v6988
      %v6990 = vpop.f32.mrb[0].mxu0
      %6991 = vmatprep.mubr.f32.mxu0 %v1475
      %6992 = vmatmul.mubr.f32.gmra.mrb[0].mxu0 %v1474
      %v6993 = vpop.f32.mrb[0].mxu0
      %v6994 = vadd.f32 0.0, %v6993
      %v6995 = vpop.f32.mrb[0].mxu0
      %6996 = vmatprep.mubr.f32.mxu0 %v1478
      %6997 = vmatmul.mubr.f32.gmra.mrb[0].mxu0 %v1477
      %v6998 = vpop.f32.mrb[0].mxu0
      %v6999 = vadd.f32 0.0, %v6998
      %v7000 = vpop.f32.mrb[0].mxu0
      %7001 = vmatprep.mubr.f32.mxu0 %v1481
      %7002 = vmatmul.mubr.f32.gmra.mrb[0].mxu0 %v1480
      %v7003 = vpop.f32.mrb[0].mxu0
      %v7004 = vadd.f32 0.0, %v7003
      %v7005 = vpop.f32.mrb[0].mxu0
      %7006 = vmatprep.mubr.f32.mxu0 %v1484
      %7007 = vmatmul.mubr.f32.gmra.mrb[0].mxu0 %v1483
      %v7008 = vpop.f32.mrb[0].mxu0
      %v7009 = vadd.f32 0.0, %v7008
      %v7010 = vpop.f32.mrb[0].mxu0
      %7011 = vmatprep.mubr.f32.mxu0 %v1487
      %7012 = vmatmul.mubr.f32.gmra.mrb[0].mxu0 %v1486
      %v7013 = vpop.f32.mrb[0].mxu0
      %v7014 = vadd.f32 0.0, %v7013
      %v7015 = vpop.f32.mrb[0].mxu0
      %7016 = vmatprep.mubr.f32.mxu0 %v1490
      %7017 = vmatmul.mubr.f32.gmra.mrb[0].mxu0 %v1489
      %v7018 = vpop.f32.mrb[0].mxu0
      %v7019 = vadd.f32 0.0, %v7018
      %v7020 = vpop.f32.mrb[0].mxu0
      %7021 = vmatprep.mubr.f32.mxu0 %v1493
      %7022 = vmatmul.mubr.f32.gmra.mrb[0].mxu0 %v1492
      %v7023 = vpop.f32.mrb[0].mxu0
      %v7024 = vadd.f32 0.0, %v7023
      %v7025 = vpop.f32.mrb[0].mxu0
      %7026 = vmatprep.mubr.f32.mxu0 %v1496
      %7027 = vmatmul.mubr.f32.gmra.mrb[0].mxu0 %v1495
      %v7028 = vpop.f32.mrb[0].mxu0
      %v7029 = vadd.f32 0.0, %v7028
      %v7030 = vpop.f32.mrb[0].mxu0
      %7031 = vmatprep.mubr.f32.mxu0 %v1499
      %7032 = vmatmul.mubr.f32.gmra.mrb[0].mxu0 %v1498
      %v7033 = vpop.f32.mrb[0].mxu0
      %v7034 = vadd.f32 0.0, %v7033
      %v7035 = vpop.f32.mrb[0].mxu0
      %7036 = vmatprep.mubr.f32.mxu0 %v1502
      %7037 = vmatmul.mubr.f32.gmra.mrb[0].mxu0 %v1501
      %v7038 = vpop.f32.mrb[0].mxu0
      %v7039 = vadd.f32 0.0, %v7038
      %v7040 = vpop.f32.mrb[0].mxu0
      %7041 = vmatprep.mubr.f32.mxu0 %v1505
      %7042 = vmatmul.mubr.f32.gmra.mrb[0].mxu0 %v1504
      %v7043 = vpop.f32.mrb[0].mxu0
      %v7044 = vadd.f32 0.0, %v7043
      %v7045 = vpop.f32.mrb[0].mxu0
      %7046 = vmatprep.mubr.f32.mxu0 %v1508
      %7047 = vmatmul.mubr.f32.gmra.mrb[0].mxu0 %v1507
      %v7048 = vpop.f32.mrb[0].mxu0
      %v7049 = vadd.f32 0.0, %v7048
      %v7050 = vpop.f32.mrb[0].mxu0
      %7051 = vmatprep.mubr.f32.mxu0 %v1511
      %7052 = vmatmul.mubr.f32.gmra.mrb[0].mxu0 %v1510
      %v7053 = vpop.f32.mrb[0].mxu0
      %v7054 = vadd.f32 0.0, %v7053
      %v7055 = vpop.f32.mrb[0].mxu0
      %7056 = vmatprep.mubr.f32.mxu0 %v1514
      %7057 = vmatmul.mubr.f32.gmra.mrb[0].mxu0 %v1513
      %v7058 = vpop.f32.mrb[0].mxu0
      %v7059 = vadd.f32 0.0, %v7058
      %v7060 = vpop.f32.mrb[0].mxu0
      %7061 = vmatprep.mubr.f32.mxu0 %v1517
      %7062 = vmatmul.mubr.f32.gmra.mrb[0].mxu0 %v1516
      %v7063 = vpop.f32.mrb[0].mxu0
      %v7064 = vadd.f32 0.0, %v7063
      %v7065 = vpop.f32.mrb[0].mxu0
      %7066 = vmatprep.mubr.f32.mxu0 %v1520
      %7067 = vmatmul.mubr.f32.gmra.mrb[0].mxu0 %v1519
      %v7068 = vpop.f32.mrb[0].mxu0
      %v7069 = vadd.f32 0.0, %v7068
      %v7070 = vpop.f32.mrb[0].mxu0
      %7071 = vmatprep.mubr.f32.mxu0 %v1523
      %7072 = vmatmul.mubr.f32.gmra.mrb[0].mxu0 %v1522
      %v7073 = vpop.f32.mrb[0].mxu0
      %v7074 = vadd.f32 0.0, %v7073
      %v7075 = vpop.f32.mrb[0].mxu0
      %7076 = vmatprep.mubr.f32.mxu0 %v1526
      %7077 = vmatmul.mubr.f32.gmra.mrb[0].mxu0 %v1525
      %v7078 = vpop.f32.mrb[0].mxu0
      %v7079 = vadd.f32 0.0, %v7078
      %v7080 = vpop.f32.mrb[0].mxu0
      %7081 = vmatprep.mubr.f32.mxu0 %v1529
      %7082 = vmatmul.mubr.f32.gmra.mrb[0].mxu0 %v1528
      %v7083 = vpop.f32.mrb[0].mxu0
      %v7084 = vadd.f32 0.0, %v7083
      %v7085 = vpop.f32.mrb[0].mxu0
      %7086 = vmatprep.mubr.f32.mxu0 %v1532
      %7087 = vmatmul.mubr.f32.gmra.mrb[0].mxu0 %v1531
      %v7088 = vpop.f32.mrb[0].mxu0
      %v7089 = vadd.f32 0.0, %v7088
      %v7090 = vpop.f32.mrb[0].mxu0
      %7091 = vmatprep.mubr.f32.mxu0 %v1535
      %7092 = vmatmul.mubr.f32.gmra.mrb[0].mxu0 %v1534
      %v7093 = vpop.f32.mrb[0].mxu0
      %v7094 = vadd.f32 0.0, %v7093
      %v7095 = vpop.f32.mrb[0].mxu0
      %7096 = vmatprep.mubr.f32.mxu0 %v1538
      %7097 = vmatmul.mubr.f32.gmra.mrb[0].mxu0 %v1537
      %v7098 = vpop.f32.mrb[0].mxu0
      %v7099 = vadd.f32 0.0, %v7098
      %v7100 = vpop.f32.mrb[0].mxu0
      %7101 = vmatprep.mubr.f32.mxu0 %v1541
      %7102 = vmatmul.mubr.f32.gmra.mrb[0].mxu0 %v1540
      %v7103 = vpop.f32.mrb[0].mxu0
      %v7104 = vadd.f32 0.0, %v7103
      %v7105 = vpop.f32.mrb[0].mxu0
      %7106 = vmatprep.mubr.f32.mxu0 %v1544
      %7107 = vmatmul.mubr.f32.gmra.mrb[0].mxu0 %v1543
      %v7108 = vpop.f32.mrb[0].mxu0
      %v7109 = vadd.f32 0.0, %v7108
      %v7110 = vpop.f32.mrb[0].mxu0
      %7111 = vmatprep.mubr.f32.mxu0 %v1547
      %7112 = vmatmul.mubr.f32.gmra.mrb[0].mxu0 %v1546
      %v7113 = vpop.f32.mrb[0].mxu0
      %v7114 = vadd.f32 0.0, %v7113
      %v7115 = vpop.f32.mrb[0].mxu0
      %7116 = vmatprep.mubr.f32.mxu0 %v1550
      %7117 = vmatmul.mubr.f32.gmra.mrb[0].mxu0 %v1549
      %v7118 = vpop.f32.mrb[0].mxu0
      %v7119 = vadd.f32 0.0, %v7118
      %v7120 = vpop.f32.mrb[0].mxu0
      %7121 = vmatprep.mubr.f32.mxu0 %v1553
      %7122 = vmatmul.mubr.f32.gmra.mrb[0].mxu0 %v1552
      %v7123 = vpop.f32.mrb[0].mxu0
      %v7124 = vadd.f32 0.0, %v7123
      %v7125 = vpop.f32.mrb[0].mxu0
      %7126 = vmatprep.mubr.f32.mxu0 %v1556
      %7127 = vmatmul.mubr.f32.gmra.mrb[0].mxu0 %v1555
      %v7128 = vpop.f32.mrb[0].mxu0
      %v7129 = vadd.f32 0.0, %v7128
      %v7130 = vpop.f32.mrb[0].mxu0
      %7131 = vmatprep.mubr.f32.mxu0 %v1559
      %7132 = vmatmul.mubr.f32.gmra.mrb[0].mxu0 %v1558
      %v7133 = vpop.f32.mrb[0].mxu0
      %v7134 = vadd.f32 0.0, %v7133
      %v7135 = vpop.f32.mrb[0].mxu0
      %7136 = vmatprep.mubr.f32.mxu0 %v1562
      %7137 = vmatmul.mubr.f32.gmra.mrb[0].mxu0 %v1561
      %v7138 = vpop.f32.mrb[0].mxu0
      %v7139 = vadd.f32 0.0, %v7138
      %v7140 = vpop.f32.mrb[0].mxu0
      %7141 = vmatprep.mubr.f32.mxu0 %v1565
      %7142 = vmatmul.mubr.f32.gmra.mrb[0].mxu0 %v1564
      %v7143 = vpop.f32.mrb[0].mxu0
      %v7144 = vadd.f32 0.0, %v7143
      %v7145 = vpop.f32.mrb[0].mxu0
      %7146 = vdwg.mxu0
      %7147 = vmatprep.subr.mxu0 0.0
      %7148 = vmatpush1.msra.mxu0 %v6070
      %7149 = vmatprep.subr.mxu0 0.0
      %7150 = vmatpush1.msra.mxu0 %v6072
      %7151 = vmatprep.subr.mxu0 0.0
      %7152 = vmatpush1.msra.mxu0 %v6917
      %7153 = vmatprep.subr.mxu0 0.0
      %7154 = vmatpush1.msra.mxu0 %v6919
      %7155 = vmatprep.subr.mxu0 0.0
      %7156 = vmatpush1.msra.mxu0 0.0
      %7157 = vmatprep.subr.mxu0 0.0
      %7158 = vmatpush1.msra.mxu0 0.0
      %7159 = vmatprep.subr.mxu0 0.0
      %7160 = vmatpush1.msra.mxu0 0.0
      %7161 = vmatprep.subr.mxu0 0.0
      %7162 = vmatpush1.msra.mxu0 0.0
      %7163 = vmatprep.subr.mxu0 0.0
      %7164 = vmatpush1.msra.mxu0 0.0
      %7165 = vmatprep.subr.mxu0 0.0
      %7166 = vmatpush1.msra.mxu0 0.0
      %7167 = vmatprep.subr.mxu0 0.0
      %7168 = vmatpush1.msra.mxu0 0.0
      %7169 = vmatprep.subr.mxu0 0.0
      %7170 = vmatpush1.msra.mxu0 0.0
      %7171 = vmatprep.subr.mxu0 0.0
      %7172 = vmatpush1.msra.mxu0 0.0
      %7173 = vmatprep.subr.mxu0 0.0
      %7174 = vmatpush1.msra.mxu0 0.0
      %7175 = vmatprep.subr.mxu0 0.0
      %7176 = vmatpush1.msra.mxu0 0.0
      %7177 = vmatprep.subr.mxu0 0.0
      %7178 = vmatpush1.msra.mxu0 0.0
      %7179 = vmatprep.subr.mxu0 0.0
      %7180 = vmatpush1.msra.mxu0 0.0
      %7181 = vmatprep.subr.mxu0 0.0
      %7182 = vmatpush1.msra.mxu0 0.0
      %7183 = vmatprep.subr.mxu0 0.0
      %7184 = vmatpush1.msra.mxu0 0.0
      %7185 = vmatprep.subr.mxu0 0.0
      %7186 = vmatpush1.msra.mxu0 0.0
      %7187 = vmatprep.subr.mxu0 0.0
      %7188 = vmatpush1.msra.mxu0 0.0
      %7189 = vmatprep.subr.mxu0 0.0
      %7190 = vmatpush1.msra.mxu0 0.0
      %7191 = vmatprep.subr.mxu0 0.0
      %7192 = vmatpush1.msra.mxu0 0.0
      %7193 = vmatprep.subr.mxu0 0.0
      %7194 = vmatpush1.msra.mxu0 0.0
      %7195 = vmatprep.subr.mxu0 0.0
      %7196 = vmatpush1.msra.mxu0 0.0
      %7197 = vmatprep.subr.mxu0 0.0
      %7198 = vmatpush1.msra.mxu0 0.0
      %7199 = vmatprep.subr.mxu0 0.0
      %7200 = vmatpush1.msra.mxu0 0.0
      %7201 = vmatprep.subr.mxu0 0.0
      %7202 = vmatpush1.msra.mxu0 0.0
      %7203 = vmatprep.subr.mxu0 0.0
      %7204 = vmatpush1.msra.mxu0 0.0
      %7205 = vmatprep.subr.mxu0 0.0
      %7206 = vmatpush1.msra.mxu0 0.0
      %7207 = vmatprep.subr.mxu0 0.0
      %7208 = vmatpush1.msra.mxu0 0.0
      %7209 = vmatprep.subr.mxu0 0.0
      %7210 = vmatpush1.msra.mxu0 0.0
      %7211 = vmatprep.mubr.f32.mxu0 0.0
      %7212 = vmatmul.mubr.f32.gmra.mrb[0].mxu0 %v1569
      %v7213 = vpop.f32.mrb[0].mxu0
      %v7214 = vadd.f32 %v6989, %v7213
      %v7215 = vpop.f32.mrb[0].mxu0
      %7216 = vmatprep.mubr.f32.mxu0 0.0
      %7217 = vmatmul.mubr.f32.gmra.mrb[0].mxu0 %v1572
      %v7218 = vpop.f32.mrb[0].mxu0
      %v7219 = vadd.f32 %v6994, %v7218
      %v7220 = vpop.f32.mrb[0].mxu0
      %7221 = vmatprep.mubr.f32.mxu0 0.0
      %7222 = vmatmul.mubr.f32.gmra.mrb[0].mxu0 %v1575
      %v7223 = vpop.f32.mrb[0].mxu0
      %v7224 = vadd.f32 %v6999, %v7223
      %v7225 = vpop.f32.mrb[0].mxu0
      %7226 = vmatprep.mubr.f32.mxu0 0.0
      %7227 = vmatmul.mubr.f32.gmra.mrb[0].mxu0 %v1578
      %v7228 = vpop.f32.mrb[0].mxu0
      %v7229 = vadd.f32 %v7004, %v7228
      %v7230 = vpop.f32.mrb[0].mxu0
      %7231 = vmatprep.mubr.f32.mxu0 0.0
      %7232 = vmatmul.mubr.f32.gmra.mrb[0].mxu0 %v1581
      %v7233 = vpop.f32.mrb[0].mxu0
      %v7234 = vadd.f32 %v7009, %v7233
      %v7235 = vpop.f32.mrb[0].mxu0
      %7236 = vmatprep.mubr.f32.mxu0 0.0
      %7237 = vmatmul.mubr.f32.gmra.mrb[0].mxu0 %v1584
      %v7238 = vpop.f32.mrb[0].mxu0
      %v7239 = vadd.f32 %v7014, %v7238
      %v7240 = vpop.f32.mrb[0].mxu0
      %7241 = vmatprep.mubr.f32.mxu0 0.0
      %7242 = vmatmul.mubr.f32.gmra.mrb[0].mxu0 %v1587
      %v7243 = vpop.f32.mrb[0].mxu0
      %v7244 = vadd.f32 %v7019, %v7243
      %v7245 = vpop.f32.mrb[0].mxu0
      %7246 = vmatprep.mubr.f32.mxu0 0.0
      %7247 = vmatmul.mubr.f32.gmra.mrb[0].mxu0 %v1590
      %v7248 = vpop.f32.mrb[0].mxu0
      %v7249 = vadd.f32 %v7024, %v7248
      %v7250 = vpop.f32.mrb[0].mxu0
      %7251 = vmatprep.mubr.f32.mxu0 0.0
      %7252 = vmatmul.mubr.f32.gmra.mrb[0].mxu0 %v1593
      %v7253 = vpop.f32.mrb[0].mxu0
      %v7254 = vadd.f32 %v7029, %v7253
      %v7255 = vpop.f32.mrb[0].mxu0
      %7256 = vmatprep.mubr.f32.mxu0 0.0
      %7257 = vmatmul.mubr.f32.gmra.mrb[0].mxu0 %v1596
      %v7258 = vpop.f32.mrb[0].mxu0
      %v7259 = vadd.f32 %v7034, %v7258
      %v7260 = vpop.f32.mrb[0].mxu0
      %7261 = vmatprep.mubr.f32.mxu0 0.0
      %7262 = vmatmul.mubr.f32.gmra.mrb[0].mxu0 %v1599
      %v7263 = vpop.f32.mrb[0].mxu0
      %v7264 = vadd.f32 %v7039, %v7263
      %v7265 = vpop.f32.mrb[0].mxu0
      %7266 = vmatprep.mubr.f32.mxu0 0.0
      %7267 = vmatmul.mubr.f32.gmra.mrb[0].mxu0 %v1602
      %v7268 = vpop.f32.mrb[0].mxu0
      %v7269 = vadd.f32 %v7044, %v7268
      %v7270 = vpop.f32.mrb[0].mxu0
      %7271 = vmatprep.mubr.f32.mxu0 0.0
      %7272 = vmatmul.mubr.f32.gmra.mrb[0].mxu0 %v1605
      %v7273 = vpop.f32.mrb[0].mxu0
      %v7274 = vadd.f32 %v7049, %v7273
      %v7275 = vpop.f32.mrb[0].mxu0
      %7276 = vmatprep.mubr.f32.mxu0 0.0
      %7277 = vmatmul.mubr.f32.gmra.mrb[0].mxu0 %v1608
      %v7278 = vpop.f32.mrb[0].mxu0
      %v7279 = vadd.f32 %v7054, %v7278
      %v7280 = vpop.f32.mrb[0].mxu0
      %7281 = vmatprep.mubr.f32.mxu0 0.0
      %7282 = vmatmul.mubr.f32.gmra.mrb[0].mxu0 %v1611
      %v7283 = vpop.f32.mrb[0].mxu0
      %v7284 = vadd.f32 %v7059, %v7283
      %v7285 = vpop.f32.mrb[0].mxu0
      %7286 = vmatprep.mubr.f32.mxu0 0.0
      %7287 = vmatmul.mubr.f32.gmra.mrb[0].mxu0 %v1614
      %v7288 = vpop.f32.mrb[0].mxu0
      %v7289 = vadd.f32 %v7064, %v7288
      %v7290 = vpop.f32.mrb[0].mxu0
      %7291 = vmatprep.mubr.f32.mxu0 0.0
      %7292 = vmatmul.mubr.f32.gmra.mrb[0].mxu0 %v1617
      %v7293 = vpop.f32.mrb[0].mxu0
      %v7294 = vadd.f32 %v7069, %v7293
      %v7295 = vpop.f32.mrb[0].mxu0
      %7296 = vmatprep.mubr.f32.mxu0 0.0
      %7297 = vmatmul.mubr.f32.gmra.mrb[0].mxu0 %v1620
      %v7298 = vpop.f32.mrb[0].mxu0
      %v7299 = vadd.f32 %v7074, %v7298
      %v7300 = vpop.f32.mrb[0].mxu0
      %7301 = vmatprep.mubr.f32.mxu0 0.0
      %7302 = vmatmul.mubr.f32.gmra.mrb[0].mxu0 %v1623
      %v7303 = vpop.f32.mrb[0].mxu0
      %v7304 = vadd.f32 %v7079, %v7303
      %v7305 = vpop.f32.mrb[0].mxu0
      %7306 = vmatprep.mubr.f32.mxu0 0.0
      %7307 = vmatmul.mubr.f32.gmra.mrb[0].mxu0 %v1626
      %v7308 = vpop.f32.mrb[0].mxu0
      %v7309 = vadd.f32 %v7084, %v7308
      %v7310 = vpop.f32.mrb[0].mxu0
      %7311 = vmatprep.mubr.f32.mxu0 0.0
      %7312 = vmatmul.mubr.f32.gmra.mrb[0].mxu0 %v1629
      %v7313 = vpop.f32.mrb[0].mxu0
      %v7314 = vadd.f32 %v7089, %v7313
      %v7315 = vpop.f32.mrb[0].mxu0
      %7316 = vmatprep.mubr.f32.mxu0 0.0
      %7317 = vmatmul.mubr.f32.gmra.mrb[0].mxu0 %v1632
      %v7318 = vpop.f32.mrb[0].mxu0
      %v7319 = vadd.f32 %v7094, %v7318
      %v7320 = vpop.f32.mrb[0].mxu0
      %7321 = vmatprep.mubr.f32.mxu0 0.0
      %7322 = vmatmul.mubr.f32.gmra.mrb[0].mxu0 %v1635
      %v7323 = vpop.f32.mrb[0].mxu0
      %v7324 = vadd.f32 %v7099, %v7323
      %v7325 = vpop.f32.mrb[0].mxu0
      %7326 = vmatprep.mubr.f32.mxu0 0.0
      %7327 = vmatmul.mubr.f32.gmra.mrb[0].mxu0 %v1638
      %v7328 = vpop.f32.mrb[0].mxu0
      %v7329 = vadd.f32 %v7104, %v7328
      %v7330 = vpop.f32.mrb[0].mxu0
      %7331 = vmatprep.mubr.f32.mxu0 0.0
      %7332 = vmatmul.mubr.f32.gmra.mrb[0].mxu0 %v1641
      %v7333 = vpop.f32.mrb[0].mxu0
      %v7334 = vadd.f32 %v7109, %v7333
      %v7335 = vpop.f32.mrb[0].mxu0
      %7336 = vmatprep.mubr.f32.mxu0 0.0
      %7337 = vmatmul.mubr.f32.gmra.mrb[0].mxu0 %v1644
      %v7338 = vpop.f32.mrb[0].mxu0
      %v7339 = vadd.f32 %v7114, %v7338
      %v7340 = vpop.f32.mrb[0].mxu0
      %7341 = vmatprep.mubr.f32.mxu0 0.0
      %7342 = vmatmul.mubr.f32.gmra.mrb[0].mxu0 %v1647
      %v7343 = vpop.f32.mrb[0].mxu0
      %v7344 = vadd.f32 %v7119, %v7343
      %v7345 = vpop.f32.mrb[0].mxu0
      %7346 = vmatprep.mubr.f32.mxu0 0.0
      %7347 = vmatmul.mubr.f32.gmra.mrb[0].mxu0 %v1650
      %v7348 = vpop.f32.mrb[0].mxu0
      %v7349 = vadd.f32 %v7124, %v7348
      %v7350 = vpop.f32.mrb[0].mxu0
      %7351 = vmatprep.mubr.f32.mxu0 0.0
      %7352 = vmatmul.mubr.f32.gmra.mrb[0].mxu0 %v1653
      %v7353 = vpop.f32.mrb[0].mxu0
      %v7354 = vadd.f32 %v7129, %v7353
      %v7355 = vpop.f32.mrb[0].mxu0
      %7356 = vmatprep.mubr.f32.mxu0 0.0
      %7357 = vmatmul.mubr.f32.gmra.mrb[0].mxu0 %v1656
      %v7358 = vpop.f32.mrb[0].mxu0
      %v7359 = vadd.f32 %v7134, %v7358
      %v7360 = vpop.f32.mrb[0].mxu0
      %7361 = vmatprep.mubr.f32.mxu0 0.0
      %7362 = vmatmul.mubr.f32.gmra.mrb[0].mxu0 %v1659
      %v7363 = vpop.f32.mrb[0].mxu0
      %v7364 = vadd.f32 %v7139, %v7363
      %v7365 = vpop.f32.mrb[0].mxu0
      %7366 = vmatprep.mubr.f32.mxu0 0.0
      %7367 = vmatmul.mubr.f32.gmra.mrb[0].mxu0 %v1662
      %v7368 = vpop.f32.mrb[0].mxu0
      %v7369 = vadd.f32 %v7144, %v7368
      %v7370 = vpop.f32.mrb[0].mxu0
      %7371 = vdwg.mxu0
      %s7372 = scalar_lea.vmem %s5, 48
      %v7373 = vld [vmem:[%s7372] sm:$0xff]
      %v7375 = vsel %vm357, %v7214, 0
      %v7378 = vsel %vm357, %v7219, 0
      %v7381 = vsel %vm357, %v7224, 0
      %v7384 = vsel %vm357, %v7229, 0
      %v7387 = vsel %vm357, %v7234, 0
      %v7390 = vsel %vm357, %v7239, 0
      %v7393 = vsel %vm357, %v7244, 0
      %v7396 = vsel %vm357, %v7249, 0
      %v7399 = vsel %vm357, %v7254, 0
      %v7402 = vsel %vm357, %v7259, 0
      %v7405 = vsel %vm357, %v7264, 0
      %v7408 = vsel %vm357, %v7269, 0
      %v7411 = vsel %vm357, %v7274, 0
      %v7414 = vsel %vm357, %v7279, 0
      %v7417 = vsel %vm357, %v7284, 0
      %v7420 = vsel %vm357, %v7289, 0
      %v7423 = vsel %vm357, %v7294, 0
      %v7426 = vsel %vm357, %v7299, 0
      %v7429 = vsel %vm357, %v7304, 0
      %v7432 = vsel %vm357, %v7309, 0
      %v7435 = vsel %vm357, %v7314, 0
      %v7438 = vsel %vm357, %v7319, 0
      %v7441 = vsel %vm357, %v7324, 0
      %v7444 = vsel %vm357, %v7329, 0
      %v7447 = vsel %vm357, %v7334, 0
      %v7450 = vsel %vm357, %v7339, 0
      %v7453 = vsel %vm357, %v7344, 0
      %v7456 = vsel %vm357, %v7349, 0
      %v7459 = vsel %vm357, %v7354, 0
      %v7462 = vsel %vm357, %v7359, 0
      %v7465 = vsel %vm357, %v7364, 0
      %v7468 = vsel %vm357, %v7369, 0
      %7470 = vmatprep.subr.mxu0 0.0
      %7471 = vmatpush1.msra.mxu0 %v7373
      %7472 = vmatprep.subr.mxu0 0.0
      %7473 = vmatpush1.msra.mxu0 0.0
      %7474 = vmatprep.subr.mxu0 0.0
      %7475 = vmatpush1.msra.mxu0 0.0
      %7476 = vmatprep.subr.mxu0 0.0
      %7477 = vmatpush1.msra.mxu0 0.0
      %7478 = vmatprep.subr.mxu0 0.0
      %7479 = vmatpush1.msra.mxu0 0.0
      %7480 = vmatprep.subr.mxu0 0.0
      %7481 = vmatpush1.msra.mxu0 0.0
      %7482 = vmatprep.subr.mxu0 0.0
      %7483 = vmatpush1.msra.mxu0 0.0
      %7484 = vmatprep.subr.mxu0 0.0
      %7485 = vmatpush1.msra.mxu0 0.0
      %7486 = vmatprep.subr.mxu0 0.0
      %7487 = vmatpush1.msra.mxu0 0.0
      %7488 = vmatprep.subr.mxu0 0.0
      %7489 = vmatpush1.msra.mxu0 0.0
      %7490 = vmatprep.subr.mxu0 0.0
      %7491 = vmatpush1.msra.mxu0 0.0
      %7492 = vmatprep.subr.mxu0 0.0
      %7493 = vmatpush1.msra.mxu0 0.0
      %7494 = vmatprep.subr.mxu0 0.0
      %7495 = vmatpush1.msra.mxu0 0.0
      %7496 = vmatprep.subr.mxu0 0.0
      %7497 = vmatpush1.msra.mxu0 0.0
      %7498 = vmatprep.subr.mxu0 0.0
      %7499 = vmatpush1.msra.mxu0 0.0
      %7500 = vmatprep.subr.mxu0 0.0
      %7501 = vmatpush1.msra.mxu0 0.0
      %7502 = vmatprep.subr.mxu0 0.0
      %7503 = vmatpush1.msra.mxu0 0.0
      %7504 = vmatprep.subr.mxu0 0.0
      %7505 = vmatpush1.msra.mxu0 0.0
      %7506 = vmatprep.subr.mxu0 0.0
      %7507 = vmatpush1.msra.mxu0 0.0
      %7508 = vmatprep.subr.mxu0 0.0
      %7509 = vmatpush1.msra.mxu0 0.0
      %7510 = vmatprep.subr.mxu0 0.0
      %7511 = vmatpush1.msra.mxu0 0.0
      %7512 = vmatprep.subr.mxu0 0.0
      %7513 = vmatpush1.msra.mxu0 0.0
      %7514 = vmatprep.subr.mxu0 0.0
      %7515 = vmatpush1.msra.mxu0 0.0
      %7516 = vmatprep.subr.mxu0 0.0
      %7517 = vmatpush1.msra.mxu0 0.0
      %7518 = vmatprep.subr.mxu0 0.0
      %7519 = vmatpush1.msra.mxu0 0.0
      %7520 = vmatprep.subr.mxu0 0.0
      %7521 = vmatpush1.msra.mxu0 0.0
      %7522 = vmatprep.subr.mxu0 0.0
      %7523 = vmatpush1.msra.mxu0 0.0
      %7524 = vmatprep.subr.mxu0 0.0
      %7525 = vmatpush1.msra.mxu0 0.0
      %7526 = vmatprep.subr.mxu0 0.0
      %7527 = vmatpush1.msra.mxu0 0.0
      %7528 = vmatprep.subr.mxu0 0.0
      %7529 = vmatpush1.msra.mxu0 0.0
      %7530 = vmatprep.subr.mxu0 0.0
      %7531 = vmatpush1.msra.mxu0 0.0
      %7532 = vmatprep.subr.mxu0 0.0
      %7533 = vmatpush1.msra.mxu0 0.0
      %7534 = vmatprep.mubr.f32.mxu0 0.0
      %7535 = vmatmul.mubr.f32.gmra.mrb[0].mxu0 %v7375
      %v7536 = vpop.f32.mrb[0].mxu0
      %v7537 = vadd.f32 0.0, %v7536
      %v7538 = vpop.f32.mrb[0].mxu0
      %7539 = vmatprep.mubr.f32.mxu0 0.0
      %7540 = vmatmul.mubr.f32.gmra.mrb[0].mxu0 %v7378
      %v7541 = vpop.f32.mrb[0].mxu0
      %v7542 = vadd.f32 0.0, %v7541
      %v7543 = vpop.f32.mrb[0].mxu0
      %7544 = vmatprep.mubr.f32.mxu0 0.0
      %7545 = vmatmul.mubr.f32.gmra.mrb[0].mxu0 %v7381
      %v7546 = vpop.f32.mrb[0].mxu0
      %v7547 = vadd.f32 0.0, %v7546
      %v7548 = vpop.f32.mrb[0].mxu0
      %7549 = vmatprep.mubr.f32.mxu0 0.0
      %7550 = vmatmul.mubr.f32.gmra.mrb[0].mxu0 %v7384
      %v7551 = vpop.f32.mrb[0].mxu0
      %v7552 = vadd.f32 0.0, %v7551
      %v7553 = vpop.f32.mrb[0].mxu0
      %7554 = vmatprep.mubr.f32.mxu0 0.0
      %7555 = vmatmul.mubr.f32.gmra.mrb[0].mxu0 %v7387
      %v7556 = vpop.f32.mrb[0].mxu0
      %v7557 = vadd.f32 0.0, %v7556
      %v7558 = vpop.f32.mrb[0].mxu0
      %7559 = vmatprep.mubr.f32.mxu0 0.0
      %7560 = vmatmul.mubr.f32.gmra.mrb[0].mxu0 %v7390
      %v7561 = vpop.f32.mrb[0].mxu0
      %v7562 = vadd.f32 0.0, %v7561
      %v7563 = vpop.f32.mrb[0].mxu0
      %7564 = vmatprep.mubr.f32.mxu0 0.0
      %7565 = vmatmul.mubr.f32.gmra.mrb[0].mxu0 %v7393
      %v7566 = vpop.f32.mrb[0].mxu0
      %v7567 = vadd.f32 0.0, %v7566
      %v7568 = vpop.f32.mrb[0].mxu0
      %7569 = vmatprep.mubr.f32.mxu0 0.0
      %7570 = vmatmul.mubr.f32.gmra.mrb[0].mxu0 %v7396
      %v7571 = vpop.f32.mrb[0].mxu0
      %v7572 = vadd.f32 0.0, %v7571
      %v7573 = vpop.f32.mrb[0].mxu0
      %7574 = vmatprep.mubr.f32.mxu0 0.0
      %7575 = vmatmul.mubr.f32.gmra.mrb[0].mxu0 %v7399
      %v7576 = vpop.f32.mrb[0].mxu0
      %v7577 = vadd.f32 0.0, %v7576
      %v7578 = vpop.f32.mrb[0].mxu0
      %7579 = vmatprep.mubr.f32.mxu0 0.0
      %7580 = vmatmul.mubr.f32.gmra.mrb[0].mxu0 %v7402
      %v7581 = vpop.f32.mrb[0].mxu0
      %v7582 = vadd.f32 0.0, %v7581
      %v7583 = vpop.f32.mrb[0].mxu0
      %7584 = vmatprep.mubr.f32.mxu0 0.0
      %7585 = vmatmul.mubr.f32.gmra.mrb[0].mxu0 %v7405
      %v7586 = vpop.f32.mrb[0].mxu0
      %v7587 = vadd.f32 0.0, %v7586
      %v7588 = vpop.f32.mrb[0].mxu0
      %7589 = vmatprep.mubr.f32.mxu0 0.0
      %7590 = vmatmul.mubr.f32.gmra.mrb[0].mxu0 %v7408
      %v7591 = vpop.f32.mrb[0].mxu0
      %v7592 = vadd.f32 0.0, %v7591
      %v7593 = vpop.f32.mrb[0].mxu0
      %7594 = vmatprep.mubr.f32.mxu0 0.0
      %7595 = vmatmul.mubr.f32.gmra.mrb[0].mxu0 %v7411
      %v7596 = vpop.f32.mrb[0].mxu0
      %v7597 = vadd.f32 0.0, %v7596
      %v7598 = vpop.f32.mrb[0].mxu0
      %7599 = vmatprep.mubr.f32.mxu0 0.0
      %7600 = vmatmul.mubr.f32.gmra.mrb[0].mxu0 %v7414
      %v7601 = vpop.f32.mrb[0].mxu0
      %v7602 = vadd.f32 0.0, %v7601
      %v7603 = vpop.f32.mrb[0].mxu0
      %7604 = vmatprep.mubr.f32.mxu0 0.0
      %7605 = vmatmul.mubr.f32.gmra.mrb[0].mxu0 %v7417
      %v7606 = vpop.f32.mrb[0].mxu0
      %v7607 = vadd.f32 0.0, %v7606
      %v7608 = vpop.f32.mrb[0].mxu0
      %7609 = vmatprep.mubr.f32.mxu0 0.0
      %7610 = vmatmul.mubr.f32.gmra.mrb[0].mxu0 %v7420
      %v7611 = vpop.f32.mrb[0].mxu0
      %v7612 = vadd.f32 0.0, %v7611
      %v7613 = vpop.f32.mrb[0].mxu0
      %7614 = vmatprep.mubr.f32.mxu0 0.0
      %7615 = vmatmul.mubr.f32.gmra.mrb[0].mxu0 %v7423
      %v7616 = vpop.f32.mrb[0].mxu0
      %v7617 = vadd.f32 0.0, %v7616
      %v7618 = vpop.f32.mrb[0].mxu0
      %7619 = vmatprep.mubr.f32.mxu0 0.0
      %7620 = vmatmul.mubr.f32.gmra.mrb[0].mxu0 %v7426
      %v7621 = vpop.f32.mrb[0].mxu0
      %v7622 = vadd.f32 0.0, %v7621
      %v7623 = vpop.f32.mrb[0].mxu0
      %7624 = vmatprep.mubr.f32.mxu0 0.0
      %7625 = vmatmul.mubr.f32.gmra.mrb[0].mxu0 %v7429
      %v7626 = vpop.f32.mrb[0].mxu0
      %v7627 = vadd.f32 0.0, %v7626
      %v7628 = vpop.f32.mrb[0].mxu0
      %7629 = vmatprep.mubr.f32.mxu0 0.0
      %7630 = vmatmul.mubr.f32.gmra.mrb[0].mxu0 %v7432
      %v7631 = vpop.f32.mrb[0].mxu0
      %v7632 = vadd.f32 0.0, %v7631
      %v7633 = vpop.f32.mrb[0].mxu0
      %7634 = vmatprep.mubr.f32.mxu0 0.0
      %7635 = vmatmul.mubr.f32.gmra.mrb[0].mxu0 %v7435
      %v7636 = vpop.f32.mrb[0].mxu0
      %v7637 = vadd.f32 0.0, %v7636
      %v7638 = vpop.f32.mrb[0].mxu0
      %7639 = vmatprep.mubr.f32.mxu0 0.0
      %7640 = vmatmul.mubr.f32.gmra.mrb[0].mxu0 %v7438
      %v7641 = vpop.f32.mrb[0].mxu0
      %v7642 = vadd.f32 0.0, %v7641
      %v7643 = vpop.f32.mrb[0].mxu0
      %7644 = vmatprep.mubr.f32.mxu0 0.0
      %7645 = vmatmul.mubr.f32.gmra.mrb[0].mxu0 %v7441
      %v7646 = vpop.f32.mrb[0].mxu0
      %v7647 = vadd.f32 0.0, %v7646
      %v7648 = vpop.f32.mrb[0].mxu0
      %7649 = vmatprep.mubr.f32.mxu0 0.0
      %7650 = vmatmul.mubr.f32.gmra.mrb[0].mxu0 %v7444
      %v7651 = vpop.f32.mrb[0].mxu0
      %v7652 = vadd.f32 0.0, %v7651
      %v7653 = vpop.f32.mrb[0].mxu0
      %7654 = vmatprep.mubr.f32.mxu0 0.0
      %7655 = vmatmul.mubr.f32.gmra.mrb[0].mxu0 %v7447
      %v7656 = vpop.f32.mrb[0].mxu0
      %v7657 = vadd.f32 0.0, %v7656
      %v7658 = vpop.f32.mrb[0].mxu0
      %7659 = vmatprep.mubr.f32.mxu0 0.0
      %7660 = vmatmul.mubr.f32.gmra.mrb[0].mxu0 %v7450
      %v7661 = vpop.f32.mrb[0].mxu0
      %v7662 = vadd.f32 0.0, %v7661
      %v7663 = vpop.f32.mrb[0].mxu0
      %7664 = vmatprep.mubr.f32.mxu0 0.0
      %7665 = vmatmul.mubr.f32.gmra.mrb[0].mxu0 %v7453
      %v7666 = vpop.f32.mrb[0].mxu0
      %v7667 = vadd.f32 0.0, %v7666
      %v7668 = vpop.f32.mrb[0].mxu0
      %7669 = vmatprep.mubr.f32.mxu0 0.0
      %7670 = vmatmul.mubr.f32.gmra.mrb[0].mxu0 %v7456
      %v7671 = vpop.f32.mrb[0].mxu0
      %v7672 = vadd.f32 0.0, %v7671
      %v7673 = vpop.f32.mrb[0].mxu0
      %7674 = vmatprep.mubr.f32.mxu0 0.0
      %7675 = vmatmul.mubr.f32.gmra.mrb[0].mxu0 %v7459
      %v7676 = vpop.f32.mrb[0].mxu0
      %v7677 = vadd.f32 0.0, %v7676
      %v7678 = vpop.f32.mrb[0].mxu0
      %7679 = vmatprep.mubr.f32.mxu0 0.0
      %7680 = vmatmul.mubr.f32.gmra.mrb[0].mxu0 %v7462
      %v7681 = vpop.f32.mrb[0].mxu0
      %v7682 = vadd.f32 0.0, %v7681
      %v7683 = vpop.f32.mrb[0].mxu0
      %7684 = vmatprep.mubr.f32.mxu0 0.0
      %7685 = vmatmul.mubr.f32.gmra.mrb[0].mxu0 %v7465
      %v7686 = vpop.f32.mrb[0].mxu0
      %v7687 = vadd.f32 0.0, %v7686
      %v7688 = vpop.f32.mrb[0].mxu0
      %7689 = vmatprep.mubr.f32.mxu0 0.0
      %7690 = vmatmul.mubr.f32.gmra.mrb[0].mxu0 %v7468
      %v7691 = vpop.f32.mrb[0].mxu0
      %v7692 = vadd.f32 0.0, %v7691
      %v7693 = vpop.f32.mrb[0].mxu0
      %7694 = vdwg.mxu0
      %v7695 = vadd.f32 %v6882, %v7537
      %v7696 = vadd.f32 %v6883, %v7542
      %v7697 = vadd.f32 %v6884, %v7547
      %v7698 = vadd.f32 %v6885, %v7552
      %v7699 = vadd.f32 %v6886, %v7557
      %v7700 = vadd.f32 %v6887, %v7562
      %v7701 = vadd.f32 %v6888, %v7567
      %v7702 = vadd.f32 %v6889, %v7572
      %v7703 = vadd.f32 %v6890, %v7577
      %v7704 = vadd.f32 %v6891, %v7582
      %v7705 = vadd.f32 %v6892, %v7587
      %v7706 = vadd.f32 %v6893, %v7592
      %v7707 = vadd.f32 %v6894, %v7597
      %v7708 = vadd.f32 %v6895, %v7602
      %v7709 = vadd.f32 %v6896, %v7607
      %v7710 = vadd.f32 %v6897, %v7612
      %v7711 = vadd.f32 %v6898, %v7617
      %v7712 = vadd.f32 %v6899, %v7622
      %v7713 = vadd.f32 %v6900, %v7627
      %v7714 = vadd.f32 %v6901, %v7632
      %v7715 = vadd.f32 %v6902, %v7637
      %v7716 = vadd.f32 %v6903, %v7642
      %v7717 = vadd.f32 %v6904, %v7647
      %v7718 = vadd.f32 %v6905, %v7652
      %v7719 = vadd.f32 %v6906, %v7657
      %v7720 = vadd.f32 %v6907, %v7662
      %v7721 = vadd.f32 %v6908, %v7667
      %v7722 = vadd.f32 %v6909, %v7672
      %v7723 = vadd.f32 %v6910, %v7677
      %v7724 = vadd.f32 %v6911, %v7682
      %v7725 = vadd.f32 %v6912, %v7687
      %v7726 = vadd.f32 %v6913, %v7692
      %vm7727 = vcmask 1042432
      %v7728 = vrot.slane %v1434, 5
      %v7729 = vrot.slane %v1435, 5
      %v7730 = vsel %vm7727, %v7728, %v7729
      %v7731 = vrot.slane %v1436, 5
      %v7732 = vsel %vm7727, %v7729, %v7731
      %v7733 = vrot.slane %v1437, 5
      %v7734 = vsel %vm7727, %v7731, %v7733
      %v7735 = vrot.slane %v1438, 5
      %v7736 = vsel %vm7727, %v7733, %v7735
      %v7737 = vrot.slane %v1439, 5
      %v7738 = vsel %vm7727, %v7735, %v7737
      %v7739 = vrot.slane %v1440, 5
      %v7740 = vsel %vm7727, %v7737, %v7739
      %v7741 = vrot.slane %v1441, 5
      %v7742 = vsel %vm7727, %v7739, %v7741
      %v7743 = vrot.slane %v1442, 5
      %v7744 = vsel %vm7727, %v7741, %v7743
      %v7745 = vrot.slane %v1443, 5
      %v7746 = vsel %vm7727, %v7743, %v7745
      %v7747 = vrot.slane %v1444, 5
      %v7748 = vsel %vm7727, %v7745, %v7747
      %v7749 = vrot.slane %v1445, 5
      %v7750 = vsel %vm7727, %v7747, %v7749
      %v7751 = vrot.slane %v1446, 5
      %v7752 = vsel %vm7727, %v7749, %v7751
      %v7753 = vrot.slane %v1447, 5
      %v7754 = vsel %vm7727, %v7751, %v7753
      %v7755 = vrot.slane %v1448, 5
      %v7756 = vsel %vm7727, %v7753, %v7755
      %v7757 = vrot.slane %v1449, 5
      %v7758 = vsel %vm7727, %v7755, %v7757
      %v7759 = vrot.slane %v1450, 5
      %v7760 = vsel %vm7727, %v7757, %v7759
      %v7761 = vrot.slane %v1451, 5
      %v7762 = vsel %vm7727, %v7759, %v7761
      %v7763 = vrot.slane %v1452, 5
      %v7764 = vsel %vm7727, %v7761, %v7763
      %v7765 = vrot.slane %v1453, 5
      %v7766 = vsel %vm7727, %v7763, %v7765
      %v7767 = vrot.slane %v1454, 5
      %v7768 = vsel %vm7727, %v7765, %v7767
      %v7769 = vrot.slane %v1455, 5
      %v7770 = vsel %vm7727, %v7767, %v7769
      %v7771 = vrot.slane %v1456, 5
      %v7772 = vsel %vm7727, %v7769, %v7771
      %v7773 = vrot.slane %v1457, 5
      %v7774 = vsel %vm7727, %v7771, %v7773
      %v7775 = vrot.slane %v1458, 5
      %v7776 = vsel %vm7727, %v7773, %v7775
      %v7777 = vrot.slane %v1459, 5
      %v7778 = vsel %vm7727, %v7775, %v7777
      %v7779 = vrot.slane %v1460, 5
      %v7780 = vsel %vm7727, %v7777, %v7779
      %v7781 = vrot.slane %v1461, 5
      %v7782 = vsel %vm7727, %v7779, %v7781
      %v7783 = vrot.slane %v1462, 5
      %v7784 = vsel %vm7727, %v7781, %v7783
      %v7785 = vrot.slane %v1463, 5
      %v7786 = vsel %vm7727, %v7783, %v7785
      %v7787 = vrot.slane %v1464, 5
      %v7788 = vsel %vm7727, %v7785, %v7787
      %v7789 = vrot.slane %v1465, 5
      %v7790 = vsel %vm7727, %v7787, %v7789
      %v7791 = vrot.slane %v1466, 5
      %v7792 = vsel %vm7727, %v7789, %v7791
      %v7793 = vrot.slane %v1467, 5
      %v7794 = vsel %vm7727, %v7791, %v7793
      %v7795 = vrot.slane %v1468, 5
      %v7796 = vsel %vm7727, %v7793, %v7795
      %v7797 = vrot.slane %v1469, 5
      %v7798 = vsel %vm7727, %v7795, %v7797
      %v7799 = vrot.slane %v1470, 5
      %v7800 = vsel %vm7727, %v7797, %v7799
      %7837 = vmatprep.subr.mxu0 0.0
      %7838 = vmatpush1.msra.mxu0 %v7730
      %7839 = vmatprep.subr.mxu0 0.0
      %7840 = vmatpush1.msra.mxu0 %v7732
      %7841 = vmatprep.subr.mxu0 0.0
      %7842 = vmatpush1.msra.mxu0 %v7734
      %7843 = vmatprep.subr.mxu0 0.0
      %7844 = vmatpush1.msra.mxu0 %v7736
      %7845 = vmatprep.subr.mxu0 0.0
      %7846 = vmatpush1.msra.mxu0 %v7738
      %7847 = vmatprep.subr.mxu0 0.0
      %7848 = vmatpush1.msra.mxu0 %v7740
      %7849 = vmatprep.subr.mxu0 0.0
      %7850 = vmatpush1.msra.mxu0 %v7742
      %7851 = vmatprep.subr.mxu0 0.0
      %7852 = vmatpush1.msra.mxu0 %v7744
      %7853 = vmatprep.subr.mxu0 0.0
      %7854 = vmatpush1.msra.mxu0 %v7746
      %7855 = vmatprep.subr.mxu0 0.0
      %7856 = vmatpush1.msra.mxu0 %v7748
      %7857 = vmatprep.subr.mxu0 0.0
      %7858 = vmatpush1.msra.mxu0 %v7750
      %7859 = vmatprep.subr.mxu0 0.0
      %7860 = vmatpush1.msra.mxu0 %v7752
      %7861 = vmatprep.subr.mxu0 0.0
      %7862 = vmatpush1.msra.mxu0 %v7754
      %7863 = vmatprep.subr.mxu0 0.0
      %7864 = vmatpush1.msra.mxu0 %v7756
      %7865 = vmatprep.subr.mxu0 0.0
      %7866 = vmatpush1.msra.mxu0 %v7758
      %7867 = vmatprep.subr.mxu0 0.0
      %7868 = vmatpush1.msra.mxu0 %v7760
      %7869 = vmatprep.subr.mxu0 0.0
      %7870 = vmatpush1.msra.mxu0 %v7762
      %7871 = vmatprep.subr.mxu0 0.0
      %7872 = vmatpush1.msra.mxu0 %v7764
      %7873 = vmatprep.subr.mxu0 0.0
      %7874 = vmatpush1.msra.mxu0 %v7766
      %7875 = vmatprep.subr.mxu0 0.0
      %7876 = vmatpush1.msra.mxu0 %v7768
      %7877 = vmatprep.subr.mxu0 0.0
      %7878 = vmatpush1.msra.mxu0 %v7770
      %7879 = vmatprep.subr.mxu0 0.0
      %7880 = vmatpush1.msra.mxu0 %v7772
      %7881 = vmatprep.subr.mxu0 0.0
      %7882 = vmatpush1.msra.mxu0 %v7774
      %7883 = vmatprep.subr.mxu0 0.0
      %7884 = vmatpush1.msra.mxu0 %v7776
      %7885 = vmatprep.subr.mxu0 0.0
      %7886 = vmatpush1.msra.mxu0 %v7778
      %7887 = vmatprep.subr.mxu0 0.0
      %7888 = vmatpush1.msra.mxu0 %v7780
      %7889 = vmatprep.subr.mxu0 0.0
      %7890 = vmatpush1.msra.mxu0 %v7782
      %7891 = vmatprep.subr.mxu0 0.0
      %7892 = vmatpush1.msra.mxu0 %v7784
      %7893 = vmatprep.subr.mxu0 0.0
      %7894 = vmatpush1.msra.mxu0 %v7786
      %7895 = vmatprep.subr.mxu0 0.0
      %7896 = vmatpush1.msra.mxu0 %v7788
      %7897 = vmatprep.subr.mxu0 0.0
      %7898 = vmatpush1.msra.mxu0 %v7790
      %7899 = vmatprep.subr.mxu0 0.0
      %7900 = vmatpush1.msra.mxu0 %v7792
      %7901 = vmatprep.mubr.f32.mxu0 %v1472
      %7902 = vmatmul.mubr.f32.gmra.mrb[0].mxu0 %v1471
      %v7903 = vpop.f32.mrb[0].mxu0
      %v7904 = vadd.f32 0.0, %v7903
      %v7905 = vpop.f32.mrb[0].mxu0
      %7906 = vmatprep.mubr.f32.mxu0 %v1475
      %7907 = vmatmul.mubr.f32.gmra.mrb[0].mxu0 %v1474
      %v7908 = vpop.f32.mrb[0].mxu0
      %v7909 = vadd.f32 0.0, %v7908
      %v7910 = vpop.f32.mrb[0].mxu0
      %7911 = vmatprep.mubr.f32.mxu0 %v1478
      %7912 = vmatmul.mubr.f32.gmra.mrb[0].mxu0 %v1477
      %v7913 = vpop.f32.mrb[0].mxu0
      %v7914 = vadd.f32 0.0, %v7913
      %v7915 = vpop.f32.mrb[0].mxu0
      %7916 = vmatprep.mubr.f32.mxu0 %v1481
      %7917 = vmatmul.mubr.f32.gmra.mrb[0].mxu0 %v1480
      %v7918 = vpop.f32.mrb[0].mxu0
      %v7919 = vadd.f32 0.0, %v7918
      %v7920 = vpop.f32.mrb[0].mxu0
      %7921 = vmatprep.mubr.f32.mxu0 %v1484
      %7922 = vmatmul.mubr.f32.gmra.mrb[0].mxu0 %v1483
      %v7923 = vpop.f32.mrb[0].mxu0
      %v7924 = vadd.f32 0.0, %v7923
      %v7925 = vpop.f32.mrb[0].mxu0
      %7926 = vmatprep.mubr.f32.mxu0 %v1487
      %7927 = vmatmul.mubr.f32.gmra.mrb[0].mxu0 %v1486
      %v7928 = vpop.f32.mrb[0].mxu0
      %v7929 = vadd.f32 0.0, %v7928
      %v7930 = vpop.f32.mrb[0].mxu0
      %7931 = vmatprep.mubr.f32.mxu0 %v1490
      %7932 = vmatmul.mubr.f32.gmra.mrb[0].mxu0 %v1489
      %v7933 = vpop.f32.mrb[0].mxu0
      %v7934 = vadd.f32 0.0, %v7933
      %v7935 = vpop.f32.mrb[0].mxu0
      %7936 = vmatprep.mubr.f32.mxu0 %v1493
      %7937 = vmatmul.mubr.f32.gmra.mrb[0].mxu0 %v1492
      %v7938 = vpop.f32.mrb[0].mxu0
      %v7939 = vadd.f32 0.0, %v7938
      %v7940 = vpop.f32.mrb[0].mxu0
      %7941 = vmatprep.mubr.f32.mxu0 %v1496
      %7942 = vmatmul.mubr.f32.gmra.mrb[0].mxu0 %v1495
      %v7943 = vpop.f32.mrb[0].mxu0
      %v7944 = vadd.f32 0.0, %v7943
      %v7945 = vpop.f32.mrb[0].mxu0
      %7946 = vmatprep.mubr.f32.mxu0 %v1499
      %7947 = vmatmul.mubr.f32.gmra.mrb[0].mxu0 %v1498
      %v7948 = vpop.f32.mrb[0].mxu0
      %v7949 = vadd.f32 0.0, %v7948
      %v7950 = vpop.f32.mrb[0].mxu0
      %7951 = vmatprep.mubr.f32.mxu0 %v1502
      %7952 = vmatmul.mubr.f32.gmra.mrb[0].mxu0 %v1501
      %v7953 = vpop.f32.mrb[0].mxu0
      %v7954 = vadd.f32 0.0, %v7953
      %v7955 = vpop.f32.mrb[0].mxu0
      %7956 = vmatprep.mubr.f32.mxu0 %v1505
      %7957 = vmatmul.mubr.f32.gmra.mrb[0].mxu0 %v1504
      %v7958 = vpop.f32.mrb[0].mxu0
      %v7959 = vadd.f32 0.0, %v7958
      %v7960 = vpop.f32.mrb[0].mxu0
      %7961 = vmatprep.mubr.f32.mxu0 %v1508
      %7962 = vmatmul.mubr.f32.gmra.mrb[0].mxu0 %v1507
      %v7963 = vpop.f32.mrb[0].mxu0
      %v7964 = vadd.f32 0.0, %v7963
      %v7965 = vpop.f32.mrb[0].mxu0
      %7966 = vmatprep.mubr.f32.mxu0 %v1511
      %7967 = vmatmul.mubr.f32.gmra.mrb[0].mxu0 %v1510
      %v7968 = vpop.f32.mrb[0].mxu0
      %v7969 = vadd.f32 0.0, %v7968
      %v7970 = vpop.f32.mrb[0].mxu0
      %7971 = vmatprep.mubr.f32.mxu0 %v1514
      %7972 = vmatmul.mubr.f32.gmra.mrb[0].mxu0 %v1513
      %v7973 = vpop.f32.mrb[0].mxu0
      %v7974 = vadd.f32 0.0, %v7973
      %v7975 = vpop.f32.mrb[0].mxu0
      %7976 = vmatprep.mubr.f32.mxu0 %v1517
      %7977 = vmatmul.mubr.f32.gmra.mrb[0].mxu0 %v1516
      %v7978 = vpop.f32.mrb[0].mxu0
      %v7979 = vadd.f32 0.0, %v7978
      %v7980 = vpop.f32.mrb[0].mxu0
      %7981 = vmatprep.mubr.f32.mxu0 %v1520
      %7982 = vmatmul.mubr.f32.gmra.mrb[0].mxu0 %v1519
      %v7983 = vpop.f32.mrb[0].mxu0
      %v7984 = vadd.f32 0.0, %v7983
      %v7985 = vpop.f32.mrb[0].mxu0
      %7986 = vmatprep.mubr.f32.mxu0 %v1523
      %7987 = vmatmul.mubr.f32.gmra.mrb[0].mxu0 %v1522
      %v7988 = vpop.f32.mrb[0].mxu0
      %v7989 = vadd.f32 0.0, %v7988
      %v7990 = vpop.f32.mrb[0].mxu0
      %7991 = vmatprep.mubr.f32.mxu0 %v1526
      %7992 = vmatmul.mubr.f32.gmra.mrb[0].mxu0 %v1525
      %v7993 = vpop.f32.mrb[0].mxu0
      %v7994 = vadd.f32 0.0, %v7993
      %v7995 = vpop.f32.mrb[0].mxu0
      %7996 = vmatprep.mubr.f32.mxu0 %v1529
      %7997 = vmatmul.mubr.f32.gmra.mrb[0].mxu0 %v1528
      %v7998 = vpop.f32.mrb[0].mxu0
      %v7999 = vadd.f32 0.0, %v7998
      %v8000 = vpop.f32.mrb[0].mxu0
      %8001 = vmatprep.mubr.f32.mxu0 %v1532
      %8002 = vmatmul.mubr.f32.gmra.mrb[0].mxu0 %v1531
      %v8003 = vpop.f32.mrb[0].mxu0
      %v8004 = vadd.f32 0.0, %v8003
      %v8005 = vpop.f32.mrb[0].mxu0
      %8006 = vmatprep.mubr.f32.mxu0 %v1535
      %8007 = vmatmul.mubr.f32.gmra.mrb[0].mxu0 %v1534
      %v8008 = vpop.f32.mrb[0].mxu0
      %v8009 = vadd.f32 0.0, %v8008
      %v8010 = vpop.f32.mrb[0].mxu0
      %8011 = vmatprep.mubr.f32.mxu0 %v1538
      %8012 = vmatmul.mubr.f32.gmra.mrb[0].mxu0 %v1537
      %v8013 = vpop.f32.mrb[0].mxu0
      %v8014 = vadd.f32 0.0, %v8013
      %v8015 = vpop.f32.mrb[0].mxu0
      %8016 = vmatprep.mubr.f32.mxu0 %v1541
      %8017 = vmatmul.mubr.f32.gmra.mrb[0].mxu0 %v1540
      %v8018 = vpop.f32.mrb[0].mxu0
      %v8019 = vadd.f32 0.0, %v8018
      %v8020 = vpop.f32.mrb[0].mxu0
      %8021 = vmatprep.mubr.f32.mxu0 %v1544
      %8022 = vmatmul.mubr.f32.gmra.mrb[0].mxu0 %v1543
      %v8023 = vpop.f32.mrb[0].mxu0
      %v8024 = vadd.f32 0.0, %v8023
      %v8025 = vpop.f32.mrb[0].mxu0
      %8026 = vmatprep.mubr.f32.mxu0 %v1547
      %8027 = vmatmul.mubr.f32.gmra.mrb[0].mxu0 %v1546
      %v8028 = vpop.f32.mrb[0].mxu0
      %v8029 = vadd.f32 0.0, %v8028
      %v8030 = vpop.f32.mrb[0].mxu0
      %8031 = vmatprep.mubr.f32.mxu0 %v1550
      %8032 = vmatmul.mubr.f32.gmra.mrb[0].mxu0 %v1549
      %v8033 = vpop.f32.mrb[0].mxu0
      %v8034 = vadd.f32 0.0, %v8033
      %v8035 = vpop.f32.mrb[0].mxu0
      %8036 = vmatprep.mubr.f32.mxu0 %v1553
      %8037 = vmatmul.mubr.f32.gmra.mrb[0].mxu0 %v1552
      %v8038 = vpop.f32.mrb[0].mxu0
      %v8039 = vadd.f32 0.0, %v8038
      %v8040 = vpop.f32.mrb[0].mxu0
      %8041 = vmatprep.mubr.f32.mxu0 %v1556
      %8042 = vmatmul.mubr.f32.gmra.mrb[0].mxu0 %v1555
      %v8043 = vpop.f32.mrb[0].mxu0
      %v8044 = vadd.f32 0.0, %v8043
      %v8045 = vpop.f32.mrb[0].mxu0
      %8046 = vmatprep.mubr.f32.mxu0 %v1559
      %8047 = vmatmul.mubr.f32.gmra.mrb[0].mxu0 %v1558
      %v8048 = vpop.f32.mrb[0].mxu0
      %v8049 = vadd.f32 0.0, %v8048
      %v8050 = vpop.f32.mrb[0].mxu0
      %8051 = vmatprep.mubr.f32.mxu0 %v1562
      %8052 = vmatmul.mubr.f32.gmra.mrb[0].mxu0 %v1561
      %v8053 = vpop.f32.mrb[0].mxu0
      %v8054 = vadd.f32 0.0, %v8053
      %v8055 = vpop.f32.mrb[0].mxu0
      %8056 = vmatprep.mubr.f32.mxu0 %v1565
      %8057 = vmatmul.mubr.f32.gmra.mrb[0].mxu0 %v1564
      %v8058 = vpop.f32.mrb[0].mxu0
      %v8059 = vadd.f32 0.0, %v8058
      %v8060 = vpop.f32.mrb[0].mxu0
      %8061 = vdwg.mxu0
      %8062 = vmatprep.subr.mxu0 0.0
      %8063 = vmatpush1.msra.mxu0 %v7794
      %8064 = vmatprep.subr.mxu0 0.0
      %8065 = vmatpush1.msra.mxu0 %v7796
      %8066 = vmatprep.subr.mxu0 0.0
      %8067 = vmatpush1.msra.mxu0 %v7798
      %8068 = vmatprep.subr.mxu0 0.0
      %8069 = vmatpush1.msra.mxu0 %v7800
      %8070 = vmatprep.subr.mxu0 0.0
      %8071 = vmatpush1.msra.mxu0 0.0
      %8072 = vmatprep.subr.mxu0 0.0
      %8073 = vmatpush1.msra.mxu0 0.0
      %8074 = vmatprep.subr.mxu0 0.0
      %8075 = vmatpush1.msra.mxu0 0.0
      %8076 = vmatprep.subr.mxu0 0.0
      %8077 = vmatpush1.msra.mxu0 0.0
      %8078 = vmatprep.subr.mxu0 0.0
      %8079 = vmatpush1.msra.mxu0 0.0
      %8080 = vmatprep.subr.mxu0 0.0
      %8081 = vmatpush1.msra.mxu0 0.0
      %8082 = vmatprep.subr.mxu0 0.0
      %8083 = vmatpush1.msra.mxu0 0.0
      %8084 = vmatprep.subr.mxu0 0.0
      %8085 = vmatpush1.msra.mxu0 0.0
      %8086 = vmatprep.subr.mxu0 0.0
      %8087 = vmatpush1.msra.mxu0 0.0
      %8088 = vmatprep.subr.mxu0 0.0
      %8089 = vmatpush1.msra.mxu0 0.0
      %8090 = vmatprep.subr.mxu0 0.0
      %8091 = vmatpush1.msra.mxu0 0.0
      %8092 = vmatprep.subr.mxu0 0.0
      %8093 = vmatpush1.msra.mxu0 0.0
      %8094 = vmatprep.subr.mxu0 0.0
      %8095 = vmatpush1.msra.mxu0 0.0
      %8096 = vmatprep.subr.mxu0 0.0
      %8097 = vmatpush1.msra.mxu0 0.0
      %8098 = vmatprep.subr.mxu0 0.0
      %8099 = vmatpush1.msra.mxu0 0.0
      %8100 = vmatprep.subr.mxu0 0.0
      %8101 = vmatpush1.msra.mxu0 0.0
      %8102 = vmatprep.subr.mxu0 0.0
      %8103 = vmatpush1.msra.mxu0 0.0
      %8104 = vmatprep.subr.mxu0 0.0
      %8105 = vmatpush1.msra.mxu0 0.0
      %8106 = vmatprep.subr.mxu0 0.0
      %8107 = vmatpush1.msra.mxu0 0.0
      %8108 = vmatprep.subr.mxu0 0.0
      %8109 = vmatpush1.msra.mxu0 0.0
      %8110 = vmatprep.subr.mxu0 0.0
      %8111 = vmatpush1.msra.mxu0 0.0
      %8112 = vmatprep.subr.mxu0 0.0
      %8113 = vmatpush1.msra.mxu0 0.0
      %8114 = vmatprep.subr.mxu0 0.0
      %8115 = vmatpush1.msra.mxu0 0.0
      %8116 = vmatprep.subr.mxu0 0.0
      %8117 = vmatpush1.msra.mxu0 0.0
      %8118 = vmatprep.subr.mxu0 0.0
      %8119 = vmatpush1.msra.mxu0 0.0
      %8120 = vmatprep.subr.mxu0 0.0
      %8121 = vmatpush1.msra.mxu0 0.0
      %8122 = vmatprep.subr.mxu0 0.0
      %8123 = vmatpush1.msra.mxu0 0.0
      %8124 = vmatprep.subr.mxu0 0.0
      %8125 = vmatpush1.msra.mxu0 0.0
      %8126 = vmatprep.mubr.f32.mxu0 0.0
      %8127 = vmatmul.mubr.f32.gmra.mrb[0].mxu0 %v1569
      %v8128 = vpop.f32.mrb[0].mxu0
      %v8129 = vadd.f32 %v7904, %v8128
      %v8130 = vpop.f32.mrb[0].mxu0
      %8131 = vmatprep.mubr.f32.mxu0 0.0
      %8132 = vmatmul.mubr.f32.gmra.mrb[0].mxu0 %v1572
      %v8133 = vpop.f32.mrb[0].mxu0
      %v8134 = vadd.f32 %v7909, %v8133
      %v8135 = vpop.f32.mrb[0].mxu0
      %8136 = vmatprep.mubr.f32.mxu0 0.0
      %8137 = vmatmul.mubr.f32.gmra.mrb[0].mxu0 %v1575
      %v8138 = vpop.f32.mrb[0].mxu0
      %v8139 = vadd.f32 %v7914, %v8138
      %v8140 = vpop.f32.mrb[0].mxu0
      %8141 = vmatprep.mubr.f32.mxu0 0.0
      %8142 = vmatmul.mubr.f32.gmra.mrb[0].mxu0 %v1578
      %v8143 = vpop.f32.mrb[0].mxu0
      %v8144 = vadd.f32 %v7919, %v8143
      %v8145 = vpop.f32.mrb[0].mxu0
      %8146 = vmatprep.mubr.f32.mxu0 0.0
      %8147 = vmatmul.mubr.f32.gmra.mrb[0].mxu0 %v1581
      %v8148 = vpop.f32.mrb[0].mxu0
      %v8149 = vadd.f32 %v7924, %v8148
      %v8150 = vpop.f32.mrb[0].mxu0
      %8151 = vmatprep.mubr.f32.mxu0 0.0
      %8152 = vmatmul.mubr.f32.gmra.mrb[0].mxu0 %v1584
      %v8153 = vpop.f32.mrb[0].mxu0
      %v8154 = vadd.f32 %v7929, %v8153
      %v8155 = vpop.f32.mrb[0].mxu0
      %8156 = vmatprep.mubr.f32.mxu0 0.0
      %8157 = vmatmul.mubr.f32.gmra.mrb[0].mxu0 %v1587
      %v8158 = vpop.f32.mrb[0].mxu0
      %v8159 = vadd.f32 %v7934, %v8158
      %v8160 = vpop.f32.mrb[0].mxu0
      %8161 = vmatprep.mubr.f32.mxu0 0.0
      %8162 = vmatmul.mubr.f32.gmra.mrb[0].mxu0 %v1590
      %v8163 = vpop.f32.mrb[0].mxu0
      %v8164 = vadd.f32 %v7939, %v8163
      %v8165 = vpop.f32.mrb[0].mxu0
      %8166 = vmatprep.mubr.f32.mxu0 0.0
      %8167 = vmatmul.mubr.f32.gmra.mrb[0].mxu0 %v1593
      %v8168 = vpop.f32.mrb[0].mxu0
      %v8169 = vadd.f32 %v7944, %v8168
      %v8170 = vpop.f32.mrb[0].mxu0
      %8171 = vmatprep.mubr.f32.mxu0 0.0
      %8172 = vmatmul.mubr.f32.gmra.mrb[0].mxu0 %v1596
      %v8173 = vpop.f32.mrb[0].mxu0
      %v8174 = vadd.f32 %v7949, %v8173
      %v8175 = vpop.f32.mrb[0].mxu0
      %8176 = vmatprep.mubr.f32.mxu0 0.0
      %8177 = vmatmul.mubr.f32.gmra.mrb[0].mxu0 %v1599
      %v8178 = vpop.f32.mrb[0].mxu0
      %v8179 = vadd.f32 %v7954, %v8178
      %v8180 = vpop.f32.mrb[0].mxu0
      %8181 = vmatprep.mubr.f32.mxu0 0.0
      %8182 = vmatmul.mubr.f32.gmra.mrb[0].mxu0 %v1602
      %v8183 = vpop.f32.mrb[0].mxu0
      %v8184 = vadd.f32 %v7959, %v8183
      %v8185 = vpop.f32.mrb[0].mxu0
      %8186 = vmatprep.mubr.f32.mxu0 0.0
      %8187 = vmatmul.mubr.f32.gmra.mrb[0].mxu0 %v1605
      %v8188 = vpop.f32.mrb[0].mxu0
      %v8189 = vadd.f32 %v7964, %v8188
      %v8190 = vpop.f32.mrb[0].mxu0
      %8191 = vmatprep.mubr.f32.mxu0 0.0
      %8192 = vmatmul.mubr.f32.gmra.mrb[0].mxu0 %v1608
      %v8193 = vpop.f32.mrb[0].mxu0
      %v8194 = vadd.f32 %v7969, %v8193
      %v8195 = vpop.f32.mrb[0].mxu0
      %8196 = vmatprep.mubr.f32.mxu0 0.0
      %8197 = vmatmul.mubr.f32.gmra.mrb[0].mxu0 %v1611
      %v8198 = vpop.f32.mrb[0].mxu0
      %v8199 = vadd.f32 %v7974, %v8198
      %v8200 = vpop.f32.mrb[0].mxu0
      %8201 = vmatprep.mubr.f32.mxu0 0.0
      %8202 = vmatmul.mubr.f32.gmra.mrb[0].mxu0 %v1614
      %v8203 = vpop.f32.mrb[0].mxu0
      %v8204 = vadd.f32 %v7979, %v8203
      %v8205 = vpop.f32.mrb[0].mxu0
      %8206 = vmatprep.mubr.f32.mxu0 0.0
      %8207 = vmatmul.mubr.f32.gmra.mrb[0].mxu0 %v1617
      %v8208 = vpop.f32.mrb[0].mxu0
      %v8209 = vadd.f32 %v7984, %v8208
      %v8210 = vpop.f32.mrb[0].mxu0
      %8211 = vmatprep.mubr.f32.mxu0 0.0
      %8212 = vmatmul.mubr.f32.gmra.mrb[0].mxu0 %v1620
      %v8213 = vpop.f32.mrb[0].mxu0
      %v8214 = vadd.f32 %v7989, %v8213
      %v8215 = vpop.f32.mrb[0].mxu0
      %8216 = vmatprep.mubr.f32.mxu0 0.0
      %8217 = vmatmul.mubr.f32.gmra.mrb[0].mxu0 %v1623
      %v8218 = vpop.f32.mrb[0].mxu0
      %v8219 = vadd.f32 %v7994, %v8218
      %v8220 = vpop.f32.mrb[0].mxu0
      %8221 = vmatprep.mubr.f32.mxu0 0.0
      %8222 = vmatmul.mubr.f32.gmra.mrb[0].mxu0 %v1626
      %v8223 = vpop.f32.mrb[0].mxu0
      %v8224 = vadd.f32 %v7999, %v8223
      %v8225 = vpop.f32.mrb[0].mxu0
      %8226 = vmatprep.mubr.f32.mxu0 0.0
      %8227 = vmatmul.mubr.f32.gmra.mrb[0].mxu0 %v1629
      %v8228 = vpop.f32.mrb[0].mxu0
      %v8229 = vadd.f32 %v8004, %v8228
      %v8230 = vpop.f32.mrb[0].mxu0
      %8231 = vmatprep.mubr.f32.mxu0 0.0
      %8232 = vmatmul.mubr.f32.gmra.mrb[0].mxu0 %v1632
      %v8233 = vpop.f32.mrb[0].mxu0
      %v8234 = vadd.f32 %v8009, %v8233
      %v8235 = vpop.f32.mrb[0].mxu0
      %8236 = vmatprep.mubr.f32.mxu0 0.0
      %8237 = vmatmul.mubr.f32.gmra.mrb[0].mxu0 %v1635
      %v8238 = vpop.f32.mrb[0].mxu0
      %v8239 = vadd.f32 %v8014, %v8238
      %v8240 = vpop.f32.mrb[0].mxu0
      %8241 = vmatprep.mubr.f32.mxu0 0.0
      %8242 = vmatmul.mubr.f32.gmra.mrb[0].mxu0 %v1638
      %v8243 = vpop.f32.mrb[0].mxu0
      %v8244 = vadd.f32 %v8019, %v8243
      %v8245 = vpop.f32.mrb[0].mxu0
      %8246 = vmatprep.mubr.f32.mxu0 0.0
      %8247 = vmatmul.mubr.f32.gmra.mrb[0].mxu0 %v1641
      %v8248 = vpop.f32.mrb[0].mxu0
      %v8249 = vadd.f32 %v8024, %v8248
      %v8250 = vpop.f32.mrb[0].mxu0
      %8251 = vmatprep.mubr.f32.mxu0 0.0
      %8252 = vmatmul.mubr.f32.gmra.mrb[0].mxu0 %v1644
      %v8253 = vpop.f32.mrb[0].mxu0
      %v8254 = vadd.f32 %v8029, %v8253
      %v8255 = vpop.f32.mrb[0].mxu0
      %8256 = vmatprep.mubr.f32.mxu0 0.0
      %8257 = vmatmul.mubr.f32.gmra.mrb[0].mxu0 %v1647
      %v8258 = vpop.f32.mrb[0].mxu0
      %v8259 = vadd.f32 %v8034, %v8258
      %v8260 = vpop.f32.mrb[0].mxu0
      %8261 = vmatprep.mubr.f32.mxu0 0.0
      %8262 = vmatmul.mubr.f32.gmra.mrb[0].mxu0 %v1650
      %v8263 = vpop.f32.mrb[0].mxu0
      %v8264 = vadd.f32 %v8039, %v8263
      %v8265 = vpop.f32.mrb[0].mxu0
      %8266 = vmatprep.mubr.f32.mxu0 0.0
      %8267 = vmatmul.mubr.f32.gmra.mrb[0].mxu0 %v1653
      %v8268 = vpop.f32.mrb[0].mxu0
      %v8269 = vadd.f32 %v8044, %v8268
      %v8270 = vpop.f32.mrb[0].mxu0
      %8271 = vmatprep.mubr.f32.mxu0 0.0
      %8272 = vmatmul.mubr.f32.gmra.mrb[0].mxu0 %v1656
      %v8273 = vpop.f32.mrb[0].mxu0
      %v8274 = vadd.f32 %v8049, %v8273
      %v8275 = vpop.f32.mrb[0].mxu0
      %8276 = vmatprep.mubr.f32.mxu0 0.0
      %8277 = vmatmul.mubr.f32.gmra.mrb[0].mxu0 %v1659
      %v8278 = vpop.f32.mrb[0].mxu0
      %v8279 = vadd.f32 %v8054, %v8278
      %v8280 = vpop.f32.mrb[0].mxu0
      %8281 = vmatprep.mubr.f32.mxu0 0.0
      %8282 = vmatmul.mubr.f32.gmra.mrb[0].mxu0 %v1662
      %v8283 = vpop.f32.mrb[0].mxu0
      %v8284 = vadd.f32 %v8059, %v8283
      %v8285 = vpop.f32.mrb[0].mxu0
      %8286 = vdwg.mxu0
      %s8287 = scalar_lea.vmem %s5, 56
      %v8288 = vld [vmem:[%s8287] sm:$0xff]
      %v8290 = vsel %vm357, %v8129, 0
      %v8293 = vsel %vm357, %v8134, 0
      %v8296 = vsel %vm357, %v8139, 0
      %v8299 = vsel %vm357, %v8144, 0
      %v8302 = vsel %vm357, %v8149, 0
      %v8305 = vsel %vm357, %v8154, 0
      %v8308 = vsel %vm357, %v8159, 0
      %v8311 = vsel %vm357, %v8164, 0
      %v8314 = vsel %vm357, %v8169, 0
      %v8317 = vsel %vm357, %v8174, 0
      %v8320 = vsel %vm357, %v8179, 0
      %v8323 = vsel %vm357, %v8184, 0
      %v8326 = vsel %vm357, %v8189, 0
      %v8329 = vsel %vm357, %v8194, 0
      %v8332 = vsel %vm357, %v8199, 0
      %v8335 = vsel %vm357, %v8204, 0
      %v8338 = vsel %vm357, %v8209, 0
      %v8341 = vsel %vm357, %v8214, 0
      %v8344 = vsel %vm357, %v8219, 0
      %v8347 = vsel %vm357, %v8224, 0
      %v8350 = vsel %vm357, %v8229, 0
      %v8353 = vsel %vm357, %v8234, 0
      %v8356 = vsel %vm357, %v8239, 0
      %v8359 = vsel %vm357, %v8244, 0
      %v8362 = vsel %vm357, %v8249, 0
      %v8365 = vsel %vm357, %v8254, 0
      %v8368 = vsel %vm357, %v8259, 0
      %v8371 = vsel %vm357, %v8264, 0
      %v8374 = vsel %vm357, %v8269, 0
      %v8377 = vsel %vm357, %v8274, 0
      %v8380 = vsel %vm357, %v8279, 0
      %v8383 = vsel %vm357, %v8284, 0
      %8385 = vmatprep.subr.mxu0 0.0
      %8386 = vmatpush1.msra.mxu0 %v8288
      %8387 = vmatprep.subr.mxu0 0.0
      %8388 = vmatpush1.msra.mxu0 0.0
      %8389 = vmatprep.subr.mxu0 0.0
      %8390 = vmatpush1.msra.mxu0 0.0
      %8391 = vmatprep.subr.mxu0 0.0
      %8392 = vmatpush1.msra.mxu0 0.0
      %8393 = vmatprep.subr.mxu0 0.0
      %8394 = vmatpush1.msra.mxu0 0.0
      %8395 = vmatprep.subr.mxu0 0.0
      %8396 = vmatpush1.msra.mxu0 0.0
      %8397 = vmatprep.subr.mxu0 0.0
      %8398 = vmatpush1.msra.mxu0 0.0
      %8399 = vmatprep.subr.mxu0 0.0
      %8400 = vmatpush1.msra.mxu0 0.0
      %8401 = vmatprep.subr.mxu0 0.0
      %8402 = vmatpush1.msra.mxu0 0.0
      %8403 = vmatprep.subr.mxu0 0.0
      %8404 = vmatpush1.msra.mxu0 0.0
      %8405 = vmatprep.subr.mxu0 0.0
      %8406 = vmatpush1.msra.mxu0 0.0
      %8407 = vmatprep.subr.mxu0 0.0
      %8408 = vmatpush1.msra.mxu0 0.0
      %8409 = vmatprep.subr.mxu0 0.0
      %8410 = vmatpush1.msra.mxu0 0.0
      %8411 = vmatprep.subr.mxu0 0.0
      %8412 = vmatpush1.msra.mxu0 0.0
      %8413 = vmatprep.subr.mxu0 0.0
      %8414 = vmatpush1.msra.mxu0 0.0
      %8415 = vmatprep.subr.mxu0 0.0
      %8416 = vmatpush1.msra.mxu0 0.0
      %8417 = vmatprep.subr.mxu0 0.0
      %8418 = vmatpush1.msra.mxu0 0.0
      %8419 = vmatprep.subr.mxu0 0.0
      %8420 = vmatpush1.msra.mxu0 0.0
      %8421 = vmatprep.subr.mxu0 0.0
      %8422 = vmatpush1.msra.mxu0 0.0
      %8423 = vmatprep.subr.mxu0 0.0
      %8424 = vmatpush1.msra.mxu0 0.0
      %8425 = vmatprep.subr.mxu0 0.0
      %8426 = vmatpush1.msra.mxu0 0.0
      %8427 = vmatprep.subr.mxu0 0.0
      %8428 = vmatpush1.msra.mxu0 0.0
      %8429 = vmatprep.subr.mxu0 0.0
      %8430 = vmatpush1.msra.mxu0 0.0
      %8431 = vmatprep.subr.mxu0 0.0
      %8432 = vmatpush1.msra.mxu0 0.0
      %8433 = vmatprep.subr.mxu0 0.0
      %8434 = vmatpush1.msra.mxu0 0.0
      %8435 = vmatprep.subr.mxu0 0.0
      %8436 = vmatpush1.msra.mxu0 0.0
      %8437 = vmatprep.subr.mxu0 0.0
      %8438 = vmatpush1.msra.mxu0 0.0
      %8439 = vmatprep.subr.mxu0 0.0
      %8440 = vmatpush1.msra.mxu0 0.0
      %8441 = vmatprep.subr.mxu0 0.0
      %8442 = vmatpush1.msra.mxu0 0.0
      %8443 = vmatprep.subr.mxu0 0.0
      %8444 = vmatpush1.msra.mxu0 0.0
      %8445 = vmatprep.subr.mxu0 0.0
      %8446 = vmatpush1.msra.mxu0 0.0
      %8447 = vmatprep.subr.mxu0 0.0
      %8448 = vmatpush1.msra.mxu0 0.0
      %8449 = vmatprep.mubr.f32.mxu0 0.0
      %8450 = vmatmul.mubr.f32.gmra.mrb[0].mxu0 %v8290
      %v8451 = vpop.f32.mrb[0].mxu0
      %v8452 = vadd.f32 0.0, %v8451
      %v8453 = vpop.f32.mrb[0].mxu0
      %8454 = vmatprep.mubr.f32.mxu0 0.0
      %8455 = vmatmul.mubr.f32.gmra.mrb[0].mxu0 %v8293
      %v8456 = vpop.f32.mrb[0].mxu0
      %v8457 = vadd.f32 0.0, %v8456
      %v8458 = vpop.f32.mrb[0].mxu0
      %8459 = vmatprep.mubr.f32.mxu0 0.0
      %8460 = vmatmul.mubr.f32.gmra.mrb[0].mxu0 %v8296
      %v8461 = vpop.f32.mrb[0].mxu0
      %v8462 = vadd.f32 0.0, %v8461
      %v8463 = vpop.f32.mrb[0].mxu0
      %8464 = vmatprep.mubr.f32.mxu0 0.0
      %8465 = vmatmul.mubr.f32.gmra.mrb[0].mxu0 %v8299
      %v8466 = vpop.f32.mrb[0].mxu0
      %v8467 = vadd.f32 0.0, %v8466
      %v8468 = vpop.f32.mrb[0].mxu0
      %8469 = vmatprep.mubr.f32.mxu0 0.0
      %8470 = vmatmul.mubr.f32.gmra.mrb[0].mxu0 %v8302
      %v8471 = vpop.f32.mrb[0].mxu0
      %v8472 = vadd.f32 0.0, %v8471
      %v8473 = vpop.f32.mrb[0].mxu0
      %8474 = vmatprep.mubr.f32.mxu0 0.0
      %8475 = vmatmul.mubr.f32.gmra.mrb[0].mxu0 %v8305
      %v8476 = vpop.f32.mrb[0].mxu0
      %v8477 = vadd.f32 0.0, %v8476
      %v8478 = vpop.f32.mrb[0].mxu0
      %8479 = vmatprep.mubr.f32.mxu0 0.0
      %8480 = vmatmul.mubr.f32.gmra.mrb[0].mxu0 %v8308
      %v8481 = vpop.f32.mrb[0].mxu0
      %v8482 = vadd.f32 0.0, %v8481
      %v8483 = vpop.f32.mrb[0].mxu0
      %8484 = vmatprep.mubr.f32.mxu0 0.0
      %8485 = vmatmul.mubr.f32.gmra.mrb[0].mxu0 %v8311
      %v8486 = vpop.f32.mrb[0].mxu0
      %v8487 = vadd.f32 0.0, %v8486
      %v8488 = vpop.f32.mrb[0].mxu0
      %8489 = vmatprep.mubr.f32.mxu0 0.0
      %8490 = vmatmul.mubr.f32.gmra.mrb[0].mxu0 %v8314
      %v8491 = vpop.f32.mrb[0].mxu0
      %v8492 = vadd.f32 0.0, %v8491
      %v8493 = vpop.f32.mrb[0].mxu0
      %8494 = vmatprep.mubr.f32.mxu0 0.0
      %8495 = vmatmul.mubr.f32.gmra.mrb[0].mxu0 %v8317
      %v8496 = vpop.f32.mrb[0].mxu0
      %v8497 = vadd.f32 0.0, %v8496
      %v8498 = vpop.f32.mrb[0].mxu0
      %8499 = vmatprep.mubr.f32.mxu0 0.0
      %8500 = vmatmul.mubr.f32.gmra.mrb[0].mxu0 %v8320
      %v8501 = vpop.f32.mrb[0].mxu0
      %v8502 = vadd.f32 0.0, %v8501
      %v8503 = vpop.f32.mrb[0].mxu0
      %8504 = vmatprep.mubr.f32.mxu0 0.0
      %8505 = vmatmul.mubr.f32.gmra.mrb[0].mxu0 %v8323
      %v8506 = vpop.f32.mrb[0].mxu0
      %v8507 = vadd.f32 0.0, %v8506
      %v8508 = vpop.f32.mrb[0].mxu0
      %8509 = vmatprep.mubr.f32.mxu0 0.0
      %8510 = vmatmul.mubr.f32.gmra.mrb[0].mxu0 %v8326
      %v8511 = vpop.f32.mrb[0].mxu0
      %v8512 = vadd.f32 0.0, %v8511
      %v8513 = vpop.f32.mrb[0].mxu0
      %8514 = vmatprep.mubr.f32.mxu0 0.0
      %8515 = vmatmul.mubr.f32.gmra.mrb[0].mxu0 %v8329
      %v8516 = vpop.f32.mrb[0].mxu0
      %v8517 = vadd.f32 0.0, %v8516
      %v8518 = vpop.f32.mrb[0].mxu0
      %8519 = vmatprep.mubr.f32.mxu0 0.0
      %8520 = vmatmul.mubr.f32.gmra.mrb[0].mxu0 %v8332
      %v8521 = vpop.f32.mrb[0].mxu0
      %v8522 = vadd.f32 0.0, %v8521
      %v8523 = vpop.f32.mrb[0].mxu0
      %8524 = vmatprep.mubr.f32.mxu0 0.0
      %8525 = vmatmul.mubr.f32.gmra.mrb[0].mxu0 %v8335
      %v8526 = vpop.f32.mrb[0].mxu0
      %v8527 = vadd.f32 0.0, %v8526
      %v8528 = vpop.f32.mrb[0].mxu0
      %8529 = vmatprep.mubr.f32.mxu0 0.0
      %8530 = vmatmul.mubr.f32.gmra.mrb[0].mxu0 %v8338
      %v8531 = vpop.f32.mrb[0].mxu0
      %v8532 = vadd.f32 0.0, %v8531
      %v8533 = vpop.f32.mrb[0].mxu0
      %8534 = vmatprep.mubr.f32.mxu0 0.0
      %8535 = vmatmul.mubr.f32.gmra.mrb[0].mxu0 %v8341
      %v8536 = vpop.f32.mrb[0].mxu0
      %v8537 = vadd.f32 0.0, %v8536
      %v8538 = vpop.f32.mrb[0].mxu0
      %8539 = vmatprep.mubr.f32.mxu0 0.0
      %8540 = vmatmul.mubr.f32.gmra.mrb[0].mxu0 %v8344
      %v8541 = vpop.f32.mrb[0].mxu0
      %v8542 = vadd.f32 0.0, %v8541
      %v8543 = vpop.f32.mrb[0].mxu0
      %8544 = vmatprep.mubr.f32.mxu0 0.0
      %8545 = vmatmul.mubr.f32.gmra.mrb[0].mxu0 %v8347
      %v8546 = vpop.f32.mrb[0].mxu0
      %v8547 = vadd.f32 0.0, %v8546
      %v8548 = vpop.f32.mrb[0].mxu0
      %8549 = vmatprep.mubr.f32.mxu0 0.0
      %8550 = vmatmul.mubr.f32.gmra.mrb[0].mxu0 %v8350
      %v8551 = vpop.f32.mrb[0].mxu0
      %v8552 = vadd.f32 0.0, %v8551
      %v8553 = vpop.f32.mrb[0].mxu0
      %8554 = vmatprep.mubr.f32.mxu0 0.0
      %8555 = vmatmul.mubr.f32.gmra.mrb[0].mxu0 %v8353
      %v8556 = vpop.f32.mrb[0].mxu0
      %v8557 = vadd.f32 0.0, %v8556
      %v8558 = vpop.f32.mrb[0].mxu0
      %8559 = vmatprep.mubr.f32.mxu0 0.0
      %8560 = vmatmul.mubr.f32.gmra.mrb[0].mxu0 %v8356
      %v8561 = vpop.f32.mrb[0].mxu0
      %v8562 = vadd.f32 0.0, %v8561
      %v8563 = vpop.f32.mrb[0].mxu0
      %8564 = vmatprep.mubr.f32.mxu0 0.0
      %8565 = vmatmul.mubr.f32.gmra.mrb[0].mxu0 %v8359
      %v8566 = vpop.f32.mrb[0].mxu0
      %v8567 = vadd.f32 0.0, %v8566
      %v8568 = vpop.f32.mrb[0].mxu0
      %8569 = vmatprep.mubr.f32.mxu0 0.0
      %8570 = vmatmul.mubr.f32.gmra.mrb[0].mxu0 %v8362
      %v8571 = vpop.f32.mrb[0].mxu0
      %v8572 = vadd.f32 0.0, %v8571
      %v8573 = vpop.f32.mrb[0].mxu0
      %8574 = vmatprep.mubr.f32.mxu0 0.0
      %8575 = vmatmul.mubr.f32.gmra.mrb[0].mxu0 %v8365
      %v8576 = vpop.f32.mrb[0].mxu0
      %v8577 = vadd.f32 0.0, %v8576
      %v8578 = vpop.f32.mrb[0].mxu0
      %8579 = vmatprep.mubr.f32.mxu0 0.0
      %8580 = vmatmul.mubr.f32.gmra.mrb[0].mxu0 %v8368
      %v8581 = vpop.f32.mrb[0].mxu0
      %v8582 = vadd.f32 0.0, %v8581
      %v8583 = vpop.f32.mrb[0].mxu0
      %8584 = vmatprep.mubr.f32.mxu0 0.0
      %8585 = vmatmul.mubr.f32.gmra.mrb[0].mxu0 %v8371
      %v8586 = vpop.f32.mrb[0].mxu0
      %v8587 = vadd.f32 0.0, %v8586
      %v8588 = vpop.f32.mrb[0].mxu0
      %8589 = vmatprep.mubr.f32.mxu0 0.0
      %8590 = vmatmul.mubr.f32.gmra.mrb[0].mxu0 %v8374
      %v8591 = vpop.f32.mrb[0].mxu0
      %v8592 = vadd.f32 0.0, %v8591
      %v8593 = vpop.f32.mrb[0].mxu0
      %8594 = vmatprep.mubr.f32.mxu0 0.0
      %8595 = vmatmul.mubr.f32.gmra.mrb[0].mxu0 %v8377
      %v8596 = vpop.f32.mrb[0].mxu0
      %v8597 = vadd.f32 0.0, %v8596
      %v8598 = vpop.f32.mrb[0].mxu0
      %8599 = vmatprep.mubr.f32.mxu0 0.0
      %8600 = vmatmul.mubr.f32.gmra.mrb[0].mxu0 %v8380
      %v8601 = vpop.f32.mrb[0].mxu0
      %v8602 = vadd.f32 0.0, %v8601
      %v8603 = vpop.f32.mrb[0].mxu0
      %8604 = vmatprep.mubr.f32.mxu0 0.0
      %8605 = vmatmul.mubr.f32.gmra.mrb[0].mxu0 %v8383
      %v8606 = vpop.f32.mrb[0].mxu0
      %v8607 = vadd.f32 0.0, %v8606
      %v8608 = vpop.f32.mrb[0].mxu0
      %8609 = vdwg.mxu0
      %v8610 = vadd.f32 %v7695, %v8452
      %v8611 = vadd.f32 %v7696, %v8457
      %v8612 = vadd.f32 %v7697, %v8462
      %v8613 = vadd.f32 %v7698, %v8467
      %v8614 = vadd.f32 %v7699, %v8472
      %v8615 = vadd.f32 %v7700, %v8477
      %v8616 = vadd.f32 %v7701, %v8482
      %v8617 = vadd.f32 %v7702, %v8487
      %v8618 = vadd.f32 %v7703, %v8492
      %v8619 = vadd.f32 %v7704, %v8497
      %v8620 = vadd.f32 %v7705, %v8502
      %v8621 = vadd.f32 %v7706, %v8507
      %v8622 = vadd.f32 %v7707, %v8512
      %v8623 = vadd.f32 %v7708, %v8517
      %v8624 = vadd.f32 %v7709, %v8522
      %v8625 = vadd.f32 %v7710, %v8527
      %v8626 = vadd.f32 %v7711, %v8532
      %v8627 = vadd.f32 %v7712, %v8537
      %v8628 = vadd.f32 %v7713, %v8542
      %v8629 = vadd.f32 %v7714, %v8547
      %v8630 = vadd.f32 %v7715, %v8552
      %v8631 = vadd.f32 %v7716, %v8557
      %v8632 = vadd.f32 %v7717, %v8562
      %v8633 = vadd.f32 %v7718, %v8567
      %v8634 = vadd.f32 %v7719, %v8572
      %v8635 = vadd.f32 %v7720, %v8577
      %v8636 = vadd.f32 %v7721, %v8582
      %v8637 = vadd.f32 %v7722, %v8587
      %v8638 = vadd.f32 %v7723, %v8592
      %v8639 = vadd.f32 %v7724, %v8597
      %v8640 = vadd.f32 %v7725, %v8602
      %v8641 = vadd.f32 %v7726, %v8607
      %vm8642 = vcmask 1041408
      %v8643 = vrot.slane %v1434, 6
      %v8644 = vrot.slane %v1435, 6
      %v8645 = vsel %vm8642, %v8643, %v8644
      %v8646 = vrot.slane %v1436, 6
      %v8647 = vsel %vm8642, %v8644, %v8646
      %v8648 = vrot.slane %v1437, 6
      %v8649 = vsel %vm8642, %v8646, %v8648
      %v8650 = vrot.slane %v1438, 6
      %v8651 = vsel %vm8642, %v8648, %v8650
      %v8652 = vrot.slane %v1439, 6
      %v8653 = vsel %vm8642, %v8650, %v8652
      %v8654 = vrot.slane %v1440, 6
      %v8655 = vsel %vm8642, %v8652, %v8654
      %v8656 = vrot.slane %v1441, 6
      %v8657 = vsel %vm8642, %v8654, %v8656
      %v8658 = vrot.slane %v1442, 6
      %v8659 = vsel %vm8642, %v8656, %v8658
      %v8660 = vrot.slane %v1443, 6
      %v8661 = vsel %vm8642, %v8658, %v8660
      %v8662 = vrot.slane %v1444, 6
      %v8663 = vsel %vm8642, %v8660, %v8662
      %v8664 = vrot.slane %v1445, 6
      %v8665 = vsel %vm8642, %v8662, %v8664
      %v8666 = vrot.slane %v1446, 6
      %v8667 = vsel %vm8642, %v8664, %v8666
      %v8668 = vrot.slane %v1447, 6
      %v8669 = vsel %vm8642, %v8666, %v8668
      %v8670 = vrot.slane %v1448, 6
      %v8671 = vsel %vm8642, %v8668, %v8670
      %v8672 = vrot.slane %v1449, 6
      %v8673 = vsel %vm8642, %v8670, %v8672
      %v8674 = vrot.slane %v1450, 6
      %v8675 = vsel %vm8642, %v8672, %v8674
      %v8676 = vrot.slane %v1451, 6
      %v8677 = vsel %vm8642, %v8674, %v8676
      %v8678 = vrot.slane %v1452, 6
      %v8679 = vsel %vm8642, %v8676, %v8678
      %v8680 = vrot.slane %v1453, 6
      %v8681 = vsel %vm8642, %v8678, %v8680
      %v8682 = vrot.slane %v1454, 6
      %v8683 = vsel %vm8642, %v8680, %v8682
      %v8684 = vrot.slane %v1455, 6
      %v8685 = vsel %vm8642, %v8682, %v8684
      %v8686 = vrot.slane %v1456, 6
      %v8687 = vsel %vm8642, %v8684, %v8686
      %v8688 = vrot.slane %v1457, 6
      %v8689 = vsel %vm8642, %v8686, %v8688
      %v8690 = vrot.slane %v1458, 6
      %v8691 = vsel %vm8642, %v8688, %v8690
      %v8692 = vrot.slane %v1459, 6
      %v8693 = vsel %vm8642, %v8690, %v8692
      %v8694 = vrot.slane %v1460, 6
      %v8695 = vsel %vm8642, %v8692, %v8694
      %v8696 = vrot.slane %v1461, 6
      %v8697 = vsel %vm8642, %v8694, %v8696
      %v8698 = vrot.slane %v1462, 6
      %v8699 = vsel %vm8642, %v8696, %v8698
      %v8700 = vrot.slane %v1463, 6
      %v8701 = vsel %vm8642, %v8698, %v8700
      %v8702 = vrot.slane %v1464, 6
      %v8703 = vsel %vm8642, %v8700, %v8702
      %v8704 = vrot.slane %v1465, 6
      %v8705 = vsel %vm8642, %v8702, %v8704
      %v8706 = vrot.slane %v1466, 6
      %v8707 = vsel %vm8642, %v8704, %v8706
      %v8708 = vrot.slane %v1467, 6
      %v8709 = vsel %vm8642, %v8706, %v8708
      %v8710 = vrot.slane %v1468, 6
      %v8711 = vsel %vm8642, %v8708, %v8710
      %v8712 = vrot.slane %v1469, 6
      %v8713 = vsel %vm8642, %v8710, %v8712
      %v8714 = vrot.slane %v1470, 6
      %v8715 = vsel %vm8642, %v8712, %v8714
      %8752 = vmatprep.subr.mxu0 0.0
      %8753 = vmatpush1.msra.mxu0 %v8645
      %8754 = vmatprep.subr.mxu0 0.0
      %8755 = vmatpush1.msra.mxu0 %v8647
      %8756 = vmatprep.subr.mxu0 0.0
      %8757 = vmatpush1.msra.mxu0 %v8649
      %8758 = vmatprep.subr.mxu0 0.0
      %8759 = vmatpush1.msra.mxu0 %v8651
      %8760 = vmatprep.subr.mxu0 0.0
      %8761 = vmatpush1.msra.mxu0 %v8653
      %8762 = vmatprep.subr.mxu0 0.0
      %8763 = vmatpush1.msra.mxu0 %v8655
      %8764 = vmatprep.subr.mxu0 0.0
      %8765 = vmatpush1.msra.mxu0 %v8657
      %8766 = vmatprep.subr.mxu0 0.0
      %8767 = vmatpush1.msra.mxu0 %v8659
      %8768 = vmatprep.subr.mxu0 0.0
      %8769 = vmatpush1.msra.mxu0 %v8661
      %8770 = vmatprep.subr.mxu0 0.0
      %8771 = vmatpush1.msra.mxu0 %v8663
      %8772 = vmatprep.subr.mxu0 0.0
      %8773 = vmatpush1.msra.mxu0 %v8665
      %8774 = vmatprep.subr.mxu0 0.0
      %8775 = vmatpush1.msra.mxu0 %v8667
      %8776 = vmatprep.subr.mxu0 0.0
      %8777 = vmatpush1.msra.mxu0 %v8669
      %8778 = vmatprep.subr.mxu0 0.0
      %8779 = vmatpush1.msra.mxu0 %v8671
      %8780 = vmatprep.subr.mxu0 0.0
      %8781 = vmatpush1.msra.mxu0 %v8673
      %8782 = vmatprep.subr.mxu0 0.0
      %8783 = vmatpush1.msra.mxu0 %v8675
      %8784 = vmatprep.subr.mxu0 0.0
      %8785 = vmatpush1.msra.mxu0 %v8677
      %8786 = vmatprep.subr.mxu0 0.0
      %8787 = vmatpush1.msra.mxu0 %v8679
      %8788 = vmatprep.subr.mxu0 0.0
      %8789 = vmatpush1.msra.mxu0 %v8681
      %8790 = vmatprep.subr.mxu0 0.0
      %8791 = vmatpush1.msra.mxu0 %v8683
      %8792 = vmatprep.subr.mxu0 0.0
      %8793 = vmatpush1.msra.mxu0 %v8685
      %8794 = vmatprep.subr.mxu0 0.0
      %8795 = vmatpush1.msra.mxu0 %v8687
      %8796 = vmatprep.subr.mxu0 0.0
      %8797 = vmatpush1.msra.mxu0 %v8689
      %8798 = vmatprep.subr.mxu0 0.0
      %8799 = vmatpush1.msra.mxu0 %v8691
      %8800 = vmatprep.subr.mxu0 0.0
      %8801 = vmatpush1.msra.mxu0 %v8693
      %8802 = vmatprep.subr.mxu0 0.0
      %8803 = vmatpush1.msra.mxu0 %v8695
      %8804 = vmatprep.subr.mxu0 0.0
      %8805 = vmatpush1.msra.mxu0 %v8697
      %8806 = vmatprep.subr.mxu0 0.0
      %8807 = vmatpush1.msra.mxu0 %v8699
      %8808 = vmatprep.subr.mxu0 0.0
      %8809 = vmatpush1.msra.mxu0 %v8701
      %8810 = vmatprep.subr.mxu0 0.0
      %8811 = vmatpush1.msra.mxu0 %v8703
      %8812 = vmatprep.subr.mxu0 0.0
      %8813 = vmatpush1.msra.mxu0 %v8705
      %8814 = vmatprep.subr.mxu0 0.0
      %8815 = vmatpush1.msra.mxu0 %v8707
      %8816 = vmatprep.mubr.f32.mxu0 %v1472
      %8817 = vmatmul.mubr.f32.gmra.mrb[0].mxu0 %v1471
      %v8818 = vpop.f32.mrb[0].mxu0
      %v8819 = vadd.f32 0.0, %v8818
      %v8820 = vpop.f32.mrb[0].mxu0
      %8821 = vmatprep.mubr.f32.mxu0 %v1475
      %8822 = vmatmul.mubr.f32.gmra.mrb[0].mxu0 %v1474
      %v8823 = vpop.f32.mrb[0].mxu0
      %v8824 = vadd.f32 0.0, %v8823
      %v8825 = vpop.f32.mrb[0].mxu0
      %8826 = vmatprep.mubr.f32.mxu0 %v1478
      %8827 = vmatmul.mubr.f32.gmra.mrb[0].mxu0 %v1477
      %v8828 = vpop.f32.mrb[0].mxu0
      %v8829 = vadd.f32 0.0, %v8828
      %v8830 = vpop.f32.mrb[0].mxu0
      %8831 = vmatprep.mubr.f32.mxu0 %v1481
      %8832 = vmatmul.mubr.f32.gmra.mrb[0].mxu0 %v1480
      %v8833 = vpop.f32.mrb[0].mxu0
      %v8834 = vadd.f32 0.0, %v8833
      %v8835 = vpop.f32.mrb[0].mxu0
      %8836 = vmatprep.mubr.f32.mxu0 %v1484
      %8837 = vmatmul.mubr.f32.gmra.mrb[0].mxu0 %v1483
      %v8838 = vpop.f32.mrb[0].mxu0
      %v8839 = vadd.f32 0.0, %v8838
      %v8840 = vpop.f32.mrb[0].mxu0
      %8841 = vmatprep.mubr.f32.mxu0 %v1487
      %8842 = vmatmul.mubr.f32.gmra.mrb[0].mxu0 %v1486
      %v8843 = vpop.f32.mrb[0].mxu0
      %v8844 = vadd.f32 0.0, %v8843
      %v8845 = vpop.f32.mrb[0].mxu0
      %8846 = vmatprep.mubr.f32.mxu0 %v1490
      %8847 = vmatmul.mubr.f32.gmra.mrb[0].mxu0 %v1489
      %v8848 = vpop.f32.mrb[0].mxu0
      %v8849 = vadd.f32 0.0, %v8848
      %v8850 = vpop.f32.mrb[0].mxu0
      %8851 = vmatprep.mubr.f32.mxu0 %v1493
      %8852 = vmatmul.mubr.f32.gmra.mrb[0].mxu0 %v1492
      %v8853 = vpop.f32.mrb[0].mxu0
      %v8854 = vadd.f32 0.0, %v8853
      %v8855 = vpop.f32.mrb[0].mxu0
      %8856 = vmatprep.mubr.f32.mxu0 %v1496
      %8857 = vmatmul.mubr.f32.gmra.mrb[0].mxu0 %v1495
      %v8858 = vpop.f32.mrb[0].mxu0
      %v8859 = vadd.f32 0.0, %v8858
      %v8860 = vpop.f32.mrb[0].mxu0
      %8861 = vmatprep.mubr.f32.mxu0 %v1499
      %8862 = vmatmul.mubr.f32.gmra.mrb[0].mxu0 %v1498
      %v8863 = vpop.f32.mrb[0].mxu0
      %v8864 = vadd.f32 0.0, %v8863
      %v8865 = vpop.f32.mrb[0].mxu0
      %8866 = vmatprep.mubr.f32.mxu0 %v1502
      %8867 = vmatmul.mubr.f32.gmra.mrb[0].mxu0 %v1501
      %v8868 = vpop.f32.mrb[0].mxu0
      %v8869 = vadd.f32 0.0, %v8868
      %v8870 = vpop.f32.mrb[0].mxu0
      %8871 = vmatprep.mubr.f32.mxu0 %v1505
      %8872 = vmatmul.mubr.f32.gmra.mrb[0].mxu0 %v1504
      %v8873 = vpop.f32.mrb[0].mxu0
      %v8874 = vadd.f32 0.0, %v8873
      %v8875 = vpop.f32.mrb[0].mxu0
      %8876 = vmatprep.mubr.f32.mxu0 %v1508
      %8877 = vmatmul.mubr.f32.gmra.mrb[0].mxu0 %v1507
      %v8878 = vpop.f32.mrb[0].mxu0
      %v8879 = vadd.f32 0.0, %v8878
      %v8880 = vpop.f32.mrb[0].mxu0
      %8881 = vmatprep.mubr.f32.mxu0 %v1511
      %8882 = vmatmul.mubr.f32.gmra.mrb[0].mxu0 %v1510
      %v8883 = vpop.f32.mrb[0].mxu0
      %v8884 = vadd.f32 0.0, %v8883
      %v8885 = vpop.f32.mrb[0].mxu0
      %8886 = vmatprep.mubr.f32.mxu0 %v1514
      %8887 = vmatmul.mubr.f32.gmra.mrb[0].mxu0 %v1513
      %v8888 = vpop.f32.mrb[0].mxu0
      %v8889 = vadd.f32 0.0, %v8888
      %v8890 = vpop.f32.mrb[0].mxu0
      %8891 = vmatprep.mubr.f32.mxu0 %v1517
      %8892 = vmatmul.mubr.f32.gmra.mrb[0].mxu0 %v1516
      %v8893 = vpop.f32.mrb[0].mxu0
      %v8894 = vadd.f32 0.0, %v8893
      %v8895 = vpop.f32.mrb[0].mxu0
      %8896 = vmatprep.mubr.f32.mxu0 %v1520
      %8897 = vmatmul.mubr.f32.gmra.mrb[0].mxu0 %v1519
      %v8898 = vpop.f32.mrb[0].mxu0
      %v8899 = vadd.f32 0.0, %v8898
      %v8900 = vpop.f32.mrb[0].mxu0
      %8901 = vmatprep.mubr.f32.mxu0 %v1523
      %8902 = vmatmul.mubr.f32.gmra.mrb[0].mxu0 %v1522
      %v8903 = vpop.f32.mrb[0].mxu0
      %v8904 = vadd.f32 0.0, %v8903
      %v8905 = vpop.f32.mrb[0].mxu0
      %8906 = vmatprep.mubr.f32.mxu0 %v1526
      %8907 = vmatmul.mubr.f32.gmra.mrb[0].mxu0 %v1525
      %v8908 = vpop.f32.mrb[0].mxu0
      %v8909 = vadd.f32 0.0, %v8908
      %v8910 = vpop.f32.mrb[0].mxu0
      %8911 = vmatprep.mubr.f32.mxu0 %v1529
      %8912 = vmatmul.mubr.f32.gmra.mrb[0].mxu0 %v1528
      %v8913 = vpop.f32.mrb[0].mxu0
      %v8914 = vadd.f32 0.0, %v8913
      %v8915 = vpop.f32.mrb[0].mxu0
      %8916 = vmatprep.mubr.f32.mxu0 %v1532
      %8917 = vmatmul.mubr.f32.gmra.mrb[0].mxu0 %v1531
      %v8918 = vpop.f32.mrb[0].mxu0
      %v8919 = vadd.f32 0.0, %v8918
      %v8920 = vpop.f32.mrb[0].mxu0
      %8921 = vmatprep.mubr.f32.mxu0 %v1535
      %8922 = vmatmul.mubr.f32.gmra.mrb[0].mxu0 %v1534
      %v8923 = vpop.f32.mrb[0].mxu0
      %v8924 = vadd.f32 0.0, %v8923
      %v8925 = vpop.f32.mrb[0].mxu0
      %8926 = vmatprep.mubr.f32.mxu0 %v1538
      %8927 = vmatmul.mubr.f32.gmra.mrb[0].mxu0 %v1537
      %v8928 = vpop.f32.mrb[0].mxu0
      %v8929 = vadd.f32 0.0, %v8928
      %v8930 = vpop.f32.mrb[0].mxu0
      %8931 = vmatprep.mubr.f32.mxu0 %v1541
      %8932 = vmatmul.mubr.f32.gmra.mrb[0].mxu0 %v1540
      %v8933 = vpop.f32.mrb[0].mxu0
      %v8934 = vadd.f32 0.0, %v8933
      %v8935 = vpop.f32.mrb[0].mxu0
      %8936 = vmatprep.mubr.f32.mxu0 %v1544
      %8937 = vmatmul.mubr.f32.gmra.mrb[0].mxu0 %v1543
      %v8938 = vpop.f32.mrb[0].mxu0
      %v8939 = vadd.f32 0.0, %v8938
      %v8940 = vpop.f32.mrb[0].mxu0
      %8941 = vmatprep.mubr.f32.mxu0 %v1547
      %8942 = vmatmul.mubr.f32.gmra.mrb[0].mxu0 %v1546
      %v8943 = vpop.f32.mrb[0].mxu0
      %v8944 = vadd.f32 0.0, %v8943
      %v8945 = vpop.f32.mrb[0].mxu0
      %8946 = vmatprep.mubr.f32.mxu0 %v1550
      %8947 = vmatmul.mubr.f32.gmra.mrb[0].mxu0 %v1549
      %v8948 = vpop.f32.mrb[0].mxu0
      %v8949 = vadd.f32 0.0, %v8948
      %v8950 = vpop.f32.mrb[0].mxu0
      %8951 = vmatprep.mubr.f32.mxu0 %v1553
      %8952 = vmatmul.mubr.f32.gmra.mrb[0].mxu0 %v1552
      %v8953 = vpop.f32.mrb[0].mxu0
      %v8954 = vadd.f32 0.0, %v8953
      %v8955 = vpop.f32.mrb[0].mxu0
      %8956 = vmatprep.mubr.f32.mxu0 %v1556
      %8957 = vmatmul.mubr.f32.gmra.mrb[0].mxu0 %v1555
      %v8958 = vpop.f32.mrb[0].mxu0
      %v8959 = vadd.f32 0.0, %v8958
      %v8960 = vpop.f32.mrb[0].mxu0
      %8961 = vmatprep.mubr.f32.mxu0 %v1559
      %8962 = vmatmul.mubr.f32.gmra.mrb[0].mxu0 %v1558
      %v8963 = vpop.f32.mrb[0].mxu0
      %v8964 = vadd.f32 0.0, %v8963
      %v8965 = vpop.f32.mrb[0].mxu0
      %8966 = vmatprep.mubr.f32.mxu0 %v1562
      %8967 = vmatmul.mubr.f32.gmra.mrb[0].mxu0 %v1561
      %v8968 = vpop.f32.mrb[0].mxu0
      %v8969 = vadd.f32 0.0, %v8968
      %v8970 = vpop.f32.mrb[0].mxu0
      %8971 = vmatprep.mubr.f32.mxu0 %v1565
      %8972 = vmatmul.mubr.f32.gmra.mrb[0].mxu0 %v1564
      %v8973 = vpop.f32.mrb[0].mxu0
      %v8974 = vadd.f32 0.0, %v8973
      %v8975 = vpop.f32.mrb[0].mxu0
      %8976 = vdwg.mxu0
      %8977 = vmatprep.subr.mxu0 0.0
      %8978 = vmatpush1.msra.mxu0 %v8709
      %8979 = vmatprep.subr.mxu0 0.0
      %8980 = vmatpush1.msra.mxu0 %v8711
      %8981 = vmatprep.subr.mxu0 0.0
      %8982 = vmatpush1.msra.mxu0 %v8713
      %8983 = vmatprep.subr.mxu0 0.0
      %8984 = vmatpush1.msra.mxu0 %v8715
      %8985 = vmatprep.subr.mxu0 0.0
      %8986 = vmatpush1.msra.mxu0 0.0
      %8987 = vmatprep.subr.mxu0 0.0
      %8988 = vmatpush1.msra.mxu0 0.0
      %8989 = vmatprep.subr.mxu0 0.0
      %8990 = vmatpush1.msra.mxu0 0.0
      %8991 = vmatprep.subr.mxu0 0.0
      %8992 = vmatpush1.msra.mxu0 0.0
      %8993 = vmatprep.subr.mxu0 0.0
      %8994 = vmatpush1.msra.mxu0 0.0
      %8995 = vmatprep.subr.mxu0 0.0
      %8996 = vmatpush1.msra.mxu0 0.0
      %8997 = vmatprep.subr.mxu0 0.0
      %8998 = vmatpush1.msra.mxu0 0.0
      %8999 = vmatprep.subr.mxu0 0.0
      %9000 = vmatpush1.msra.mxu0 0.0
      %9001 = vmatprep.subr.mxu0 0.0
      %9002 = vmatpush1.msra.mxu0 0.0
      %9003 = vmatprep.subr.mxu0 0.0
      %9004 = vmatpush1.msra.mxu0 0.0
      %9005 = vmatprep.subr.mxu0 0.0
      %9006 = vmatpush1.msra.mxu0 0.0
      %9007 = vmatprep.subr.mxu0 0.0
      %9008 = vmatpush1.msra.mxu0 0.0
      %9009 = vmatprep.subr.mxu0 0.0
      %9010 = vmatpush1.msra.mxu0 0.0
      %9011 = vmatprep.subr.mxu0 0.0
      %9012 = vmatpush1.msra.mxu0 0.0
      %9013 = vmatprep.subr.mxu0 0.0
      %9014 = vmatpush1.msra.mxu0 0.0
      %9015 = vmatprep.subr.mxu0 0.0
      %9016 = vmatpush1.msra.mxu0 0.0
      %9017 = vmatprep.subr.mxu0 0.0
      %9018 = vmatpush1.msra.mxu0 0.0
      %9019 = vmatprep.subr.mxu0 0.0
      %9020 = vmatpush1.msra.mxu0 0.0
      %9021 = vmatprep.subr.mxu0 0.0
      %9022 = vmatpush1.msra.mxu0 0.0
      %9023 = vmatprep.subr.mxu0 0.0
      %9024 = vmatpush1.msra.mxu0 0.0
      %9025 = vmatprep.subr.mxu0 0.0
      %9026 = vmatpush1.msra.mxu0 0.0
      %9027 = vmatprep.subr.mxu0 0.0
      %9028 = vmatpush1.msra.mxu0 0.0
      %9029 = vmatprep.subr.mxu0 0.0
      %9030 = vmatpush1.msra.mxu0 0.0
      %9031 = vmatprep.subr.mxu0 0.0
      %9032 = vmatpush1.msra.mxu0 0.0
      %9033 = vmatprep.subr.mxu0 0.0
      %9034 = vmatpush1.msra.mxu0 0.0
      %9035 = vmatprep.subr.mxu0 0.0
      %9036 = vmatpush1.msra.mxu0 0.0
      %9037 = vmatprep.subr.mxu0 0.0
      %9038 = vmatpush1.msra.mxu0 0.0
      %9039 = vmatprep.subr.mxu0 0.0
      %9040 = vmatpush1.msra.mxu0 0.0
      %9041 = vmatprep.mubr.f32.mxu0 0.0
      %9042 = vmatmul.mubr.f32.gmra.mrb[0].mxu0 %v1569
      %v9043 = vpop.f32.mrb[0].mxu0
      %v9044 = vadd.f32 %v8819, %v9043
      %v9045 = vpop.f32.mrb[0].mxu0
      %9046 = vmatprep.mubr.f32.mxu0 0.0
      %9047 = vmatmul.mubr.f32.gmra.mrb[0].mxu0 %v1572
      %v9048 = vpop.f32.mrb[0].mxu0
      %v9049 = vadd.f32 %v8824, %v9048
      %v9050 = vpop.f32.mrb[0].mxu0
      %9051 = vmatprep.mubr.f32.mxu0 0.0
      %9052 = vmatmul.mubr.f32.gmra.mrb[0].mxu0 %v1575
      %v9053 = vpop.f32.mrb[0].mxu0
      %v9054 = vadd.f32 %v8829, %v9053
      %v9055 = vpop.f32.mrb[0].mxu0
      %9056 = vmatprep.mubr.f32.mxu0 0.0
      %9057 = vmatmul.mubr.f32.gmra.mrb[0].mxu0 %v1578
      %v9058 = vpop.f32.mrb[0].mxu0
      %v9059 = vadd.f32 %v8834, %v9058
      %v9060 = vpop.f32.mrb[0].mxu0
      %9061 = vmatprep.mubr.f32.mxu0 0.0
      %9062 = vmatmul.mubr.f32.gmra.mrb[0].mxu0 %v1581
      %v9063 = vpop.f32.mrb[0].mxu0
      %v9064 = vadd.f32 %v8839, %v9063
      %v9065 = vpop.f32.mrb[0].mxu0
      %9066 = vmatprep.mubr.f32.mxu0 0.0
      %9067 = vmatmul.mubr.f32.gmra.mrb[0].mxu0 %v1584
      %v9068 = vpop.f32.mrb[0].mxu0
      %v9069 = vadd.f32 %v8844, %v9068
      %v9070 = vpop.f32.mrb[0].mxu0
      %9071 = vmatprep.mubr.f32.mxu0 0.0
      %9072 = vmatmul.mubr.f32.gmra.mrb[0].mxu0 %v1587
      %v9073 = vpop.f32.mrb[0].mxu0
      %v9074 = vadd.f32 %v8849, %v9073
      %v9075 = vpop.f32.mrb[0].mxu0
      %9076 = vmatprep.mubr.f32.mxu0 0.0
      %9077 = vmatmul.mubr.f32.gmra.mrb[0].mxu0 %v1590
      %v9078 = vpop.f32.mrb[0].mxu0
      %v9079 = vadd.f32 %v8854, %v9078
      %v9080 = vpop.f32.mrb[0].mxu0
      %9081 = vmatprep.mubr.f32.mxu0 0.0
      %9082 = vmatmul.mubr.f32.gmra.mrb[0].mxu0 %v1593
      %v9083 = vpop.f32.mrb[0].mxu0
      %v9084 = vadd.f32 %v8859, %v9083
      %v9085 = vpop.f32.mrb[0].mxu0
      %9086 = vmatprep.mubr.f32.mxu0 0.0
      %9087 = vmatmul.mubr.f32.gmra.mrb[0].mxu0 %v1596
      %v9088 = vpop.f32.mrb[0].mxu0
      %v9089 = vadd.f32 %v8864, %v9088
      %v9090 = vpop.f32.mrb[0].mxu0
      %9091 = vmatprep.mubr.f32.mxu0 0.0
      %9092 = vmatmul.mubr.f32.gmra.mrb[0].mxu0 %v1599
      %v9093 = vpop.f32.mrb[0].mxu0
      %v9094 = vadd.f32 %v8869, %v9093
      %v9095 = vpop.f32.mrb[0].mxu0
      %9096 = vmatprep.mubr.f32.mxu0 0.0
      %9097 = vmatmul.mubr.f32.gmra.mrb[0].mxu0 %v1602
      %v9098 = vpop.f32.mrb[0].mxu0
      %v9099 = vadd.f32 %v8874, %v9098
      %v9100 = vpop.f32.mrb[0].mxu0
      %9101 = vmatprep.mubr.f32.mxu0 0.0
      %9102 = vmatmul.mubr.f32.gmra.mrb[0].mxu0 %v1605
      %v9103 = vpop.f32.mrb[0].mxu0
      %v9104 = vadd.f32 %v8879, %v9103
      %v9105 = vpop.f32.mrb[0].mxu0
      %9106 = vmatprep.mubr.f32.mxu0 0.0
      %9107 = vmatmul.mubr.f32.gmra.mrb[0].mxu0 %v1608
      %v9108 = vpop.f32.mrb[0].mxu0
      %v9109 = vadd.f32 %v8884, %v9108
      %v9110 = vpop.f32.mrb[0].mxu0
      %9111 = vmatprep.mubr.f32.mxu0 0.0
      %9112 = vmatmul.mubr.f32.gmra.mrb[0].mxu0 %v1611
      %v9113 = vpop.f32.mrb[0].mxu0
      %v9114 = vadd.f32 %v8889, %v9113
      %v9115 = vpop.f32.mrb[0].mxu0
      %9116 = vmatprep.mubr.f32.mxu0 0.0
      %9117 = vmatmul.mubr.f32.gmra.mrb[0].mxu0 %v1614
      %v9118 = vpop.f32.mrb[0].mxu0
      %v9119 = vadd.f32 %v8894, %v9118
      %v9120 = vpop.f32.mrb[0].mxu0
      %9121 = vmatprep.mubr.f32.mxu0 0.0
      %9122 = vmatmul.mubr.f32.gmra.mrb[0].mxu0 %v1617
      %v9123 = vpop.f32.mrb[0].mxu0
      %v9124 = vadd.f32 %v8899, %v9123
      %v9125 = vpop.f32.mrb[0].mxu0
      %9126 = vmatprep.mubr.f32.mxu0 0.0
      %9127 = vmatmul.mubr.f32.gmra.mrb[0].mxu0 %v1620
      %v9128 = vpop.f32.mrb[0].mxu0
      %v9129 = vadd.f32 %v8904, %v9128
      %v9130 = vpop.f32.mrb[0].mxu0
      %9131 = vmatprep.mubr.f32.mxu0 0.0
      %9132 = vmatmul.mubr.f32.gmra.mrb[0].mxu0 %v1623
      %v9133 = vpop.f32.mrb[0].mxu0
      %v9134 = vadd.f32 %v8909, %v9133
      %v9135 = vpop.f32.mrb[0].mxu0
      %9136 = vmatprep.mubr.f32.mxu0 0.0
      %9137 = vmatmul.mubr.f32.gmra.mrb[0].mxu0 %v1626
      %v9138 = vpop.f32.mrb[0].mxu0
      %v9139 = vadd.f32 %v8914, %v9138
      %v9140 = vpop.f32.mrb[0].mxu0
      %9141 = vmatprep.mubr.f32.mxu0 0.0
      %9142 = vmatmul.mubr.f32.gmra.mrb[0].mxu0 %v1629
      %v9143 = vpop.f32.mrb[0].mxu0
      %v9144 = vadd.f32 %v8919, %v9143
      %v9145 = vpop.f32.mrb[0].mxu0
      %9146 = vmatprep.mubr.f32.mxu0 0.0
      %9147 = vmatmul.mubr.f32.gmra.mrb[0].mxu0 %v1632
      %v9148 = vpop.f32.mrb[0].mxu0
      %v9149 = vadd.f32 %v8924, %v9148
      %v9150 = vpop.f32.mrb[0].mxu0
      %9151 = vmatprep.mubr.f32.mxu0 0.0
      %9152 = vmatmul.mubr.f32.gmra.mrb[0].mxu0 %v1635
      %v9153 = vpop.f32.mrb[0].mxu0
      %v9154 = vadd.f32 %v8929, %v9153
      %v9155 = vpop.f32.mrb[0].mxu0
      %9156 = vmatprep.mubr.f32.mxu0 0.0
      %9157 = vmatmul.mubr.f32.gmra.mrb[0].mxu0 %v1638
      %v9158 = vpop.f32.mrb[0].mxu0
      %v9159 = vadd.f32 %v8934, %v9158
      %v9160 = vpop.f32.mrb[0].mxu0
      %9161 = vmatprep.mubr.f32.mxu0 0.0
      %9162 = vmatmul.mubr.f32.gmra.mrb[0].mxu0 %v1641
      %v9163 = vpop.f32.mrb[0].mxu0
      %v9164 = vadd.f32 %v8939, %v9163
      %v9165 = vpop.f32.mrb[0].mxu0
      %9166 = vmatprep.mubr.f32.mxu0 0.0
      %9167 = vmatmul.mubr.f32.gmra.mrb[0].mxu0 %v1644
      %v9168 = vpop.f32.mrb[0].mxu0
      %v9169 = vadd.f32 %v8944, %v9168
      %v9170 = vpop.f32.mrb[0].mxu0
      %9171 = vmatprep.mubr.f32.mxu0 0.0
      %9172 = vmatmul.mubr.f32.gmra.mrb[0].mxu0 %v1647
      %v9173 = vpop.f32.mrb[0].mxu0
      %v9174 = vadd.f32 %v8949, %v9173
      %v9175 = vpop.f32.mrb[0].mxu0
      %9176 = vmatprep.mubr.f32.mxu0 0.0
      %9177 = vmatmul.mubr.f32.gmra.mrb[0].mxu0 %v1650
      %v9178 = vpop.f32.mrb[0].mxu0
      %v9179 = vadd.f32 %v8954, %v9178
      %v9180 = vpop.f32.mrb[0].mxu0
      %9181 = vmatprep.mubr.f32.mxu0 0.0
      %9182 = vmatmul.mubr.f32.gmra.mrb[0].mxu0 %v1653
      %v9183 = vpop.f32.mrb[0].mxu0
      %v9184 = vadd.f32 %v8959, %v9183
      %v9185 = vpop.f32.mrb[0].mxu0
      %9186 = vmatprep.mubr.f32.mxu0 0.0
      %9187 = vmatmul.mubr.f32.gmra.mrb[0].mxu0 %v1656
      %v9188 = vpop.f32.mrb[0].mxu0
      %v9189 = vadd.f32 %v8964, %v9188
      %v9190 = vpop.f32.mrb[0].mxu0
      %9191 = vmatprep.mubr.f32.mxu0 0.0
      %9192 = vmatmul.mubr.f32.gmra.mrb[0].mxu0 %v1659
      %v9193 = vpop.f32.mrb[0].mxu0
      %v9194 = vadd.f32 %v8969, %v9193
      %v9195 = vpop.f32.mrb[0].mxu0
      %9196 = vmatprep.mubr.f32.mxu0 0.0
      %9197 = vmatmul.mubr.f32.gmra.mrb[0].mxu0 %v1662
      %v9198 = vpop.f32.mrb[0].mxu0
      %v9199 = vadd.f32 %v8974, %v9198
      %v9200 = vpop.f32.mrb[0].mxu0
      %9201 = vdwg.mxu0
      %s9202 = scalar_lea.vmem %s5, 64
      %v9203 = vld [vmem:[%s9202] sm:$0xff]
      %v9205 = vsel %vm357, %v9044, 0
      %v9208 = vsel %vm357, %v9049, 0
      %v9211 = vsel %vm357, %v9054, 0
      %v9214 = vsel %vm357, %v9059, 0
      %v9217 = vsel %vm357, %v9064, 0
      %v9220 = vsel %vm357, %v9069, 0
      %v9223 = vsel %vm357, %v9074, 0
      %v9226 = vsel %vm357, %v9079, 0
      %v9229 = vsel %vm357, %v9084, 0
      %v9232 = vsel %vm357, %v9089, 0
      %v9235 = vsel %vm357, %v9094, 0
      %v9238 = vsel %vm357, %v9099, 0
      %v9241 = vsel %vm357, %v9104, 0
      %v9244 = vsel %vm357, %v9109, 0
      %v9247 = vsel %vm357, %v9114, 0
      %v9250 = vsel %vm357, %v9119, 0
      %v9253 = vsel %vm357, %v9124, 0
      %v9256 = vsel %vm357, %v9129, 0
      %v9259 = vsel %vm357, %v9134, 0
      %v9262 = vsel %vm357, %v9139, 0
      %v9265 = vsel %vm357, %v9144, 0
      %v9268 = vsel %vm357, %v9149, 0
      %v9271 = vsel %vm357, %v9154, 0
      %v9274 = vsel %vm357, %v9159, 0
      %v9277 = vsel %vm357, %v9164, 0
      %v9280 = vsel %vm357, %v9169, 0
      %v9283 = vsel %vm357, %v9174, 0
      %v9286 = vsel %vm357, %v9179, 0
      %v9289 = vsel %vm357, %v9184, 0
      %v9292 = vsel %vm357, %v9189, 0
      %v9295 = vsel %vm357, %v9194, 0
      %v9298 = vsel %vm357, %v9199, 0
      %9300 = vmatprep.subr.mxu0 0.0
      %9301 = vmatpush1.msra.mxu0 %v9203
      %9302 = vmatprep.subr.mxu0 0.0
      %9303 = vmatpush1.msra.mxu0 0.0
      %9304 = vmatprep.subr.mxu0 0.0
      %9305 = vmatpush1.msra.mxu0 0.0
      %9306 = vmatprep.subr.mxu0 0.0
      %9307 = vmatpush1.msra.mxu0 0.0
      %9308 = vmatprep.subr.mxu0 0.0
      %9309 = vmatpush1.msra.mxu0 0.0
      %9310 = vmatprep.subr.mxu0 0.0
      %9311 = vmatpush1.msra.mxu0 0.0
      %9312 = vmatprep.subr.mxu0 0.0
      %9313 = vmatpush1.msra.mxu0 0.0
      %9314 = vmatprep.subr.mxu0 0.0
      %9315 = vmatpush1.msra.mxu0 0.0
      %9316 = vmatprep.subr.mxu0 0.0
      %9317 = vmatpush1.msra.mxu0 0.0
      %9318 = vmatprep.subr.mxu0 0.0
      %9319 = vmatpush1.msra.mxu0 0.0
      %9320 = vmatprep.subr.mxu0 0.0
      %9321 = vmatpush1.msra.mxu0 0.0
      %9322 = vmatprep.subr.mxu0 0.0
      %9323 = vmatpush1.msra.mxu0 0.0
      %9324 = vmatprep.subr.mxu0 0.0
      %9325 = vmatpush1.msra.mxu0 0.0
      %9326 = vmatprep.subr.mxu0 0.0
      %9327 = vmatpush1.msra.mxu0 0.0
      %9328 = vmatprep.subr.mxu0 0.0
      %9329 = vmatpush1.msra.mxu0 0.0
      %9330 = vmatprep.subr.mxu0 0.0
      %9331 = vmatpush1.msra.mxu0 0.0
      %9332 = vmatprep.subr.mxu0 0.0
      %9333 = vmatpush1.msra.mxu0 0.0
      %9334 = vmatprep.subr.mxu0 0.0
      %9335 = vmatpush1.msra.mxu0 0.0
      %9336 = vmatprep.subr.mxu0 0.0
      %9337 = vmatpush1.msra.mxu0 0.0
      %9338 = vmatprep.subr.mxu0 0.0
      %9339 = vmatpush1.msra.mxu0 0.0
      %9340 = vmatprep.subr.mxu0 0.0
      %9341 = vmatpush1.msra.mxu0 0.0
      %9342 = vmatprep.subr.mxu0 0.0
      %9343 = vmatpush1.msra.mxu0 0.0
      %9344 = vmatprep.subr.mxu0 0.0
      %9345 = vmatpush1.msra.mxu0 0.0
      %9346 = vmatprep.subr.mxu0 0.0
      %9347 = vmatpush1.msra.mxu0 0.0
      %9348 = vmatprep.subr.mxu0 0.0
      %9349 = vmatpush1.msra.mxu0 0.0
      %9350 = vmatprep.subr.mxu0 0.0
      %9351 = vmatpush1.msra.mxu0 0.0
      %9352 = vmatprep.subr.mxu0 0.0
      %9353 = vmatpush1.msra.mxu0 0.0
      %9354 = vmatprep.subr.mxu0 0.0
      %9355 = vmatpush1.msra.mxu0 0.0
      %9356 = vmatprep.subr.mxu0 0.0
      %9357 = vmatpush1.msra.mxu0 0.0
      %9358 = vmatprep.subr.mxu0 0.0
      %9359 = vmatpush1.msra.mxu0 0.0
      %9360 = vmatprep.subr.mxu0 0.0
      %9361 = vmatpush1.msra.mxu0 0.0
      %9362 = vmatprep.subr.mxu0 0.0
      %9363 = vmatpush1.msra.mxu0 0.0
      %9364 = vmatprep.mubr.f32.mxu0 0.0
      %9365 = vmatmul.mubr.f32.gmra.mrb[0].mxu0 %v9205
      %v9366 = vpop.f32.mrb[0].mxu0
      %v9367 = vadd.f32 0.0, %v9366
      %v9368 = vpop.f32.mrb[0].mxu0
      %9369 = vmatprep.mubr.f32.mxu0 0.0
      %9370 = vmatmul.mubr.f32.gmra.mrb[0].mxu0 %v9208
      %v9371 = vpop.f32.mrb[0].mxu0
      %v9372 = vadd.f32 0.0, %v9371
      %v9373 = vpop.f32.mrb[0].mxu0
      %9374 = vmatprep.mubr.f32.mxu0 0.0
      %9375 = vmatmul.mubr.f32.gmra.mrb[0].mxu0 %v9211
      %v9376 = vpop.f32.mrb[0].mxu0
      %v9377 = vadd.f32 0.0, %v9376
      %v9378 = vpop.f32.mrb[0].mxu0
      %9379 = vmatprep.mubr.f32.mxu0 0.0
      %9380 = vmatmul.mubr.f32.gmra.mrb[0].mxu0 %v9214
      %v9381 = vpop.f32.mrb[0].mxu0
      %v9382 = vadd.f32 0.0, %v9381
      %v9383 = vpop.f32.mrb[0].mxu0
      %9384 = vmatprep.mubr.f32.mxu0 0.0
      %9385 = vmatmul.mubr.f32.gmra.mrb[0].mxu0 %v9217
      %v9386 = vpop.f32.mrb[0].mxu0
      %v9387 = vadd.f32 0.0, %v9386
      %v9388 = vpop.f32.mrb[0].mxu0
      %9389 = vmatprep.mubr.f32.mxu0 0.0
      %9390 = vmatmul.mubr.f32.gmra.mrb[0].mxu0 %v9220
      %v9391 = vpop.f32.mrb[0].mxu0
      %v9392 = vadd.f32 0.0, %v9391
      %v9393 = vpop.f32.mrb[0].mxu0
      %9394 = vmatprep.mubr.f32.mxu0 0.0
      %9395 = vmatmul.mubr.f32.gmra.mrb[0].mxu0 %v9223
      %v9396 = vpop.f32.mrb[0].mxu0
      %v9397 = vadd.f32 0.0, %v9396
      %v9398 = vpop.f32.mrb[0].mxu0
      %9399 = vmatprep.mubr.f32.mxu0 0.0
      %9400 = vmatmul.mubr.f32.gmra.mrb[0].mxu0 %v9226
      %v9401 = vpop.f32.mrb[0].mxu0
      %v9402 = vadd.f32 0.0, %v9401
      %v9403 = vpop.f32.mrb[0].mxu0
      %9404 = vmatprep.mubr.f32.mxu0 0.0
      %9405 = vmatmul.mubr.f32.gmra.mrb[0].mxu0 %v9229
      %v9406 = vpop.f32.mrb[0].mxu0
      %v9407 = vadd.f32 0.0, %v9406
      %v9408 = vpop.f32.mrb[0].mxu0
      %9409 = vmatprep.mubr.f32.mxu0 0.0
      %9410 = vmatmul.mubr.f32.gmra.mrb[0].mxu0 %v9232
      %v9411 = vpop.f32.mrb[0].mxu0
      %v9412 = vadd.f32 0.0, %v9411
      %v9413 = vpop.f32.mrb[0].mxu0
      %9414 = vmatprep.mubr.f32.mxu0 0.0
      %9415 = vmatmul.mubr.f32.gmra.mrb[0].mxu0 %v9235
      %v9416 = vpop.f32.mrb[0].mxu0
      %v9417 = vadd.f32 0.0, %v9416
      %v9418 = vpop.f32.mrb[0].mxu0
      %9419 = vmatprep.mubr.f32.mxu0 0.0
      %9420 = vmatmul.mubr.f32.gmra.mrb[0].mxu0 %v9238
      %v9421 = vpop.f32.mrb[0].mxu0
      %v9422 = vadd.f32 0.0, %v9421
      %v9423 = vpop.f32.mrb[0].mxu0
      %9424 = vmatprep.mubr.f32.mxu0 0.0
      %9425 = vmatmul.mubr.f32.gmra.mrb[0].mxu0 %v9241
      %v9426 = vpop.f32.mrb[0].mxu0
      %v9427 = vadd.f32 0.0, %v9426
      %v9428 = vpop.f32.mrb[0].mxu0
      %9429 = vmatprep.mubr.f32.mxu0 0.0
      %9430 = vmatmul.mubr.f32.gmra.mrb[0].mxu0 %v9244
      %v9431 = vpop.f32.mrb[0].mxu0
      %v9432 = vadd.f32 0.0, %v9431
      %v9433 = vpop.f32.mrb[0].mxu0
      %9434 = vmatprep.mubr.f32.mxu0 0.0
      %9435 = vmatmul.mubr.f32.gmra.mrb[0].mxu0 %v9247
      %v9436 = vpop.f32.mrb[0].mxu0
      %v9437 = vadd.f32 0.0, %v9436
      %v9438 = vpop.f32.mrb[0].mxu0
      %9439 = vmatprep.mubr.f32.mxu0 0.0
      %9440 = vmatmul.mubr.f32.gmra.mrb[0].mxu0 %v9250
      %v9441 = vpop.f32.mrb[0].mxu0
      %v9442 = vadd.f32 0.0, %v9441
      %v9443 = vpop.f32.mrb[0].mxu0
      %9444 = vmatprep.mubr.f32.mxu0 0.0
      %9445 = vmatmul.mubr.f32.gmra.mrb[0].mxu0 %v9253
      %v9446 = vpop.f32.mrb[0].mxu0
      %v9447 = vadd.f32 0.0, %v9446
      %v9448 = vpop.f32.mrb[0].mxu0
      %9449 = vmatprep.mubr.f32.mxu0 0.0
      %9450 = vmatmul.mubr.f32.gmra.mrb[0].mxu0 %v9256
      %v9451 = vpop.f32.mrb[0].mxu0
      %v9452 = vadd.f32 0.0, %v9451
      %v9453 = vpop.f32.mrb[0].mxu0
      %9454 = vmatprep.mubr.f32.mxu0 0.0
      %9455 = vmatmul.mubr.f32.gmra.mrb[0].mxu0 %v9259
      %v9456 = vpop.f32.mrb[0].mxu0
      %v9457 = vadd.f32 0.0, %v9456
      %v9458 = vpop.f32.mrb[0].mxu0
      %9459 = vmatprep.mubr.f32.mxu0 0.0
      %9460 = vmatmul.mubr.f32.gmra.mrb[0].mxu0 %v9262
      %v9461 = vpop.f32.mrb[0].mxu0
      %v9462 = vadd.f32 0.0, %v9461
      %v9463 = vpop.f32.mrb[0].mxu0
      %9464 = vmatprep.mubr.f32.mxu0 0.0
      %9465 = vmatmul.mubr.f32.gmra.mrb[0].mxu0 %v9265
      %v9466 = vpop.f32.mrb[0].mxu0
      %v9467 = vadd.f32 0.0, %v9466
      %v9468 = vpop.f32.mrb[0].mxu0
      %9469 = vmatprep.mubr.f32.mxu0 0.0
      %9470 = vmatmul.mubr.f32.gmra.mrb[0].mxu0 %v9268
      %v9471 = vpop.f32.mrb[0].mxu0
      %v9472 = vadd.f32 0.0, %v9471
      %v9473 = vpop.f32.mrb[0].mxu0
      %9474 = vmatprep.mubr.f32.mxu0 0.0
      %9475 = vmatmul.mubr.f32.gmra.mrb[0].mxu0 %v9271
      %v9476 = vpop.f32.mrb[0].mxu0
      %v9477 = vadd.f32 0.0, %v9476
      %v9478 = vpop.f32.mrb[0].mxu0
      %9479 = vmatprep.mubr.f32.mxu0 0.0
      %9480 = vmatmul.mubr.f32.gmra.mrb[0].mxu0 %v9274
      %v9481 = vpop.f32.mrb[0].mxu0
      %v9482 = vadd.f32 0.0, %v9481
      %v9483 = vpop.f32.mrb[0].mxu0
      %9484 = vmatprep.mubr.f32.mxu0 0.0
      %9485 = vmatmul.mubr.f32.gmra.mrb[0].mxu0 %v9277
      %v9486 = vpop.f32.mrb[0].mxu0
      %v9487 = vadd.f32 0.0, %v9486
      %v9488 = vpop.f32.mrb[0].mxu0
      %9489 = vmatprep.mubr.f32.mxu0 0.0
      %9490 = vmatmul.mubr.f32.gmra.mrb[0].mxu0 %v9280
      %v9491 = vpop.f32.mrb[0].mxu0
      %v9492 = vadd.f32 0.0, %v9491
      %v9493 = vpop.f32.mrb[0].mxu0
      %9494 = vmatprep.mubr.f32.mxu0 0.0
      %9495 = vmatmul.mubr.f32.gmra.mrb[0].mxu0 %v9283
      %v9496 = vpop.f32.mrb[0].mxu0
      %v9497 = vadd.f32 0.0, %v9496
      %v9498 = vpop.f32.mrb[0].mxu0
      %9499 = vmatprep.mubr.f32.mxu0 0.0
      %9500 = vmatmul.mubr.f32.gmra.mrb[0].mxu0 %v9286
      %v9501 = vpop.f32.mrb[0].mxu0
      %v9502 = vadd.f32 0.0, %v9501
      %v9503 = vpop.f32.mrb[0].mxu0
      %9504 = vmatprep.mubr.f32.mxu0 0.0
      %9505 = vmatmul.mubr.f32.gmra.mrb[0].mxu0 %v9289
      %v9506 = vpop.f32.mrb[0].mxu0
      %v9507 = vadd.f32 0.0, %v9506
      %v9508 = vpop.f32.mrb[0].mxu0
      %9509 = vmatprep.mubr.f32.mxu0 0.0
      %9510 = vmatmul.mubr.f32.gmra.mrb[0].mxu0 %v9292
      %v9511 = vpop.f32.mrb[0].mxu0
      %v9512 = vadd.f32 0.0, %v9511
      %v9513 = vpop.f32.mrb[0].mxu0
      %9514 = vmatprep.mubr.f32.mxu0 0.0
      %9515 = vmatmul.mubr.f32.gmra.mrb[0].mxu0 %v9295
      %v9516 = vpop.f32.mrb[0].mxu0
      %v9517 = vadd.f32 0.0, %v9516
      %v9518 = vpop.f32.mrb[0].mxu0
      %9519 = vmatprep.mubr.f32.mxu0 0.0
      %9520 = vmatmul.mubr.f32.gmra.mrb[0].mxu0 %v9298
      %v9521 = vpop.f32.mrb[0].mxu0
      %v9522 = vadd.f32 0.0, %v9521
      %v9523 = vpop.f32.mrb[0].mxu0
      %9524 = vdwg.mxu0
      %v9525 = vadd.f32 %v8610, %v9367
      %v9526 = vadd.f32 %v8611, %v9372
      %v9527 = vadd.f32 %v8612, %v9377
      %v9528 = vadd.f32 %v8613, %v9382
      %v9529 = vadd.f32 %v8614, %v9387
      %v9530 = vadd.f32 %v8615, %v9392
      %v9531 = vadd.f32 %v8616, %v9397
      %v9532 = vadd.f32 %v8617, %v9402
      %v9533 = vadd.f32 %v8618, %v9407
      %v9534 = vadd.f32 %v8619, %v9412
      %v9535 = vadd.f32 %v8620, %v9417
      %v9536 = vadd.f32 %v8621, %v9422
      %v9537 = vadd.f32 %v8622, %v9427
      %v9538 = vadd.f32 %v8623, %v9432
      %v9539 = vadd.f32 %v8624, %v9437
      %v9540 = vadd.f32 %v8625, %v9442
      %v9541 = vadd.f32 %v8626, %v9447
      %v9542 = vadd.f32 %v8627, %v9452
      %v9543 = vadd.f32 %v8628, %v9457
      %v9544 = vadd.f32 %v8629, %v9462
      %v9545 = vadd.f32 %v8630, %v9467
      %v9546 = vadd.f32 %v8631, %v9472
      %v9547 = vadd.f32 %v8632, %v9477
      %v9548 = vadd.f32 %v8633, %v9482
      %v9549 = vadd.f32 %v8634, %v9487
      %v9550 = vadd.f32 %v8635, %v9492
      %v9551 = vadd.f32 %v8636, %v9497
      %v9552 = vadd.f32 %v8637, %v9502
      %v9553 = vadd.f32 %v8638, %v9507
      %v9554 = vadd.f32 %v8639, %v9512
      %v9555 = vadd.f32 %v8640, %v9517
      %v9556 = vadd.f32 %v8641, %v9522
      %v9557 = vld [vmem:[%s6] sm:$0x1]
      %v9559 = vlaneseq
      %v9560 = vshrl.u32 %v9559, 7
      %v9561 = vsub.s32 0, %v9560
      %v9562 = vrot.slane %v9557, %v9561
      %v9564 = vadd.f32 %v9525, %v9562
      %v9565 = vadd.f32 %v9526, %v9562
      %v9566 = vadd.f32 %v9527, %v9562
      %v9567 = vadd.f32 %v9528, %v9562
      %v9568 = vadd.f32 %v9529, %v9562
      %v9569 = vadd.f32 %v9530, %v9562
      %v9570 = vadd.f32 %v9531, %v9562
      %v9571 = vadd.f32 %v9532, %v9562
      %v9572 = vadd.f32 %v9533, %v9562
      %v9573 = vadd.f32 %v9534, %v9562
      %v9574 = vadd.f32 %v9535, %v9562
      %v9575 = vadd.f32 %v9536, %v9562
      %v9576 = vadd.f32 %v9537, %v9562
      %v9577 = vadd.f32 %v9538, %v9562
      %v9578 = vadd.f32 %v9539, %v9562
      %v9579 = vadd.f32 %v9540, %v9562
      %v9580 = vadd.f32 %v9541, %v9562
      %v9581 = vadd.f32 %v9542, %v9562
      %v9582 = vadd.f32 %v9543, %v9562
      %v9583 = vadd.f32 %v9544, %v9562
      %v9584 = vadd.f32 %v9545, %v9562
      %v9585 = vadd.f32 %v9546, %v9562
      %v9586 = vadd.f32 %v9547, %v9562
      %v9587 = vadd.f32 %v9548, %v9562
      %v9588 = vadd.f32 %v9549, %v9562
      %v9589 = vadd.f32 %v9550, %v9562
      %v9590 = vadd.f32 %v9551, %v9562
      %v9591 = vadd.f32 %v9552, %v9562
      %v9592 = vadd.f32 %v9553, %v9562
      %v9593 = vadd.f32 %v9554, %v9562
      %v9594 = vadd.f32 %v9555, %v9562
      %v9595 = vadd.f32 %v9556, %v9562
      %v9596 = vmax.f32 %v9564, 0.0
      %v9597 = vmax.f32 %v9565, 0.0
      %v9598 = vmax.f32 %v9566, 0.0
      %v9599 = vmax.f32 %v9567, 0.0
      %v9600 = vmax.f32 %v9568, 0.0
      %v9601 = vmax.f32 %v9569, 0.0
      %v9602 = vmax.f32 %v9570, 0.0
      %v9603 = vmax.f32 %v9571, 0.0
      %v9604 = vmax.f32 %v9572, 0.0
      %v9605 = vmax.f32 %v9573, 0.0
      %v9606 = vmax.f32 %v9574, 0.0
      %v9607 = vmax.f32 %v9575, 0.0
      %v9608 = vmax.f32 %v9576, 0.0
      %v9609 = vmax.f32 %v9577, 0.0
      %v9610 = vmax.f32 %v9578, 0.0
      %v9611 = vmax.f32 %v9579, 0.0
      %v9612 = vmax.f32 %v9580, 0.0
      %v9613 = vmax.f32 %v9581, 0.0
      %v9614 = vmax.f32 %v9582, 0.0
      %v9615 = vmax.f32 %v9583, 0.0
      %v9616 = vmax.f32 %v9584, 0.0
      %v9617 = vmax.f32 %v9585, 0.0
      %v9618 = vmax.f32 %v9586, 0.0
      %v9619 = vmax.f32 %v9587, 0.0
      %v9620 = vmax.f32 %v9588, 0.0
      %v9621 = vmax.f32 %v9589, 0.0
      %v9622 = vmax.f32 %v9590, 0.0
      %v9623 = vmax.f32 %v9591, 0.0
      %v9624 = vmax.f32 %v9592, 0.0
      %v9625 = vmax.f32 %v9593, 0.0
      %v9626 = vmax.f32 %v9594, 0.0
      %v9627 = vmax.f32 %v9595, 0.0
      %v9628 = vmax.f32 %v9596, %v9604
      %v9629 = vmax.f32 %v9597, %v9605
      %v9630 = vmax.f32 %v9598, %v9606
      %v9631 = vmax.f32 %v9599, %v9607
      %v9632 = vmax.f32 %v9600, %v9608
      %v9633 = vmax.f32 %v9601, %v9609
      %v9634 = vmax.f32 %v9602, %v9610
      %v9635 = vmax.f32 %v9603, %v9611
      %v9636 = vmax.f32 %v9612, %v9620
      %v9637 = vmax.f32 %v9613, %v9621
      %v9638 = vmax.f32 %v9614, %v9622
      %v9639 = vmax.f32 %v9615, %v9623
      %v9640 = vmax.f32 %v9616, %v9624
      %v9641 = vmax.f32 %v9617, %v9625
      %v9642 = vmax.f32 %v9618, %v9626
      %v9643 = vmax.f32 %v9619, %v9627
      %v9644 = vmax.f32 %v9628, %v9636
      %v9645 = vmax.f32 %v9629, %v9637
      %v9646 = vmax.f32 %v9630, %v9638
      %v9647 = vmax.f32 %v9631, %v9639
      %v9648 = vmax.f32 %v9632, %v9640
      %v9649 = vmax.f32 %v9633, %v9641
      %v9650 = vmax.f32 %v9634, %v9642
      %v9651 = vmax.f32 %v9635, %v9643
      %vm9652 = vcmask 31744
      %9653 = vst.msk [vmem:[%s305] sm:$0xff] %vm9652, %v9644
      %9654 = vst.msk [vmem:[%s305 + $0x8] sm:$0xff] %vm9652, %v9645
      %9655 = vst.msk [vmem:[%s305 + $0x10] sm:$0xff] %vm9652, %v9646
      %9656 = vst.msk [vmem:[%s305 + $0x18] sm:$0xff] %vm9652, %v9647
      %9657 = vst.msk [vmem:[%s305 + $0x20] sm:$0xff] %vm9652, %v9648
      %9658 = vst.msk [vmem:[%s305 + $0x28] sm:$0xff] %vm9652, %v9649
      %9659 = vst.msk [vmem:[%s305 + $0x30] sm:$0xff] %vm9652, %v9650
      %9660 = vst.msk [vmem:[%s305 + $0x38] sm:$0xff] %vm9652, %v9651
      %p9661 = scmp.lt.s32.totalorder %s19, 1
      %s9662 = scalar_select %p9661, %s19, 1
      %s9663 = smul.addr %s9662, 8
      %s9664 = smul.addr %s9663, 8
      %s9665 = scalar_lea.vmem %s8, %s9664
      // Predicated region
      $region53: #{tpu_custom_call.1} parent=51 // pred_check
        %p9666 = pneg %p210
      $region54: #{tpu_custom_call.1} parent=51 // pred_check_branch
        %9668 = sbr.rel (%p9666) target = $region56
      $region55: #{tpu_custom_call.1} parent=51 // pred_region
        _
      $region56: #{tpu_custom_call.1} parent=51 // pred_fallthru
        _
    $region52: #{tpu_custom_call.1} parent=5 // pred_fallthru
      _
    %p9669 = scmp.le.s32.totalorder 2, %s14
    // Predicated region
    $region57: #{tpu_custom_call.1} parent=5 // pred_check
      %p9670 = pneg %p9669
    $region58: #{tpu_custom_call.1} parent=5 // pred_check_branch
      %9672 = sbr.rel (%p9670) target = $region60
    $region59: #{tpu_custom_call.1} parent=5 // pred_region
      %s9673 = ssub.s32 %s14, 2
      // Predicated region
      $region61: #{tpu_custom_call.1} parent=59 // pred_check
        %p9674 = pneg %p216
      $region62: #{tpu_custom_call.1} parent=59 // pred_check_branch
        %9676 = sbr.rel (%p9674) target = $region64
      $region63: #{tpu_custom_call.1} parent=59 // pred_region
        %p9677 = scmp.lt.s32.totalorder %s20, 1
        %s9678 = scalar_select %p9677, %s20, 1
        %s9679 = smul.addr %s9678, 8
        %s9680 = smul.addr %s9679, 8
        %s9681 = scalar_lea.vmem %s8, %s9680
      $region64: #{tpu_custom_call.1} parent=59 // pred_fallthru
        _
    $region60: #{tpu_custom_call.1} parent=5 // pred_fallthru
      _
  $region6: #{tpu_custom_call.1} parent=0 // loop_footer
    %s18 = sadd.s32 1, %s14
  $region7: #{tpu_custom_call.1} parent=0 // loop_footer_branch
    %13 = sbr.rel target = $region3
  $region8: #{tpu_custom_call.1} parent=0 // loop_exit
    _

</llo_original>
